<compile_context>
chip_gen: v5e
topology: v5e:2x2
jax: 0.10.0
libtpu: 0.0.40
codegen_flags: <defaults>
</compile_context>

<pallas_src>
import jax
import jax.numpy as jnp
from jax.experimental import pallas as pl
from jax.experimental.pallas import tpu as pltpu

F32 = jnp.float32
BF16 = jnp.bfloat16

# ----------------------------- config (small) -------------------------------
B = 2               # batch
IMG = 32            # input spatial size (square)
CIN = 3             # RGB
PATCH = 4           # ViT patch size
GRID = IMG // PATCH  # 8 -> 8x8 image-embedding grid
D = 32              # ViT embedding dim
C = 32              # prompt / decoder embedding dim
HEADS = 2
HD = D // HEADS
MLP = 64
NUM_CLASSES = 2
NUM_PTS = 3                              # user points fed to the prompt encoder
STAT_CNN = 8 + 16 + 32 + 32 + 32         # 120 pooled CNN stats
FUSE_IN = STAT_CNN + C                   # 152 fused pooled features
AUX_N = 4 * C + NUM_CLASSES              # 130 = pos | neg | box(2C) | cls
AUX_PAD = 256                            # aux row padded to a lane-dense width
OUT_ROWS = 8                             # output slab rows (0-3 mask, 4 aux)
OUT_LANES = 256

_CP = getattr(pltpu, "CompilerParams", None) or getattr(pltpu, "TPUCompilerParams")
_MOSAIC_PARALLEL = _CP(dimension_semantics=("parallel",))


# ----------------------------- host-side helpers -----------------------------
def _pack_slab(entries, lane, dtype, row_align=8):
    """Pack [(name, 2-D array)] into one (sum_rows, lane) slab.

    Each entry is zero-padded to `lane` lanes and a multiple of `row_align`
    sublanes, then stacked along sublanes.  Returns (slab, {name: (off, r, c)})
    so the kernel can slice with static offsets.
    """
    blocks, index, off = [], {}, 0
    for name, a in entries:
        a = jnp.asarray(a, dtype)
        r, c = a.shape
        rp = ((r + row_align - 1) // row_align) * row_align
        blk = jnp.zeros((rp, lane), dtype).at[:r, :c].set(a)
        blocks.append(blk)
        index[name] = (off, r, c)
        off += rp
    return jnp.concatenate(blocks, axis=0), index


def _pool_sel(h, w):
    """2x2 mean-pool selection matrix S (h*w, h*w/4): p = x_map @ S."""
    s = jnp.arange(h * w)
    d = jnp.arange((h // 2) * (w // 2))
    ys, xs = s // w, s % w
    yd, xd = d // (w // 2), d % (w // 2)
    m = (ys[:, None] // 2 == yd[None, :]) & (xs[:, None] // 2 == xd[None, :])
    return 0.25 * m.astype(F32)


def _upsample_sel():
    """Nearest 4x upsample (8x8 -> 32x32) emitted in (4, 256) output layout.

    out[r, l] = mask8[r*16 + (l//128)*8 + (l%32)//4]; out.reshape(32,32) is the
    row-major 32x32 mask.  out = L @ (mask8 * R).
    """
    t = jnp.arange(GRID * GRID)
    r = jnp.arange(4)
    lmat = (t[None, :] // 16 == r[:, None]).astype(F32)            # (4, 64)
    lane = jnp.arange(OUT_LANES)
    q = (lane // 128) * 8 + (lane % 32) // 4
    rmat = (t[:, None] % 16 == q[None, :]).astype(F32)             # (64, 256)
    return lmat, rmat


def _pe_encode(coords01, gauss):
    """Random Fourier positional encoding (SAM PositionEmbeddingRandom)."""
    c = 2.0 * coords01 - 1.0
    c = c @ gauss
    c = 2.0 * jnp.pi * c
    return jnp.concatenate([jnp.sin(c), jnp.cos(c)], axis=-1)


def _dense_pe(gauss, h, w):
    ys = (jnp.arange(h, dtype=F32) + 0.5) / h
    xs = (jnp.arange(w, dtype=F32) + 0.5) / w
    gx, gy = jnp.meshgrid(xs, ys, indexing="xy")
    grid = jnp.stack([gx, gy], axis=-1)                            # (h, w, 2)
    return _pe_encode(grid, gauss).reshape(h * w, C)               # (h*w, C)


# ----------------------------- parameters -------------------------------------
def init_model(key):
    ks = iter(jax.random.split(key, 64))

    def nrm(shape, scale=0.02):
        return scale * jax.random.normal(next(ks), shape, dtype=F32)

    def zrow(n):
        return jnp.zeros((1, n), F32)

    pixel_mean = jnp.array([123.675, 116.28, 103.53], F32)
    pixel_std = jnp.array([58.395, 57.12, 57.375], F32)

    # CNN stage 0 (channels-on-sublane) with pixel normalization folded in:
    # W @ ((x - m)/s) = (W/s) @ x + (-(W @ (m/s)))
    c0_raw = nrm((8, CIN))
    c0_w = c0_raw / pixel_std[None, :]
    c0_b = -(c0_raw @ (pixel_mean / pixel_std)).reshape(8, 1)

    # ViT patch embedding with the same fold (patch columns ordered (c, py, px)).
    pw_raw = nrm((PATCH * PATCH * CIN, D))
    std_cols = jnp.repeat(pixel_std, PATCH * PATCH)
    mean_cols = jnp.repeat(pixel_mean, PATCH * PATCH)
    patch_w = pw_raw / std_cols[:, None]
    patch_b = (-(mean_cols / std_cols) @ pw_raw).reshape(1, D)

    point_embeddings = nrm((4, C))
    pe_gauss = jax.random.normal(next(ks), (2, C // 2), dtype=F32)
    image_pe = _dense_pe(pe_gauss, GRID, GRID)        # baked in at init time

    # auto-prompt heads fused into one lane-dense matmul: [pos|neg|box|cls], padded
    head_w = jnp.concatenate(
        [nrm((64, C)), nrm((64, C)), nrm((64, 2 * C)), nrm((64, NUM_CLASSES))],
        axis=1)
    head_w = jnp.pad(head_w, ((0, 0), (0, AUX_PAD - AUX_N)))
    head_b = jnp.concatenate(
        [point_embeddings[1], point_embeddings[0], point_embeddings[2],
         point_embeddings[3], jnp.zeros((NUM_CLASSES,), F32)], axis=0)
    head_b = jnp.pad(head_b, (0, AUX_PAD - AUX_N)).reshape(1, AUX_PAD)

    # encoder LN params packed row-wise: [ln1_g, ln1_b, ln2_g, ln2_b,
    # neck_g, neck_b, full_g, full_b]   (D == C)
    enc_ln = jnp.stack([jnp.ones((C,), F32), jnp.zeros((C,), F32)] * 4)

    # head masks for the block-diagonal 2-head attention
    hmask_row = jnp.concatenate(
        [jnp.concatenate([jnp.ones((1, HD), F32), jnp.zeros((1, HD), F32)], axis=1),
         jnp.concatenate([jnp.zeros((1, HD), F32), jnp.ones((1, HD), F32)], axis=1)],
        axis=0)                                       # (2, C)
    hmask_col = hmask_row.T                           # (C, 2)

    slab32_entries = [
        ("c0_w", c0_w), ("c0_b", c0_b),
        ("c1_w", nrm((16, 8))), ("c1_b", jnp.zeros((16, 1), F32)),
        ("c2_w", nrm((32, 16))), ("c2_b", jnp.zeros((32, 1), F32)),
        ("c3_w", nrm((32, 32))), ("c3_b", jnp.zeros((32, 1), F32)),
        ("c4_w", nrm((32, 32))), ("c4_b", jnp.zeros((32, 1), F32)),
        ("feat_w", nrm((32, C))), ("feat_b", zrow(C)),
        ("patch_w", patch_w), ("patch_b", patch_b),
        ("pos_embed", nrm((GRID * GRID, D))),
        ("proj_w", nrm((D, D))), ("proj_b", zrow(D)),
        ("mlp2_w", nrm((MLP, D))), ("mlp2_b", zrow(D)),
        ("neck_w", nrm((D, C))), ("neck_b", zrow(C)),
        ("full_w", nrm((C, C))), ("full_b", zrow(C)),
        ("enc_ln", enc_ln),
        ("attn_w", nrm((4 * 4 * C, C))),              # [sa,t2i,i2t,final] x [q,k,v,o]
        ("attn_b", jnp.zeros((16, C), F32)),
        ("dec_ln_g", jnp.ones((5, C), F32)), ("dec_ln_b", jnp.zeros((5, C), F32)),
        ("dm2_w", nrm((MLP, C))), ("dm2_b", zrow(C)),
        ("up1_w", nrm((C, C // 2))), ("up1_b", zrow(C // 2)),
        ("up2_w", nrm((C // 2, C // 8))), ("up2_b", zrow(C // 8)),
        ("hy1_w", nrm((C, C))), ("hy1_b", zrow(C)),
        ("hy2_w", nrm((C, C // 8))), ("hy2_b", zrow(C // 8)),
        ("out_tokens", nrm((5, C))),                  # [iou_token ; 4 mask tokens]
        ("no_mask", nrm((1, C))),
        ("image_pe", image_pe),
        ("hmask_row", hmask_row), ("hmask_col", hmask_col),
    ]
    slab32, idx32 = _pack_slab(slab32_entries, 32, F32, row_align=8)

    slab256_entries = [
        ("qkv_w", nrm((D, 3 * D))), ("qkv_b", zrow(3 * D)),
        ("mlp1_w", nrm((D, MLP))), ("mlp1_b", zrow(MLP)),
        ("dm1_w", nrm((C, MLP))), ("dm1_b", zrow(MLP)),
        ("fuse_w", nrm((FUSE_IN, 64))), ("fuse_b", zrow(64)),
        ("head_w", head_w), ("head_b", head_b),
    ]
    slab256, idx256 = _pack_slab(slab256_entries, 256, F32, row_align=8)

    lmat, rmat = _upsample_sel()
    sel_entries = [
        ("pool0", _pool_sel(IMG, IMG)),               # (1024, 256)
        ("pool1", _pool_sel(IMG // 2, IMG // 2)),     # (256, 64)
        ("pool2", _pool_sel(IMG // 4, IMG // 4)),     # (64, 16)
        ("pool3", _pool_sel(IMG // 8, IMG // 8)),     # (16, 4)
        ("l_up", lmat), ("r_up", rmat),
        ("eye_stat", jnp.eye(STAT_CNN, dtype=F32)),   # column->row flip helper
    ]
    selbf, idxsel = _pack_slab(sel_entries, 256, BF16, row_align=16)

    params = {
        "slab32": slab32, "slab256": slab256, "selbf": selbf,
        "pe_gauss": pe_gauss,
        "point_embeddings": point_embeddings,
        "not_a_point_embed": nrm((1, C)),
    }
    meta = {
        "idx32": idx32, "idx256": idx256, "idxsel": idxsel,
        "slab32_shape": tuple(slab32.shape),
        "slab256_shape": tuple(slab256.shape),
        "selbf_shape": tuple(selbf.shape),
    }
    return params, meta


# ----------------------------- fused kernel + wrapper -------------------------
def make_forward(meta):
    idx32 = meta["idx32"]
    idx256 = meta["idx256"]
    idxsel = meta["idxsel"]

    def kernel(img_ref, patch_ref, s32_ref, s256_ref, sel_ref, out_ref):
        # -- packed-slab accessors (static offsets, plain VMEM loads) ---------
        def w32(name):
            off, r, c = idx32[name]
            return s32_ref[off:off + r, :c]

        def w256(name):
            off, r, c = idx256[name]
            return s256_ref[off:off + r, :c]

        def sel(name):
            off, r, c = idxsel[name]
            return sel_ref[off:off + r, :c]

        def mm(a, b):
            """MXU matmul: bf16 operands, f32 accumulation."""
            return jnp.dot(a.astype(BF16), b.astype(BF16),
                           preferred_element_type=F32)

        def ln(x, g, b, eps):
            mu = jnp.mean(x, axis=-1, keepdims=True)
            xc = x - mu
            var = jnp.mean(xc * xc, axis=-1, keepdims=True)
            return xc * jax.lax.rsqrt(var + eps) * g + b

        hm_row = w32("hmask_row")                     # (2, C)
        hm_col = w32("hmask_col")                     # (C, 2)

        def mha(q, k, v):
            """2-head attention via block-diagonal K/V (single score matmul)."""
            lk = k.shape[0]
            scale = 1.0 / float(HD) ** 0.5
            kt = k.T                                                     # (C, lk)
            k_bd = jnp.concatenate(
                [kt * hm_col[:, 0:1], kt * hm_col[:, 1:2]], axis=1)      # (C, 2lk)
            v_bd = jnp.concatenate(
                [v * hm_row[0:1], v * hm_row[1:2]], axis=0)              # (2lk, C)
            s = mm(q, k_bd) * scale                                      # (Lq, 2lk)

            def sm(x):
                x = x - jnp.max(x, axis=-1, keepdims=True)
                e = jnp.exp(x)
                return e * pl.reciprocal(jnp.sum(e, axis=-1, keepdims=True),
                                         approx=True)

            p = jnp.concatenate([sm(s[:, :lk]), sm(s[:, lk:])], axis=1)
            return mm(p, v_bd)                                           # (Lq, C)

        # -- CNN multi-scale branch (channels on sublane, spatial on lane) ----
        x_t = img_ref[0]                                                 # (3, 1024)
        h0 = jax.nn.gelu(mm(w32("c0_w"), x_t) + w32("c0_b"))             # (8, 1024)
        g256 = jnp.mean(h0, axis=1, keepdims=True)
        p0 = mm(h0, sel("pool0"))                                        # (8, 256)
        h1 = jax.nn.gelu(mm(w32("c1_w"), p0) + w32("c1_b"))              # (16, 256)
        g128 = jnp.mean(h1, axis=1, keepdims=True)
        p1 = mm(h1, sel("pool1"))                                        # (16, 64)
        h2 = jax.nn.gelu(mm(w32("c2_w"), p1) + w32("c2_b"))              # (32, 64)
        g64 = jnp.mean(h2, axis=1, keepdims=True)
        p2 = mm(h2, sel("pool2"))                                        # (32, 16)
        h3 = jax.nn.gelu(mm(w32("c3_w"), p2) + w32("c3_b"))              # (32, 16)
        g32 = jnp.mean(h3, axis=1, keepdims=True)
        p3 = mm(h3, sel("pool3"))                                        # (32, 4)
        h4 = jax.nn.gelu(mm(w32("c4_w"), p3) + w32("c4_b"))              # (32, 4)
        g16 = jnp.mean(h4, axis=1, keepdims=True)

        # -- ViT branch (one block stand-in) + neck / full projections --------
        encln = w32("enc_ln")                                            # (8, C)
        tok = mm(patch_ref[0], w32("patch_w")) + w32("patch_b") + w32("pos_embed")
        hl = ln(tok, encln[0:1], encln[1:2], 1e-5)
        qkv = mm(hl, w256("qkv_w")) + w256("qkv_b")                      # (64, 3C)
        att = mha(qkv[:, :C], qkv[:, C:2 * C], qkv[:, 2 * C:3 * C])
        tok = tok + mm(att, w32("proj_w")) + w32("proj_b")
        hl = ln(tok, encln[2:3], encln[3:4], 1e-5)
        hmlp = jax.nn.gelu(mm(hl, w256("mlp1_w")) + w256("mlp1_b"))
        tok = tok + mm(hmlp, w32("mlp2_w")) + w32("mlp2_b")
        imge = ln(mm(tok, w32("neck_w")) + w32("neck_b"),
                  encln[4:5], encln[5:6], 1e-6)
        imge_full = ln(mm(imge, w32("full_w")) + w32("full_b"),
                       encln[6:7], encln[7:8], 1e-6)
        gimg = jnp.mean(imge, axis=0, keepdims=True)                     # (1, C)

        # feature fusion with the x64 CNN map
        x64 = h2.T                                                       # (64, 32)
        feature = imge + mm(x64, w32("feat_w")) + w32("feat_b")          # (64, C)

        # -- auto prompt encoder (fused lane-dense head matmul) ---------------
        cnn_col = jnp.concatenate([g256, g128, g64, g32, g16], axis=0)   # (120, 1)
        eye = sel("eye_stat").astype(F32)                                # (120, 120)
        cnn_row = jnp.sum(eye * cnn_col, axis=0, keepdims=True)          # (1, 120)
        pooled = jnp.concatenate([cnn_row, gimg], axis=1)                # (1, 152)
        hfe = jax.nn.gelu(mm(pooled, w256("fuse_w")) + w256("fuse_b"))   # (1, 64)
        aux = mm(hfe, w256("head_w")) + w256("head_b")                   # (1, 256)
        pos = aux[:, 0:C]
        neg = aux[:, C:2 * C]
        box0 = aux[:, 2 * C:3 * C]
        box1 = aux[:, 3 * C:4 * C]

        tokens = jnp.concatenate(
            [w32("out_tokens"), pos, neg, box0, box1], axis=0)           # (9, C)
        src = feature + w32("no_mask") + imge_full                       # (64, C)
        pos_src = w32("image_pe")                                        # (64, C)

        attn_off = idx32["attn_w"][0]
        ab = w32("attn_b")                                               # (16, C)

        def amat(a, m):
            o = attn_off + (a * 4 + m) * C
            return s32_ref[o:o + C, :C]

        def proj_attn(a, xq, xk, xv):
            q = mm(xq, amat(a, 0)) + ab[a * 4 + 0:a * 4 + 1]
            k = mm(xk, amat(a, 1)) + ab[a * 4 + 1:a * 4 + 2]
            v = mm(xv, amat(a, 2)) + ab[a * 4 + 2:a * 4 + 3]
            return mm(mha(q, k, v), amat(a, 3)) + ab[a * 4 + 3:a * 4 + 4]

        dg = w32("dec_ln_g")
        db = w32("dec_ln_b")

        def dln(x, i):
            return ln(x, dg[i:i + 1], db[i:i + 1], 1e-5)

        # -- two-way transformer (one block + final token->image, SAM-style) --
        queries = tokens
        keys = src
        queries = dln(proj_attn(0, queries, queries, queries), 0)        # self-attn
        q = queries + tokens
        kk = keys + pos_src
        queries = dln(queries + proj_attn(1, q, kk, keys), 1)            # token->image
        hmlp = jnp.maximum(mm(queries, w256("dm1_w")) + w256("dm1_b"), 0.0)
        hmlp = mm(hmlp, w32("dm2_w")) + w32("dm2_b")
        queries = dln(queries + hmlp, 2)
        q = queries + tokens
        kk = keys + pos_src
        keys = dln(keys + proj_attn(2, kk, q, queries), 3)               # image->token
        q = queries + tokens
        kk = keys + pos_src
        queries = dln(queries + proj_attn(3, q, kk, keys), 4)            # final

        # -- mask head ---------------------------------------------------------
        # TODO(synk): ConvTranspose2d upscaling approximated by 1x1 conv +
        # nearest 4x upsample (selection matmul), not a true transposed conv.
        e = jax.nn.gelu(mm(keys, w32("up1_w")) + w32("up1_b"))           # (64, 16)
        e = mm(e, w32("up2_w")) + w32("up2_b")                           # (64, 4)
        mtok = queries[1:2, :]                                           # mask token 0
        hyp = jax.nn.gelu(mm(mtok, w32("hy1_w")) + w32("hy1_b"))
        hyp = mm(hyp, w32("hy2_w")) + w32("hy2_b")                       # (1, 4)
        mask8 = jnp.sum(e * hyp, axis=-1, keepdims=True)                 # (64, 1)

        # nearest 4x upsample emitted directly in the lane-dense (4, 256) layout
        lmat = sel("l_up").astype(F32)                                   # (4, 64)
        rmat = sel("r_up").astype(F32)                                   # (64, 256)
        masks4 = jnp.dot(lmat, mask8 * rmat, preferred_element_type=F32)  # (4, 256)

        out_ref[0] = jnp.concatenate(
            [masks4, aux, jnp.zeros((OUT_ROWS - 5, OUT_LANES), F32)], axis=0)

    s32_shape = meta["slab32_shape"]
    s256_shape = meta["slab256_shape"]
    sel_shape = meta["selbf_shape"]

    def full2d(shape):
        return pl.BlockSpec(tuple(shape), lambda b: (0, 0))

    def fused_call(params, img_t, patches):
        B_ = img_t.shape[0]
        in_specs = [
            pl.BlockSpec((1, CIN, IMG * IMG), lambda b: (b, 0, 0)),
            pl.BlockSpec((1, GRID * GRID, PATCH * PATCH * CIN), lambda b: (b, 0, 0)),
            full2d(s32_shape),
            full2d(s256_shape),
            full2d(sel_shape),
        ]
        out_specs = pl.BlockSpec((1, OUT_ROWS, OUT_LANES), lambda b: (b, 0, 0))
        return pl.pallas_call(
            kernel,
            grid=(B_,),
            in_specs=in_specs,
            out_specs=out_specs,
            out_shape=jax.ShapeDtypeStruct((B_, OUT_ROWS, OUT_LANES), F32),
            compiler_params=_MOSAIC_PARALLEL,
        )(img_t, patches, params["slab32"], params["slab256"], params["selbf"])

    def forward(params, imgs_nchw, pt_coords, pt_labels):
        imgs = imgs_nchw.astype(F32)
        B_ = imgs.shape[0]
        # raw pixels; mean/std normalization is folded into the weights
        img_t = imgs.reshape(B_, CIN, IMG * IMG)                 # channels on sublane
        patches = imgs.reshape(B_, CIN, GRID, PATCH, GRID, PATCH)
        patches = patches.transpose(0, 2, 4, 1, 3, 5).reshape(
            B_, GRID * GRID, PATCH * PATCH * CIN)                # (c, py, px) columns

        out = fused_call(params, img_t, patches)                 # (B, 8, 256)

        masks = out[:, 0:4, :].reshape(B_, 1, 4 * GRID, 4 * GRID)
        aux = out[:, 4, :]                                       # (B, 256)
        pos_pt_embed = aux[:, None, 0:C]
        neg_pt_embed = aux[:, None, C:2 * C]
        box_embed = aux[:, 2 * C:4 * C].reshape(B_, 2, C)
        class_score = aux[:, 4 * C:4 * C + NUM_CLASSES]

        # prompt encoder: sparse embeddings for user-provided points (returned
        # in the output dict only; the decoder consumes the auto prompts).
        pad_coord = jnp.zeros((B_, 1, 2), F32)
        pad_label = -jnp.ones((B_, 1), F32)
        coords = jnp.concatenate([pt_coords.astype(F32), pad_coord], axis=1) / float(IMG)
        labels = jnp.concatenate([pt_labels.astype(F32), pad_label], axis=1)
        pe_pts = _pe_encode(coords, params["pe_gauss"])
        lab = labels[..., None]
        se = jnp.where(lab == -1, 0.0, pe_pts)
        se = se + jnp.where(lab == -1, params["not_a_point_embed"][None], 0.0)
        se = se + jnp.where(lab == 0, params["point_embeddings"][0][None, None], 0.0)
        se = se + jnp.where(lab == 1, params["point_embeddings"][1][None, None], 0.0)

        return {
            "low_res_logits": masks,
            "masks": masks,
            "class_score": class_score,
            "pos_pt_embed": pos_pt_embed,
            "neg_pt_embed": neg_pt_embed,
            "box_embed": box_embed,
            "pos_pt_se": se[:, 1:2, :],
            "neg_pt_se": se[:, 2:3, :],
            "box_se": se[:, 3:, :],
        }

    return jax.jit(forward)


# ----------------------------- main --------------------------------------------
if __name__ == "__main__":
    key = jax.random.PRNGKey(0)
    pkey, ikey, ckey, lkey = jax.random.split(key, 4)
    params, meta = init_model(pkey)
    forward = make_forward(meta)

    imgs = jax.random.uniform(ikey, (B, CIN, IMG, IMG), dtype=F32) * 255.0  # NCHW
    pt_coords = jax.random.uniform(ckey, (B, NUM_PTS, 2), dtype=F32) * IMG
    pt_labels = (jax.random.uniform(lkey, (B, NUM_PTS)) > 0.5).astype(jnp.int32)

    out = forward(params, imgs, pt_coords, pt_labels)
    jax.block_until_ready(out)

    assert out["low_res_logits"].shape == (B, 1, 4 * GRID, 4 * GRID)
    assert out["masks"].shape == (B, 1, 4 * GRID, 4 * GRID)
    assert out["class_score"].shape == (B, NUM_CLASSES)
    assert out["pos_pt_embed"].shape == (B, 1, C)
    assert out["neg_pt_embed"].shape == (B, 1, C)
    assert out["box_embed"].shape == (B, 2, C)
    assert bool(jnp.all(jnp.isfinite(out["masks"])))
    print("KERNEL_OK")
</pallas_src>

<mosaic_0001>
module attributes {stable_mosaic.version = 11 : i64} {
  func.func @kernel(%arg0: i32, %arg1: memref<1x3x1024xf32, #tpu.memory_space<vmem>>, %arg2: memref<1x64x48xf32, #tpu.memory_space<vmem>>, %arg3: memref<1480x32xf32, #tpu.memory_space<vmem>>, %arg4: memref<352x256xf32, #tpu.memory_space<vmem>>, %arg5: memref<1568x256xbf16, #tpu.memory_space<vmem>>, %arg6: memref<1x8x256xf32, #tpu.memory_space<vmem>>) attributes {dimension_semantics = [#tpu.dimension_semantics<parallel>], iteration_bounds = array<i64: 2>, scalar_prefetch = 0 : i64, scratch_operands = 0 : i64, tpu.core_type = #tpu.core_type<tc>, window_params = [{transform_indices = @transform_0, window_bounds = array<i64: 1, 3, 1024>}, {transform_indices = @transform_1, window_bounds = array<i64: 1, 64, 48>}, {pipeline_mode = #tpu.pipeline_mode<synchronous>, transform_indices = @transform_2, window_bounds = array<i64: 1480, 32>}, {pipeline_mode = #tpu.pipeline_mode<synchronous>, transform_indices = @transform_3, window_bounds = array<i64: 352, 256>}, {pipeline_mode = #tpu.pipeline_mode<synchronous>, transform_indices = @transform_4, window_bounds = array<i64: 1568, 256>}, {transform_indices = @transform_5, window_bounds = array<i64: 1, 8, 256>}]} {
    %c1440 = arith.constant 1440 : index
    %c0 = arith.constant 0 : index
    %0 = vector.load %arg3[%c1440, %c0] : memref<1480x32xf32, #tpu.memory_space<vmem>>, vector<2x32xf32>
    %c1448 = arith.constant 1448 : index
    %c0_0 = arith.constant 0 : index
    %1 = vector.load %arg3[%c1448, %c0_0] : memref<1480x32xf32, #tpu.memory_space<vmem>>, vector<32x2xf32>
    %c0_1 = arith.constant 0 : index
    %c0_2 = arith.constant 0 : index
    %c0_3 = arith.constant 0 : index
    %2 = vector.load %arg1[%c0_1, %c0_2, %c0_3] : memref<1x3x1024xf32, #tpu.memory_space<vmem>>, vector<1x3x1024xf32>
    %3 = vector.shape_cast %2 : vector<1x3x1024xf32> to vector<3x1024xf32>
    %c0_4 = arith.constant 0 : index
    %c0_5 = arith.constant 0 : index
    %4 = vector.load %arg3[%c0_4, %c0_5] : memref<1480x32xf32, #tpu.memory_space<vmem>>, vector<8x3xf32>
    %5 = arith.truncf %4 : vector<8x3xf32> to vector<8x3xbf16>
    %6 = arith.truncf %3 : vector<3x1024xf32> to vector<3x1024xbf16>
    %cst = arith.constant dense<0.000000e+00> : vector<8x1024xf32>
    %7 = tpu.matmul %5, %6, %cst {dimension_numbers = #tpu.dot_dimension_numbers<[1], [0], [0], [1], [0, 0, 1, 1], [], []>} : vector<8x3xbf16>, vector<3x1024xbf16>, vector<8x1024xf32> -> vector<8x1024xf32>
    %c8 = arith.constant 8 : index
    %c0_6 = arith.constant 0 : index
    %8 = vector.load %arg3[%c8, %c0_6] : memref<1480x32xf32, #tpu.memory_space<vmem>>, vector<8x1xf32>
    %9 = vector.broadcast %8 : vector<8x1xf32> to vector<8x1024xf32>
    %10 = arith.addf %7, %9 : vector<8x1024xf32>
    %11 = arith.mulf %10, %10 : vector<8x1024xf32>
    %12 = arith.mulf %10, %11 : vector<8x1024xf32>
    %cst_7 = arith.constant 4.471500e-02 : f32
    %13 = vector.broadcast %cst_7 : f32 to vector<8x1024xf32>
    %14 = arith.mulf %13, %12 : vector<8x1024xf32>
    %15 = arith.addf %10, %14 : vector<8x1024xf32>
    %cst_8 = arith.constant 0.797884583 : f32
    %16 = vector.broadcast %cst_8 : f32 to vector<8x1024xf32>
    %17 = arith.mulf %16, %15 : vector<8x1024xf32>
    %18 = math.tanh %17 : vector<8x1024xf32>
    %cst_9 = arith.constant 1.000000e+00 : f32
    %19 = vector.broadcast %cst_9 : f32 to vector<8x1024xf32>
    %20 = arith.addf %19, %18 : vector<8x1024xf32>
    %cst_10 = arith.constant 5.000000e-01 : f32
    %21 = vector.broadcast %cst_10 : f32 to vector<8x1024xf32>
    %22 = arith.mulf %21, %20 : vector<8x1024xf32>
    %23 = arith.mulf %10, %22 : vector<8x1024xf32>
    %cst_11 = arith.constant dense<0.000000e+00> : vector<8xf32>
    %24 = vector.multi_reduction <add>, %23, %cst_11 [1] : vector<8x1024xf32> to vector<8xf32>
    %25 = vector.shape_cast %24 : vector<8xf32> to vector<8x1xf32>
    %cst_12 = arith.constant 1.024000e+03 : f32
    %26 = vector.broadcast %cst_12 : f32 to vector<8x1xf32>
    %27 = arith.divf %25, %26 : vector<8x1xf32>
    %c0_13 = arith.constant 0 : index
    %c0_14 = arith.constant 0 : index
    %28 = vector.load %arg5[%c0_13, %c0_14] : memref<1568x256xbf16, #tpu.memory_space<vmem>>, vector<1024x256xbf16>
    %29 = arith.truncf %23 : vector<8x1024xf32> to vector<8x1024xbf16>
    %cst_15 = arith.constant dense<0.000000e+00> : vector<8x256xf32>
    %30 = tpu.matmul %29, %28, %cst_15 {dimension_numbers = #tpu.dot_dimension_numbers<[1], [0], [0], [1], [0, 0, 1, 1], [], []>} : vector<8x1024xbf16>, vector<1024x256xbf16>, vector<8x256xf32> -> vector<8x256xf32>
    %c16 = arith.constant 16 : index
    %c0_16 = arith.constant 0 : index
    %31 = vector.load %arg3[%c16, %c0_16] : memref<1480x32xf32, #tpu.memory_space<vmem>>, vector<16x8xf32>
    %32 = arith.truncf %31 : vector<16x8xf32> to vector<16x8xbf16>
    %33 = arith.truncf %30 : vector<8x256xf32> to vector<8x256xbf16>
    %cst_17 = arith.constant dense<0.000000e+00> : vector<16x256xf32>
    %34 = tpu.matmul %32, %33, %cst_17 {dimension_numbers = #tpu.dot_dimension_numbers<[1], [0], [0], [1], [0, 0, 1, 1], [], []>} : vector<16x8xbf16>, vector<8x256xbf16>, vector<16x256xf32> -> vector<16x256xf32>
    %c32 = arith.constant 32 : index
    %c0_18 = arith.constant 0 : index
    %35 = vector.load %arg3[%c32, %c0_18] : memref<1480x32xf32, #tpu.memory_space<vmem>>, vector<16x1xf32>
    %36 = vector.broadcast %35 : vector<16x1xf32> to vector<16x256xf32>
    %37 = arith.addf %34, %36 : vector<16x256xf32>
    %38 = arith.mulf %37, %37 : vector<16x256xf32>
    %39 = arith.mulf %37, %38 : vector<16x256xf32>
    %cst_19 = arith.constant 4.471500e-02 : f32
    %40 = vector.broadcast %cst_19 : f32 to vector<16x256xf32>
    %41 = arith.mulf %40, %39 : vector<16x256xf32>
    %42 = arith.addf %37, %41 : vector<16x256xf32>
    %cst_20 = arith.constant 0.797884583 : f32
    %43 = vector.broadcast %cst_20 : f32 to vector<16x256xf32>
    %44 = arith.mulf %43, %42 : vector<16x256xf32>
    %45 = math.tanh %44 : vector<16x256xf32>
    %cst_21 = arith.constant 1.000000e+00 : f32
    %46 = vector.broadcast %cst_21 : f32 to vector<16x256xf32>
    %47 = arith.addf %46, %45 : vector<16x256xf32>
    %cst_22 = arith.constant 5.000000e-01 : f32
    %48 = vector.broadcast %cst_22 : f32 to vector<16x256xf32>
    %49 = arith.mulf %48, %47 : vector<16x256xf32>
    %50 = arith.mulf %37, %49 : vector<16x256xf32>
    %cst_23 = arith.constant dense<0.000000e+00> : vector<16xf32>
    %51 = vector.multi_reduction <add>, %50, %cst_23 [1] : vector<16x256xf32> to vector<16xf32>
    %52 = vector.shape_cast %51 : vector<16xf32> to vector<16x1xf32>
    %cst_24 = arith.constant 2.560000e+02 : f32
    %53 = vector.broadcast %cst_24 : f32 to vector<16x1xf32>
    %54 = arith.divf %52, %53 : vector<16x1xf32>
    %c1024 = arith.constant 1024 : index
    %c0_25 = arith.constant 0 : index
    %55 = vector.load %arg5[%c1024, %c0_25] : memref<1568x256xbf16, #tpu.memory_space<vmem>>, vector<256x64xbf16>
    %56 = arith.truncf %50 : vector<16x256xf32> to vector<16x256xbf16>
    %cst_26 = arith.constant dense<0.000000e+00> : vector<16x64xf32>
    %57 = tpu.matmul %56, %55, %cst_26 {dimension_numbers = #tpu.dot_dimension_numbers<[1], [0], [0], [1], [0, 0, 1, 1], [], []>} : vector<16x256xbf16>, vector<256x64xbf16>, vector<16x64xf32> -> vector<16x64xf32>
    %c48 = arith.constant 48 : index
    %c0_27 = arith.constant 0 : index
    %58 = vector.load %arg3[%c48, %c0_27] : memref<1480x32xf32, #tpu.memory_space<vmem>>, vector<32x16xf32>
    %59 = arith.truncf %58 : vector<32x16xf32> to vector<32x16xbf16>
    %60 = arith.truncf %57 : vector<16x64xf32> to vector<16x64xbf16>
    %cst_28 = arith.constant dense<0.000000e+00> : vector<32x64xf32>
    %61 = tpu.matmul %59, %60, %cst_28 {dimension_numbers = #tpu.dot_dimension_numbers<[1], [0], [0], [1], [0, 0, 1, 1], [], []>} : vector<32x16xbf16>, vector<16x64xbf16>, vector<32x64xf32> -> vector<32x64xf32>
    %c80 = arith.constant 80 : index
    %c0_29 = arith.constant 0 : index
    %62 = vector.load %arg3[%c80, %c0_29] : memref<1480x32xf32, #tpu.memory_space<vmem>>, vector<32x1xf32>
    %63 = vector.broadcast %62 : vector<32x1xf32> to vector<32x64xf32>
    %64 = arith.addf %61, %63 : vector<32x64xf32>
    %65 = arith.mulf %64, %64 : vector<32x64xf32>
    %66 = arith.mulf %64, %65 : vector<32x64xf32>
    %cst_30 = arith.constant 4.471500e-02 : f32
    %67 = vector.broadcast %cst_30 : f32 to vector<32x64xf32>
    %68 = arith.mulf %67, %66 : vector<32x64xf32>
    %69 = arith.addf %64, %68 : vector<32x64xf32>
    %cst_31 = arith.constant 0.797884583 : f32
    %70 = vector.broadcast %cst_31 : f32 to vector<32x64xf32>
    %71 = arith.mulf %70, %69 : vector<32x64xf32>
    %72 = math.tanh %71 : vector<32x64xf32>
    %cst_32 = arith.constant 1.000000e+00 : f32
    %73 = vector.broadcast %cst_32 : f32 to vector<32x64xf32>
    %74 = arith.addf %73, %72 : vector<32x64xf32>
    %cst_33 = arith.constant 5.000000e-01 : f32
    %75 = vector.broadcast %cst_33 : f32 to vector<32x64xf32>
    %76 = arith.mulf %75, %74 : vector<32x64xf32>
    %77 = arith.mulf %64, %76 : vector<32x64xf32>
    %cst_34 = arith.constant dense<0.000000e+00> : vector<32xf32>
    %78 = vector.multi_reduction <add>, %77, %cst_34 [1] : vector<32x64xf32> to vector<32xf32>
    %79 = vector.shape_cast %78 : vector<32xf32> to vector<32x1xf32>
    %cst_35 = arith.constant 6.400000e+01 : f32
    %80 = vector.broadcast %cst_35 : f32 to vector<32x1xf32>
    %81 = arith.divf %79, %80 : vector<32x1xf32>
    %c1280 = arith.constant 1280 : index
    %c0_36 = arith.constant 0 : index
    %82 = vector.load %arg5[%c1280, %c0_36] : memref<1568x256xbf16, #tpu.memory_space<vmem>>, vector<64x16xbf16>
    %83 = arith.truncf %77 : vector<32x64xf32> to vector<32x64xbf16>
    %cst_37 = arith.constant dense<0.000000e+00> : vector<32x16xf32>
    %84 = tpu.matmul %83, %82, %cst_37 {dimension_numbers = #tpu.dot_dimension_numbers<[1], [0], [0], [1], [0, 0, 1, 1], [], []>} : vector<32x64xbf16>, vector<64x16xbf16>, vector<32x16xf32> -> vector<32x16xf32>
    %c112 = arith.constant 112 : index
    %c0_38 = arith.constant 0 : index
    %85 = vector.load %arg3[%c112, %c0_38] : memref<1480x32xf32, #tpu.memory_space<vmem>>, vector<32x32xf32>
    %86 = arith.truncf %85 : vector<32x32xf32> to vector<32x32xbf16>
    %87 = arith.truncf %84 : vector<32x16xf32> to vector<32x16xbf16>
    %cst_39 = arith.constant dense<0.000000e+00> : vector<32x16xf32>
    %88 = tpu.matmul %86, %87, %cst_39 {dimension_numbers = #tpu.dot_dimension_numbers<[1], [0], [0], [1], [0, 0, 1, 1], [], []>} : vector<32x32xbf16>, vector<32x16xbf16>, vector<32x16xf32> -> vector<32x16xf32>
    %c144 = arith.constant 144 : index
    %c0_40 = arith.constant 0 : index
    %89 = vector.load %arg3[%c144, %c0_40] : memref<1480x32xf32, #tpu.memory_space<vmem>>, vector<32x1xf32>
    %90 = vector.broadcast %89 : vector<32x1xf32> to vector<32x16xf32>
    %91 = arith.addf %88, %90 : vector<32x16xf32>
    %92 = arith.mulf %91, %91 : vector<32x16xf32>
    %93 = arith.mulf %91, %92 : vector<32x16xf32>
    %cst_41 = arith.constant 4.471500e-02 : f32
    %94 = vector.broadcast %cst_41 : f32 to vector<32x16xf32>
    %95 = arith.mulf %94, %93 : vector<32x16xf32>
    %96 = arith.addf %91, %95 : vector<32x16xf32>
    %cst_42 = arith.constant 0.797884583 : f32
    %97 = vector.broadcast %cst_42 : f32 to vector<32x16xf32>
    %98 = arith.mulf %97, %96 : vector<32x16xf32>
    %99 = math.tanh %98 : vector<32x16xf32>
    %cst_43 = arith.constant 1.000000e+00 : f32
    %100 = vector.broadcast %cst_43 : f32 to vector<32x16xf32>
    %101 = arith.addf %100, %99 : vector<32x16xf32>
    %cst_44 = arith.constant 5.000000e-01 : f32
    %102 = vector.broadcast %cst_44 : f32 to vector<32x16xf32>
    %103 = arith.mulf %102, %101 : vector<32x16xf32>
    %104 = arith.mulf %91, %103 : vector<32x16xf32>
    %cst_45 = arith.constant dense<0.000000e+00> : vector<32xf32>
    %105 = vector.multi_reduction <add>, %104, %cst_45 [1] : vector<32x16xf32> to vector<32xf32>
    %106 = vector.shape_cast %105 : vector<32xf32> to vector<32x1xf32>
    %cst_46 = arith.constant 1.600000e+01 : f32
    %107 = vector.broadcast %cst_46 : f32 to vector<32x1xf32>
    %108 = arith.divf %106, %107 : vector<32x1xf32>
    %c1344 = arith.constant 1344 : index
    %c0_47 = arith.constant 0 : index
    %109 = vector.load %arg5[%c1344, %c0_47] : memref<1568x256xbf16, #tpu.memory_space<vmem>>, vector<16x4xbf16>
    %110 = arith.truncf %104 : vector<32x16xf32> to vector<32x16xbf16>
    %cst_48 = arith.constant dense<0.000000e+00> : vector<32x4xf32>
    %111 = tpu.matmul %110, %109, %cst_48 {dimension_numbers = #tpu.dot_dimension_numbers<[1], [0], [0], [1], [0, 0, 1, 1], [], []>} : vector<32x16xbf16>, vector<16x4xbf16>, vector<32x4xf32> -> vector<32x4xf32>
    %c176 = arith.constant 176 : index
    %c0_49 = arith.constant 0 : index
    %112 = vector.load %arg3[%c176, %c0_49] : memref<1480x32xf32, #tpu.memory_space<vmem>>, vector<32x32xf32>
    %113 = arith.truncf %112 : vector<32x32xf32> to vector<32x32xbf16>
    %114 = arith.truncf %111 : vector<32x4xf32> to vector<32x4xbf16>
    %cst_50 = arith.constant dense<0.000000e+00> : vector<32x4xf32>
    %115 = tpu.matmul %113, %114, %cst_50 {dimension_numbers = #tpu.dot_dimension_numbers<[1], [0], [0], [1], [0, 0, 1, 1], [], []>} : vector<32x32xbf16>, vector<32x4xbf16>, vector<32x4xf32> -> vector<32x4xf32>
    %c208 = arith.constant 208 : index
    %c0_51 = arith.constant 0 : index
    %116 = vector.load %arg3[%c208, %c0_51] : memref<1480x32xf32, #tpu.memory_space<vmem>>, vector<32x1xf32>
    %117 = vector.broadcast %116 : vector<32x1xf32> to vector<32x4xf32>
    %118 = arith.addf %115, %117 : vector<32x4xf32>
    %119 = arith.mulf %118, %118 : vector<32x4xf32>
    %120 = arith.mulf %118, %119 : vector<32x4xf32>
    %cst_52 = arith.constant 4.471500e-02 : f32
    %121 = vector.broadcast %cst_52 : f32 to vector<32x4xf32>
    %122 = arith.mulf %121, %120 : vector<32x4xf32>
    %123 = arith.addf %118, %122 : vector<32x4xf32>
    %cst_53 = arith.constant 0.797884583 : f32
    %124 = vector.broadcast %cst_53 : f32 to vector<32x4xf32>
    %125 = arith.mulf %124, %123 : vector<32x4xf32>
    %126 = math.tanh %125 : vector<32x4xf32>
    %cst_54 = arith.constant 1.000000e+00 : f32
    %127 = vector.broadcast %cst_54 : f32 to vector<32x4xf32>
    %128 = arith.addf %127, %126 : vector<32x4xf32>
    %cst_55 = arith.constant 5.000000e-01 : f32
    %129 = vector.broadcast %cst_55 : f32 to vector<32x4xf32>
    %130 = arith.mulf %129, %128 : vector<32x4xf32>
    %131 = arith.mulf %118, %130 : vector<32x4xf32>
    %cst_56 = arith.constant dense<0.000000e+00> : vector<32xf32>
    %132 = vector.multi_reduction <add>, %131, %cst_56 [1] : vector<32x4xf32> to vector<32xf32>
    %133 = vector.shape_cast %132 : vector<32xf32> to vector<32x1xf32>
    %cst_57 = arith.constant 4.000000e+00 : f32
    %134 = vector.broadcast %cst_57 : f32 to vector<32x1xf32>
    %135 = arith.divf %133, %134 : vector<32x1xf32>
    %c592 = arith.constant 592 : index
    %c0_58 = arith.constant 0 : index
    %136 = vector.load %arg3[%c592, %c0_58] : memref<1480x32xf32, #tpu.memory_space<vmem>>, vector<8x32xf32>
    %c0_59 = arith.constant 0 : index
    %c0_60 = arith.constant 0 : index
    %c0_61 = arith.constant 0 : index
    %137 = vector.load %arg2[%c0_59, %c0_60, %c0_61] : memref<1x64x48xf32, #tpu.memory_space<vmem>>, vector<1x64x48xf32>
    %138 = vector.shape_cast %137 : vector<1x64x48xf32> to vector<64x48xf32>
    %c280 = arith.constant 280 : index
    %c0_62 = arith.constant 0 : index
    %139 = vector.load %arg3[%c280, %c0_62] : memref<1480x32xf32, #tpu.memory_space<vmem>>, vector<48x32xf32>
    %140 = arith.truncf %138 : vector<64x48xf32> to vector<64x48xbf16>
    %141 = arith.truncf %139 : vector<48x32xf32> to vector<48x32xbf16>
    %cst_63 = arith.constant dense<0.000000e+00> : vector<64x32xf32>
    %142 = tpu.matmul %140, %141, %cst_63 {dimension_numbers = #tpu.dot_dimension_numbers<[1], [0], [0], [1], [0, 0, 1, 1], [], []>} : vector<64x48xbf16>, vector<48x32xbf16>, vector<64x32xf32> -> vector<64x32xf32>
    %c328 = arith.constant 328 : index
    %c0_64 = arith.constant 0 : index
    %143 = vector.load %arg3[%c328, %c0_64] : memref<1480x32xf32, #tpu.memory_space<vmem>>, vector<1x32xf32>
    %144 = vector.broadcast %143 : vector<1x32xf32> to vector<64x32xf32>
    %145 = arith.addf %142, %144 : vector<64x32xf32>
    %c336 = arith.constant 336 : index
    %c0_65 = arith.constant 0 : index
    %146 = vector.load %arg3[%c336, %c0_65] : memref<1480x32xf32, #tpu.memory_space<vmem>>, vector<64x32xf32>
    %147 = arith.addf %145, %146 : vector<64x32xf32>
    %148 = vector.extract_strided_slice %136 {offsets = [0, 0], sizes = [1, 32], strides = [1, 1]} : vector<8x32xf32> to vector<1x32xf32>
    %149 = vector.extract_strided_slice %136 {offsets = [1, 0], sizes = [1, 32], strides = [1, 1]} : vector<8x32xf32> to vector<1x32xf32>
    %cst_66 = arith.constant dense<0.000000e+00> : vector<64xf32>
    %150 = vector.multi_reduction <add>, %147, %cst_66 [1] : vector<64x32xf32> to vector<64xf32>
    %151 = vector.shape_cast %150 : vector<64xf32> to vector<64x1xf32>
    %cst_67 = arith.constant 3.200000e+01 : f32
    %152 = vector.broadcast %cst_67 : f32 to vector<64x1xf32>
    %153 = arith.divf %151, %152 : vector<64x1xf32>
    %154 = vector.broadcast %153 : vector<64x1xf32> to vector<64x32xf32>
    %155 = arith.subf %147, %154 : vector<64x32xf32>
    %156 = arith.mulf %155, %155 : vector<64x32xf32>
    %cst_68 = arith.constant dense<0.000000e+00> : vector<64xf32>
    %157 = vector.multi_reduction <add>, %156, %cst_68 [1] : vector<64x32xf32> to vector<64xf32>
    %158 = vector.shape_cast %157 : vector<64xf32> to vector<64x1xf32>
    %cst_69 = arith.constant 3.200000e+01 : f32
    %159 = vector.broadcast %cst_69 : f32 to vector<64x1xf32>
    %160 = arith.divf %158, %159 : vector<64x1xf32>
    %cst_70 = arith.constant 9.99999974E-6 : f32
    %161 = vector.broadcast %cst_70 : f32 to vector<64x1xf32>
    %162 = arith.addf %160, %161 : vector<64x1xf32>
    %163 = math.rsqrt %162 : vector<64x1xf32>
    %164 = vector.broadcast %163 : vector<64x1xf32> to vector<64x32xf32>
    %165 = arith.mulf %155, %164 : vector<64x32xf32>
    %166 = vector.broadcast %148 : vector<1x32xf32> to vector<64x32xf32>
    %167 = arith.mulf %165, %166 : vector<64x32xf32>
    %168 = vector.broadcast %149 : vector<1x32xf32> to vector<64x32xf32>
    %169 = arith.addf %167, %168 : vector<64x32xf32>
    %c0_71 = arith.constant 0 : index
    %c0_72 = arith.constant 0 : index
    %170 = vector.load %arg4[%c0_71, %c0_72] : memref<352x256xf32, #tpu.memory_space<vmem>>, vector<32x96xf32>
    %171 = arith.truncf %169 : vector<64x32xf32> to vector<64x32xbf16>
    %172 = arith.truncf %170 : vector<32x96xf32> to vector<32x96xbf16>
    %cst_73 = arith.constant dense<0.000000e+00> : vector<64x96xf32>
    %173 = tpu.matmul %171, %172, %cst_73 {dimension_numbers = #tpu.dot_dimension_numbers<[1], [0], [0], [1], [0, 0, 1, 1], [], []>} : vector<64x32xbf16>, vector<32x96xbf16>, vector<64x96xf32> -> vector<64x96xf32>
    %c32_74 = arith.constant 32 : index
    %c0_75 = arith.constant 0 : index
    %174 = vector.load %arg4[%c32_74, %c0_75] : memref<352x256xf32, #tpu.memory_space<vmem>>, vector<1x96xf32>
    %175 = vector.broadcast %174 : vector<1x96xf32> to vector<64x96xf32>
    %176 = arith.addf %173, %175 : vector<64x96xf32>
    %177 = vector.extract_strided_slice %176 {offsets = [0, 0], sizes = [64, 32], strides = [1, 1]} : vector<64x96xf32> to vector<64x32xf32>
    %178 = vector.extract_strided_slice %176 {offsets = [0, 32], sizes = [64, 32], strides = [1, 1]} : vector<64x96xf32> to vector<64x32xf32>
    %179 = vector.extract_strided_slice %176 {offsets = [0, 64], sizes = [64, 32], strides = [1, 1]} : vector<64x96xf32> to vector<64x32xf32>
    %180 = tpu.transpose %178, [1, 0] : vector<64x32xf32> -> vector<32x64xf32>
    %181 = vector.extract_strided_slice %1 {offsets = [0, 0], sizes = [32, 1], strides = [1, 1]} : vector<32x2xf32> to vector<32x1xf32>
    %182 = vector.broadcast %181 : vector<32x1xf32> to vector<32x64xf32>
    %183 = arith.mulf %180, %182 : vector<32x64xf32>
    %184 = vector.extract_strided_slice %1 {offsets = [0, 1], sizes = [32, 1], strides = [1, 1]} : vector<32x2xf32> to vector<32x1xf32>
    %185 = vector.broadcast %184 : vector<32x1xf32> to vector<32x64xf32>
    %186 = arith.mulf %180, %185 : vector<32x64xf32>
    %187 = tpu.concatenate %183, %186 in 1 : vector<32x64xf32>, vector<32x64xf32> -> vector<32x128xf32>
    %188 = vector.extract_strided_slice %0 {offsets = [0, 0], sizes = [1, 32], strides = [1, 1]} : vector<2x32xf32> to vector<1x32xf32>
    %189 = vector.broadcast %188 : vector<1x32xf32> to vector<64x32xf32>
    %190 = arith.mulf %179, %189 : vector<64x32xf32>
    %191 = vector.extract_strided_slice %0 {offsets = [1, 0], sizes = [1, 32], strides = [1, 1]} : vector<2x32xf32> to vector<1x32xf32>
    %192 = vector.broadcast %191 : vector<1x32xf32> to vector<64x32xf32>
    %193 = arith.mulf %179, %192 : vector<64x32xf32>
    %194 = tpu.concatenate %190, %193 in 0 : vector<64x32xf32>, vector<64x32xf32> -> vector<128x32xf32>
    %195 = arith.truncf %177 : vector<64x32xf32> to vector<64x32xbf16>
    %196 = arith.truncf %187 : vector<32x128xf32> to vector<32x128xbf16>
    %cst_76 = arith.constant dense<0.000000e+00> : vector<64x128xf32>
    %197 = tpu.matmul %195, %196, %cst_76 {dimension_numbers = #tpu.dot_dimension_numbers<[1], [0], [0], [1], [0, 0, 1, 1], [], []>} : vector<64x32xbf16>, vector<32x128xbf16>, vector<64x128xf32> -> vector<64x128xf32>
    %cst_77 = arith.constant 2.500000e-01 : f32
    %198 = vector.broadcast %cst_77 : f32 to vector<64x128xf32>
    %199 = arith.mulf %197, %198 : vector<64x128xf32>
    %200 = vector.extract_strided_slice %199 {offsets = [0, 0], sizes = [64, 64], strides = [1, 1]} : vector<64x128xf32> to vector<64x64xf32>
    %cst_78 = arith.constant dense<0xFF800000> : vector<64xf32>
    %201 = vector.multi_reduction <maximumf>, %200, %cst_78 [1] : vector<64x64xf32> to vector<64xf32>
    %202 = vector.shape_cast %201 : vector<64xf32> to vector<64x1xf32>
    %203 = vector.broadcast %202 : vector<64x1xf32> to vector<64x64xf32>
    %204 = arith.subf %200, %203 : vector<64x64xf32>
    %205 = math.exp %204 : vector<64x64xf32>
    %cst_79 = arith.constant dense<0.000000e+00> : vector<64xf32>
    %206 = vector.multi_reduction <add>, %205, %cst_79 [1] : vector<64x64xf32> to vector<64xf32>
    %207 = vector.shape_cast %206 : vector<64xf32> to vector<64x1xf32>
    %208 = tpu.reciprocal %207 {approx = true} : vector<64x1xf32> -> vector<64x1xf32>
    %209 = vector.broadcast %208 : vector<64x1xf32> to vector<64x64xf32>
    %210 = arith.mulf %205, %209 : vector<64x64xf32>
    %211 = vector.extract_strided_slice %199 {offsets = [0, 64], sizes = [64, 64], strides = [1, 1]} : vector<64x128xf32> to vector<64x64xf32>
    %cst_80 = arith.constant dense<0xFF800000> : vector<64xf32>
    %212 = vector.multi_reduction <maximumf>, %211, %cst_80 [1] : vector<64x64xf32> to vector<64xf32>
    %213 = vector.shape_cast %212 : vector<64xf32> to vector<64x1xf32>
    %214 = vector.broadcast %213 : vector<64x1xf32> to vector<64x64xf32>
    %215 = arith.subf %211, %214 : vector<64x64xf32>
    %216 = math.exp %215 : vector<64x64xf32>
    %cst_81 = arith.constant dense<0.000000e+00> : vector<64xf32>
    %217 = vector.multi_reduction <add>, %216, %cst_81 [1] : vector<64x64xf32> to vector<64xf32>
    %218 = vector.shape_cast %217 : vector<64xf32> to vector<64x1xf32>
    %219 = tpu.reciprocal %218 {approx = true} : vector<64x1xf32> -> vector<64x1xf32>
    %220 = vector.broadcast %219 : vector<64x1xf32> to vector<64x64xf32>
    %221 = arith.mulf %216, %220 : vector<64x64xf32>
    %222 = tpu.concatenate %210, %221 in 1 : vector<64x64xf32>, vector<64x64xf32> -> vector<64x128xf32>
    %223 = arith.truncf %222 : vector<64x128xf32> to vector<64x128xbf16>
    %224 = arith.truncf %194 : vector<128x32xf32> to vector<128x32xbf16>
    %cst_82 = arith.constant dense<0.000000e+00> : vector<64x32xf32>
    %225 = tpu.matmul %223, %224, %cst_82 {dimension_numbers = #tpu.dot_dimension_numbers<[1], [0], [0], [1], [0, 0, 1, 1], [], []>} : vector<64x128xbf16>, vector<128x32xbf16>, vector<64x32xf32> -> vector<64x32xf32>
    %c400 = arith.constant 400 : index
    %c0_83 = arith.constant 0 : index
    %226 = vector.load %arg3[%c400, %c0_83] : memref<1480x32xf32, #tpu.memory_space<vmem>>, vector<32x32xf32>
    %227 = arith.truncf %225 : vector<64x32xf32> to vector<64x32xbf16>
    %228 = arith.truncf %226 : vector<32x32xf32> to vector<32x32xbf16>
    %cst_84 = arith.constant dense<0.000000e+00> : vector<64x32xf32>
    %229 = tpu.matmul %227, %228, %cst_84 {dimension_numbers = #tpu.dot_dimension_numbers<[1], [0], [0], [1], [0, 0, 1, 1], [], []>} : vector<64x32xbf16>, vector<32x32xbf16>, vector<64x32xf32> -> vector<64x32xf32>
    %230 = arith.addf %147, %229 : vector<64x32xf32>
    %c432 = arith.constant 432 : index
    %c0_85 = arith.constant 0 : index
    %231 = vector.load %arg3[%c432, %c0_85] : memref<1480x32xf32, #tpu.memory_space<vmem>>, vector<1x32xf32>
    %232 = vector.broadcast %231 : vector<1x32xf32> to vector<64x32xf32>
    %233 = arith.addf %230, %232 : vector<64x32xf32>
    %234 = vector.extract_strided_slice %136 {offsets = [2, 0], sizes = [1, 32], strides = [1, 1]} : vector<8x32xf32> to vector<1x32xf32>
    %235 = vector.extract_strided_slice %136 {offsets = [3, 0], sizes = [1, 32], strides = [1, 1]} : vector<8x32xf32> to vector<1x32xf32>
    %cst_86 = arith.constant dense<0.000000e+00> : vector<64xf32>
    %236 = vector.multi_reduction <add>, %233, %cst_86 [1] : vector<64x32xf32> to vector<64xf32>
    %237 = vector.shape_cast %236 : vector<64xf32> to vector<64x1xf32>
    %cst_87 = arith.constant 3.200000e+01 : f32
    %238 = vector.broadcast %cst_87 : f32 to vector<64x1xf32>
    %239 = arith.divf %237, %238 : vector<64x1xf32>
    %240 = vector.broadcast %239 : vector<64x1xf32> to vector<64x32xf32>
    %241 = arith.subf %233, %240 : vector<64x32xf32>
    %242 = arith.mulf %241, %241 : vector<64x32xf32>
    %cst_88 = arith.constant dense<0.000000e+00> : vector<64xf32>
    %243 = vector.multi_reduction <add>, %242, %cst_88 [1] : vector<64x32xf32> to vector<64xf32>
    %244 = vector.shape_cast %243 : vector<64xf32> to vector<64x1xf32>
    %cst_89 = arith.constant 3.200000e+01 : f32
    %245 = vector.broadcast %cst_89 : f32 to vector<64x1xf32>
    %246 = arith.divf %244, %245 : vector<64x1xf32>
    %cst_90 = arith.constant 9.99999974E-6 : f32
    %247 = vector.broadcast %cst_90 : f32 to vector<64x1xf32>
    %248 = arith.addf %246, %247 : vector<64x1xf32>
    %249 = math.rsqrt %248 : vector<64x1xf32>
    %250 = vector.broadcast %249 : vector<64x1xf32> to vector<64x32xf32>
    %251 = arith.mulf %241, %250 : vector<64x32xf32>
    %252 = vector.broadcast %234 : vector<1x32xf32> to vector<64x32xf32>
    %253 = arith.mulf %251, %252 : vector<64x32xf32>
    %254 = vector.broadcast %235 : vector<1x32xf32> to vector<64x32xf32>
    %255 = arith.addf %253, %254 : vector<64x32xf32>
    %c40 = arith.constant 40 : index
    %c0_91 = arith.constant 0 : index
    %256 = vector.load %arg4[%c40, %c0_91] : memref<352x256xf32, #tpu.memory_space<vmem>>, vector<32x64xf32>
    %257 = arith.truncf %255 : vector<64x32xf32> to vector<64x32xbf16>
    %258 = arith.truncf %256 : vector<32x64xf32> to vector<32x64xbf16>
    %cst_92 = arith.constant dense<0.000000e+00> : vector<64x64xf32>
    %259 = tpu.matmul %257, %258, %cst_92 {dimension_numbers = #tpu.dot_dimension_numbers<[1], [0], [0], [1], [0, 0, 1, 1], [], []>} : vector<64x32xbf16>, vector<32x64xbf16>, vector<64x64xf32> -> vector<64x64xf32>
    %c72 = arith.constant 72 : index
    %c0_93 = arith.constant 0 : index
    %260 = vector.load %arg4[%c72, %c0_93] : memref<352x256xf32, #tpu.memory_space<vmem>>, vector<1x64xf32>
    %261 = vector.broadcast %260 : vector<1x64xf32> to vector<64x64xf32>
    %262 = arith.addf %259, %261 : vector<64x64xf32>
    %263 = arith.mulf %262, %262 : vector<64x64xf32>
    %264 = arith.mulf %262, %263 : vector<64x64xf32>
    %cst_94 = arith.constant 4.471500e-02 : f32
    %265 = vector.broadcast %cst_94 : f32 to vector<64x64xf32>
    %266 = arith.mulf %265, %264 : vector<64x64xf32>
    %267 = arith.addf %262, %266 : vector<64x64xf32>
    %cst_95 = arith.constant 0.797884583 : f32
    %268 = vector.broadcast %cst_95 : f32 to vector<64x64xf32>
    %269 = arith.mulf %268, %267 : vector<64x64xf32>
    %270 = math.tanh %269 : vector<64x64xf32>
    %cst_96 = arith.constant 1.000000e+00 : f32
    %271 = vector.broadcast %cst_96 : f32 to vector<64x64xf32>
    %272 = arith.addf %271, %270 : vector<64x64xf32>
    %cst_97 = arith.constant 5.000000e-01 : f32
    %273 = vector.broadcast %cst_97 : f32 to vector<64x64xf32>
    %274 = arith.mulf %273, %272 : vector<64x64xf32>
    %275 = arith.mulf %262, %274 : vector<64x64xf32>
    %c440 = arith.constant 440 : index
    %c0_98 = arith.constant 0 : index
    %276 = vector.load %arg3[%c440, %c0_98] : memref<1480x32xf32, #tpu.memory_space<vmem>>, vector<64x32xf32>
    %277 = arith.truncf %275 : vector<64x64xf32> to vector<64x64xbf16>
    %278 = arith.truncf %276 : vector<64x32xf32> to vector<64x32xbf16>
    %cst_99 = arith.constant dense<0.000000e+00> : vector<64x32xf32>
    %279 = tpu.matmul %277, %278, %cst_99 {dimension_numbers = #tpu.dot_dimension_numbers<[1], [0], [0], [1], [0, 0, 1, 1], [], []>} : vector<64x64xbf16>, vector<64x32xbf16>, vector<64x32xf32> -> vector<64x32xf32>
    %280 = arith.addf %233, %279 : vector<64x32xf32>
    %c504 = arith.constant 504 : index
    %c0_100 = arith.constant 0 : index
    %281 = vector.load %arg3[%c504, %c0_100] : memref<1480x32xf32, #tpu.memory_space<vmem>>, vector<1x32xf32>
    %282 = vector.broadcast %281 : vector<1x32xf32> to vector<64x32xf32>
    %283 = arith.addf %280, %282 : vector<64x32xf32>
    %c512 = arith.constant 512 : index
    %c0_101 = arith.constant 0 : index
    %284 = vector.load %arg3[%c512, %c0_101] : memref<1480x32xf32, #tpu.memory_space<vmem>>, vector<32x32xf32>
    %285 = arith.truncf %283 : vector<64x32xf32> to vector<64x32xbf16>
    %286 = arith.truncf %284 : vector<32x32xf32> to vector<32x32xbf16>
    %cst_102 = arith.constant dense<0.000000e+00> : vector<64x32xf32>
    %287 = tpu.matmul %285, %286, %cst_102 {dimension_numbers = #tpu.dot_dimension_numbers<[1], [0], [0], [1], [0, 0, 1, 1], [], []>} : vector<64x32xbf16>, vector<32x32xbf16>, vector<64x32xf32> -> vector<64x32xf32>
    %c544 = arith.constant 544 : index
    %c0_103 = arith.constant 0 : index
    %288 = vector.load %arg3[%c544, %c0_103] : memref<1480x32xf32, #tpu.memory_space<vmem>>, vector<1x32xf32>
    %289 = vector.broadcast %288 : vector<1x32xf32> to vector<64x32xf32>
    %290 = arith.addf %287, %289 : vector<64x32xf32>
    %291 = vector.extract_strided_slice %136 {offsets = [4, 0], sizes = [1, 32], strides = [1, 1]} : vector<8x32xf32> to vector<1x32xf32>
    %292 = vector.extract_strided_slice %136 {offsets = [5, 0], sizes = [1, 32], strides = [1, 1]} : vector<8x32xf32> to vector<1x32xf32>
    %cst_104 = arith.constant dense<0.000000e+00> : vector<64xf32>
    %293 = vector.multi_reduction <add>, %290, %cst_104 [1] : vector<64x32xf32> to vector<64xf32>
    %294 = vector.shape_cast %293 : vector<64xf32> to vector<64x1xf32>
    %cst_105 = arith.constant 3.200000e+01 : f32
    %295 = vector.broadcast %cst_105 : f32 to vector<64x1xf32>
    %296 = arith.divf %294, %295 : vector<64x1xf32>
    %297 = vector.broadcast %296 : vector<64x1xf32> to vector<64x32xf32>
    %298 = arith.subf %290, %297 : vector<64x32xf32>
    %299 = arith.mulf %298, %298 : vector<64x32xf32>
    %cst_106 = arith.constant dense<0.000000e+00> : vector<64xf32>
    %300 = vector.multi_reduction <add>, %299, %cst_106 [1] : vector<64x32xf32> to vector<64xf32>
    %301 = vector.shape_cast %300 : vector<64xf32> to vector<64x1xf32>
    %cst_107 = arith.constant 3.200000e+01 : f32
    %302 = vector.broadcast %cst_107 : f32 to vector<64x1xf32>
    %303 = arith.divf %301, %302 : vector<64x1xf32>
    %cst_108 = arith.constant 9.99999997E-7 : f32
    %304 = vector.broadcast %cst_108 : f32 to vector<64x1xf32>
    %305 = arith.addf %303, %304 : vector<64x1xf32>
    %306 = math.rsqrt %305 : vector<64x1xf32>
    %307 = vector.broadcast %306 : vector<64x1xf32> to vector<64x32xf32>
    %308 = arith.mulf %298, %307 : vector<64x32xf32>
    %309 = vector.broadcast %291 : vector<1x32xf32> to vector<64x32xf32>
    %310 = arith.mulf %308, %309 : vector<64x32xf32>
    %311 = vector.broadcast %292 : vector<1x32xf32> to vector<64x32xf32>
    %312 = arith.addf %310, %311 : vector<64x32xf32>
    %c552 = arith.constant 552 : index
    %c0_109 = arith.constant 0 : index
    %313 = vector.load %arg3[%c552, %c0_109] : memref<1480x32xf32, #tpu.memory_space<vmem>>, vector<32x32xf32>
    %314 = arith.truncf %312 : vector<64x32xf32> to vector<64x32xbf16>
    %315 = arith.truncf %313 : vector<32x32xf32> to vector<32x32xbf16>
    %cst_110 = arith.constant dense<0.000000e+00> : vector<64x32xf32>
    %316 = tpu.matmul %314, %315, %cst_110 {dimension_numbers = #tpu.dot_dimension_numbers<[1], [0], [0], [1], [0, 0, 1, 1], [], []>} : vector<64x32xbf16>, vector<32x32xbf16>, vector<64x32xf32> -> vector<64x32xf32>
    %c584 = arith.constant 584 : index
    %c0_111 = arith.constant 0 : index
    %317 = vector.load %arg3[%c584, %c0_111] : memref<1480x32xf32, #tpu.memory_space<vmem>>, vector<1x32xf32>
    %318 = vector.broadcast %317 : vector<1x32xf32> to vector<64x32xf32>
    %319 = arith.addf %316, %318 : vector<64x32xf32>
    %320 = vector.extract_strided_slice %136 {offsets = [6, 0], sizes = [1, 32], strides = [1, 1]} : vector<8x32xf32> to vector<1x32xf32>
    %321 = vector.extract_strided_slice %136 {offsets = [7, 0], sizes = [1, 32], strides = [1, 1]} : vector<8x32xf32> to vector<1x32xf32>
    %cst_112 = arith.constant dense<0.000000e+00> : vector<64xf32>
    %322 = vector.multi_reduction <add>, %319, %cst_112 [1] : vector<64x32xf32> to vector<64xf32>
    %323 = vector.shape_cast %322 : vector<64xf32> to vector<64x1xf32>
    %cst_113 = arith.constant 3.200000e+01 : f32
    %324 = vector.broadcast %cst_113 : f32 to vector<64x1xf32>
    %325 = arith.divf %323, %324 : vector<64x1xf32>
    %326 = vector.broadcast %325 : vector<64x1xf32> to vector<64x32xf32>
    %327 = arith.subf %319, %326 : vector<64x32xf32>
    %328 = arith.mulf %327, %327 : vector<64x32xf32>
    %cst_114 = arith.constant dense<0.000000e+00> : vector<64xf32>
    %329 = vector.multi_reduction <add>, %328, %cst_114 [1] : vector<64x32xf32> to vector<64xf32>
    %330 = vector.shape_cast %329 : vector<64xf32> to vector<64x1xf32>
    %cst_115 = arith.constant 3.200000e+01 : f32
    %331 = vector.broadcast %cst_115 : f32 to vector<64x1xf32>
    %332 = arith.divf %330, %331 : vector<64x1xf32>
    %cst_116 = arith.constant 9.99999997E-7 : f32
    %333 = vector.broadcast %cst_116 : f32 to vector<64x1xf32>
    %334 = arith.addf %332, %333 : vector<64x1xf32>
    %335 = math.rsqrt %334 : vector<64x1xf32>
    %336 = vector.broadcast %335 : vector<64x1xf32> to vector<64x32xf32>
    %337 = arith.mulf %327, %336 : vector<64x32xf32>
    %338 = vector.broadcast %320 : vector<1x32xf32> to vector<64x32xf32>
    %339 = arith.mulf %337, %338 : vector<64x32xf32>
    %340 = vector.broadcast %321 : vector<1x32xf32> to vector<64x32xf32>
    %341 = arith.addf %339, %340 : vector<64x32xf32>
    %cst_117 = arith.constant dense<0.000000e+00> : vector<32xf32>
    %342 = vector.multi_reduction <add>, %312, %cst_117 [0] : vector<64x32xf32> to vector<32xf32>
    %343 = vector.shape_cast %342 : vector<32xf32> to vector<1x32xf32>
    %cst_118 = arith.constant 6.400000e+01 : f32
    %344 = vector.broadcast %cst_118 : f32 to vector<1x32xf32>
    %345 = arith.divf %343, %344 : vector<1x32xf32>
    %346 = tpu.transpose %77, [1, 0] : vector<32x64xf32> -> vector<64x32xf32>
    %c240 = arith.constant 240 : index
    %c0_119 = arith.constant 0 : index
    %347 = vector.load %arg3[%c240, %c0_119] : memref<1480x32xf32, #tpu.memory_space<vmem>>, vector<32x32xf32>
    %348 = arith.truncf %346 : vector<64x32xf32> to vector<64x32xbf16>
    %349 = arith.truncf %347 : vector<32x32xf32> to vector<32x32xbf16>
    %cst_120 = arith.constant dense<0.000000e+00> : vector<64x32xf32>
    %350 = tpu.matmul %348, %349, %cst_120 {dimension_numbers = #tpu.dot_dimension_numbers<[1], [0], [0], [1], [0, 0, 1, 1], [], []>} : vector<64x32xbf16>, vector<32x32xbf16>, vector<64x32xf32> -> vector<64x32xf32>
    %351 = arith.addf %312, %350 : vector<64x32xf32>
    %c272 = arith.constant 272 : index
    %c0_121 = arith.constant 0 : index
    %352 = vector.load %arg3[%c272, %c0_121] : memref<1480x32xf32, #tpu.memory_space<vmem>>, vector<1x32xf32>
    %353 = vector.broadcast %352 : vector<1x32xf32> to vector<64x32xf32>
    %354 = arith.addf %351, %353 : vector<64x32xf32>
    %355 = tpu.concatenate %27, %54, %81, %108, %135 in 0 : vector<8x1xf32>, vector<16x1xf32>, vector<32x1xf32>, vector<32x1xf32>, vector<32x1xf32> -> vector<120x1xf32>
    %c1440_122 = arith.constant 1440 : index
    %c0_123 = arith.constant 0 : index
    %356 = vector.load %arg5[%c1440_122, %c0_123] : memref<1568x256xbf16, #tpu.memory_space<vmem>>, vector<120x120xbf16>
    %357 = arith.extf %356 : vector<120x120xbf16> to vector<120x120xf32>
    %358 = vector.broadcast %355 : vector<120x1xf32> to vector<120x120xf32>
    %359 = arith.mulf %357, %358 : vector<120x120xf32>
    %cst_124 = arith.constant dense<0.000000e+00> : vector<120xf32>
    %360 = vector.multi_reduction <add>, %359, %cst_124 [0] : vector<120x120xf32> to vector<120xf32>
    %361 = vector.shape_cast %360 : vector<120xf32> to vector<1x120xf32>
    %362 = tpu.concatenate %361, %345 in 1 : vector<1x120xf32>, vector<1x32xf32> -> vector<1x152xf32>
    %c120 = arith.constant 120 : index
    %c0_125 = arith.constant 0 : index
    %363 = vector.load %arg4[%c120, %c0_125] : memref<352x256xf32, #tpu.memory_space<vmem>>, vector<152x64xf32>
    %364 = arith.truncf %362 : vector<1x152xf32> to vector<1x152xbf16>
    %365 = arith.truncf %363 : vector<152x64xf32> to vector<152x64xbf16>
    %cst_126 = arith.constant dense<0.000000e+00> : vector<1x64xf32>
    %366 = tpu.matmul %364, %365, %cst_126 {dimension_numbers = #tpu.dot_dimension_numbers<[1], [0], [0], [1], [0, 0, 1, 1], [], []>} : vector<1x152xbf16>, vector<152x64xbf16>, vector<1x64xf32> -> vector<1x64xf32>
    %c272_127 = arith.constant 272 : index
    %c0_128 = arith.constant 0 : index
    %367 = vector.load %arg4[%c272_127, %c0_128] : memref<352x256xf32, #tpu.memory_space<vmem>>, vector<1x64xf32>
    %368 = arith.addf %366, %367 : vector<1x64xf32>
    %369 = arith.mulf %368, %368 : vector<1x64xf32>
    %370 = arith.mulf %368, %369 : vector<1x64xf32>
    %cst_129 = arith.constant 4.471500e-02 : f32
    %371 = vector.broadcast %cst_129 : f32 to vector<1x64xf32>
    %372 = arith.mulf %371, %370 : vector<1x64xf32>
    %373 = arith.addf %368, %372 : vector<1x64xf32>
    %cst_130 = arith.constant 0.797884583 : f32
    %374 = vector.broadcast %cst_130 : f32 to vector<1x64xf32>
    %375 = arith.mulf %374, %373 : vector<1x64xf32>
    %376 = math.tanh %375 : vector<1x64xf32>
    %cst_131 = arith.constant 1.000000e+00 : f32
    %377 = vector.broadcast %cst_131 : f32 to vector<1x64xf32>
    %378 = arith.addf %377, %376 : vector<1x64xf32>
    %cst_132 = arith.constant 5.000000e-01 : f32
    %379 = vector.broadcast %cst_132 : f32 to vector<1x64xf32>
    %380 = arith.mulf %379, %378 : vector<1x64xf32>
    %381 = arith.mulf %368, %380 : vector<1x64xf32>
    %c280_133 = arith.constant 280 : index
    %c0_134 = arith.constant 0 : index
    %382 = vector.load %arg4[%c280_133, %c0_134] : memref<352x256xf32, #tpu.memory_space<vmem>>, vector<64x256xf32>
    %383 = arith.truncf %381 : vector<1x64xf32> to vector<1x64xbf16>
    %384 = arith.truncf %382 : vector<64x256xf32> to vector<64x256xbf16>
    %cst_135 = arith.constant dense<0.000000e+00> : vector<1x256xf32>
    %385 = tpu.matmul %383, %384, %cst_135 {dimension_numbers = #tpu.dot_dimension_numbers<[1], [0], [0], [1], [0, 0, 1, 1], [], []>} : vector<1x64xbf16>, vector<64x256xbf16>, vector<1x256xf32> -> vector<1x256xf32>
    %c344 = arith.constant 344 : index
    %c0_136 = arith.constant 0 : index
    %386 = vector.load %arg4[%c344, %c0_136] : memref<352x256xf32, #tpu.memory_space<vmem>>, vector<1x256xf32>
    %387 = arith.addf %385, %386 : vector<1x256xf32>
    %388 = vector.extract_strided_slice %387 {offsets = [0, 0], sizes = [1, 32], strides = [1, 1]} : vector<1x256xf32> to vector<1x32xf32>
    %389 = vector.extract_strided_slice %387 {offsets = [0, 32], sizes = [1, 32], strides = [1, 1]} : vector<1x256xf32> to vector<1x32xf32>
    %390 = vector.extract_strided_slice %387 {offsets = [0, 64], sizes = [1, 32], strides = [1, 1]} : vector<1x256xf32> to vector<1x32xf32>
    %391 = vector.extract_strided_slice %387 {offsets = [0, 96], sizes = [1, 32], strides = [1, 1]} : vector<1x256xf32> to vector<1x32xf32>
    %c1360 = arith.constant 1360 : index
    %c0_137 = arith.constant 0 : index
    %392 = vector.load %arg3[%c1360, %c0_137] : memref<1480x32xf32, #tpu.memory_space<vmem>>, vector<5x32xf32>
    %393 = tpu.concatenate %392, %388, %389, %390, %391 in 0 : vector<5x32xf32>, vector<1x32xf32>, vector<1x32xf32>, vector<1x32xf32>, vector<1x32xf32> -> vector<9x32xf32>
    %c1368 = arith.constant 1368 : index
    %c0_138 = arith.constant 0 : index
    %394 = vector.load %arg3[%c1368, %c0_138] : memref<1480x32xf32, #tpu.memory_space<vmem>>, vector<1x32xf32>
    %395 = vector.broadcast %394 : vector<1x32xf32> to vector<64x32xf32>
    %396 = arith.addf %354, %395 : vector<64x32xf32>
    %397 = arith.addf %396, %341 : vector<64x32xf32>
    %c1376 = arith.constant 1376 : index
    %c0_139 = arith.constant 0 : index
    %398 = vector.load %arg3[%c1376, %c0_139] : memref<1480x32xf32, #tpu.memory_space<vmem>>, vector<64x32xf32>
    %c1112 = arith.constant 1112 : index
    %c0_140 = arith.constant 0 : index
    %399 = vector.load %arg3[%c1112, %c0_140] : memref<1480x32xf32, #tpu.memory_space<vmem>>, vector<16x32xf32>
    %c1128 = arith.constant 1128 : index
    %c0_141 = arith.constant 0 : index
    %400 = vector.load %arg3[%c1128, %c0_141] : memref<1480x32xf32, #tpu.memory_space<vmem>>, vector<5x32xf32>
    %c1136 = arith.constant 1136 : index
    %c0_142 = arith.constant 0 : index
    %401 = vector.load %arg3[%c1136, %c0_142] : memref<1480x32xf32, #tpu.memory_space<vmem>>, vector<5x32xf32>
    %c600 = arith.constant 600 : index
    %c0_143 = arith.constant 0 : index
    %402 = vector.load %arg3[%c600, %c0_143] : memref<1480x32xf32, #tpu.memory_space<vmem>>, vector<32x32xf32>
    %403 = arith.truncf %393 : vector<9x32xf32> to vector<9x32xbf16>
    %404 = arith.truncf %402 : vector<32x32xf32> to vector<32x32xbf16>
    %cst_144 = arith.constant dense<0.000000e+00> : vector<9x32xf32>
    %405 = tpu.matmul %403, %404, %cst_144 {dimension_numbers = #tpu.dot_dimension_numbers<[1], [0], [0], [1], [0, 0, 1, 1], [], []>} : vector<9x32xbf16>, vector<32x32xbf16>, vector<9x32xf32> -> vector<9x32xf32>
    %406 = vector.extract_strided_slice %399 {offsets = [0, 0], sizes = [1, 32], strides = [1, 1]} : vector<16x32xf32> to vector<1x32xf32>
    %407 = vector.broadcast %406 : vector<1x32xf32> to vector<9x32xf32>
    %408 = arith.addf %405, %407 : vector<9x32xf32>
    %c632 = arith.constant 632 : index
    %c0_145 = arith.constant 0 : index
    %409 = vector.load %arg3[%c632, %c0_145] : memref<1480x32xf32, #tpu.memory_space<vmem>>, vector<32x32xf32>
    %410 = arith.truncf %393 : vector<9x32xf32> to vector<9x32xbf16>
    %411 = arith.truncf %409 : vector<32x32xf32> to vector<32x32xbf16>
    %cst_146 = arith.constant dense<0.000000e+00> : vector<9x32xf32>
    %412 = tpu.matmul %410, %411, %cst_146 {dimension_numbers = #tpu.dot_dimension_numbers<[1], [0], [0], [1], [0, 0, 1, 1], [], []>} : vector<9x32xbf16>, vector<32x32xbf16>, vector<9x32xf32> -> vector<9x32xf32>
    %413 = vector.extract_strided_slice %399 {offsets = [1, 0], sizes = [1, 32], strides = [1, 1]} : vector<16x32xf32> to vector<1x32xf32>
    %414 = vector.broadcast %413 : vector<1x32xf32> to vector<9x32xf32>
    %415 = arith.addf %412, %414 : vector<9x32xf32>
    %c664 = arith.constant 664 : index
    %c0_147 = arith.constant 0 : index
    %416 = vector.load %arg3[%c664, %c0_147] : memref<1480x32xf32, #tpu.memory_space<vmem>>, vector<32x32xf32>
    %417 = arith.truncf %393 : vector<9x32xf32> to vector<9x32xbf16>
    %418 = arith.truncf %416 : vector<32x32xf32> to vector<32x32xbf16>
    %cst_148 = arith.constant dense<0.000000e+00> : vector<9x32xf32>
    %419 = tpu.matmul %417, %418, %cst_148 {dimension_numbers = #tpu.dot_dimension_numbers<[1], [0], [0], [1], [0, 0, 1, 1], [], []>} : vector<9x32xbf16>, vector<32x32xbf16>, vector<9x32xf32> -> vector<9x32xf32>
    %420 = vector.extract_strided_slice %399 {offsets = [2, 0], sizes = [1, 32], strides = [1, 1]} : vector<16x32xf32> to vector<1x32xf32>
    %421 = vector.broadcast %420 : vector<1x32xf32> to vector<9x32xf32>
    %422 = arith.addf %419, %421 : vector<9x32xf32>
    %423 = tpu.transpose %415, [1, 0] : vector<9x32xf32> -> vector<32x9xf32>
    %424 = vector.extract_strided_slice %1 {offsets = [0, 0], sizes = [32, 1], strides = [1, 1]} : vector<32x2xf32> to vector<32x1xf32>
    %425 = vector.broadcast %424 : vector<32x1xf32> to vector<32x9xf32>
    %426 = arith.mulf %423, %425 : vector<32x9xf32>
    %427 = vector.extract_strided_slice %1 {offsets = [0, 1], sizes = [32, 1], strides = [1, 1]} : vector<32x2xf32> to vector<32x1xf32>
    %428 = vector.broadcast %427 : vector<32x1xf32> to vector<32x9xf32>
    %429 = arith.mulf %423, %428 : vector<32x9xf32>
    %430 = tpu.concatenate %426, %429 in 1 : vector<32x9xf32>, vector<32x9xf32> -> vector<32x18xf32>
    %431 = vector.extract_strided_slice %0 {offsets = [0, 0], sizes = [1, 32], strides = [1, 1]} : vector<2x32xf32> to vector<1x32xf32>
    %432 = vector.broadcast %431 : vector<1x32xf32> to vector<9x32xf32>
    %433 = arith.mulf %422, %432 : vector<9x32xf32>
    %434 = vector.extract_strided_slice %0 {offsets = [1, 0], sizes = [1, 32], strides = [1, 1]} : vector<2x32xf32> to vector<1x32xf32>
    %435 = vector.broadcast %434 : vector<1x32xf32> to vector<9x32xf32>
    %436 = arith.mulf %422, %435 : vector<9x32xf32>
    %437 = tpu.concatenate %433, %436 in 0 : vector<9x32xf32>, vector<9x32xf32> -> vector<18x32xf32>
    %438 = arith.truncf %408 : vector<9x32xf32> to vector<9x32xbf16>
    %439 = arith.truncf %430 : vector<32x18xf32> to vector<32x18xbf16>
    %cst_149 = arith.constant dense<0.000000e+00> : vector<9x18xf32>
    %440 = tpu.matmul %438, %439, %cst_149 {dimension_numbers = #tpu.dot_dimension_numbers<[1], [0], [0], [1], [0, 0, 1, 1], [], []>} : vector<9x32xbf16>, vector<32x18xbf16>, vector<9x18xf32> -> vector<9x18xf32>
    %cst_150 = arith.constant 2.500000e-01 : f32
    %441 = vector.broadcast %cst_150 : f32 to vector<9x18xf32>
    %442 = arith.mulf %440, %441 : vector<9x18xf32>
    %443 = vector.extract_strided_slice %442 {offsets = [0, 0], sizes = [9, 9], strides = [1, 1]} : vector<9x18xf32> to vector<9x9xf32>
    %cst_151 = arith.constant dense<0xFF800000> : vector<9xf32>
    %444 = vector.multi_reduction <maximumf>, %443, %cst_151 [1] : vector<9x9xf32> to vector<9xf32>
    %445 = vector.shape_cast %444 : vector<9xf32> to vector<9x1xf32>
    %446 = vector.broadcast %445 : vector<9x1xf32> to vector<9x9xf32>
    %447 = arith.subf %443, %446 : vector<9x9xf32>
    %448 = math.exp %447 : vector<9x9xf32>
    %cst_152 = arith.constant dense<0.000000e+00> : vector<9xf32>
    %449 = vector.multi_reduction <add>, %448, %cst_152 [1] : vector<9x9xf32> to vector<9xf32>
    %450 = vector.shape_cast %449 : vector<9xf32> to vector<9x1xf32>
    %451 = tpu.reciprocal %450 {approx = true} : vector<9x1xf32> -> vector<9x1xf32>
    %452 = vector.broadcast %451 : vector<9x1xf32> to vector<9x9xf32>
    %453 = arith.mulf %448, %452 : vector<9x9xf32>
    %454 = vector.extract_strided_slice %442 {offsets = [0, 9], sizes = [9, 9], strides = [1, 1]} : vector<9x18xf32> to vector<9x9xf32>
    %cst_153 = arith.constant dense<0xFF800000> : vector<9xf32>
    %455 = vector.multi_reduction <maximumf>, %454, %cst_153 [1] : vector<9x9xf32> to vector<9xf32>
    %456 = vector.shape_cast %455 : vector<9xf32> to vector<9x1xf32>
    %457 = vector.broadcast %456 : vector<9x1xf32> to vector<9x9xf32>
    %458 = arith.subf %454, %457 : vector<9x9xf32>
    %459 = math.exp %458 : vector<9x9xf32>
    %cst_154 = arith.constant dense<0.000000e+00> : vector<9xf32>
    %460 = vector.multi_reduction <add>, %459, %cst_154 [1] : vector<9x9xf32> to vector<9xf32>
    %461 = vector.shape_cast %460 : vector<9xf32> to vector<9x1xf32>
    %462 = tpu.reciprocal %461 {approx = true} : vector<9x1xf32> -> vector<9x1xf32>
    %463 = vector.broadcast %462 : vector<9x1xf32> to vector<9x9xf32>
    %464 = arith.mulf %459, %463 : vector<9x9xf32>
    %465 = tpu.concatenate %453, %464 in 1 : vector<9x9xf32>, vector<9x9xf32> -> vector<9x18xf32>
    %466 = arith.truncf %465 : vector<9x18xf32> to vector<9x18xbf16>
    %467 = arith.truncf %437 : vector<18x32xf32> to vector<18x32xbf16>
    %cst_155 = arith.constant dense<0.000000e+00> : vector<9x32xf32>
    %468 = tpu.matmul %466, %467, %cst_155 {dimension_numbers = #tpu.dot_dimension_numbers<[1], [0], [0], [1], [0, 0, 1, 1], [], []>} : vector<9x18xbf16>, vector<18x32xbf16>, vector<9x32xf32> -> vector<9x32xf32>
    %c696 = arith.constant 696 : index
    %c0_156 = arith.constant 0 : index
    %469 = vector.load %arg3[%c696, %c0_156] : memref<1480x32xf32, #tpu.memory_space<vmem>>, vector<32x32xf32>
    %470 = arith.truncf %468 : vector<9x32xf32> to vector<9x32xbf16>
    %471 = arith.truncf %469 : vector<32x32xf32> to vector<32x32xbf16>
    %cst_157 = arith.constant dense<0.000000e+00> : vector<9x32xf32>
    %472 = tpu.matmul %470, %471, %cst_157 {dimension_numbers = #tpu.dot_dimension_numbers<[1], [0], [0], [1], [0, 0, 1, 1], [], []>} : vector<9x32xbf16>, vector<32x32xbf16>, vector<9x32xf32> -> vector<9x32xf32>
    %473 = vector.extract_strided_slice %399 {offsets = [3, 0], sizes = [1, 32], strides = [1, 1]} : vector<16x32xf32> to vector<1x32xf32>
    %474 = vector.broadcast %473 : vector<1x32xf32> to vector<9x32xf32>
    %475 = arith.addf %472, %474 : vector<9x32xf32>
    %476 = vector.extract_strided_slice %400 {offsets = [0, 0], sizes = [1, 32], strides = [1, 1]} : vector<5x32xf32> to vector<1x32xf32>
    %477 = vector.extract_strided_slice %401 {offsets = [0, 0], sizes = [1, 32], strides = [1, 1]} : vector<5x32xf32> to vector<1x32xf32>
    %cst_158 = arith.constant dense<0.000000e+00> : vector<9xf32>
    %478 = vector.multi_reduction <add>, %475, %cst_158 [1] : vector<9x32xf32> to vector<9xf32>
    %479 = vector.shape_cast %478 : vector<9xf32> to vector<9x1xf32>
    %cst_159 = arith.constant 3.200000e+01 : f32
    %480 = vector.broadcast %cst_159 : f32 to vector<9x1xf32>
    %481 = arith.divf %479, %480 : vector<9x1xf32>
    %482 = vector.broadcast %481 : vector<9x1xf32> to vector<9x32xf32>
    %483 = arith.subf %475, %482 : vector<9x32xf32>
    %484 = arith.mulf %483, %483 : vector<9x32xf32>
    %cst_160 = arith.constant dense<0.000000e+00> : vector<9xf32>
    %485 = vector.multi_reduction <add>, %484, %cst_160 [1] : vector<9x32xf32> to vector<9xf32>
    %486 = vector.shape_cast %485 : vector<9xf32> to vector<9x1xf32>
    %cst_161 = arith.constant 3.200000e+01 : f32
    %487 = vector.broadcast %cst_161 : f32 to vector<9x1xf32>
    %488 = arith.divf %486, %487 : vector<9x1xf32>
    %cst_162 = arith.constant 9.99999974E-6 : f32
    %489 = vector.broadcast %cst_162 : f32 to vector<9x1xf32>
    %490 = arith.addf %488, %489 : vector<9x1xf32>
    %491 = math.rsqrt %490 : vector<9x1xf32>
    %492 = vector.broadcast %491 : vector<9x1xf32> to vector<9x32xf32>
    %493 = arith.mulf %483, %492 : vector<9x32xf32>
    %494 = vector.broadcast %476 : vector<1x32xf32> to vector<9x32xf32>
    %495 = arith.mulf %493, %494 : vector<9x32xf32>
    %496 = vector.broadcast %477 : vector<1x32xf32> to vector<9x32xf32>
    %497 = arith.addf %495, %496 : vector<9x32xf32>
    %498 = arith.addf %497, %393 : vector<9x32xf32>
    %499 = arith.addf %397, %398 : vector<64x32xf32>
    %c728 = arith.constant 728 : index
    %c0_163 = arith.constant 0 : index
    %500 = vector.load %arg3[%c728, %c0_163] : memref<1480x32xf32, #tpu.memory_space<vmem>>, vector<32x32xf32>
    %501 = arith.truncf %498 : vector<9x32xf32> to vector<9x32xbf16>
    %502 = arith.truncf %500 : vector<32x32xf32> to vector<32x32xbf16>
    %cst_164 = arith.constant dense<0.000000e+00> : vector<9x32xf32>
    %503 = tpu.matmul %501, %502, %cst_164 {dimension_numbers = #tpu.dot_dimension_numbers<[1], [0], [0], [1], [0, 0, 1, 1], [], []>} : vector<9x32xbf16>, vector<32x32xbf16>, vector<9x32xf32> -> vector<9x32xf32>
    %504 = vector.extract_strided_slice %399 {offsets = [4, 0], sizes = [1, 32], strides = [1, 1]} : vector<16x32xf32> to vector<1x32xf32>
    %505 = vector.broadcast %504 : vector<1x32xf32> to vector<9x32xf32>
    %506 = arith.addf %503, %505 : vector<9x32xf32>
    %c760 = arith.constant 760 : index
    %c0_165 = arith.constant 0 : index
    %507 = vector.load %arg3[%c760, %c0_165] : memref<1480x32xf32, #tpu.memory_space<vmem>>, vector<32x32xf32>
    %508 = arith.truncf %499 : vector<64x32xf32> to vector<64x32xbf16>
    %509 = arith.truncf %507 : vector<32x32xf32> to vector<32x32xbf16>
    %cst_166 = arith.constant dense<0.000000e+00> : vector<64x32xf32>
    %510 = tpu.matmul %508, %509, %cst_166 {dimension_numbers = #tpu.dot_dimension_numbers<[1], [0], [0], [1], [0, 0, 1, 1], [], []>} : vector<64x32xbf16>, vector<32x32xbf16>, vector<64x32xf32> -> vector<64x32xf32>
    %511 = vector.extract_strided_slice %399 {offsets = [5, 0], sizes = [1, 32], strides = [1, 1]} : vector<16x32xf32> to vector<1x32xf32>
    %512 = vector.broadcast %511 : vector<1x32xf32> to vector<64x32xf32>
    %513 = arith.addf %510, %512 : vector<64x32xf32>
    %c792 = arith.constant 792 : index
    %c0_167 = arith.constant 0 : index
    %514 = vector.load %arg3[%c792, %c0_167] : memref<1480x32xf32, #tpu.memory_space<vmem>>, vector<32x32xf32>
    %515 = arith.truncf %397 : vector<64x32xf32> to vector<64x32xbf16>
    %516 = arith.truncf %514 : vector<32x32xf32> to vector<32x32xbf16>
    %cst_168 = arith.constant dense<0.000000e+00> : vector<64x32xf32>
    %517 = tpu.matmul %515, %516, %cst_168 {dimension_numbers = #tpu.dot_dimension_numbers<[1], [0], [0], [1], [0, 0, 1, 1], [], []>} : vector<64x32xbf16>, vector<32x32xbf16>, vector<64x32xf32> -> vector<64x32xf32>
    %518 = vector.extract_strided_slice %399 {offsets = [6, 0], sizes = [1, 32], strides = [1, 1]} : vector<16x32xf32> to vector<1x32xf32>
    %519 = vector.broadcast %518 : vector<1x32xf32> to vector<64x32xf32>
    %520 = arith.addf %517, %519 : vector<64x32xf32>
    %521 = tpu.transpose %513, [1, 0] : vector<64x32xf32> -> vector<32x64xf32>
    %522 = vector.extract_strided_slice %1 {offsets = [0, 0], sizes = [32, 1], strides = [1, 1]} : vector<32x2xf32> to vector<32x1xf32>
    %523 = vector.broadcast %522 : vector<32x1xf32> to vector<32x64xf32>
    %524 = arith.mulf %521, %523 : vector<32x64xf32>
    %525 = vector.extract_strided_slice %1 {offsets = [0, 1], sizes = [32, 1], strides = [1, 1]} : vector<32x2xf32> to vector<32x1xf32>
    %526 = vector.broadcast %525 : vector<32x1xf32> to vector<32x64xf32>
    %527 = arith.mulf %521, %526 : vector<32x64xf32>
    %528 = tpu.concatenate %524, %527 in 1 : vector<32x64xf32>, vector<32x64xf32> -> vector<32x128xf32>
    %529 = vector.extract_strided_slice %0 {offsets = [0, 0], sizes = [1, 32], strides = [1, 1]} : vector<2x32xf32> to vector<1x32xf32>
    %530 = vector.broadcast %529 : vector<1x32xf32> to vector<64x32xf32>
    %531 = arith.mulf %520, %530 : vector<64x32xf32>
    %532 = vector.extract_strided_slice %0 {offsets = [1, 0], sizes = [1, 32], strides = [1, 1]} : vector<2x32xf32> to vector<1x32xf32>
    %533 = vector.broadcast %532 : vector<1x32xf32> to vector<64x32xf32>
    %534 = arith.mulf %520, %533 : vector<64x32xf32>
    %535 = tpu.concatenate %531, %534 in 0 : vector<64x32xf32>, vector<64x32xf32> -> vector<128x32xf32>
    %536 = arith.truncf %506 : vector<9x32xf32> to vector<9x32xbf16>
    %537 = arith.truncf %528 : vector<32x128xf32> to vector<32x128xbf16>
    %cst_169 = arith.constant dense<0.000000e+00> : vector<9x128xf32>
    %538 = tpu.matmul %536, %537, %cst_169 {dimension_numbers = #tpu.dot_dimension_numbers<[1], [0], [0], [1], [0, 0, 1, 1], [], []>} : vector<9x32xbf16>, vector<32x128xbf16>, vector<9x128xf32> -> vector<9x128xf32>
    %cst_170 = arith.constant 2.500000e-01 : f32
    %539 = vector.broadcast %cst_170 : f32 to vector<9x128xf32>
    %540 = arith.mulf %538, %539 : vector<9x128xf32>
    %541 = vector.extract_strided_slice %540 {offsets = [0, 0], sizes = [9, 64], strides = [1, 1]} : vector<9x128xf32> to vector<9x64xf32>
    %cst_171 = arith.constant dense<0xFF800000> : vector<9xf32>
    %542 = vector.multi_reduction <maximumf>, %541, %cst_171 [1] : vector<9x64xf32> to vector<9xf32>
    %543 = vector.shape_cast %542 : vector<9xf32> to vector<9x1xf32>
    %544 = vector.broadcast %543 : vector<9x1xf32> to vector<9x64xf32>
    %545 = arith.subf %541, %544 : vector<9x64xf32>
    %546 = math.exp %545 : vector<9x64xf32>
    %cst_172 = arith.constant dense<0.000000e+00> : vector<9xf32>
    %547 = vector.multi_reduction <add>, %546, %cst_172 [1] : vector<9x64xf32> to vector<9xf32>
    %548 = vector.shape_cast %547 : vector<9xf32> to vector<9x1xf32>
    %549 = tpu.reciprocal %548 {approx = true} : vector<9x1xf32> -> vector<9x1xf32>
    %550 = vector.broadcast %549 : vector<9x1xf32> to vector<9x64xf32>
    %551 = arith.mulf %546, %550 : vector<9x64xf32>
    %552 = vector.extract_strided_slice %540 {offsets = [0, 64], sizes = [9, 64], strides = [1, 1]} : vector<9x128xf32> to vector<9x64xf32>
    %cst_173 = arith.constant dense<0xFF800000> : vector<9xf32>
    %553 = vector.multi_reduction <maximumf>, %552, %cst_173 [1] : vector<9x64xf32> to vector<9xf32>
    %554 = vector.shape_cast %553 : vector<9xf32> to vector<9x1xf32>
    %555 = vector.broadcast %554 : vector<9x1xf32> to vector<9x64xf32>
    %556 = arith.subf %552, %555 : vector<9x64xf32>
    %557 = math.exp %556 : vector<9x64xf32>
    %cst_174 = arith.constant dense<0.000000e+00> : vector<9xf32>
    %558 = vector.multi_reduction <add>, %557, %cst_174 [1] : vector<9x64xf32> to vector<9xf32>
    %559 = vector.shape_cast %558 : vector<9xf32> to vector<9x1xf32>
    %560 = tpu.reciprocal %559 {approx = true} : vector<9x1xf32> -> vector<9x1xf32>
    %561 = vector.broadcast %560 : vector<9x1xf32> to vector<9x64xf32>
    %562 = arith.mulf %557, %561 : vector<9x64xf32>
    %563 = tpu.concatenate %551, %562 in 1 : vector<9x64xf32>, vector<9x64xf32> -> vector<9x128xf32>
    %564 = arith.truncf %563 : vector<9x128xf32> to vector<9x128xbf16>
    %565 = arith.truncf %535 : vector<128x32xf32> to vector<128x32xbf16>
    %cst_175 = arith.constant dense<0.000000e+00> : vector<9x32xf32>
    %566 = tpu.matmul %564, %565, %cst_175 {dimension_numbers = #tpu.dot_dimension_numbers<[1], [0], [0], [1], [0, 0, 1, 1], [], []>} : vector<9x128xbf16>, vector<128x32xbf16>, vector<9x32xf32> -> vector<9x32xf32>
    %c824 = arith.constant 824 : index
    %c0_176 = arith.constant 0 : index
    %567 = vector.load %arg3[%c824, %c0_176] : memref<1480x32xf32, #tpu.memory_space<vmem>>, vector<32x32xf32>
    %568 = arith.truncf %566 : vector<9x32xf32> to vector<9x32xbf16>
    %569 = arith.truncf %567 : vector<32x32xf32> to vector<32x32xbf16>
    %cst_177 = arith.constant dense<0.000000e+00> : vector<9x32xf32>
    %570 = tpu.matmul %568, %569, %cst_177 {dimension_numbers = #tpu.dot_dimension_numbers<[1], [0], [0], [1], [0, 0, 1, 1], [], []>} : vector<9x32xbf16>, vector<32x32xbf16>, vector<9x32xf32> -> vector<9x32xf32>
    %571 = vector.extract_strided_slice %399 {offsets = [7, 0], sizes = [1, 32], strides = [1, 1]} : vector<16x32xf32> to vector<1x32xf32>
    %572 = vector.broadcast %571 : vector<1x32xf32> to vector<9x32xf32>
    %573 = arith.addf %570, %572 : vector<9x32xf32>
    %574 = arith.addf %497, %573 : vector<9x32xf32>
    %575 = vector.extract_strided_slice %400 {offsets = [1, 0], sizes = [1, 32], strides = [1, 1]} : vector<5x32xf32> to vector<1x32xf32>
    %576 = vector.extract_strided_slice %401 {offsets = [1, 0], sizes = [1, 32], strides = [1, 1]} : vector<5x32xf32> to vector<1x32xf32>
    %cst_178 = arith.constant dense<0.000000e+00> : vector<9xf32>
    %577 = vector.multi_reduction <add>, %574, %cst_178 [1] : vector<9x32xf32> to vector<9xf32>
    %578 = vector.shape_cast %577 : vector<9xf32> to vector<9x1xf32>
    %cst_179 = arith.constant 3.200000e+01 : f32
    %579 = vector.broadcast %cst_179 : f32 to vector<9x1xf32>
    %580 = arith.divf %578, %579 : vector<9x1xf32>
    %581 = vector.broadcast %580 : vector<9x1xf32> to vector<9x32xf32>
    %582 = arith.subf %574, %581 : vector<9x32xf32>
    %583 = arith.mulf %582, %582 : vector<9x32xf32>
    %cst_180 = arith.constant dense<0.000000e+00> : vector<9xf32>
    %584 = vector.multi_reduction <add>, %583, %cst_180 [1] : vector<9x32xf32> to vector<9xf32>
    %585 = vector.shape_cast %584 : vector<9xf32> to vector<9x1xf32>
    %cst_181 = arith.constant 3.200000e+01 : f32
    %586 = vector.broadcast %cst_181 : f32 to vector<9x1xf32>
    %587 = arith.divf %585, %586 : vector<9x1xf32>
    %cst_182 = arith.constant 9.99999974E-6 : f32
    %588 = vector.broadcast %cst_182 : f32 to vector<9x1xf32>
    %589 = arith.addf %587, %588 : vector<9x1xf32>
    %590 = math.rsqrt %589 : vector<9x1xf32>
    %591 = vector.broadcast %590 : vector<9x1xf32> to vector<9x32xf32>
    %592 = arith.mulf %582, %591 : vector<9x32xf32>
    %593 = vector.broadcast %575 : vector<1x32xf32> to vector<9x32xf32>
    %594 = arith.mulf %592, %593 : vector<9x32xf32>
    %595 = vector.broadcast %576 : vector<1x32xf32> to vector<9x32xf32>
    %596 = arith.addf %594, %595 : vector<9x32xf32>
    %c80_183 = arith.constant 80 : index
    %c0_184 = arith.constant 0 : index
    %597 = vector.load %arg4[%c80_183, %c0_184] : memref<352x256xf32, #tpu.memory_space<vmem>>, vector<32x64xf32>
    %598 = arith.truncf %596 : vector<9x32xf32> to vector<9x32xbf16>
    %599 = arith.truncf %597 : vector<32x64xf32> to vector<32x64xbf16>
    %cst_185 = arith.constant dense<0.000000e+00> : vector<9x64xf32>
    %600 = tpu.matmul %598, %599, %cst_185 {dimension_numbers = #tpu.dot_dimension_numbers<[1], [0], [0], [1], [0, 0, 1, 1], [], []>} : vector<9x32xbf16>, vector<32x64xbf16>, vector<9x64xf32> -> vector<9x64xf32>
    %c112_186 = arith.constant 112 : index
    %c0_187 = arith.constant 0 : index
    %601 = vector.load %arg4[%c112_186, %c0_187] : memref<352x256xf32, #tpu.memory_space<vmem>>, vector<1x64xf32>
    %602 = vector.broadcast %601 : vector<1x64xf32> to vector<9x64xf32>
    %603 = arith.addf %600, %602 : vector<9x64xf32>
    %cst_188 = arith.constant 0.000000e+00 : f32
    %604 = vector.broadcast %cst_188 : f32 to vector<9x64xf32>
    %605 = arith.maximumf %603, %604 : vector<9x64xf32>
    %c1144 = arith.constant 1144 : index
    %c0_189 = arith.constant 0 : index
    %606 = vector.load %arg3[%c1144, %c0_189] : memref<1480x32xf32, #tpu.memory_space<vmem>>, vector<64x32xf32>
    %607 = arith.truncf %605 : vector<9x64xf32> to vector<9x64xbf16>
    %608 = arith.truncf %606 : vector<64x32xf32> to vector<64x32xbf16>
    %cst_190 = arith.constant dense<0.000000e+00> : vector<9x32xf32>
    %609 = tpu.matmul %607, %608, %cst_190 {dimension_numbers = #tpu.dot_dimension_numbers<[1], [0], [0], [1], [0, 0, 1, 1], [], []>} : vector<9x64xbf16>, vector<64x32xbf16>, vector<9x32xf32> -> vector<9x32xf32>
    %c1208 = arith.constant 1208 : index
    %c0_191 = arith.constant 0 : index
    %610 = vector.load %arg3[%c1208, %c0_191] : memref<1480x32xf32, #tpu.memory_space<vmem>>, vector<1x32xf32>
    %611 = vector.broadcast %610 : vector<1x32xf32> to vector<9x32xf32>
    %612 = arith.addf %609, %611 : vector<9x32xf32>
    %613 = arith.addf %596, %612 : vector<9x32xf32>
    %614 = vector.extract_strided_slice %400 {offsets = [2, 0], sizes = [1, 32], strides = [1, 1]} : vector<5x32xf32> to vector<1x32xf32>
    %615 = vector.extract_strided_slice %401 {offsets = [2, 0], sizes = [1, 32], strides = [1, 1]} : vector<5x32xf32> to vector<1x32xf32>
    %cst_192 = arith.constant dense<0.000000e+00> : vector<9xf32>
    %616 = vector.multi_reduction <add>, %613, %cst_192 [1] : vector<9x32xf32> to vector<9xf32>
    %617 = vector.shape_cast %616 : vector<9xf32> to vector<9x1xf32>
    %cst_193 = arith.constant 3.200000e+01 : f32
    %618 = vector.broadcast %cst_193 : f32 to vector<9x1xf32>
    %619 = arith.divf %617, %618 : vector<9x1xf32>
    %620 = vector.broadcast %619 : vector<9x1xf32> to vector<9x32xf32>
    %621 = arith.subf %613, %620 : vector<9x32xf32>
    %622 = arith.mulf %621, %621 : vector<9x32xf32>
    %cst_194 = arith.constant dense<0.000000e+00> : vector<9xf32>
    %623 = vector.multi_reduction <add>, %622, %cst_194 [1] : vector<9x32xf32> to vector<9xf32>
    %624 = vector.shape_cast %623 : vector<9xf32> to vector<9x1xf32>
    %cst_195 = arith.constant 3.200000e+01 : f32
    %625 = vector.broadcast %cst_195 : f32 to vector<9x1xf32>
    %626 = arith.divf %624, %625 : vector<9x1xf32>
    %cst_196 = arith.constant 9.99999974E-6 : f32
    %627 = vector.broadcast %cst_196 : f32 to vector<9x1xf32>
    %628 = arith.addf %626, %627 : vector<9x1xf32>
    %629 = math.rsqrt %628 : vector<9x1xf32>
    %630 = vector.broadcast %629 : vector<9x1xf32> to vector<9x32xf32>
    %631 = arith.mulf %621, %630 : vector<9x32xf32>
    %632 = vector.broadcast %614 : vector<1x32xf32> to vector<9x32xf32>
    %633 = arith.mulf %631, %632 : vector<9x32xf32>
    %634 = vector.broadcast %615 : vector<1x32xf32> to vector<9x32xf32>
    %635 = arith.addf %633, %634 : vector<9x32xf32>
    %636 = arith.addf %635, %393 : vector<9x32xf32>
    %637 = arith.addf %397, %398 : vector<64x32xf32>
    %c856 = arith.constant 856 : index
    %c0_197 = arith.constant 0 : index
    %638 = vector.load %arg3[%c856, %c0_197] : memref<1480x32xf32, #tpu.memory_space<vmem>>, vector<32x32xf32>
    %639 = arith.truncf %637 : vector<64x32xf32> to vector<64x32xbf16>
    %640 = arith.truncf %638 : vector<32x32xf32> to vector<32x32xbf16>
    %cst_198 = arith.constant dense<0.000000e+00> : vector<64x32xf32>
    %641 = tpu.matmul %639, %640, %cst_198 {dimension_numbers = #tpu.dot_dimension_numbers<[1], [0], [0], [1], [0, 0, 1, 1], [], []>} : vector<64x32xbf16>, vector<32x32xbf16>, vector<64x32xf32> -> vector<64x32xf32>
    %642 = vector.extract_strided_slice %399 {offsets = [8, 0], sizes = [1, 32], strides = [1, 1]} : vector<16x32xf32> to vector<1x32xf32>
    %643 = vector.broadcast %642 : vector<1x32xf32> to vector<64x32xf32>
    %644 = arith.addf %641, %643 : vector<64x32xf32>
    %c888 = arith.constant 888 : index
    %c0_199 = arith.constant 0 : index
    %645 = vector.load %arg3[%c888, %c0_199] : memref<1480x32xf32, #tpu.memory_space<vmem>>, vector<32x32xf32>
    %646 = arith.truncf %636 : vector<9x32xf32> to vector<9x32xbf16>
    %647 = arith.truncf %645 : vector<32x32xf32> to vector<32x32xbf16>
    %cst_200 = arith.constant dense<0.000000e+00> : vector<9x32xf32>
    %648 = tpu.matmul %646, %647, %cst_200 {dimension_numbers = #tpu.dot_dimension_numbers<[1], [0], [0], [1], [0, 0, 1, 1], [], []>} : vector<9x32xbf16>, vector<32x32xbf16>, vector<9x32xf32> -> vector<9x32xf32>
    %649 = vector.extract_strided_slice %399 {offsets = [9, 0], sizes = [1, 32], strides = [1, 1]} : vector<16x32xf32> to vector<1x32xf32>
    %650 = vector.broadcast %649 : vector<1x32xf32> to vector<9x32xf32>
    %651 = arith.addf %648, %650 : vector<9x32xf32>
    %c920 = arith.constant 920 : index
    %c0_201 = arith.constant 0 : index
    %652 = vector.load %arg3[%c920, %c0_201] : memref<1480x32xf32, #tpu.memory_space<vmem>>, vector<32x32xf32>
    %653 = arith.truncf %635 : vector<9x32xf32> to vector<9x32xbf16>
    %654 = arith.truncf %652 : vector<32x32xf32> to vector<32x32xbf16>
    %cst_202 = arith.constant dense<0.000000e+00> : vector<9x32xf32>
    %655 = tpu.matmul %653, %654, %cst_202 {dimension_numbers = #tpu.dot_dimension_numbers<[1], [0], [0], [1], [0, 0, 1, 1], [], []>} : vector<9x32xbf16>, vector<32x32xbf16>, vector<9x32xf32> -> vector<9x32xf32>
    %656 = vector.extract_strided_slice %399 {offsets = [10, 0], sizes = [1, 32], strides = [1, 1]} : vector<16x32xf32> to vector<1x32xf32>
    %657 = vector.broadcast %656 : vector<1x32xf32> to vector<9x32xf32>
    %658 = arith.addf %655, %657 : vector<9x32xf32>
    %659 = tpu.transpose %651, [1, 0] : vector<9x32xf32> -> vector<32x9xf32>
    %660 = vector.extract_strided_slice %1 {offsets = [0, 0], sizes = [32, 1], strides = [1, 1]} : vector<32x2xf32> to vector<32x1xf32>
    %661 = vector.broadcast %660 : vector<32x1xf32> to vector<32x9xf32>
    %662 = arith.mulf %659, %661 : vector<32x9xf32>
    %663 = vector.extract_strided_slice %1 {offsets = [0, 1], sizes = [32, 1], strides = [1, 1]} : vector<32x2xf32> to vector<32x1xf32>
    %664 = vector.broadcast %663 : vector<32x1xf32> to vector<32x9xf32>
    %665 = arith.mulf %659, %664 : vector<32x9xf32>
    %666 = tpu.concatenate %662, %665 in 1 : vector<32x9xf32>, vector<32x9xf32> -> vector<32x18xf32>
    %667 = vector.extract_strided_slice %0 {offsets = [0, 0], sizes = [1, 32], strides = [1, 1]} : vector<2x32xf32> to vector<1x32xf32>
    %668 = vector.broadcast %667 : vector<1x32xf32> to vector<9x32xf32>
    %669 = arith.mulf %658, %668 : vector<9x32xf32>
    %670 = vector.extract_strided_slice %0 {offsets = [1, 0], sizes = [1, 32], strides = [1, 1]} : vector<2x32xf32> to vector<1x32xf32>
    %671 = vector.broadcast %670 : vector<1x32xf32> to vector<9x32xf32>
    %672 = arith.mulf %658, %671 : vector<9x32xf32>
    %673 = tpu.concatenate %669, %672 in 0 : vector<9x32xf32>, vector<9x32xf32> -> vector<18x32xf32>
    %674 = arith.truncf %644 : vector<64x32xf32> to vector<64x32xbf16>
    %675 = arith.truncf %666 : vector<32x18xf32> to vector<32x18xbf16>
    %cst_203 = arith.constant dense<0.000000e+00> : vector<64x18xf32>
    %676 = tpu.matmul %674, %675, %cst_203 {dimension_numbers = #tpu.dot_dimension_numbers<[1], [0], [0], [1], [0, 0, 1, 1], [], []>} : vector<64x32xbf16>, vector<32x18xbf16>, vector<64x18xf32> -> vector<64x18xf32>
    %cst_204 = arith.constant 2.500000e-01 : f32
    %677 = vector.broadcast %cst_204 : f32 to vector<64x18xf32>
    %678 = arith.mulf %676, %677 : vector<64x18xf32>
    %679 = vector.extract_strided_slice %678 {offsets = [0, 0], sizes = [64, 9], strides = [1, 1]} : vector<64x18xf32> to vector<64x9xf32>
    %cst_205 = arith.constant dense<0xFF800000> : vector<64xf32>
    %680 = vector.multi_reduction <maximumf>, %679, %cst_205 [1] : vector<64x9xf32> to vector<64xf32>
    %681 = vector.shape_cast %680 : vector<64xf32> to vector<64x1xf32>
    %682 = vector.broadcast %681 : vector<64x1xf32> to vector<64x9xf32>
    %683 = arith.subf %679, %682 : vector<64x9xf32>
    %684 = math.exp %683 : vector<64x9xf32>
    %cst_206 = arith.constant dense<0.000000e+00> : vector<64xf32>
    %685 = vector.multi_reduction <add>, %684, %cst_206 [1] : vector<64x9xf32> to vector<64xf32>
    %686 = vector.shape_cast %685 : vector<64xf32> to vector<64x1xf32>
    %687 = tpu.reciprocal %686 {approx = true} : vector<64x1xf32> -> vector<64x1xf32>
    %688 = vector.broadcast %687 : vector<64x1xf32> to vector<64x9xf32>
    %689 = arith.mulf %684, %688 : vector<64x9xf32>
    %690 = vector.extract_strided_slice %678 {offsets = [0, 9], sizes = [64, 9], strides = [1, 1]} : vector<64x18xf32> to vector<64x9xf32>
    %cst_207 = arith.constant dense<0xFF800000> : vector<64xf32>
    %691 = vector.multi_reduction <maximumf>, %690, %cst_207 [1] : vector<64x9xf32> to vector<64xf32>
    %692 = vector.shape_cast %691 : vector<64xf32> to vector<64x1xf32>
    %693 = vector.broadcast %692 : vector<64x1xf32> to vector<64x9xf32>
    %694 = arith.subf %690, %693 : vector<64x9xf32>
    %695 = math.exp %694 : vector<64x9xf32>
    %cst_208 = arith.constant dense<0.000000e+00> : vector<64xf32>
    %696 = vector.multi_reduction <add>, %695, %cst_208 [1] : vector<64x9xf32> to vector<64xf32>
    %697 = vector.shape_cast %696 : vector<64xf32> to vector<64x1xf32>
    %698 = tpu.reciprocal %697 {approx = true} : vector<64x1xf32> -> vector<64x1xf32>
    %699 = vector.broadcast %698 : vector<64x1xf32> to vector<64x9xf32>
    %700 = arith.mulf %695, %699 : vector<64x9xf32>
    %701 = tpu.concatenate %689, %700 in 1 : vector<64x9xf32>, vector<64x9xf32> -> vector<64x18xf32>
    %702 = arith.truncf %701 : vector<64x18xf32> to vector<64x18xbf16>
    %703 = arith.truncf %673 : vector<18x32xf32> to vector<18x32xbf16>
    %cst_209 = arith.constant dense<0.000000e+00> : vector<64x32xf32>
    %704 = tpu.matmul %702, %703, %cst_209 {dimension_numbers = #tpu.dot_dimension_numbers<[1], [0], [0], [1], [0, 0, 1, 1], [], []>} : vector<64x18xbf16>, vector<18x32xbf16>, vector<64x32xf32> -> vector<64x32xf32>
    %c952 = arith.constant 952 : index
    %c0_210 = arith.constant 0 : index
    %705 = vector.load %arg3[%c952, %c0_210] : memref<1480x32xf32, #tpu.memory_space<vmem>>, vector<32x32xf32>
    %706 = arith.truncf %704 : vector<64x32xf32> to vector<64x32xbf16>
    %707 = arith.truncf %705 : vector<32x32xf32> to vector<32x32xbf16>
    %cst_211 = arith.constant dense<0.000000e+00> : vector<64x32xf32>
    %708 = tpu.matmul %706, %707, %cst_211 {dimension_numbers = #tpu.dot_dimension_numbers<[1], [0], [0], [1], [0, 0, 1, 1], [], []>} : vector<64x32xbf16>, vector<32x32xbf16>, vector<64x32xf32> -> vector<64x32xf32>
    %709 = vector.extract_strided_slice %399 {offsets = [11, 0], sizes = [1, 32], strides = [1, 1]} : vector<16x32xf32> to vector<1x32xf32>
    %710 = vector.broadcast %709 : vector<1x32xf32> to vector<64x32xf32>
    %711 = arith.addf %708, %710 : vector<64x32xf32>
    %712 = arith.addf %397, %711 : vector<64x32xf32>
    %713 = vector.extract_strided_slice %400 {offsets = [3, 0], sizes = [1, 32], strides = [1, 1]} : vector<5x32xf32> to vector<1x32xf32>
    %714 = vector.extract_strided_slice %401 {offsets = [3, 0], sizes = [1, 32], strides = [1, 1]} : vector<5x32xf32> to vector<1x32xf32>
    %cst_212 = arith.constant dense<0.000000e+00> : vector<64xf32>
    %715 = vector.multi_reduction <add>, %712, %cst_212 [1] : vector<64x32xf32> to vector<64xf32>
    %716 = vector.shape_cast %715 : vector<64xf32> to vector<64x1xf32>
    %cst_213 = arith.constant 3.200000e+01 : f32
    %717 = vector.broadcast %cst_213 : f32 to vector<64x1xf32>
    %718 = arith.divf %716, %717 : vector<64x1xf32>
    %719 = vector.broadcast %718 : vector<64x1xf32> to vector<64x32xf32>
    %720 = arith.subf %712, %719 : vector<64x32xf32>
    %721 = arith.mulf %720, %720 : vector<64x32xf32>
    %cst_214 = arith.constant dense<0.000000e+00> : vector<64xf32>
    %722 = vector.multi_reduction <add>, %721, %cst_214 [1] : vector<64x32xf32> to vector<64xf32>
    %723 = vector.shape_cast %722 : vector<64xf32> to vector<64x1xf32>
    %cst_215 = arith.constant 3.200000e+01 : f32
    %724 = vector.broadcast %cst_215 : f32 to vector<64x1xf32>
    %725 = arith.divf %723, %724 : vector<64x1xf32>
    %cst_216 = arith.constant 9.99999974E-6 : f32
    %726 = vector.broadcast %cst_216 : f32 to vector<64x1xf32>
    %727 = arith.addf %725, %726 : vector<64x1xf32>
    %728 = math.rsqrt %727 : vector<64x1xf32>
    %729 = vector.broadcast %728 : vector<64x1xf32> to vector<64x32xf32>
    %730 = arith.mulf %720, %729 : vector<64x32xf32>
    %731 = vector.broadcast %713 : vector<1x32xf32> to vector<64x32xf32>
    %732 = arith.mulf %730, %731 : vector<64x32xf32>
    %733 = vector.broadcast %714 : vector<1x32xf32> to vector<64x32xf32>
    %734 = arith.addf %732, %733 : vector<64x32xf32>
    %735 = arith.addf %635, %393 : vector<9x32xf32>
    %736 = arith.addf %734, %398 : vector<64x32xf32>
    %c984 = arith.constant 984 : index
    %c0_217 = arith.constant 0 : index
    %737 = vector.load %arg3[%c984, %c0_217] : memref<1480x32xf32, #tpu.memory_space<vmem>>, vector<32x32xf32>
    %738 = arith.truncf %735 : vector<9x32xf32> to vector<9x32xbf16>
    %739 = arith.truncf %737 : vector<32x32xf32> to vector<32x32xbf16>
    %cst_218 = arith.constant dense<0.000000e+00> : vector<9x32xf32>
    %740 = tpu.matmul %738, %739, %cst_218 {dimension_numbers = #tpu.dot_dimension_numbers<[1], [0], [0], [1], [0, 0, 1, 1], [], []>} : vector<9x32xbf16>, vector<32x32xbf16>, vector<9x32xf32> -> vector<9x32xf32>
    %741 = vector.extract_strided_slice %399 {offsets = [12, 0], sizes = [1, 32], strides = [1, 1]} : vector<16x32xf32> to vector<1x32xf32>
    %742 = vector.broadcast %741 : vector<1x32xf32> to vector<9x32xf32>
    %743 = arith.addf %740, %742 : vector<9x32xf32>
    %c1016 = arith.constant 1016 : index
    %c0_219 = arith.constant 0 : index
    %744 = vector.load %arg3[%c1016, %c0_219] : memref<1480x32xf32, #tpu.memory_space<vmem>>, vector<32x32xf32>
    %745 = arith.truncf %736 : vector<64x32xf32> to vector<64x32xbf16>
    %746 = arith.truncf %744 : vector<32x32xf32> to vector<32x32xbf16>
    %cst_220 = arith.constant dense<0.000000e+00> : vector<64x32xf32>
    %747 = tpu.matmul %745, %746, %cst_220 {dimension_numbers = #tpu.dot_dimension_numbers<[1], [0], [0], [1], [0, 0, 1, 1], [], []>} : vector<64x32xbf16>, vector<32x32xbf16>, vector<64x32xf32> -> vector<64x32xf32>
    %748 = vector.extract_strided_slice %399 {offsets = [13, 0], sizes = [1, 32], strides = [1, 1]} : vector<16x32xf32> to vector<1x32xf32>
    %749 = vector.broadcast %748 : vector<1x32xf32> to vector<64x32xf32>
    %750 = arith.addf %747, %749 : vector<64x32xf32>
    %c1048 = arith.constant 1048 : index
    %c0_221 = arith.constant 0 : index
    %751 = vector.load %arg3[%c1048, %c0_221] : memref<1480x32xf32, #tpu.memory_space<vmem>>, vector<32x32xf32>
    %752 = arith.truncf %734 : vector<64x32xf32> to vector<64x32xbf16>
    %753 = arith.truncf %751 : vector<32x32xf32> to vector<32x32xbf16>
    %cst_222 = arith.constant dense<0.000000e+00> : vector<64x32xf32>
    %754 = tpu.matmul %752, %753, %cst_222 {dimension_numbers = #tpu.dot_dimension_numbers<[1], [0], [0], [1], [0, 0, 1, 1], [], []>} : vector<64x32xbf16>, vector<32x32xbf16>, vector<64x32xf32> -> vector<64x32xf32>
    %755 = vector.extract_strided_slice %399 {offsets = [14, 0], sizes = [1, 32], strides = [1, 1]} : vector<16x32xf32> to vector<1x32xf32>
    %756 = vector.broadcast %755 : vector<1x32xf32> to vector<64x32xf32>
    %757 = arith.addf %754, %756 : vector<64x32xf32>
    %758 = tpu.transpose %750, [1, 0] : vector<64x32xf32> -> vector<32x64xf32>
    %759 = vector.extract_strided_slice %1 {offsets = [0, 0], sizes = [32, 1], strides = [1, 1]} : vector<32x2xf32> to vector<32x1xf32>
    %760 = vector.broadcast %759 : vector<32x1xf32> to vector<32x64xf32>
    %761 = arith.mulf %758, %760 : vector<32x64xf32>
    %762 = vector.extract_strided_slice %1 {offsets = [0, 1], sizes = [32, 1], strides = [1, 1]} : vector<32x2xf32> to vector<32x1xf32>
    %763 = vector.broadcast %762 : vector<32x1xf32> to vector<32x64xf32>
    %764 = arith.mulf %758, %763 : vector<32x64xf32>
    %765 = tpu.concatenate %761, %764 in 1 : vector<32x64xf32>, vector<32x64xf32> -> vector<32x128xf32>
    %766 = vector.extract_strided_slice %0 {offsets = [0, 0], sizes = [1, 32], strides = [1, 1]} : vector<2x32xf32> to vector<1x32xf32>
    %767 = vector.broadcast %766 : vector<1x32xf32> to vector<64x32xf32>
    %768 = arith.mulf %757, %767 : vector<64x32xf32>
    %769 = vector.extract_strided_slice %0 {offsets = [1, 0], sizes = [1, 32], strides = [1, 1]} : vector<2x32xf32> to vector<1x32xf32>
    %770 = vector.broadcast %769 : vector<1x32xf32> to vector<64x32xf32>
    %771 = arith.mulf %757, %770 : vector<64x32xf32>
    %772 = tpu.concatenate %768, %771 in 0 : vector<64x32xf32>, vector<64x32xf32> -> vector<128x32xf32>
    %773 = arith.truncf %743 : vector<9x32xf32> to vector<9x32xbf16>
    %774 = arith.truncf %765 : vector<32x128xf32> to vector<32x128xbf16>
    %cst_223 = arith.constant dense<0.000000e+00> : vector<9x128xf32>
    %775 = tpu.matmul %773, %774, %cst_223 {dimension_numbers = #tpu.dot_dimension_numbers<[1], [0], [0], [1], [0, 0, 1, 1], [], []>} : vector<9x32xbf16>, vector<32x128xbf16>, vector<9x128xf32> -> vector<9x128xf32>
    %cst_224 = arith.constant 2.500000e-01 : f32
    %776 = vector.broadcast %cst_224 : f32 to vector<9x128xf32>
    %777 = arith.mulf %775, %776 : vector<9x128xf32>
    %778 = vector.extract_strided_slice %777 {offsets = [0, 0], sizes = [9, 64], strides = [1, 1]} : vector<9x128xf32> to vector<9x64xf32>
    %cst_225 = arith.constant dense<0xFF800000> : vector<9xf32>
    %779 = vector.multi_reduction <maximumf>, %778, %cst_225 [1] : vector<9x64xf32> to vector<9xf32>
    %780 = vector.shape_cast %779 : vector<9xf32> to vector<9x1xf32>
    %781 = vector.broadcast %780 : vector<9x1xf32> to vector<9x64xf32>
    %782 = arith.subf %778, %781 : vector<9x64xf32>
    %783 = math.exp %782 : vector<9x64xf32>
    %cst_226 = arith.constant dense<0.000000e+00> : vector<9xf32>
    %784 = vector.multi_reduction <add>, %783, %cst_226 [1] : vector<9x64xf32> to vector<9xf32>
    %785 = vector.shape_cast %784 : vector<9xf32> to vector<9x1xf32>
    %786 = tpu.reciprocal %785 {approx = true} : vector<9x1xf32> -> vector<9x1xf32>
    %787 = vector.broadcast %786 : vector<9x1xf32> to vector<9x64xf32>
    %788 = arith.mulf %783, %787 : vector<9x64xf32>
    %789 = vector.extract_strided_slice %777 {offsets = [0, 64], sizes = [9, 64], strides = [1, 1]} : vector<9x128xf32> to vector<9x64xf32>
    %cst_227 = arith.constant dense<0xFF800000> : vector<9xf32>
    %790 = vector.multi_reduction <maximumf>, %789, %cst_227 [1] : vector<9x64xf32> to vector<9xf32>
    %791 = vector.shape_cast %790 : vector<9xf32> to vector<9x1xf32>
    %792 = vector.broadcast %791 : vector<9x1xf32> to vector<9x64xf32>
    %793 = arith.subf %789, %792 : vector<9x64xf32>
    %794 = math.exp %793 : vector<9x64xf32>
    %cst_228 = arith.constant dense<0.000000e+00> : vector<9xf32>
    %795 = vector.multi_reduction <add>, %794, %cst_228 [1] : vector<9x64xf32> to vector<9xf32>
    %796 = vector.shape_cast %795 : vector<9xf32> to vector<9x1xf32>
    %797 = tpu.reciprocal %796 {approx = true} : vector<9x1xf32> -> vector<9x1xf32>
    %798 = vector.broadcast %797 : vector<9x1xf32> to vector<9x64xf32>
    %799 = arith.mulf %794, %798 : vector<9x64xf32>
    %800 = tpu.concatenate %788, %799 in 1 : vector<9x64xf32>, vector<9x64xf32> -> vector<9x128xf32>
    %801 = arith.truncf %800 : vector<9x128xf32> to vector<9x128xbf16>
    %802 = arith.truncf %772 : vector<128x32xf32> to vector<128x32xbf16>
    %cst_229 = arith.constant dense<0.000000e+00> : vector<9x32xf32>
    %803 = tpu.matmul %801, %802, %cst_229 {dimension_numbers = #tpu.dot_dimension_numbers<[1], [0], [0], [1], [0, 0, 1, 1], [], []>} : vector<9x128xbf16>, vector<128x32xbf16>, vector<9x32xf32> -> vector<9x32xf32>
    %c1080 = arith.constant 1080 : index
    %c0_230 = arith.constant 0 : index
    %804 = vector.load %arg3[%c1080, %c0_230] : memref<1480x32xf32, #tpu.memory_space<vmem>>, vector<32x32xf32>
    %805 = arith.truncf %803 : vector<9x32xf32> to vector<9x32xbf16>
    %806 = arith.truncf %804 : vector<32x32xf32> to vector<32x32xbf16>
    %cst_231 = arith.constant dense<0.000000e+00> : vector<9x32xf32>
    %807 = tpu.matmul %805, %806, %cst_231 {dimension_numbers = #tpu.dot_dimension_numbers<[1], [0], [0], [1], [0, 0, 1, 1], [], []>} : vector<9x32xbf16>, vector<32x32xbf16>, vector<9x32xf32> -> vector<9x32xf32>
    %808 = vector.extract_strided_slice %399 {offsets = [15, 0], sizes = [1, 32], strides = [1, 1]} : vector<16x32xf32> to vector<1x32xf32>
    %809 = vector.broadcast %808 : vector<1x32xf32> to vector<9x32xf32>
    %810 = arith.addf %807, %809 : vector<9x32xf32>
    %811 = arith.addf %635, %810 : vector<9x32xf32>
    %812 = vector.extract_strided_slice %400 {offsets = [4, 0], sizes = [1, 32], strides = [1, 1]} : vector<5x32xf32> to vector<1x32xf32>
    %813 = vector.extract_strided_slice %401 {offsets = [4, 0], sizes = [1, 32], strides = [1, 1]} : vector<5x32xf32> to vector<1x32xf32>
    %cst_232 = arith.constant dense<0.000000e+00> : vector<9xf32>
    %814 = vector.multi_reduction <add>, %811, %cst_232 [1] : vector<9x32xf32> to vector<9xf32>
    %815 = vector.shape_cast %814 : vector<9xf32> to vector<9x1xf32>
    %cst_233 = arith.constant 3.200000e+01 : f32
    %816 = vector.broadcast %cst_233 : f32 to vector<9x1xf32>
    %817 = arith.divf %815, %816 : vector<9x1xf32>
    %818 = vector.broadcast %817 : vector<9x1xf32> to vector<9x32xf32>
    %819 = arith.subf %811, %818 : vector<9x32xf32>
    %820 = arith.mulf %819, %819 : vector<9x32xf32>
    %cst_234 = arith.constant dense<0.000000e+00> : vector<9xf32>
    %821 = vector.multi_reduction <add>, %820, %cst_234 [1] : vector<9x32xf32> to vector<9xf32>
    %822 = vector.shape_cast %821 : vector<9xf32> to vector<9x1xf32>
    %cst_235 = arith.constant 3.200000e+01 : f32
    %823 = vector.broadcast %cst_235 : f32 to vector<9x1xf32>
    %824 = arith.divf %822, %823 : vector<9x1xf32>
    %cst_236 = arith.constant 9.99999974E-6 : f32
    %825 = vector.broadcast %cst_236 : f32 to vector<9x1xf32>
    %826 = arith.addf %824, %825 : vector<9x1xf32>
    %827 = math.rsqrt %826 : vector<9x1xf32>
    %828 = vector.broadcast %827 : vector<9x1xf32> to vector<9x32xf32>
    %829 = arith.mulf %819, %828 : vector<9x32xf32>
    %830 = vector.broadcast %812 : vector<1x32xf32> to vector<9x32xf32>
    %831 = arith.mulf %829, %830 : vector<9x32xf32>
    %832 = vector.broadcast %813 : vector<1x32xf32> to vector<9x32xf32>
    %833 = arith.addf %831, %832 : vector<9x32xf32>
    %c1216 = arith.constant 1216 : index
    %c0_237 = arith.constant 0 : index
    %834 = vector.load %arg3[%c1216, %c0_237] : memref<1480x32xf32, #tpu.memory_space<vmem>>, vector<32x16xf32>
    %835 = arith.truncf %734 : vector<64x32xf32> to vector<64x32xbf16>
    %836 = arith.truncf %834 : vector<32x16xf32> to vector<32x16xbf16>
    %cst_238 = arith.constant dense<0.000000e+00> : vector<64x16xf32>
    %837 = tpu.matmul %835, %836, %cst_238 {dimension_numbers = #tpu.dot_dimension_numbers<[1], [0], [0], [1], [0, 0, 1, 1], [], []>} : vector<64x32xbf16>, vector<32x16xbf16>, vector<64x16xf32> -> vector<64x16xf32>
    %c1248 = arith.constant 1248 : index
    %c0_239 = arith.constant 0 : index
    %838 = vector.load %arg3[%c1248, %c0_239] : memref<1480x32xf32, #tpu.memory_space<vmem>>, vector<1x16xf32>
    %839 = vector.broadcast %838 : vector<1x16xf32> to vector<64x16xf32>
    %840 = arith.addf %837, %839 : vector<64x16xf32>
    %841 = arith.mulf %840, %840 : vector<64x16xf32>
    %842 = arith.mulf %840, %841 : vector<64x16xf32>
    %cst_240 = arith.constant 4.471500e-02 : f32
    %843 = vector.broadcast %cst_240 : f32 to vector<64x16xf32>
    %844 = arith.mulf %843, %842 : vector<64x16xf32>
    %845 = arith.addf %840, %844 : vector<64x16xf32>
    %cst_241 = arith.constant 0.797884583 : f32
    %846 = vector.broadcast %cst_241 : f32 to vector<64x16xf32>
    %847 = arith.mulf %846, %845 : vector<64x16xf32>
    %848 = math.tanh %847 : vector<64x16xf32>
    %cst_242 = arith.constant 1.000000e+00 : f32
    %849 = vector.broadcast %cst_242 : f32 to vector<64x16xf32>
    %850 = arith.addf %849, %848 : vector<64x16xf32>
    %cst_243 = arith.constant 5.000000e-01 : f32
    %851 = vector.broadcast %cst_243 : f32 to vector<64x16xf32>
    %852 = arith.mulf %851, %850 : vector<64x16xf32>
    %853 = arith.mulf %840, %852 : vector<64x16xf32>
    %c1256 = arith.constant 1256 : index
    %c0_244 = arith.constant 0 : index
    %854 = vector.load %arg3[%c1256, %c0_244] : memref<1480x32xf32, #tpu.memory_space<vmem>>, vector<16x4xf32>
    %855 = arith.truncf %853 : vector<64x16xf32> to vector<64x16xbf16>
    %856 = arith.truncf %854 : vector<16x4xf32> to vector<16x4xbf16>
    %cst_245 = arith.constant dense<0.000000e+00> : vector<64x4xf32>
    %857 = tpu.matmul %855, %856, %cst_245 {dimension_numbers = #tpu.dot_dimension_numbers<[1], [0], [0], [1], [0, 0, 1, 1], [], []>} : vector<64x16xbf16>, vector<16x4xbf16>, vector<64x4xf32> -> vector<64x4xf32>
    %c1272 = arith.constant 1272 : index
    %c0_246 = arith.constant 0 : index
    %858 = vector.load %arg3[%c1272, %c0_246] : memref<1480x32xf32, #tpu.memory_space<vmem>>, vector<1x4xf32>
    %859 = vector.broadcast %858 : vector<1x4xf32> to vector<64x4xf32>
    %860 = arith.addf %857, %859 : vector<64x4xf32>
    %861 = vector.extract_strided_slice %833 {offsets = [1, 0], sizes = [1, 32], strides = [1, 1]} : vector<9x32xf32> to vector<1x32xf32>
    %c1280_247 = arith.constant 1280 : index
    %c0_248 = arith.constant 0 : index
    %862 = vector.load %arg3[%c1280_247, %c0_248] : memref<1480x32xf32, #tpu.memory_space<vmem>>, vector<32x32xf32>
    %863 = arith.truncf %861 : vector<1x32xf32> to vector<1x32xbf16>
    %864 = arith.truncf %862 : vector<32x32xf32> to vector<32x32xbf16>
    %cst_249 = arith.constant dense<0.000000e+00> : vector<1x32xf32>
    %865 = tpu.matmul %863, %864, %cst_249 {dimension_numbers = #tpu.dot_dimension_numbers<[1], [0], [0], [1], [0, 0, 1, 1], [], []>} : vector<1x32xbf16>, vector<32x32xbf16>, vector<1x32xf32> -> vector<1x32xf32>
    %c1312 = arith.constant 1312 : index
    %c0_250 = arith.constant 0 : index
    %866 = vector.load %arg3[%c1312, %c0_250] : memref<1480x32xf32, #tpu.memory_space<vmem>>, vector<1x32xf32>
    %867 = arith.addf %865, %866 : vector<1x32xf32>
    %868 = arith.mulf %867, %867 : vector<1x32xf32>
    %869 = arith.mulf %867, %868 : vector<1x32xf32>
    %cst_251 = arith.constant 4.471500e-02 : f32
    %870 = vector.broadcast %cst_251 : f32 to vector<1x32xf32>
    %871 = arith.mulf %870, %869 : vector<1x32xf32>
    %872 = arith.addf %867, %871 : vector<1x32xf32>
    %cst_252 = arith.constant 0.797884583 : f32
    %873 = vector.broadcast %cst_252 : f32 to vector<1x32xf32>
    %874 = arith.mulf %873, %872 : vector<1x32xf32>
    %875 = math.tanh %874 : vector<1x32xf32>
    %cst_253 = arith.constant 1.000000e+00 : f32
    %876 = vector.broadcast %cst_253 : f32 to vector<1x32xf32>
    %877 = arith.addf %876, %875 : vector<1x32xf32>
    %cst_254 = arith.constant 5.000000e-01 : f32
    %878 = vector.broadcast %cst_254 : f32 to vector<1x32xf32>
    %879 = arith.mulf %878, %877 : vector<1x32xf32>
    %880 = arith.mulf %867, %879 : vector<1x32xf32>
    %c1320 = arith.constant 1320 : index
    %c0_255 = arith.constant 0 : index
    %881 = vector.load %arg3[%c1320, %c0_255] : memref<1480x32xf32, #tpu.memory_space<vmem>>, vector<32x4xf32>
    %882 = arith.truncf %880 : vector<1x32xf32> to vector<1x32xbf16>
    %883 = arith.truncf %881 : vector<32x4xf32> to vector<32x4xbf16>
    %cst_256 = arith.constant dense<0.000000e+00> : vector<1x4xf32>
    %884 = tpu.matmul %882, %883, %cst_256 {dimension_numbers = #tpu.dot_dimension_numbers<[1], [0], [0], [1], [0, 0, 1, 1], [], []>} : vector<1x32xbf16>, vector<32x4xbf16>, vector<1x4xf32> -> vector<1x4xf32>
    %c1352 = arith.constant 1352 : index
    %c0_257 = arith.constant 0 : index
    %885 = vector.load %arg3[%c1352, %c0_257] : memref<1480x32xf32, #tpu.memory_space<vmem>>, vector<1x4xf32>
    %886 = arith.addf %884, %885 : vector<1x4xf32>
    %887 = vector.broadcast %886 : vector<1x4xf32> to vector<64x4xf32>
    %888 = arith.mulf %860, %887 : vector<64x4xf32>
    %cst_258 = arith.constant dense<0.000000e+00> : vector<64xf32>
    %889 = vector.multi_reduction <add>, %888, %cst_258 [1] : vector<64x4xf32> to vector<64xf32>
    %890 = vector.shape_cast %889 : vector<64xf32> to vector<64x1xf32>
    %c1360_259 = arith.constant 1360 : index
    %c0_260 = arith.constant 0 : index
    %891 = vector.load %arg5[%c1360_259, %c0_260] : memref<1568x256xbf16, #tpu.memory_space<vmem>>, vector<4x64xbf16>
    %892 = arith.extf %891 : vector<4x64xbf16> to vector<4x64xf32>
    %c1376_261 = arith.constant 1376 : index
    %c0_262 = arith.constant 0 : index
    %893 = vector.load %arg5[%c1376_261, %c0_262] : memref<1568x256xbf16, #tpu.memory_space<vmem>>, vector<64x256xbf16>
    %894 = arith.extf %893 : vector<64x256xbf16> to vector<64x256xf32>
    %895 = vector.broadcast %890 : vector<64x1xf32> to vector<64x256xf32>
    %896 = arith.mulf %895, %894 : vector<64x256xf32>
    %cst_263 = arith.constant dense<0.000000e+00> : vector<4x256xf32>
    %897 = tpu.matmul %892, %896, %cst_263 {dimension_numbers = #tpu.dot_dimension_numbers<[1], [0], [0], [1], [0, 0, 1, 1], [], []>} : vector<4x64xf32>, vector<64x256xf32>, vector<4x256xf32> -> vector<4x256xf32>
    %cst_264 = arith.constant 0.000000e+00 : f32
    %898 = vector.broadcast %cst_264 : f32 to vector<3x256xf32>
    %899 = tpu.concatenate %897, %387, %898 in 0 : vector<4x256xf32>, vector<1x256xf32>, vector<3x256xf32> -> vector<8x256xf32>
    %c0_265 = arith.constant 0 : index
    %c0_266 = arith.constant 0 : index
    %c0_267 = arith.constant 0 : index
    %900 = vector.load %arg6[%c0_265, %c0_266, %c0_267] : memref<1x8x256xf32, #tpu.memory_space<vmem>>, vector<1x8x256xf32>
    %901 = vector.shape_cast %900 : vector<1x8x256xf32> to vector<8x256xf32>
    %902 = vector.shape_cast %899 : vector<8x256xf32> to vector<1x8x256xf32>
    tpu.vector_store %arg6[%c0_265, %c0_266, %c0_267], %902 {strides = array<i32>} : memref<1x8x256xf32, #tpu.memory_space<vmem>>, vector<1x8x256xf32>,
    return
  }
  func.func @transform_0(%arg0: i32) -> (i32, i32, i32) {
    %c0_i32 = arith.constant 0 : i32
    %c0_i32_0 = arith.constant 0 : i32
    %c0_i32_1 = arith.constant 0 : i32
    return %arg0, %c0_i32, %c0_i32_0 : i32, i32, i32
  }
  func.func @transform_1(%arg0: i32) -> (i32, i32, i32) {
    %c0_i32 = arith.constant 0 : i32
    %c0_i32_0 = arith.constant 0 : i32
    %c0_i32_1 = arith.constant 0 : i32
    return %arg0, %c0_i32, %c0_i32_0 : i32, i32, i32
  }
  func.func @transform_2(%arg0: i32) -> (i32, i32) {
    %c0_i32 = arith.constant 0 : i32
    %c0_i32_0 = arith.constant 0 : i32
    %c0_i32_1 = arith.constant 0 : i32
    return %c0_i32, %c0_i32_0 : i32, i32
  }
  func.func @transform_3(%arg0: i32) -> (i32, i32) {
    %c0_i32 = arith.constant 0 : i32
    %c0_i32_0 = arith.constant 0 : i32
    %c0_i32_1 = arith.constant 0 : i32
    return %c0_i32, %c0_i32_0 : i32, i32
  }
  func.func @transform_4(%arg0: i32) -> (i32, i32) {
    %c0_i32 = arith.constant 0 : i32
    %c0_i32_0 = arith.constant 0 : i32
    %c0_i32_1 = arith.constant 0 : i32
    return %c0_i32, %c0_i32_0 : i32, i32
  }
  func.func @transform_5(%arg0: i32) -> (i32, i32, i32) {
    %c0_i32 = arith.constant 0 : i32
    %c0_i32_0 = arith.constant 0 : i32
    %c0_i32_1 = arith.constant 0 : i32
    return %arg0, %c0_i32, %c0_i32_0 : i32, i32, i32
  }
}

</mosaic_0001>

<llo_original>
// kernel: forward.1
$region0: #{forward.1}
  #allocation0 [shape = 'u32[]', space=smem, size = 0x4, offset = 0x4, fixed_abs, tag = 'smem constant byte address 0x4 - core index']
  #allocation1 [shape = 'u32[72,128]{1,0:T(1,128)}', space=vmem, size = 0x9000, scoped, tag = 'internal scratch']
  %s0 = inlined_call_operand.vmem [shape: f32[2,3,1024], index: 0, kind: input, shape index: {}]
  %s1 = inlined_call_operand.vmem [shape: f32[2,64,48], index: 1, kind: input, shape index: {}]
  %s2 = inlined_call_operand.vmem [shape: f32[1480,32], index: 2, kind: input, shape index: {}]
  %s3 = inlined_call_operand.vmem [shape: f32[352,256], index: 3, kind: input, shape index: {}]
  %s4 = inlined_call_operand.vmem [shape: bf16[1568,256], index: 4, kind: input, shape index: {}]
  %s5 = inlined_call_operand.vmem [shape: f32[2,8,256], index: 5, kind: output, shape index: {}]
  %s6 = sld [smem:[#allocation0]]
  $region53: #{forward.1} parent=0
    _
  %s8 = ssub.s32 1, %s6
  %s9 = scalar_select 0, %s8, %s6
  loop: start=0, step=1, limit=4
  $region2: #{forward.1} parent=0 // loop_pre_header
    _
  $region3: #{forward.1} parent=0 // loop_header
    %s11 = sphi 0, %s15
    %p12 = scmp.ge.s32.totalorder %s11, 4
    %s21 = sphi 0, %s23
    %s24 = sphi 0, %s21
    %s25 = sphi 0, %s24
    %s41 = sphi 0, %s25
    %s47 = sphi 0, %s49
    %s50 = sphi 0, %s47
    %s51 = sphi 0, %s50
    %s67 = sphi 0, %s51
    %s71 = sphi 0, %s71
    %s73 = sphi 0, %s71
    %s74 = sphi 0, %s73
    %s88 = sphi 0, %s74
    %s92 = sphi 0, %s92
    %s94 = sphi 0, %s92
    %s95 = sphi 0, %s94
    %s109 = sphi 0, %s95
    %s113 = sphi 0, %s113
    %s115 = sphi 0, %s113
    %s116 = sphi 0, %s115
    %s130 = sphi 0, %s116
    %s136 = sphi 0, %s138
    %s139 = sphi 0, %s136
    %s140 = sphi 0, %s139
    %s156 = sphi 0, %s140
  $region4: #{forward.1} parent=0 // loop_header_branch
    %14 = sbr.rel (%p12) target = $region8
  $region5: #{forward.1} parent=0 // loop_body
    %s16 = ssub.s32 %s11, 1
    %s17 = ssub.s32 %s11, 2
    %s18 = sadd.s32 %s11, 1
    %s19 = ssub.s32 %s11, %s18
    %p20 = scmp.eq.s32.totalorder %s19, 0
    %s22 = sadd.s32 %s21, 1
    %s23 = scalar_select %p20, %s21, %s22
    %p26 = pneg %p20
    %p27 = scmp.eq.s32.totalorder %s11, 1
    %p28 = por %p26, %p27
    %p29 = scmp.ne.s32.totalorder %s21, %s24
    %p30 = scmp.eq.s32.totalorder %s11, 0
    %p31 = por %p29, %p30
    %p32 = scmp.ne.s32.totalorder %s21, %s24
    %p33 = scmp.eq.s32.totalorder %s16, 1
    %p34 = por %p32, %p33
    %p35 = scmp.ne.s32.totalorder %s24, %s25
    %p36 = scmp.eq.s32.totalorder %s16, 0
    %p37 = por %p35, %p36
    %p38 = scmp.ne.s32.totalorder %s24, %s25
    %p39 = scmp.eq.s32.totalorder %s17, 1
    %p40 = por %p38, %p39
    %p42 = scmp.ne.s32.totalorder %s25, %s41
    %p43 = scmp.eq.s32.totalorder %s17, 0
    %p44 = por %p42, %p43
    %s45 = ssub.s32 %s11, %s18
    %p46 = scmp.eq.s32.totalorder %s45, 0
    %s48 = sadd.s32 %s47, 1
    %s49 = scalar_select %p46, %s47, %s48
    %p52 = pneg %p46
    %p53 = scmp.eq.s32.totalorder %s11, 1
    %p54 = por %p52, %p53
    %p55 = scmp.ne.s32.totalorder %s47, %s50
    %p56 = scmp.eq.s32.totalorder %s11, 0
    %p57 = por %p55, %p56
    %p58 = scmp.ne.s32.totalorder %s47, %s50
    %p59 = scmp.eq.s32.totalorder %s16, 1
    %p60 = por %p58, %p59
    %p61 = scmp.ne.s32.totalorder %s50, %s51
    %p62 = scmp.eq.s32.totalorder %s16, 0
    %p63 = por %p61, %p62
    %p64 = scmp.ne.s32.totalorder %s50, %s51
    %p65 = scmp.eq.s32.totalorder %s17, 1
    %p66 = por %p64, %p65
    %p68 = scmp.ne.s32.totalorder %s51, %s67
    %p69 = scmp.eq.s32.totalorder %s17, 0
    %p70 = por %p68, %p69
    %s72 = sadd.s32 %s71, 1
    %p75 = scmp.eq.s32.totalorder %s11, 1
    %p76 = scmp.ne.s32.totalorder %s71, %s73
    %p77 = scmp.eq.s32.totalorder %s11, 0
    %p78 = por %p76, %p77
    %p79 = scmp.ne.s32.totalorder %s71, %s73
    %p80 = scmp.eq.s32.totalorder %s16, 1
    %p81 = por %p79, %p80
    %p82 = scmp.ne.s32.totalorder %s73, %s74
    %p83 = scmp.eq.s32.totalorder %s16, 0
    %p84 = por %p82, %p83
    %p85 = scmp.ne.s32.totalorder %s73, %s74
    %p86 = scmp.eq.s32.totalorder %s17, 1
    %p87 = por %p85, %p86
    %p89 = scmp.ne.s32.totalorder %s74, %s88
    %p90 = scmp.eq.s32.totalorder %s17, 0
    %p91 = por %p89, %p90
    %s93 = sadd.s32 %s92, 1
    %p96 = scmp.eq.s32.totalorder %s11, 1
    %p97 = scmp.ne.s32.totalorder %s92, %s94
    %p98 = scmp.eq.s32.totalorder %s11, 0
    %p99 = por %p97, %p98
    %p100 = scmp.ne.s32.totalorder %s92, %s94
    %p101 = scmp.eq.s32.totalorder %s16, 1
    %p102 = por %p100, %p101
    %p103 = scmp.ne.s32.totalorder %s94, %s95
    %p104 = scmp.eq.s32.totalorder %s16, 0
    %p105 = por %p103, %p104
    %p106 = scmp.ne.s32.totalorder %s94, %s95
    %p107 = scmp.eq.s32.totalorder %s17, 1
    %p108 = por %p106, %p107
    %p110 = scmp.ne.s32.totalorder %s95, %s109
    %p111 = scmp.eq.s32.totalorder %s17, 0
    %p112 = por %p110, %p111
    %s114 = sadd.s32 %s113, 1
    %p117 = scmp.eq.s32.totalorder %s11, 1
    %p118 = scmp.ne.s32.totalorder %s113, %s115
    %p119 = scmp.eq.s32.totalorder %s11, 0
    %p120 = por %p118, %p119
    %p121 = scmp.ne.s32.totalorder %s113, %s115
    %p122 = scmp.eq.s32.totalorder %s16, 1
    %p123 = por %p121, %p122
    %p124 = scmp.ne.s32.totalorder %s115, %s116
    %p125 = scmp.eq.s32.totalorder %s16, 0
    %p126 = por %p124, %p125
    %p127 = scmp.ne.s32.totalorder %s115, %s116
    %p128 = scmp.eq.s32.totalorder %s17, 1
    %p129 = por %p127, %p128
    %p131 = scmp.ne.s32.totalorder %s116, %s130
    %p132 = scmp.eq.s32.totalorder %s17, 0
    %p133 = por %p131, %p132
    %s134 = ssub.s32 %s11, %s18
    %p135 = scmp.eq.s32.totalorder %s134, 0
    %s137 = sadd.s32 %s136, 1
    %s138 = scalar_select %p135, %s136, %s137
    %p141 = pneg %p135
    %p142 = scmp.eq.s32.totalorder %s11, 1
    %p143 = por %p141, %p142
    %p144 = scmp.ne.s32.totalorder %s136, %s139
    %p145 = scmp.eq.s32.totalorder %s11, 0
    %p146 = por %p144, %p145
    %p147 = scmp.ne.s32.totalorder %s136, %s139
    %p148 = scmp.eq.s32.totalorder %s16, 1
    %p149 = por %p147, %p148
    %p150 = scmp.ne.s32.totalorder %s139, %s140
    %p151 = scmp.eq.s32.totalorder %s16, 0
    %p152 = por %p150, %p151
    %p153 = scmp.ne.s32.totalorder %s139, %s140
    %p154 = scmp.eq.s32.totalorder %s17, 1
    %p155 = por %p153, %p154
    %p157 = scmp.ne.s32.totalorder %s140, %s156
    %p158 = scmp.eq.s32.totalorder %s17, 0
    %p159 = por %p157, %p158
    %p160 = scmp.le.s32.totalorder 1, %s11
    %p161 = scmp.lt.s32.totalorder %s11, 3
    %p162 = pnand %p160, %p161
    %p163 = pneg %p162
    // Predicated region
    $region9: #{forward.1} parent=5 // pred_check
      _
    $region10: #{forward.1} parent=5 // pred_check_branch
      %165 = sbr.rel (%p162) target = $region12
    $region11: #{forward.1} parent=5 // pred_region
      %s166 = ssub.s32 %s11, 1
      // Predicated region
      $region13: #{forward.1} parent=11 // pred_check
        %p167 = pneg %p84
      $region14: #{forward.1} parent=11 // pred_check_branch
        %169 = sbr.rel (%p167) target = $region16
      $region15: #{forward.1} parent=11 // pred_region
        _
      $region16: #{forward.1} parent=11 // pred_fallthru
        _
      // Predicated region
      $region17: #{forward.1} parent=11 // pred_check
        %p170 = pneg %p105
      $region18: #{forward.1} parent=11 // pred_check_branch
        %172 = sbr.rel (%p170) target = $region20
      $region19: #{forward.1} parent=11 // pred_region
        _
      $region20: #{forward.1} parent=11 // pred_fallthru
        _
      // Predicated region
      $region21: #{forward.1} parent=11 // pred_check
        %p173 = pneg %p126
      $region22: #{forward.1} parent=11 // pred_check_branch
        %175 = sbr.rel (%p173) target = $region24
      $region23: #{forward.1} parent=11 // pred_region
        _
      $region24: #{forward.1} parent=11 // pred_fallthru
        _
    $region12: #{forward.1} parent=5 // pred_fallthru
      _
    %p176 = scmp.lt.s32.totalorder %s11, 2
    // Predicated region
    $region25: #{forward.1} parent=5 // pred_check
      %p177 = pneg %p176
    $region26: #{forward.1} parent=5 // pred_check_branch
      %179 = sbr.rel (%p177) target = $region28
    $region27: #{forward.1} parent=5 // pred_region
      // Predicated region
      $region29: #{forward.1} parent=27 // pred_check
        %p180 = pneg %p31
      $region30: #{forward.1} parent=27 // pred_check_branch
        %182 = sbr.rel (%p180) target = $region32
      $region31: #{forward.1} parent=27 // pred_region
        %p183 = scmp.lt.s32.totalorder %s11, 1
        %s184 = scalar_select %p183, %s11, 1
        %s185 = smul.addr %s184, 8
        %s186 = smul.addr %s185, 4
        %s187 = scalar_lea.vmem %s0, %s186
      $region32: #{forward.1} parent=27 // pred_fallthru
        _
      // Predicated region
      $region33: #{forward.1} parent=27 // pred_check
        %p188 = pneg %p57
      $region34: #{forward.1} parent=27 // pred_check_branch
        %190 = sbr.rel (%p188) target = $region36
      $region35: #{forward.1} parent=27 // pred_region
        %p191 = scmp.lt.s32.totalorder %s11, 1
        %s192 = scalar_select %p191, %s11, 1
        %s193 = smul.addr %s192, 8
        %s194 = smul.addr %s193, 8
        %s195 = scalar_lea.vmem %s1, %s194
      $region36: #{forward.1} parent=27 // pred_fallthru
        _
    $region28: #{forward.1} parent=5 // pred_fallthru
      _
    %p196 = scmp.le.s32.totalorder 1, %s11
    %p197 = scmp.lt.s32.totalorder %s11, 3
    %p198 = pnand %p196, %p197
    %p199 = pneg %p198
    // Predicated region
    $region37: #{forward.1} parent=5 // pred_check
      _
    $region38: #{forward.1} parent=5 // pred_check_branch
      %201 = sbr.rel (%p198) target = $region40
    $region39: #{forward.1} parent=5 // pred_region
      %s202 = ssub.s32 %s11, 1
      %p203 = scmp.lt.s32.totalorder %s16, 1
      %s204 = scalar_select %p203, %s16, 1
      %s205 = smul.addr %s204, 8
      %s206 = smul.addr %s205, 4
      %s207 = scalar_lea.vmem %s0, %s206
      %p208 = pneg %p37
      %p209 = pneg %p34
      %p210 = scmp.lt.s32.totalorder %s16, 1
      %s211 = scalar_select %p210, %s16, 1
      %s212 = smul.addr %s211, 8
      %s213 = smul.addr %s212, 8
      %s214 = scalar_lea.vmem %s1, %s213
      %p215 = pneg %p63
      %p216 = pneg %p60
      %p217 = pneg %p84
      %p218 = pneg %p81
      %p219 = pneg %p105
      %p220 = pneg %p102
      %p221 = pneg %p126
      %p222 = pneg %p123
      %p223 = pneg %p152
      %p224 = pneg %p149
      %p225 = scmp.lt.s32.totalorder %s16, 1
      %s226 = scalar_select %p225, %s16, 1
      %s227 = smul.addr %s226, 2
      %s228 = smul.addr %s227, 8
      %s229 = scalar_lea.vmem %s5, %s228
      %p230 = scmp.lt.s32.totalorder %s16, 1
      %s231 = scalar_select %p230, %s16, 1
      %s232 = smul.addr %s231, 8
      %s233 = smul.addr %s232, 4
      %s234 = scalar_lea.vmem %s0, %s233
      %p235 = scmp.lt.s32.totalorder %s16, 1
      %s236 = scalar_select %p235, %s16, 1
      %s237 = smul.addr %s236, 8
      %s238 = smul.addr %s237, 8
      %s239 = scalar_lea.vmem %s1, %s238
      %p240 = scmp.lt.s32.totalorder %s16, 1
      %s241 = scalar_select %p240, %s16, 1
      %s242 = smul.addr %s241, 2
      %s243 = smul.addr %s242, 8
      %s244 = scalar_lea.vmem %s5, %s243
      %v246 = vld [vmem:[%s2 + $0x5a0] sm:$0x3]
      %v247 = vld [vmem:[%s2 + $0x5a8] sm:$0xff]
      %v248 = vld [vmem:[%s2 + $0x5b0] sm:$0xff]
      %v249 = vld [vmem:[%s2 + $0x5b8] sm:$0xff]
      %v250 = vld [vmem:[%s2 + $0x5c0] sm:$0xff]
      %v251 = vld [vmem:[%s234] sm:$0x77]
      %v252 = vld [vmem:[%s234 + $0x8] sm:$0x77]
      %v253 = vld [vmem:[%s234 + $0x10] sm:$0x77]
      %v254 = vld [vmem:[%s234 + $0x18] sm:$0x77]
      %v255 = vld [vmem:[%s2] sm:$0xff]
      %v256 = vpack.c.bf16 %v255, %v255
      %261 = vst [vmem:[#allocation1] ss:$2 sm:$0xff] %v251
      %s262 = scalar_lea.vmem [#allocation1], 16
      %263 = vst [vmem:[%s262] ss:$2 sm:$0xff] %v252
      %s264 = scalar_lea.vmem [#allocation1], 32
      %265 = vst [vmem:[%s264] ss:$2 sm:$0xff] %v253
      %s266 = scalar_lea.vmem [#allocation1], 48
      %267 = vst [vmem:[%s266] ss:$2 sm:$0xff] %v254
      %v268 = vld.sshfl [vmem:[#allocation1] sm:$0xff pattern:$0x75316420]
      %v269 = vld.sshfl [vmem:[#allocation1 + $0x8] sm:$0xff pattern:$0x75316420]
      %v270 = vld.sshfl [vmem:[#allocation1 + $0x10] sm:$0xff pattern:$0x75316420]
      %v271 = vld.sshfl [vmem:[#allocation1 + $0x18] sm:$0xff pattern:$0x75316420]
      %v272 = vld.sshfl [vmem:[#allocation1 + $0x20] sm:$0xff pattern:$0x75316420]
      %v273 = vld.sshfl [vmem:[#allocation1 + $0x28] sm:$0xff pattern:$0x75316420]
      %v274 = vld.sshfl [vmem:[#allocation1 + $0x30] sm:$0xff pattern:$0x75316420]
      %v275 = vld.sshfl [vmem:[#allocation1 + $0x38] sm:$0xff pattern:$0x75316420]
      %v284 = vpack.c.bf16 %v268, %v268
      %v285 = vpack.c.bf16 %v269, %v269
      %v286 = vpack.c.bf16 %v270, %v270
      %v287 = vpack.c.bf16 %v271, %v271
      %v288 = vpack.c.bf16 %v272, %v272
      %v289 = vpack.c.bf16 %v273, %v273
      %v290 = vpack.c.bf16 %v274, %v274
      %v291 = vpack.c.bf16 %v275, %v275
      %v292 = vld [vmem:[%s2 + $0x8] sm:$0xff]
      %294 = vset.pattern.permute.xlu0 0
      %295 = vperm.xlu0 %294, %v292
      %v296 = vpop.permute.xlu0 %295
      %vm298 = vcmask 23552
      %v300 = vsel %vm298, %v256, 0
      %vm302 = vcmask 1040384
      %vm303 = vcmask 1041408
      %v304 = vsel %vm302, 4294967295, 65535
      %v305 = vsel %vm303, %v304, 0
      %v307 = vand.u32 %v284, %v305
      %v310 = vand.u32 %v285, %v305
      %v313 = vand.u32 %v286, %v305
      %v316 = vand.u32 %v287, %v305
      %v319 = vand.u32 %v288, %v305
      %v322 = vand.u32 %v289, %v305
      %v325 = vand.u32 %v290, %v305
      %v328 = vand.u32 %v291, %v305
      %330 = vmatpush.bf16.msra.mxu0 0
      %331 = vmatpush.bf16.msra.mxu0 0
      %332 = vmatpush.bf16.msra.mxu0 0
      %333 = vmatpush.bf16.msra.mxu0 0
      %334 = vmatpush.bf16.msra.mxu0 0
      %335 = vmatpush.bf16.msra.mxu0 0
      %336 = vmatpush.bf16.msra.mxu0 0
      %337 = vmatpush.bf16.msra.mxu0 %v307
      %338 = vmatmul.bf16.gmra.mxu0 %v300
      %v339 = vpop.f32.mrf.mxu0
      %v340 = vadd.f32 %v296, %v339
      %v341 = vpop.f32.mrf.mxu0
      %342 = vdwg.mxu0
      %343 = vmatpush.bf16.msra.mxu0 0
      %344 = vmatpush.bf16.msra.mxu0 0
      %345 = vmatpush.bf16.msra.mxu0 0
      %346 = vmatpush.bf16.msra.mxu0 0
      %347 = vmatpush.bf16.msra.mxu0 0
      %348 = vmatpush.bf16.msra.mxu0 0
      %349 = vmatpush.bf16.msra.mxu0 0
      %350 = vmatpush.bf16.msra.mxu0 %v310
      %351 = vmatmul.bf16.gmra.mxu0 %v300
      %v352 = vpop.f32.mrf.mxu0
      %v353 = vadd.f32 %v296, %v352
      %v354 = vpop.f32.mrf.mxu0
      %355 = vdwg.mxu0
      %356 = vmatpush.bf16.msra.mxu0 0
      %357 = vmatpush.bf16.msra.mxu0 0
      %358 = vmatpush.bf16.msra.mxu0 0
      %359 = vmatpush.bf16.msra.mxu0 0
      %360 = vmatpush.bf16.msra.mxu0 0
      %361 = vmatpush.bf16.msra.mxu0 0
      %362 = vmatpush.bf16.msra.mxu0 0
      %363 = vmatpush.bf16.msra.mxu0 %v313
      %364 = vmatmul.bf16.gmra.mxu0 %v300
      %v365 = vpop.f32.mrf.mxu0
      %v366 = vadd.f32 %v296, %v365
      %v367 = vpop.f32.mrf.mxu0
      %368 = vdwg.mxu0
      %369 = vmatpush.bf16.msra.mxu0 0
      %370 = vmatpush.bf16.msra.mxu0 0
      %371 = vmatpush.bf16.msra.mxu0 0
      %372 = vmatpush.bf16.msra.mxu0 0
      %373 = vmatpush.bf16.msra.mxu0 0
      %374 = vmatpush.bf16.msra.mxu0 0
      %375 = vmatpush.bf16.msra.mxu0 0
      %376 = vmatpush.bf16.msra.mxu0 %v316
      %377 = vmatmul.bf16.gmra.mxu0 %v300
      %v378 = vpop.f32.mrf.mxu0
      %v379 = vadd.f32 %v296, %v378
      %v380 = vpop.f32.mrf.mxu0
      %381 = vdwg.mxu0
      %382 = vmatpush.bf16.msra.mxu0 0
      %383 = vmatpush.bf16.msra.mxu0 0
      %384 = vmatpush.bf16.msra.mxu0 0
      %385 = vmatpush.bf16.msra.mxu0 0
      %386 = vmatpush.bf16.msra.mxu0 0
      %387 = vmatpush.bf16.msra.mxu0 0
      %388 = vmatpush.bf16.msra.mxu0 0
      %389 = vmatpush.bf16.msra.mxu0 %v319
      %390 = vmatmul.bf16.gmra.mxu0 %v300
      %v391 = vpop.f32.mrf.mxu0
      %v392 = vadd.f32 %v296, %v391
      %v393 = vpop.f32.mrf.mxu0
      %394 = vdwg.mxu0
      %395 = vmatpush.bf16.msra.mxu0 0
      %396 = vmatpush.bf16.msra.mxu0 0
      %397 = vmatpush.bf16.msra.mxu0 0
      %398 = vmatpush.bf16.msra.mxu0 0
      %399 = vmatpush.bf16.msra.mxu0 0
      %400 = vmatpush.bf16.msra.mxu0 0
      %401 = vmatpush.bf16.msra.mxu0 0
      %402 = vmatpush.bf16.msra.mxu0 %v322
      %403 = vmatmul.bf16.gmra.mxu0 %v300
      %v404 = vpop.f32.mrf.mxu0
      %v405 = vadd.f32 %v296, %v404
      %v406 = vpop.f32.mrf.mxu0
      %407 = vdwg.mxu0
      %408 = vmatpush.bf16.msra.mxu0 0
      %409 = vmatpush.bf16.msra.mxu0 0
      %410 = vmatpush.bf16.msra.mxu0 0
      %411 = vmatpush.bf16.msra.mxu0 0
      %412 = vmatpush.bf16.msra.mxu0 0
      %413 = vmatpush.bf16.msra.mxu0 0
      %414 = vmatpush.bf16.msra.mxu0 0
      %415 = vmatpush.bf16.msra.mxu0 %v325
      %416 = vmatmul.bf16.gmra.mxu0 %v300
      %v417 = vpop.f32.mrf.mxu0
      %v418 = vadd.f32 %v296, %v417
      %v419 = vpop.f32.mrf.mxu0
      %420 = vdwg.mxu0
      %421 = vmatpush.bf16.msra.mxu0 0
      %422 = vmatpush.bf16.msra.mxu0 0
      %423 = vmatpush.bf16.msra.mxu0 0
      %424 = vmatpush.bf16.msra.mxu0 0
      %425 = vmatpush.bf16.msra.mxu0 0
      %426 = vmatpush.bf16.msra.mxu0 0
      %427 = vmatpush.bf16.msra.mxu0 0
      %428 = vmatpush.bf16.msra.mxu0 %v328
      %429 = vmatmul.bf16.gmra.mxu0 %v300
      %v430 = vpop.f32.mrf.mxu0
      %v431 = vadd.f32 %v296, %v430
      %v432 = vpop.f32.mrf.mxu0
      %433 = vdwg.mxu0
      %v434 = vmul.f32 %v340, %v340
      %v435 = vmul.f32 %v353, %v353
      %v436 = vmul.f32 %v366, %v366
      %v437 = vmul.f32 %v379, %v379
      %v438 = vmul.f32 %v392, %v392
      %v439 = vmul.f32 %v405, %v405
      %v440 = vmul.f32 %v418, %v418
      %v441 = vmul.f32 %v431, %v431
      %v442 = vmul.f32 %v340, %v434
      %v443 = vmul.f32 %v353, %v435
      %v444 = vmul.f32 %v366, %v436
      %v445 = vmul.f32 %v379, %v437
      %v446 = vmul.f32 %v392, %v438
      %v447 = vmul.f32 %v405, %v439
      %v448 = vmul.f32 %v418, %v440
      %v449 = vmul.f32 %v431, %v441
      %v450 = vmul.f32 %v442, 0.044715
      %v451 = vmul.f32 %v443, 0.044715
      %v452 = vmul.f32 %v444, 0.044715
      %v453 = vmul.f32 %v445, 0.044715
      %v454 = vmul.f32 %v446, 0.044715
      %v455 = vmul.f32 %v447, 0.044715
      %v456 = vmul.f32 %v448, 0.044715
      %v457 = vmul.f32 %v449, 0.044715
      %v458 = vadd.f32 %v340, %v450
      %v459 = vadd.f32 %v353, %v451
      %v460 = vadd.f32 %v366, %v452
      %v461 = vadd.f32 %v379, %v453
      %v462 = vadd.f32 %v392, %v454
      %v463 = vadd.f32 %v405, %v455
      %v464 = vadd.f32 %v418, %v456
      %v465 = vadd.f32 %v431, %v457
      %v466 = vmul.f32 %v458, 0.7978846
      %v467 = vmul.f32 %v459, 0.7978846
      %v468 = vmul.f32 %v460, 0.7978846
      %v469 = vmul.f32 %v461, 0.7978846
      %v470 = vmul.f32 %v462, 0.7978846
      %v471 = vmul.f32 %v463, 0.7978846
      %v472 = vmul.f32 %v464, 0.7978846
      %v473 = vmul.f32 %v465, 0.7978846
      %v474 = vtanh.pop %v466
      %v475 = vtanh.pop %v467
      %v476 = vtanh.pop %v468
      %v477 = vtanh.pop %v469
      %v478 = vtanh.pop %v470
      %v479 = vtanh.pop %v471
      %v480 = vtanh.pop %v472
      %v481 = vtanh.pop %v473
      %v482 = vadd.f32 %v474, 1.0
      %v483 = vadd.f32 %v475, 1.0
      %v484 = vadd.f32 %v476, 1.0
      %v485 = vadd.f32 %v477, 1.0
      %v486 = vadd.f32 %v478, 1.0
      %v487 = vadd.f32 %v479, 1.0
      %v488 = vadd.f32 %v480, 1.0
      %v489 = vadd.f32 %v481, 1.0
      %v490 = vmul.f32 %v482, 0.5
      %v491 = vmul.f32 %v483, 0.5
      %v492 = vmul.f32 %v484, 0.5
      %v493 = vmul.f32 %v485, 0.5
      %v494 = vmul.f32 %v486, 0.5
      %v495 = vmul.f32 %v487, 0.5
      %v496 = vmul.f32 %v488, 0.5
      %v497 = vmul.f32 %v489, 0.5
      %v498 = vmul.f32 %v340, %v490
      %v499 = vmul.f32 %v353, %v491
      %v500 = vmul.f32 %v366, %v492
      %v501 = vmul.f32 %v379, %v493
      %v502 = vmul.f32 %v392, %v494
      %v503 = vmul.f32 %v405, %v495
      %v504 = vmul.f32 %v418, %v496
      %v505 = vmul.f32 %v431, %v497
      %v506 = vadd.f32 %v498, %v499
      %v507 = vadd.f32 %v506, %v500
      %v508 = vadd.f32 %v507, %v501
      %v509 = vadd.f32 %v508, %v502
      %v510 = vadd.f32 %v509, %v503
      %v511 = vadd.f32 %v510, %v504
      %v512 = vadd.f32 %v511, %v505
      %513 = vadd.xlane.f32.xlu0 %v512
      %v514 = vpop.xlane.xlu0 %513
      %v515 = vrcp.pop 1024.0
      %v516 = vmul.f32 1024.0, %v515
      %v517 = vsub.f32 1.0, %v516
      %v518 = vmul.f32 %v515, %v517
      %v519 = vadd.f32 %v515, %v518
      %vm520 = vweird.f32 %v515
      %v521 = vsel %vm520, %v515, %v519
      %v522 = vmul.f32 %v514, %v521
      %v523 = vld [vmem:[%s4] sm:$0xff]
      %v524 = vld [vmem:[%s4 + $0x8] sm:$0xff]
      %v525 = vld [vmem:[%s4 + $0x10] sm:$0xff]
      %v526 = vld [vmem:[%s4 + $0x18] sm:$0xff]
      %v527 = vld [vmem:[%s4 + $0x20] sm:$0xff]
      %v528 = vld [vmem:[%s4 + $0x28] sm:$0xff]
      %v529 = vld [vmem:[%s4 + $0x30] sm:$0xff]
      %v530 = vld [vmem:[%s4 + $0x38] sm:$0xff]
      %v531 = vld [vmem:[%s4 + $0x40] sm:$0xff]
      %v532 = vld [vmem:[%s4 + $0x48] sm:$0xff]
      %v533 = vld [vmem:[%s4 + $0x50] sm:$0xff]
      %v534 = vld [vmem:[%s4 + $0x58] sm:$0xff]
      %v535 = vld [vmem:[%s4 + $0x60] sm:$0xff]
      %v536 = vld [vmem:[%s4 + $0x68] sm:$0xff]
      %v537 = vld [vmem:[%s4 + $0x70] sm:$0xff]
      %v538 = vld [vmem:[%s4 + $0x78] sm:$0xff]
      %v539 = vld [vmem:[%s4 + $0x80] sm:$0xff]
      %v540 = vld [vmem:[%s4 + $0x88] sm:$0xff]
      %v541 = vld [vmem:[%s4 + $0x90] sm:$0xff]
      %v542 = vld [vmem:[%s4 + $0x98] sm:$0xff]
      %v543 = vld [vmem:[%s4 + $0xa0] sm:$0xff]
      %v544 = vld [vmem:[%s4 + $0xa8] sm:$0xff]
      %v545 = vld [vmem:[%s4 + $0xb0] sm:$0xff]
      %v546 = vld [vmem:[%s4 + $0xb8] sm:$0xff]
      %v547 = vld [vmem:[%s4 + $0xc0] sm:$0xff]
      %v548 = vld [vmem:[%s4 + $0xc8] sm:$0xff]
      %v549 = vld [vmem:[%s4 + $0xd0] sm:$0xff]
      %v550 = vld [vmem:[%s4 + $0xd8] sm:$0xff]
      %v551 = vld [vmem:[%s4 + $0xe0] sm:$0xff]
      %v552 = vld [vmem:[%s4 + $0xe8] sm:$0xff]
      %v553 = vld [vmem:[%s4 + $0xf0] sm:$0xff]
      %v554 = vld [vmem:[%s4 + $0xf8] sm:$0xff]
      %v555 = vld [vmem:[%s4 + $0x100] sm:$0xff]
      %v556 = vld [vmem:[%s4 + $0x108] sm:$0xff]
      %v557 = vld [vmem:[%s4 + $0x110] sm:$0xff]
      %v558 = vld [vmem:[%s4 + $0x118] sm:$0xff]
      %v559 = vld [vmem:[%s4 + $0x120] sm:$0xff]
      %v560 = vld [vmem:[%s4 + $0x128] sm:$0xff]
      %v561 = vld [vmem:[%s4 + $0x130] sm:$0xff]
      %v562 = vld [vmem:[%s4 + $0x138] sm:$0xff]
      %v563 = vld [vmem:[%s4 + $0x140] sm:$0xff]
      %v564 = vld [vmem:[%s4 + $0x148] sm:$0xff]
      %v565 = vld [vmem:[%s4 + $0x150] sm:$0xff]
      %v566 = vld [vmem:[%s4 + $0x158] sm:$0xff]
      %v567 = vld [vmem:[%s4 + $0x160] sm:$0xff]
      %v568 = vld [vmem:[%s4 + $0x168] sm:$0xff]
      %v569 = vld [vmem:[%s4 + $0x170] sm:$0xff]
      %v570 = vld [vmem:[%s4 + $0x178] sm:$0xff]
      %v571 = vld [vmem:[%s4 + $0x180] sm:$0xff]
      %v572 = vld [vmem:[%s4 + $0x188] sm:$0xff]
      %v573 = vld [vmem:[%s4 + $0x190] sm:$0xff]
      %v574 = vld [vmem:[%s4 + $0x198] sm:$0xff]
      %v575 = vld [vmem:[%s4 + $0x1a0] sm:$0xff]
      %v576 = vld [vmem:[%s4 + $0x1a8] sm:$0xff]
      %v577 = vld [vmem:[%s4 + $0x1b0] sm:$0xff]
      %v578 = vld [vmem:[%s4 + $0x1b8] sm:$0xff]
      %v579 = vld [vmem:[%s4 + $0x1c0] sm:$0xff]
      %v580 = vld [vmem:[%s4 + $0x1c8] sm:$0xff]
      %v581 = vld [vmem:[%s4 + $0x1d0] sm:$0xff]
      %v582 = vld [vmem:[%s4 + $0x1d8] sm:$0xff]
      %v583 = vld [vmem:[%s4 + $0x1e0] sm:$0xff]
      %v584 = vld [vmem:[%s4 + $0x1e8] sm:$0xff]
      %v585 = vld [vmem:[%s4 + $0x1f0] sm:$0xff]
      %v586 = vld [vmem:[%s4 + $0x1f8] sm:$0xff]
      %v587 = vld [vmem:[%s4 + $0x200] sm:$0xff]
      %v588 = vld [vmem:[%s4 + $0x208] sm:$0xff]
      %v589 = vld [vmem:[%s4 + $0x210] sm:$0xff]
      %v590 = vld [vmem:[%s4 + $0x218] sm:$0xff]
      %v591 = vld [vmem:[%s4 + $0x220] sm:$0xff]
      %v592 = vld [vmem:[%s4 + $0x228] sm:$0xff]
      %v593 = vld [vmem:[%s4 + $0x230] sm:$0xff]
      %v594 = vld [vmem:[%s4 + $0x238] sm:$0xff]
      %v595 = vld [vmem:[%s4 + $0x240] sm:$0xff]
      %v596 = vld [vmem:[%s4 + $0x248] sm:$0xff]
      %v597 = vld [vmem:[%s4 + $0x250] sm:$0xff]
      %v598 = vld [vmem:[%s4 + $0x258] sm:$0xff]
      %v599 = vld [vmem:[%s4 + $0x260] sm:$0xff]
      %v600 = vld [vmem:[%s4 + $0x268] sm:$0xff]
      %v601 = vld [vmem:[%s4 + $0x270] sm:$0xff]
      %v602 = vld [vmem:[%s4 + $0x278] sm:$0xff]
      %v603 = vld [vmem:[%s4 + $0x280] sm:$0xff]
      %v604 = vld [vmem:[%s4 + $0x288] sm:$0xff]
      %v605 = vld [vmem:[%s4 + $0x290] sm:$0xff]
      %v606 = vld [vmem:[%s4 + $0x298] sm:$0xff]
      %v607 = vld [vmem:[%s4 + $0x2a0] sm:$0xff]
      %v608 = vld [vmem:[%s4 + $0x2a8] sm:$0xff]
      %v609 = vld [vmem:[%s4 + $0x2b0] sm:$0xff]
      %v610 = vld [vmem:[%s4 + $0x2b8] sm:$0xff]
      %v611 = vld [vmem:[%s4 + $0x2c0] sm:$0xff]
      %v612 = vld [vmem:[%s4 + $0x2c8] sm:$0xff]
      %v613 = vld [vmem:[%s4 + $0x2d0] sm:$0xff]
      %v614 = vld [vmem:[%s4 + $0x2d8] sm:$0xff]
      %v615 = vld [vmem:[%s4 + $0x2e0] sm:$0xff]
      %v616 = vld [vmem:[%s4 + $0x2e8] sm:$0xff]
      %v617 = vld [vmem:[%s4 + $0x2f0] sm:$0xff]
      %v618 = vld [vmem:[%s4 + $0x2f8] sm:$0xff]
      %v619 = vld [vmem:[%s4 + $0x300] sm:$0xff]
      %v620 = vld [vmem:[%s4 + $0x308] sm:$0xff]
      %v621 = vld [vmem:[%s4 + $0x310] sm:$0xff]
      %v622 = vld [vmem:[%s4 + $0x318] sm:$0xff]
      %v623 = vld [vmem:[%s4 + $0x320] sm:$0xff]
      %v624 = vld [vmem:[%s4 + $0x328] sm:$0xff]
      %v625 = vld [vmem:[%s4 + $0x330] sm:$0xff]
      %v626 = vld [vmem:[%s4 + $0x338] sm:$0xff]
      %v627 = vld [vmem:[%s4 + $0x340] sm:$0xff]
      %v628 = vld [vmem:[%s4 + $0x348] sm:$0xff]
      %v629 = vld [vmem:[%s4 + $0x350] sm:$0xff]
      %v630 = vld [vmem:[%s4 + $0x358] sm:$0xff]
      %v631 = vld [vmem:[%s4 + $0x360] sm:$0xff]
      %v632 = vld [vmem:[%s4 + $0x368] sm:$0xff]
      %v633 = vld [vmem:[%s4 + $0x370] sm:$0xff]
      %v634 = vld [vmem:[%s4 + $0x378] sm:$0xff]
      %v635 = vld [vmem:[%s4 + $0x380] sm:$0xff]
      %v636 = vld [vmem:[%s4 + $0x388] sm:$0xff]
      %v637 = vld [vmem:[%s4 + $0x390] sm:$0xff]
      %v638 = vld [vmem:[%s4 + $0x398] sm:$0xff]
      %v639 = vld [vmem:[%s4 + $0x3a0] sm:$0xff]
      %v640 = vld [vmem:[%s4 + $0x3a8] sm:$0xff]
      %v641 = vld [vmem:[%s4 + $0x3b0] sm:$0xff]
      %v642 = vld [vmem:[%s4 + $0x3b8] sm:$0xff]
      %v643 = vld [vmem:[%s4 + $0x3c0] sm:$0xff]
      %v644 = vld [vmem:[%s4 + $0x3c8] sm:$0xff]
      %v645 = vld [vmem:[%s4 + $0x3d0] sm:$0xff]
      %v646 = vld [vmem:[%s4 + $0x3d8] sm:$0xff]
      %v647 = vld [vmem:[%s4 + $0x3e0] sm:$0xff]
      %v648 = vld [vmem:[%s4 + $0x3e8] sm:$0xff]
      %v649 = vld [vmem:[%s4 + $0x3f0] sm:$0xff]
      %v650 = vld [vmem:[%s4 + $0x3f8] sm:$0xff]
      %v651 = vpack.c.bf16 %v498, %v498
      %v652 = vpack.c.bf16 %v499, %v499
      %v653 = vpack.c.bf16 %v500, %v500
      %v654 = vpack.c.bf16 %v501, %v501
      %v655 = vpack.c.bf16 %v502, %v502
      %v656 = vpack.c.bf16 %v503, %v503
      %v657 = vpack.c.bf16 %v504, %v504
      %v658 = vpack.c.bf16 %v505, %v505
      %v787 = vunpack.c.l.b16 %v523
      %v788 = vunpack.c.h.b16 %v523
      %v789 = vunpack.c.l.b16 %v524
      %v790 = vunpack.c.h.b16 %v524
      %v791 = vunpack.c.l.b16 %v525
      %v792 = vunpack.c.h.b16 %v525
      %v793 = vunpack.c.l.b16 %v526
      %v794 = vunpack.c.h.b16 %v526
      %v795 = vunpack.c.l.b16 %v527
      %v796 = vunpack.c.h.b16 %v527
      %v797 = vunpack.c.l.b16 %v528
      %v798 = vunpack.c.h.b16 %v528
      %v799 = vunpack.c.l.b16 %v529
      %v800 = vunpack.c.h.b16 %v529
      %v801 = vunpack.c.l.b16 %v530
      %v802 = vunpack.c.h.b16 %v530
      %v803 = vunpack.c.l.b16 %v531
      %v804 = vunpack.c.h.b16 %v531
      %v805 = vunpack.c.l.b16 %v532
      %v806 = vunpack.c.h.b16 %v532
      %v807 = vunpack.c.l.b16 %v533
      %v808 = vunpack.c.h.b16 %v533
      %v809 = vunpack.c.l.b16 %v534
      %v810 = vunpack.c.h.b16 %v534
      %v811 = vunpack.c.l.b16 %v535
      %v812 = vunpack.c.h.b16 %v535
      %v813 = vunpack.c.l.b16 %v536
      %v814 = vunpack.c.h.b16 %v536
      %v815 = vunpack.c.l.b16 %v537
      %v816 = vunpack.c.h.b16 %v537
      %v817 = vunpack.c.l.b16 %v538
      %v818 = vunpack.c.h.b16 %v538
      %v819 = vunpack.c.l.b16 %v539
      %v820 = vunpack.c.h.b16 %v539
      %v821 = vunpack.c.l.b16 %v540
      %v822 = vunpack.c.h.b16 %v540
      %v823 = vunpack.c.l.b16 %v541
      %v824 = vunpack.c.h.b16 %v541
      %v825 = vunpack.c.l.b16 %v542
      %v826 = vunpack.c.h.b16 %v542
      %v827 = vunpack.c.l.b16 %v543
      %v828 = vunpack.c.h.b16 %v543
      %v829 = vunpack.c.l.b16 %v544
      %v830 = vunpack.c.h.b16 %v544
      %v831 = vunpack.c.l.b16 %v545
      %v832 = vunpack.c.h.b16 %v545
      %v833 = vunpack.c.l.b16 %v546
      %v834 = vunpack.c.h.b16 %v546
      %v835 = vunpack.c.l.b16 %v547
      %v836 = vunpack.c.h.b16 %v547
      %v837 = vunpack.c.l.b16 %v548
      %v838 = vunpack.c.h.b16 %v548
      %v839 = vunpack.c.l.b16 %v549
      %v840 = vunpack.c.h.b16 %v549
      %v841 = vunpack.c.l.b16 %v550
      %v842 = vunpack.c.h.b16 %v550
      %v843 = vunpack.c.l.b16 %v551
      %v844 = vunpack.c.h.b16 %v551
      %v845 = vunpack.c.l.b16 %v552
      %v846 = vunpack.c.h.b16 %v552
      %v847 = vunpack.c.l.b16 %v553
      %v848 = vunpack.c.h.b16 %v553
      %v849 = vunpack.c.l.b16 %v554
      %v850 = vunpack.c.h.b16 %v554
      %v851 = vunpack.c.l.b16 %v555
      %v852 = vunpack.c.h.b16 %v555
      %v853 = vunpack.c.l.b16 %v556
      %v854 = vunpack.c.h.b16 %v556
      %v855 = vunpack.c.l.b16 %v557
      %v856 = vunpack.c.h.b16 %v557
      %v857 = vunpack.c.l.b16 %v558
      %v858 = vunpack.c.h.b16 %v558
      %v859 = vunpack.c.l.b16 %v559
      %v860 = vunpack.c.h.b16 %v559
      %v861 = vunpack.c.l.b16 %v560
      %v862 = vunpack.c.h.b16 %v560
      %v863 = vunpack.c.l.b16 %v561
      %v864 = vunpack.c.h.b16 %v561
      %v865 = vunpack.c.l.b16 %v562
      %v866 = vunpack.c.h.b16 %v562
      %v867 = vunpack.c.l.b16 %v563
      %v868 = vunpack.c.h.b16 %v563
      %v869 = vunpack.c.l.b16 %v564
      %v870 = vunpack.c.h.b16 %v564
      %v871 = vunpack.c.l.b16 %v565
      %v872 = vunpack.c.h.b16 %v565
      %v873 = vunpack.c.l.b16 %v566
      %v874 = vunpack.c.h.b16 %v566
      %v875 = vunpack.c.l.b16 %v567
      %v876 = vunpack.c.h.b16 %v567
      %v877 = vunpack.c.l.b16 %v568
      %v878 = vunpack.c.h.b16 %v568
      %v879 = vunpack.c.l.b16 %v569
      %v880 = vunpack.c.h.b16 %v569
      %v881 = vunpack.c.l.b16 %v570
      %v882 = vunpack.c.h.b16 %v570
      %v883 = vunpack.c.l.b16 %v571
      %v884 = vunpack.c.h.b16 %v571
      %v885 = vunpack.c.l.b16 %v572
      %v886 = vunpack.c.h.b16 %v572
      %v887 = vunpack.c.l.b16 %v573
      %v888 = vunpack.c.h.b16 %v573
      %v889 = vunpack.c.l.b16 %v574
      %v890 = vunpack.c.h.b16 %v574
      %v891 = vunpack.c.l.b16 %v575
      %v892 = vunpack.c.h.b16 %v575
      %v893 = vunpack.c.l.b16 %v576
      %v894 = vunpack.c.h.b16 %v576
      %v895 = vunpack.c.l.b16 %v577
      %v896 = vunpack.c.h.b16 %v577
      %v897 = vunpack.c.l.b16 %v578
      %v898 = vunpack.c.h.b16 %v578
      %v899 = vunpack.c.l.b16 %v579
      %v900 = vunpack.c.h.b16 %v579
      %v901 = vunpack.c.l.b16 %v580
      %v902 = vunpack.c.h.b16 %v580
      %v903 = vunpack.c.l.b16 %v581
      %v904 = vunpack.c.h.b16 %v581
      %v905 = vunpack.c.l.b16 %v582
      %v906 = vunpack.c.h.b16 %v582
      %v907 = vunpack.c.l.b16 %v583
      %v908 = vunpack.c.h.b16 %v583
      %v909 = vunpack.c.l.b16 %v584
      %v910 = vunpack.c.h.b16 %v584
      %v911 = vunpack.c.l.b16 %v585
      %v912 = vunpack.c.h.b16 %v585
      %v913 = vunpack.c.l.b16 %v586
      %v914 = vunpack.c.h.b16 %v586
      %v915 = vunpack.c.l.b16 %v587
      %v916 = vunpack.c.h.b16 %v587
      %v917 = vunpack.c.l.b16 %v588
      %v918 = vunpack.c.h.b16 %v588
      %v919 = vunpack.c.l.b16 %v589
      %v920 = vunpack.c.h.b16 %v589
      %v921 = vunpack.c.l.b16 %v590
      %v922 = vunpack.c.h.b16 %v590
      %v923 = vunpack.c.l.b16 %v591
      %v924 = vunpack.c.h.b16 %v591
      %v925 = vunpack.c.l.b16 %v592
      %v926 = vunpack.c.h.b16 %v592
      %v927 = vunpack.c.l.b16 %v593
      %v928 = vunpack.c.h.b16 %v593
      %v929 = vunpack.c.l.b16 %v594
      %v930 = vunpack.c.h.b16 %v594
      %v931 = vunpack.c.l.b16 %v595
      %v932 = vunpack.c.h.b16 %v595
      %v933 = vunpack.c.l.b16 %v596
      %v934 = vunpack.c.h.b16 %v596
      %v935 = vunpack.c.l.b16 %v597
      %v936 = vunpack.c.h.b16 %v597
      %v937 = vunpack.c.l.b16 %v598
      %v938 = vunpack.c.h.b16 %v598
      %v939 = vunpack.c.l.b16 %v599
      %v940 = vunpack.c.h.b16 %v599
      %v941 = vunpack.c.l.b16 %v600
      %v942 = vunpack.c.h.b16 %v600
      %v943 = vunpack.c.l.b16 %v601
      %v944 = vunpack.c.h.b16 %v601
      %v945 = vunpack.c.l.b16 %v602
      %v946 = vunpack.c.h.b16 %v602
      %v947 = vunpack.c.l.b16 %v603
      %v948 = vunpack.c.h.b16 %v603
      %v949 = vunpack.c.l.b16 %v604
      %v950 = vunpack.c.h.b16 %v604
      %v951 = vunpack.c.l.b16 %v605
      %v952 = vunpack.c.h.b16 %v605
      %v953 = vunpack.c.l.b16 %v606
      %v954 = vunpack.c.h.b16 %v606
      %v955 = vunpack.c.l.b16 %v607
      %v956 = vunpack.c.h.b16 %v607
      %v957 = vunpack.c.l.b16 %v608
      %v958 = vunpack.c.h.b16 %v608
      %v959 = vunpack.c.l.b16 %v609
      %v960 = vunpack.c.h.b16 %v609
      %v961 = vunpack.c.l.b16 %v610
      %v962 = vunpack.c.h.b16 %v610
      %v963 = vunpack.c.l.b16 %v611
      %v964 = vunpack.c.h.b16 %v611
      %v965 = vunpack.c.l.b16 %v612
      %v966 = vunpack.c.h.b16 %v612
      %v967 = vunpack.c.l.b16 %v613
      %v968 = vunpack.c.h.b16 %v613
      %v969 = vunpack.c.l.b16 %v614
      %v970 = vunpack.c.h.b16 %v614
      %v971 = vunpack.c.l.b16 %v615
      %v972 = vunpack.c.h.b16 %v615
      %v973 = vunpack.c.l.b16 %v616
      %v974 = vunpack.c.h.b16 %v616
      %v975 = vunpack.c.l.b16 %v617
      %v976 = vunpack.c.h.b16 %v617
      %v977 = vunpack.c.l.b16 %v618
      %v978 = vunpack.c.h.b16 %v618
      %v979 = vunpack.c.l.b16 %v619
      %v980 = vunpack.c.h.b16 %v619
      %v981 = vunpack.c.l.b16 %v620
      %v982 = vunpack.c.h.b16 %v620
      %v983 = vunpack.c.l.b16 %v621
      %v984 = vunpack.c.h.b16 %v621
      %v985 = vunpack.c.l.b16 %v622
      %v986 = vunpack.c.h.b16 %v622
      %v987 = vunpack.c.l.b16 %v623
      %v988 = vunpack.c.h.b16 %v623
      %v989 = vunpack.c.l.b16 %v624
      %v990 = vunpack.c.h.b16 %v624
      %v991 = vunpack.c.l.b16 %v625
      %v992 = vunpack.c.h.b16 %v625
      %v993 = vunpack.c.l.b16 %v626
      %v994 = vunpack.c.h.b16 %v626
      %v995 = vunpack.c.l.b16 %v627
      %v996 = vunpack.c.h.b16 %v627
      %v997 = vunpack.c.l.b16 %v628
      %v998 = vunpack.c.h.b16 %v628
      %v999 = vunpack.c.l.b16 %v629
      %v1000 = vunpack.c.h.b16 %v629
      %v1001 = vunpack.c.l.b16 %v630
      %v1002 = vunpack.c.h.b16 %v630
      %v1003 = vunpack.c.l.b16 %v631
      %v1004 = vunpack.c.h.b16 %v631
      %v1005 = vunpack.c.l.b16 %v632
      %v1006 = vunpack.c.h.b16 %v632
      %v1007 = vunpack.c.l.b16 %v633
      %v1008 = vunpack.c.h.b16 %v633
      %v1009 = vunpack.c.l.b16 %v634
      %v1010 = vunpack.c.h.b16 %v634
      %v1011 = vunpack.c.l.b16 %v635
      %v1012 = vunpack.c.h.b16 %v635
      %v1013 = vunpack.c.l.b16 %v636
      %v1014 = vunpack.c.h.b16 %v636
      %v1015 = vunpack.c.l.b16 %v637
      %v1016 = vunpack.c.h.b16 %v637
      %v1017 = vunpack.c.l.b16 %v638
      %v1018 = vunpack.c.h.b16 %v638
      %v1019 = vunpack.c.l.b16 %v639
      %v1020 = vunpack.c.h.b16 %v639
      %v1021 = vunpack.c.l.b16 %v640
      %v1022 = vunpack.c.h.b16 %v640
      %v1023 = vunpack.c.l.b16 %v641
      %v1024 = vunpack.c.h.b16 %v641
      %v1025 = vunpack.c.l.b16 %v642
      %v1026 = vunpack.c.h.b16 %v642
      %v1027 = vunpack.c.l.b16 %v643
      %v1028 = vunpack.c.h.b16 %v643
      %v1029 = vunpack.c.l.b16 %v644
      %v1030 = vunpack.c.h.b16 %v644
      %v1031 = vunpack.c.l.b16 %v645
      %v1032 = vunpack.c.h.b16 %v645
      %v1033 = vunpack.c.l.b16 %v646
      %v1034 = vunpack.c.h.b16 %v646
      %v1035 = vunpack.c.l.b16 %v647
      %v1036 = vunpack.c.h.b16 %v647
      %v1037 = vunpack.c.l.b16 %v648
      %v1038 = vunpack.c.h.b16 %v648
      %v1039 = vunpack.c.l.b16 %v649
      %v1040 = vunpack.c.h.b16 %v649
      %v1041 = vunpack.c.l.b16 %v650
      %v1042 = vunpack.c.h.b16 %v650
      %v1043 = vpack.c.b16 %v789, %v787
      %v1044 = vpack.c.b16 %v790, %v788
      %v1045 = vpack.c.b16 %v793, %v791
      %v1046 = vpack.c.b16 %v794, %v792
      %v1047 = vpack.c.b16 %v797, %v795
      %v1048 = vpack.c.b16 %v798, %v796
      %v1049 = vpack.c.b16 %v801, %v799
      %v1050 = vpack.c.b16 %v802, %v800
      %v1051 = vpack.c.b16 %v805, %v803
      %v1052 = vpack.c.b16 %v806, %v804
      %v1053 = vpack.c.b16 %v809, %v807
      %v1054 = vpack.c.b16 %v810, %v808
      %v1055 = vpack.c.b16 %v813, %v811
      %v1056 = vpack.c.b16 %v814, %v812
      %v1057 = vpack.c.b16 %v817, %v815
      %v1058 = vpack.c.b16 %v818, %v816
      %v1059 = vpack.c.b16 %v821, %v819
      %v1060 = vpack.c.b16 %v822, %v820
      %v1061 = vpack.c.b16 %v825, %v823
      %v1062 = vpack.c.b16 %v826, %v824
      %v1063 = vpack.c.b16 %v829, %v827
      %v1064 = vpack.c.b16 %v830, %v828
      %v1065 = vpack.c.b16 %v833, %v831
      %v1066 = vpack.c.b16 %v834, %v832
      %v1067 = vpack.c.b16 %v837, %v835
      %v1068 = vpack.c.b16 %v838, %v836
      %v1069 = vpack.c.b16 %v841, %v839
      %v1070 = vpack.c.b16 %v842, %v840
      %v1071 = vpack.c.b16 %v845, %v843
      %v1072 = vpack.c.b16 %v846, %v844
      %v1073 = vpack.c.b16 %v849, %v847
      %v1074 = vpack.c.b16 %v850, %v848
      %v1075 = vpack.c.b16 %v853, %v851
      %v1076 = vpack.c.b16 %v854, %v852
      %v1077 = vpack.c.b16 %v857, %v855
      %v1078 = vpack.c.b16 %v858, %v856
      %v1079 = vpack.c.b16 %v861, %v859
      %v1080 = vpack.c.b16 %v862, %v860
      %v1081 = vpack.c.b16 %v865, %v863
      %v1082 = vpack.c.b16 %v866, %v864
      %v1083 = vpack.c.b16 %v869, %v867
      %v1084 = vpack.c.b16 %v870, %v868
      %v1085 = vpack.c.b16 %v873, %v871
      %v1086 = vpack.c.b16 %v874, %v872
      %v1087 = vpack.c.b16 %v877, %v875
      %v1088 = vpack.c.b16 %v878, %v876
      %v1089 = vpack.c.b16 %v881, %v879
      %v1090 = vpack.c.b16 %v882, %v880
      %v1091 = vpack.c.b16 %v885, %v883
      %v1092 = vpack.c.b16 %v886, %v884
      %v1093 = vpack.c.b16 %v889, %v887
      %v1094 = vpack.c.b16 %v890, %v888
      %v1095 = vpack.c.b16 %v893, %v891
      %v1096 = vpack.c.b16 %v894, %v892
      %v1097 = vpack.c.b16 %v897, %v895
      %v1098 = vpack.c.b16 %v898, %v896
      %v1099 = vpack.c.b16 %v901, %v899
      %v1100 = vpack.c.b16 %v902, %v900
      %v1101 = vpack.c.b16 %v905, %v903
      %v1102 = vpack.c.b16 %v906, %v904
      %v1103 = vpack.c.b16 %v909, %v907
      %v1104 = vpack.c.b16 %v910, %v908
      %v1105 = vpack.c.b16 %v913, %v911
      %v1106 = vpack.c.b16 %v914, %v912
      %v1107 = vpack.c.b16 %v917, %v915
      %v1108 = vpack.c.b16 %v918, %v916
      %v1109 = vpack.c.b16 %v921, %v919
      %v1110 = vpack.c.b16 %v922, %v920
      %v1111 = vpack.c.b16 %v925, %v923
      %v1112 = vpack.c.b16 %v926, %v924
      %v1113 = vpack.c.b16 %v929, %v927
      %v1114 = vpack.c.b16 %v930, %v928
      %v1115 = vpack.c.b16 %v933, %v931
      %v1116 = vpack.c.b16 %v934, %v932
      %v1117 = vpack.c.b16 %v937, %v935
      %v1118 = vpack.c.b16 %v938, %v936
      %v1119 = vpack.c.b16 %v941, %v939
      %v1120 = vpack.c.b16 %v942, %v940
      %v1121 = vpack.c.b16 %v945, %v943
      %v1122 = vpack.c.b16 %v946, %v944
      %v1123 = vpack.c.b16 %v949, %v947
      %v1124 = vpack.c.b16 %v950, %v948
      %v1125 = vpack.c.b16 %v953, %v951
      %v1126 = vpack.c.b16 %v954, %v952
      %v1127 = vpack.c.b16 %v957, %v955
      %v1128 = vpack.c.b16 %v958, %v956
      %v1129 = vpack.c.b16 %v961, %v959
      %v1130 = vpack.c.b16 %v962, %v960
      %v1131 = vpack.c.b16 %v965, %v963
      %v1132 = vpack.c.b16 %v966, %v964
      %v1133 = vpack.c.b16 %v969, %v967
      %v1134 = vpack.c.b16 %v970, %v968
      %v1135 = vpack.c.b16 %v973, %v971
      %v1136 = vpack.c.b16 %v974, %v972
      %v1137 = vpack.c.b16 %v977, %v975
      %v1138 = vpack.c.b16 %v978, %v976
      %v1139 = vpack.c.b16 %v981, %v979
      %v1140 = vpack.c.b16 %v982, %v980
      %v1141 = vpack.c.b16 %v985, %v983
      %v1142 = vpack.c.b16 %v986, %v984
      %v1143 = vpack.c.b16 %v989, %v987
      %v1144 = vpack.c.b16 %v990, %v988
      %v1145 = vpack.c.b16 %v993, %v991
      %v1146 = vpack.c.b16 %v994, %v992
      %v1147 = vpack.c.b16 %v997, %v995
      %v1148 = vpack.c.b16 %v998, %v996
      %v1149 = vpack.c.b16 %v1001, %v999
      %v1150 = vpack.c.b16 %v1002, %v1000
      %v1151 = vpack.c.b16 %v1005, %v1003
      %v1152 = vpack.c.b16 %v1006, %v1004
      %v1153 = vpack.c.b16 %v1009, %v1007
      %v1154 = vpack.c.b16 %v1010, %v1008
      %v1155 = vpack.c.b16 %v1013, %v1011
      %v1156 = vpack.c.b16 %v1014, %v1012
      %v1157 = vpack.c.b16 %v1017, %v1015
      %v1158 = vpack.c.b16 %v1018, %v1016
      %v1159 = vpack.c.b16 %v1021, %v1019
      %v1160 = vpack.c.b16 %v1022, %v1020
      %v1161 = vpack.c.b16 %v1025, %v1023
      %v1162 = vpack.c.b16 %v1026, %v1024
      %v1163 = vpack.c.b16 %v1029, %v1027
      %v1164 = vpack.c.b16 %v1030, %v1028
      %v1165 = vpack.c.b16 %v1033, %v1031
      %v1166 = vpack.c.b16 %v1034, %v1032
      %v1167 = vpack.c.b16 %v1037, %v1035
      %v1168 = vpack.c.b16 %v1038, %v1036
      %v1169 = vpack.c.b16 %v1041, %v1039
      %v1170 = vpack.c.b16 %v1042, %v1040
      %1299 = vmatpush.bf16.msra.mxu0 %v1057
      %1300 = vmatpush.bf16.msra.mxu0 %v1055
      %1301 = vmatpush.bf16.msra.mxu0 %v1053
      %1302 = vmatpush.bf16.msra.mxu0 %v1051
      %1303 = vmatpush.bf16.msra.mxu0 %v1049
      %1304 = vmatpush.bf16.msra.mxu0 %v1047
      %1305 = vmatpush.bf16.msra.mxu0 %v1045
      %1306 = vmatpush.bf16.msra.mxu0 %v1043
      %1307 = vmatmul.bf16.gmra.mxu0 %v651
      %v1308 = vpop.f32.mrf.mxu0
      %v1309 = vadd.f32 0.0, %v1308
      %v1310 = vpop.f32.mrf.mxu0
      %1311 = vdwg.mxu0
      %1312 = vmatpush.bf16.msra.mxu0 %v1073
      %1313 = vmatpush.bf16.msra.mxu0 %v1071
      %1314 = vmatpush.bf16.msra.mxu0 %v1069
      %1315 = vmatpush.bf16.msra.mxu0 %v1067
      %1316 = vmatpush.bf16.msra.mxu0 %v1065
      %1317 = vmatpush.bf16.msra.mxu0 %v1063
      %1318 = vmatpush.bf16.msra.mxu0 %v1061
      %1319 = vmatpush.bf16.msra.mxu0 %v1059
      %1320 = vmatmul.bf16.gmra.mxu0 %v652
      %v1321 = vpop.f32.mrf.mxu0
      %v1322 = vadd.f32 %v1309, %v1321
      %v1323 = vpop.f32.mrf.mxu0
      %1324 = vdwg.mxu0
      %1325 = vmatpush.bf16.msra.mxu0 %v1089
      %1326 = vmatpush.bf16.msra.mxu0 %v1087
      %1327 = vmatpush.bf16.msra.mxu0 %v1085
      %1328 = vmatpush.bf16.msra.mxu0 %v1083
      %1329 = vmatpush.bf16.msra.mxu0 %v1081
      %1330 = vmatpush.bf16.msra.mxu0 %v1079
      %1331 = vmatpush.bf16.msra.mxu0 %v1077
      %1332 = vmatpush.bf16.msra.mxu0 %v1075
      %1333 = vmatmul.bf16.gmra.mxu0 %v653
      %v1334 = vpop.f32.mrf.mxu0
      %v1335 = vadd.f32 %v1322, %v1334
      %v1336 = vpop.f32.mrf.mxu0
      %1337 = vdwg.mxu0
      %1338 = vmatpush.bf16.msra.mxu0 %v1105
      %1339 = vmatpush.bf16.msra.mxu0 %v1103
      %1340 = vmatpush.bf16.msra.mxu0 %v1101
      %1341 = vmatpush.bf16.msra.mxu0 %v1099
      %1342 = vmatpush.bf16.msra.mxu0 %v1097
      %1343 = vmatpush.bf16.msra.mxu0 %v1095
      %1344 = vmatpush.bf16.msra.mxu0 %v1093
      %1345 = vmatpush.bf16.msra.mxu0 %v1091
      %1346 = vmatmul.bf16.gmra.mxu0 %v654
      %v1347 = vpop.f32.mrf.mxu0
      %v1348 = vadd.f32 %v1335, %v1347
      %v1349 = vpop.f32.mrf.mxu0
      %1350 = vdwg.mxu0
      %1351 = vmatpush.bf16.msra.mxu0 %v1121
      %1352 = vmatpush.bf16.msra.mxu0 %v1119
      %1353 = vmatpush.bf16.msra.mxu0 %v1117
      %1354 = vmatpush.bf16.msra.mxu0 %v1115
      %1355 = vmatpush.bf16.msra.mxu0 %v1113
      %1356 = vmatpush.bf16.msra.mxu0 %v1111
      %1357 = vmatpush.bf16.msra.mxu0 %v1109
      %1358 = vmatpush.bf16.msra.mxu0 %v1107
      %1359 = vmatmul.bf16.gmra.mxu0 %v655
      %v1360 = vpop.f32.mrf.mxu0
      %v1361 = vadd.f32 %v1348, %v1360
      %v1362 = vpop.f32.mrf.mxu0
      %1363 = vdwg.mxu0
      %1364 = vmatpush.bf16.msra.mxu0 %v1137
      %1365 = vmatpush.bf16.msra.mxu0 %v1135
      %1366 = vmatpush.bf16.msra.mxu0 %v1133
      %1367 = vmatpush.bf16.msra.mxu0 %v1131
      %1368 = vmatpush.bf16.msra.mxu0 %v1129
      %1369 = vmatpush.bf16.msra.mxu0 %v1127
      %1370 = vmatpush.bf16.msra.mxu0 %v1125
      %1371 = vmatpush.bf16.msra.mxu0 %v1123
      %1372 = vmatmul.bf16.gmra.mxu0 %v656
      %v1373 = vpop.f32.mrf.mxu0
      %v1374 = vadd.f32 %v1361, %v1373
      %v1375 = vpop.f32.mrf.mxu0
      %1376 = vdwg.mxu0
      %1377 = vmatpush.bf16.msra.mxu0 %v1153
      %1378 = vmatpush.bf16.msra.mxu0 %v1151
      %1379 = vmatpush.bf16.msra.mxu0 %v1149
      %1380 = vmatpush.bf16.msra.mxu0 %v1147
      %1381 = vmatpush.bf16.msra.mxu0 %v1145
      %1382 = vmatpush.bf16.msra.mxu0 %v1143
      %1383 = vmatpush.bf16.msra.mxu0 %v1141
      %1384 = vmatpush.bf16.msra.mxu0 %v1139
      %1385 = vmatmul.bf16.gmra.mxu0 %v657
      %v1386 = vpop.f32.mrf.mxu0
      %v1387 = vadd.f32 %v1374, %v1386
      %v1388 = vpop.f32.mrf.mxu0
      %1389 = vdwg.mxu0
      %1390 = vmatpush.bf16.msra.mxu0 %v1169
      %1391 = vmatpush.bf16.msra.mxu0 %v1167
      %1392 = vmatpush.bf16.msra.mxu0 %v1165
      %1393 = vmatpush.bf16.msra.mxu0 %v1163
      %1394 = vmatpush.bf16.msra.mxu0 %v1161
      %1395 = vmatpush.bf16.msra.mxu0 %v1159
      %1396 = vmatpush.bf16.msra.mxu0 %v1157
      %1397 = vmatpush.bf16.msra.mxu0 %v1155
      %1398 = vmatmul.bf16.gmra.mxu0 %v658
      %v1399 = vpop.f32.mrf.mxu0
      %v1400 = vadd.f32 %v1387, %v1399
      %v1401 = vpop.f32.mrf.mxu0
      %1402 = vdwg.mxu0
      %1403 = vmatpush.bf16.msra.mxu0 %v1058
      %1404 = vmatpush.bf16.msra.mxu0 %v1056
      %1405 = vmatpush.bf16.msra.mxu0 %v1054
      %1406 = vmatpush.bf16.msra.mxu0 %v1052
      %1407 = vmatpush.bf16.msra.mxu0 %v1050
      %1408 = vmatpush.bf16.msra.mxu0 %v1048
      %1409 = vmatpush.bf16.msra.mxu0 %v1046
      %1410 = vmatpush.bf16.msra.mxu0 %v1044
      %1411 = vmatmul.bf16.gmra.mxu0 %v651
      %v1412 = vpop.f32.mrf.mxu0
      %v1413 = vadd.f32 0.0, %v1412
      %v1414 = vpop.f32.mrf.mxu0
      %1415 = vdwg.mxu0
      %1416 = vmatpush.bf16.msra.mxu0 %v1074
      %1417 = vmatpush.bf16.msra.mxu0 %v1072
      %1418 = vmatpush.bf16.msra.mxu0 %v1070
      %1419 = vmatpush.bf16.msra.mxu0 %v1068
      %1420 = vmatpush.bf16.msra.mxu0 %v1066
      %1421 = vmatpush.bf16.msra.mxu0 %v1064
      %1422 = vmatpush.bf16.msra.mxu0 %v1062
      %1423 = vmatpush.bf16.msra.mxu0 %v1060
      %1424 = vmatmul.bf16.gmra.mxu0 %v652
      %v1425 = vpop.f32.mrf.mxu0
      %v1426 = vadd.f32 %v1413, %v1425
      %v1427 = vpop.f32.mrf.mxu0
      %1428 = vdwg.mxu0
      %1429 = vmatpush.bf16.msra.mxu0 %v1090
      %1430 = vmatpush.bf16.msra.mxu0 %v1088
      %1431 = vmatpush.bf16.msra.mxu0 %v1086
      %1432 = vmatpush.bf16.msra.mxu0 %v1084
      %1433 = vmatpush.bf16.msra.mxu0 %v1082
      %1434 = vmatpush.bf16.msra.mxu0 %v1080
      %1435 = vmatpush.bf16.msra.mxu0 %v1078
      %1436 = vmatpush.bf16.msra.mxu0 %v1076
      %1437 = vmatmul.bf16.gmra.mxu0 %v653
      %v1438 = vpop.f32.mrf.mxu0
      %v1439 = vadd.f32 %v1426, %v1438
      %v1440 = vpop.f32.mrf.mxu0
      %1441 = vdwg.mxu0
      %1442 = vmatpush.bf16.msra.mxu0 %v1106
      %1443 = vmatpush.bf16.msra.mxu0 %v1104
      %1444 = vmatpush.bf16.msra.mxu0 %v1102
      %1445 = vmatpush.bf16.msra.mxu0 %v1100
      %1446 = vmatpush.bf16.msra.mxu0 %v1098
      %1447 = vmatpush.bf16.msra.mxu0 %v1096
      %1448 = vmatpush.bf16.msra.mxu0 %v1094
      %1449 = vmatpush.bf16.msra.mxu0 %v1092
      %1450 = vmatmul.bf16.gmra.mxu0 %v654
      %v1451 = vpop.f32.mrf.mxu0
      %v1452 = vadd.f32 %v1439, %v1451
      %v1453 = vpop.f32.mrf.mxu0
      %1454 = vdwg.mxu0
      %1455 = vmatpush.bf16.msra.mxu0 %v1122
      %1456 = vmatpush.bf16.msra.mxu0 %v1120
      %1457 = vmatpush.bf16.msra.mxu0 %v1118
      %1458 = vmatpush.bf16.msra.mxu0 %v1116
      %1459 = vmatpush.bf16.msra.mxu0 %v1114
      %1460 = vmatpush.bf16.msra.mxu0 %v1112
      %1461 = vmatpush.bf16.msra.mxu0 %v1110
      %1462 = vmatpush.bf16.msra.mxu0 %v1108
      %1463 = vmatmul.bf16.gmra.mxu0 %v655
      %v1464 = vpop.f32.mrf.mxu0
      %v1465 = vadd.f32 %v1452, %v1464
      %v1466 = vpop.f32.mrf.mxu0
      %1467 = vdwg.mxu0
      %1468 = vmatpush.bf16.msra.mxu0 %v1138
      %1469 = vmatpush.bf16.msra.mxu0 %v1136
      %1470 = vmatpush.bf16.msra.mxu0 %v1134
      %1471 = vmatpush.bf16.msra.mxu0 %v1132
      %1472 = vmatpush.bf16.msra.mxu0 %v1130
      %1473 = vmatpush.bf16.msra.mxu0 %v1128
      %1474 = vmatpush.bf16.msra.mxu0 %v1126
      %1475 = vmatpush.bf16.msra.mxu0 %v1124
      %1476 = vmatmul.bf16.gmra.mxu0 %v656
      %v1477 = vpop.f32.mrf.mxu0
      %v1478 = vadd.f32 %v1465, %v1477
      %v1479 = vpop.f32.mrf.mxu0
      %1480 = vdwg.mxu0
      %1481 = vmatpush.bf16.msra.mxu0 %v1154
      %1482 = vmatpush.bf16.msra.mxu0 %v1152
      %1483 = vmatpush.bf16.msra.mxu0 %v1150
      %1484 = vmatpush.bf16.msra.mxu0 %v1148
      %1485 = vmatpush.bf16.msra.mxu0 %v1146
      %1486 = vmatpush.bf16.msra.mxu0 %v1144
      %1487 = vmatpush.bf16.msra.mxu0 %v1142
      %1488 = vmatpush.bf16.msra.mxu0 %v1140
      %1489 = vmatmul.bf16.gmra.mxu0 %v657
      %v1490 = vpop.f32.mrf.mxu0
      %v1491 = vadd.f32 %v1478, %v1490
      %v1492 = vpop.f32.mrf.mxu0
      %1493 = vdwg.mxu0
      %1494 = vmatpush.bf16.msra.mxu0 %v1170
      %1495 = vmatpush.bf16.msra.mxu0 %v1168
      %1496 = vmatpush.bf16.msra.mxu0 %v1166
      %1497 = vmatpush.bf16.msra.mxu0 %v1164
      %1498 = vmatpush.bf16.msra.mxu0 %v1162
      %1499 = vmatpush.bf16.msra.mxu0 %v1160
      %1500 = vmatpush.bf16.msra.mxu0 %v1158
      %1501 = vmatpush.bf16.msra.mxu0 %v1156
      %1502 = vmatmul.bf16.gmra.mxu0 %v658
      %v1503 = vpop.f32.mrf.mxu0
      %v1504 = vadd.f32 %v1491, %v1503
      %v1505 = vpop.f32.mrf.mxu0
      %1506 = vdwg.mxu0
      %v1507 = vld [vmem:[%s2 + $0x10] sm:$0xff]
      %v1508 = vld [vmem:[%s2 + $0x18] sm:$0xff]
      %v1509 = vpack.c.bf16 %v1508, %v1507
      %v1510 = vpack.c.bf16 %v1400, %v1400
      %v1511 = vpack.c.bf16 %v1504, %v1504
      %v1512 = vld [vmem:[%s2 + $0x20] sm:$0xff]
      %v1513 = vld [vmem:[%s2 + $0x28] sm:$0xff]
      %1515 = vset.pattern.permute.xlu0 0
      %1516 = vperm.xlu0 %1515, %v1512
      %v1517 = vpop.permute.xlu0 %1516
      %1520 = vset.pattern.permute.xlu0 0
      %1521 = vperm.xlu0 %1520, %v1513
      %v1522 = vpop.permute.xlu0 %1521
      %vm1524 = vcmask 64512
      %v1526 = vsel %vm1524, %v1509, 0
      %vm1528 = vcmask 1043456
      %v1530 = vsel %vm1528, %v1510, 0
      %v1533 = vsel %vm1528, %v1511, 0
      %1535 = vmatpush.bf16.msra.mxu0 0
      %1536 = vmatpush.bf16.msra.mxu0 0
      %1537 = vmatpush.bf16.msra.mxu0 0
      %1538 = vmatpush.bf16.msra.mxu0 0
      %1539 = vmatpush.bf16.msra.mxu0 0
      %1540 = vmatpush.bf16.msra.mxu0 0
      %1541 = vmatpush.bf16.msra.mxu0 0
      %1542 = vmatpush.bf16.msra.mxu0 %v1530
      %1543 = vmatmul.bf16.gmra.mxu0 %v1526
      %v1544 = vpop.f32.mrf.mxu0
      %v1545 = vadd.f32 %v1517, %v1544
      %v1546 = vpop.f32.mrf.mxu0
      %v1547 = vadd.f32 %v1522, %v1546
      %1548 = vdwg.mxu0
      %1549 = vmatpush.bf16.msra.mxu0 0
      %1550 = vmatpush.bf16.msra.mxu0 0
      %1551 = vmatpush.bf16.msra.mxu0 0
      %1552 = vmatpush.bf16.msra.mxu0 0
      %1553 = vmatpush.bf16.msra.mxu0 0
      %1554 = vmatpush.bf16.msra.mxu0 0
      %1555 = vmatpush.bf16.msra.mxu0 0
      %1556 = vmatpush.bf16.msra.mxu0 %v1533
      %1557 = vmatmul.bf16.gmra.mxu0 %v1526
      %v1558 = vpop.f32.mrf.mxu0
      %v1559 = vadd.f32 %v1517, %v1558
      %v1560 = vpop.f32.mrf.mxu0
      %v1561 = vadd.f32 %v1522, %v1560
      %1562 = vdwg.mxu0
      %v1563 = vmul.f32 %v1545, %v1545
      %v1564 = vmul.f32 %v1559, %v1559
      %v1565 = vmul.f32 %v1547, %v1547
      %v1566 = vmul.f32 %v1561, %v1561
      %v1567 = vmul.f32 %v1545, %v1563
      %v1568 = vmul.f32 %v1559, %v1564
      %v1569 = vmul.f32 %v1547, %v1565
      %v1570 = vmul.f32 %v1561, %v1566
      %v1571 = vmul.f32 %v1567, 0.044715
      %v1572 = vmul.f32 %v1568, 0.044715
      %v1573 = vmul.f32 %v1569, 0.044715
      %v1574 = vmul.f32 %v1570, 0.044715
      %v1575 = vadd.f32 %v1545, %v1571
      %v1576 = vadd.f32 %v1559, %v1572
      %v1577 = vadd.f32 %v1547, %v1573
      %v1578 = vadd.f32 %v1561, %v1574
      %v1579 = vmul.f32 %v1575, 0.7978846
      %v1580 = vmul.f32 %v1576, 0.7978846
      %v1581 = vmul.f32 %v1577, 0.7978846
      %v1582 = vmul.f32 %v1578, 0.7978846
      %v1583 = vtanh.pop %v1579
      %v1584 = vtanh.pop %v1580
      %v1585 = vtanh.pop %v1581
      %v1586 = vtanh.pop %v1582
      %v1587 = vadd.f32 %v1583, 1.0
      %v1588 = vadd.f32 %v1584, 1.0
      %v1589 = vadd.f32 %v1585, 1.0
      %v1590 = vadd.f32 %v1586, 1.0
      %v1591 = vmul.f32 %v1587, 0.5
      %v1592 = vmul.f32 %v1588, 0.5
      %v1593 = vmul.f32 %v1589, 0.5
      %v1594 = vmul.f32 %v1590, 0.5
      %v1595 = vmul.f32 %v1545, %v1591
      %v1596 = vmul.f32 %v1559, %v1592
      %v1597 = vmul.f32 %v1547, %v1593
      %v1598 = vmul.f32 %v1561, %v1594
      %v1599 = vadd.f32 %v1595, %v1596
      %1600 = vadd.xlane.f32.xlu0 %v1599
      %v1601 = vpop.xlane.xlu0 %1600
      %v1602 = vadd.f32 %v1597, %v1598
      %1603 = vadd.xlane.f32.xlu0 %v1602
      %v1604 = vpop.xlane.xlu0 %1603
      %v1605 = vrcp.pop 256.0
      %v1606 = vmul.f32 256.0, %v1605
      %v1607 = vsub.f32 1.0, %v1606
      %v1608 = vmul.f32 %v1605, %v1607
      %v1609 = vadd.f32 %v1605, %v1608
      %vm1610 = vweird.f32 %v1605
      %v1611 = vsel %vm1610, %v1605, %v1609
      %v1612 = vmul.f32 %v1601, %v1611
      %v1613 = vmul.f32 %v1604, %v1611
      %v1614 = vld [vmem:[%s4 + $0x400] sm:$0xf]
      %v1615 = vld [vmem:[%s4 + $0x408] sm:$0xf]
      %v1616 = vld [vmem:[%s4 + $0x410] sm:$0xf]
      %v1617 = vld [vmem:[%s4 + $0x418] sm:$0xf]
      %v1618 = vld [vmem:[%s4 + $0x420] sm:$0xf]
      %v1619 = vld [vmem:[%s4 + $0x428] sm:$0xf]
      %v1620 = vld [vmem:[%s4 + $0x430] sm:$0xf]
      %v1621 = vld [vmem:[%s4 + $0x438] sm:$0xf]
      %v1622 = vld [vmem:[%s4 + $0x440] sm:$0xf]
      %v1623 = vld [vmem:[%s4 + $0x448] sm:$0xf]
      %v1624 = vld [vmem:[%s4 + $0x450] sm:$0xf]
      %v1625 = vld [vmem:[%s4 + $0x458] sm:$0xf]
      %v1626 = vld [vmem:[%s4 + $0x460] sm:$0xf]
      %v1627 = vld [vmem:[%s4 + $0x468] sm:$0xf]
      %v1628 = vld [vmem:[%s4 + $0x470] sm:$0xf]
      %v1629 = vld [vmem:[%s4 + $0x478] sm:$0xf]
      %v1630 = vld [vmem:[%s4 + $0x480] sm:$0xf]
      %v1631 = vld [vmem:[%s4 + $0x488] sm:$0xf]
      %v1632 = vld [vmem:[%s4 + $0x490] sm:$0xf]
      %v1633 = vld [vmem:[%s4 + $0x498] sm:$0xf]
      %v1634 = vld [vmem:[%s4 + $0x4a0] sm:$0xf]
      %v1635 = vld [vmem:[%s4 + $0x4a8] sm:$0xf]
      %v1636 = vld [vmem:[%s4 + $0x4b0] sm:$0xf]
      %v1637 = vld [vmem:[%s4 + $0x4b8] sm:$0xf]
      %v1638 = vld [vmem:[%s4 + $0x4c0] sm:$0xf]
      %v1639 = vld [vmem:[%s4 + $0x4c8] sm:$0xf]
      %v1640 = vld [vmem:[%s4 + $0x4d0] sm:$0xf]
      %v1641 = vld [vmem:[%s4 + $0x4d8] sm:$0xf]
      %v1642 = vld [vmem:[%s4 + $0x4e0] sm:$0xf]
      %v1643 = vld [vmem:[%s4 + $0x4e8] sm:$0xf]
      %v1644 = vld [vmem:[%s4 + $0x4f0] sm:$0xf]
      %v1645 = vld [vmem:[%s4 + $0x4f8] sm:$0xf]
      %v1646 = vpack.c.bf16 %v1597, %v1595
      %v1647 = vpack.c.bf16 %v1598, %v1596
      %v1680 = vunpack.c.l.b16 %v1614
      %v1681 = vunpack.c.l.b16 %v1615
      %v1682 = vunpack.c.l.b16 %v1616
      %v1683 = vunpack.c.l.b16 %v1617
      %v1684 = vunpack.c.l.b16 %v1618
      %v1685 = vunpack.c.l.b16 %v1619
      %v1686 = vunpack.c.l.b16 %v1620
      %v1687 = vunpack.c.l.b16 %v1621
      %v1688 = vunpack.c.l.b16 %v1622
      %v1689 = vunpack.c.l.b16 %v1623
      %v1690 = vunpack.c.l.b16 %v1624
      %v1691 = vunpack.c.l.b16 %v1625
      %v1692 = vunpack.c.l.b16 %v1626
      %v1693 = vunpack.c.l.b16 %v1627
      %v1694 = vunpack.c.l.b16 %v1628
      %v1695 = vunpack.c.l.b16 %v1629
      %v1696 = vunpack.c.l.b16 %v1630
      %v1697 = vunpack.c.l.b16 %v1631
      %v1698 = vunpack.c.l.b16 %v1632
      %v1699 = vunpack.c.l.b16 %v1633
      %v1700 = vunpack.c.l.b16 %v1634
      %v1701 = vunpack.c.l.b16 %v1635
      %v1702 = vunpack.c.l.b16 %v1636
      %v1703 = vunpack.c.l.b16 %v1637
      %v1704 = vunpack.c.l.b16 %v1638
      %v1705 = vunpack.c.l.b16 %v1639
      %v1706 = vunpack.c.l.b16 %v1640
      %v1707 = vunpack.c.l.b16 %v1641
      %v1708 = vunpack.c.l.b16 %v1642
      %v1709 = vunpack.c.l.b16 %v1643
      %v1710 = vunpack.c.l.b16 %v1644
      %v1711 = vunpack.c.l.b16 %v1645
      %v1712 = vpack.c.b16 %v1681, %v1680
      %v1713 = vpack.c.b16 %v1683, %v1682
      %v1714 = vpack.c.b16 %v1685, %v1684
      %v1715 = vpack.c.b16 %v1687, %v1686
      %v1716 = vpack.c.b16 %v1689, %v1688
      %v1717 = vpack.c.b16 %v1691, %v1690
      %v1718 = vpack.c.b16 %v1693, %v1692
      %v1719 = vpack.c.b16 %v1695, %v1694
      %v1720 = vpack.c.b16 %v1697, %v1696
      %v1721 = vpack.c.b16 %v1699, %v1698
      %v1722 = vpack.c.b16 %v1701, %v1700
      %v1723 = vpack.c.b16 %v1703, %v1702
      %v1724 = vpack.c.b16 %v1705, %v1704
      %v1725 = vpack.c.b16 %v1707, %v1706
      %v1726 = vpack.c.b16 %v1709, %v1708
      %v1727 = vpack.c.b16 %v1711, %v1710
      %1744 = vmatpush.bf16.msra.mxu0 %v1719
      %1745 = vmatpush.bf16.msra.mxu0 %v1718
      %1746 = vmatpush.bf16.msra.mxu0 %v1717
      %1747 = vmatpush.bf16.msra.mxu0 %v1716
      %1748 = vmatpush.bf16.msra.mxu0 %v1715
      %1749 = vmatpush.bf16.msra.mxu0 %v1714
      %1750 = vmatpush.bf16.msra.mxu0 %v1713
      %1751 = vmatpush.bf16.msra.mxu0 %v1712
      %1752 = vmatmul.bf16.gmra.mxu0 %v1646
      %v1753 = vpop.f32.mrf.mxu0
      %v1754 = vadd.f32 0.0, %v1753
      %v1755 = vpop.f32.mrf.mxu0
      %v1756 = vadd.f32 0.0, %v1755
      %1757 = vdwg.mxu0
      %1758 = vmatpush.bf16.msra.mxu0 %v1727
      %1759 = vmatpush.bf16.msra.mxu0 %v1726
      %1760 = vmatpush.bf16.msra.mxu0 %v1725
      %1761 = vmatpush.bf16.msra.mxu0 %v1724
      %1762 = vmatpush.bf16.msra.mxu0 %v1723
      %1763 = vmatpush.bf16.msra.mxu0 %v1722
      %1764 = vmatpush.bf16.msra.mxu0 %v1721
      %1765 = vmatpush.bf16.msra.mxu0 %v1720
      %1766 = vmatmul.bf16.gmra.mxu0 %v1647
      %v1767 = vpop.f32.mrf.mxu0
      %v1768 = vadd.f32 %v1754, %v1767
      %v1769 = vpop.f32.mrf.mxu0
      %v1770 = vadd.f32 %v1756, %v1769
      %1771 = vdwg.mxu0
      %v1772 = vld [vmem:[%s2 + $0x30] sm:$0xff]
      %v1773 = vld [vmem:[%s2 + $0x38] sm:$0xff]
      %v1774 = vld [vmem:[%s2 + $0x40] sm:$0xff]
      %v1775 = vld [vmem:[%s2 + $0x48] sm:$0xff]
      %v1776 = vpack.c.bf16 %v1773, %v1772
      %v1777 = vpack.c.bf16 %v1775, %v1774
      %v1778 = vpack.c.bf16 %v1770, %v1768
      %v1779 = vld [vmem:[%s2 + $0x50] sm:$0xff]
      %v1780 = vld [vmem:[%s2 + $0x58] sm:$0xff]
      %v1781 = vld [vmem:[%s2 + $0x60] sm:$0xff]
      %v1782 = vld [vmem:[%s2 + $0x68] sm:$0xff]
      %1784 = vset.pattern.permute.xlu0 0
      %1785 = vperm.xlu0 %1784, %v1779
      %v1786 = vpop.permute.xlu0 %1785
      %1789 = vset.pattern.permute.xlu0 0
      %1790 = vperm.xlu0 %1789, %v1780
      %v1791 = vpop.permute.xlu0 %1790
      %1794 = vset.pattern.permute.xlu0 0
      %1795 = vperm.xlu0 %1794, %v1781
      %v1796 = vpop.permute.xlu0 %1795
      %1799 = vset.pattern.permute.xlu0 0
      %1800 = vperm.xlu0 %1799, %v1782
      %v1801 = vpop.permute.xlu0 %1800
      %vm1803 = vcmask 130048
      %v1805 = vsel %vm1803, %v1776, 0
      %v1808 = vsel %vm1803, %v1777, 0
      %1810 = vmatpush.bf16.msra.mxu0 0
      %1811 = vmatpush.bf16.msra.mxu0 0
      %1812 = vmatpush.bf16.msra.mxu0 0
      %1813 = vmatpush.bf16.msra.mxu0 0
      %1814 = vmatpush.bf16.msra.mxu0 0
      %1815 = vmatpush.bf16.msra.mxu0 0
      %1816 = vmatpush.bf16.msra.mxu0 0
      %1817 = vmatpush.bf16.msra.mxu0 %v1778
      %1818 = vmatmul.bf16.gmra.mxu0 %v1805
      %v1819 = vpop.f32.mrf.mxu0
      %v1820 = vadd.f32 %v1786, %v1819
      %v1821 = vpop.f32.mrf.mxu0
      %v1822 = vadd.f32 %v1791, %v1821
      %1823 = vmatmul.bf16.gmra.mxu0 %v1808
      %v1824 = vpop.f32.mrf.mxu0
      %v1825 = vadd.f32 %v1796, %v1824
      %v1826 = vpop.f32.mrf.mxu0
      %v1827 = vadd.f32 %v1801, %v1826
      %1828 = vdwg.mxu0
      %v1829 = vmul.f32 %v1820, %v1820
      %v1830 = vmul.f32 %v1822, %v1822
      %v1831 = vmul.f32 %v1825, %v1825
      %v1832 = vmul.f32 %v1827, %v1827
      %v1833 = vmul.f32 %v1820, %v1829
      %v1834 = vmul.f32 %v1822, %v1830
      %v1835 = vmul.f32 %v1825, %v1831
      %v1836 = vmul.f32 %v1827, %v1832
      %v1837 = vmul.f32 %v1833, 0.044715
      %v1838 = vmul.f32 %v1834, 0.044715
      %v1839 = vmul.f32 %v1835, 0.044715
      %v1840 = vmul.f32 %v1836, 0.044715
      %v1841 = vadd.f32 %v1820, %v1837
      %v1842 = vadd.f32 %v1822, %v1838
      %v1843 = vadd.f32 %v1825, %v1839
      %v1844 = vadd.f32 %v1827, %v1840
      %v1845 = vmul.f32 %v1841, 0.7978846
      %v1846 = vmul.f32 %v1842, 0.7978846
      %v1847 = vmul.f32 %v1843, 0.7978846
      %v1848 = vmul.f32 %v1844, 0.7978846
      %v1849 = vtanh.pop %v1845
      %v1850 = vtanh.pop %v1846
      %v1851 = vtanh.pop %v1847
      %v1852 = vtanh.pop %v1848
      %v1853 = vadd.f32 %v1849, 1.0
      %v1854 = vadd.f32 %v1850, 1.0
      %v1855 = vadd.f32 %v1851, 1.0
      %v1856 = vadd.f32 %v1852, 1.0
      %v1857 = vmul.f32 %v1853, 0.5
      %v1858 = vmul.f32 %v1854, 0.5
      %v1859 = vmul.f32 %v1855, 0.5
      %v1860 = vmul.f32 %v1856, 0.5
      %v1861 = vmul.f32 %v1820, %v1857
      %v1862 = vmul.f32 %v1822, %v1858
      %v1863 = vmul.f32 %v1825, %v1859
      %v1864 = vmul.f32 %v1827, %v1860
      %vm1865 = vcmask 523264
      %v1866 = vsel %vm1865, %v1861, 0.0
      %1867 = vadd.xlane.f32.xlu0 %v1866
      %v1868 = vpop.xlane.xlu0 %1867
      %v1869 = vsel %vm1865, %v1862, 0.0
      %1870 = vadd.xlane.f32.xlu0 %v1869
      %v1871 = vpop.xlane.xlu0 %1870
      %v1872 = vsel %vm1865, %v1863, 0.0
      %1873 = vadd.xlane.f32.xlu0 %v1872
      %v1874 = vpop.xlane.xlu0 %1873
      %v1875 = vsel %vm1865, %v1864, 0.0
      %1876 = vadd.xlane.f32.xlu0 %v1875
      %v1877 = vpop.xlane.xlu0 %1876
      %v1878 = vrcp.pop 64.0
      %v1879 = vmul.f32 64.0, %v1878
      %v1880 = vsub.f32 1.0, %v1879
      %v1881 = vmul.f32 %v1878, %v1880
      %v1882 = vadd.f32 %v1878, %v1881
      %vm1883 = vweird.f32 %v1878
      %v1884 = vsel %vm1883, %v1878, %v1882
      %v1885 = vmul.f32 %v1868, %v1884
      %v1886 = vmul.f32 %v1871, %v1884
      %v1887 = vmul.f32 %v1874, %v1884
      %v1888 = vmul.f32 %v1877, %v1884
      %v1889 = vld [vmem:[%s4 + $0x500] sm:$0xf]
      %v1890 = vld [vmem:[%s4 + $0x508] sm:$0xf]
      %v1891 = vld [vmem:[%s4 + $0x510] sm:$0xf]
      %v1892 = vld [vmem:[%s4 + $0x518] sm:$0xf]
      %v1893 = vld [vmem:[%s4 + $0x520] sm:$0xf]
      %v1894 = vld [vmem:[%s4 + $0x528] sm:$0xf]
      %v1895 = vld [vmem:[%s4 + $0x530] sm:$0xf]
      %v1896 = vld [vmem:[%s4 + $0x538] sm:$0xf]
      %v1897 = vpack.c.bf16 %v1862, %v1861
      %v1898 = vpack.c.bf16 %v1864, %v1863
      %v1907 = vunpack.c.l.b16 %v1889
      %v1908 = vunpack.c.l.b16 %v1890
      %v1909 = vunpack.c.l.b16 %v1891
      %v1910 = vunpack.c.l.b16 %v1892
      %v1911 = vunpack.c.l.b16 %v1893
      %v1912 = vunpack.c.l.b16 %v1894
      %v1913 = vunpack.c.l.b16 %v1895
      %v1914 = vunpack.c.l.b16 %v1896
      %v1915 = vpack.c.b16 %v1908, %v1907
      %v1916 = vpack.c.b16 %v1910, %v1909
      %v1917 = vpack.c.b16 %v1912, %v1911
      %v1918 = vpack.c.b16 %v1914, %v1913
      %v1924 = vsel %vm1865, %v1897, 0
      %v1927 = vsel %vm1865, %v1898, 0
      %1929 = vmatpush.bf16.msra.mxu0 0
      %1930 = vmatpush.bf16.msra.mxu0 0
      %1931 = vmatpush.bf16.msra.mxu0 0
      %1932 = vmatpush.bf16.msra.mxu0 0
      %1933 = vmatpush.bf16.msra.mxu0 %v1918
      %1934 = vmatpush.bf16.msra.mxu0 %v1917
      %1935 = vmatpush.bf16.msra.mxu0 %v1916
      %1936 = vmatpush.bf16.msra.mxu0 %v1915
      %1937 = vmatmul.bf16.gmra.mxu0 %v1924
      %v1938 = vpop.f32.mrf.mxu0
      %v1939 = vadd.f32 0.0, %v1938
      %v1940 = vpop.f32.mrf.mxu0
      %v1941 = vadd.f32 0.0, %v1940
      %1942 = vmatmul.bf16.gmra.mxu0 %v1927
      %v1943 = vpop.f32.mrf.mxu0
      %v1944 = vadd.f32 0.0, %v1943
      %v1945 = vpop.f32.mrf.mxu0
      %v1946 = vadd.f32 0.0, %v1945
      %1947 = vdwg.mxu0
      %v1948 = vld [vmem:[%s2 + $0x70] sm:$0xff]
      %v1949 = vld [vmem:[%s2 + $0x78] sm:$0xff]
      %v1950 = vld [vmem:[%s2 + $0x80] sm:$0xff]
      %v1951 = vld [vmem:[%s2 + $0x88] sm:$0xff]
      %v1952 = vpack.c.bf16 %v1949, %v1948
      %v1953 = vpack.c.bf16 %v1951, %v1950
      %v1954 = vpack.c.bf16 %v1941, %v1939
      %v1955 = vpack.c.bf16 %v1946, %v1944
      %v1956 = vld [vmem:[%s2 + $0x90] sm:$0xff]
      %v1957 = vld [vmem:[%s2 + $0x98] sm:$0xff]
      %v1958 = vld [vmem:[%s2 + $0xa0] sm:$0xff]
      %v1959 = vld [vmem:[%s2 + $0xa8] sm:$0xff]
      %1961 = vset.pattern.permute.xlu0 0
      %1962 = vperm.xlu0 %1961, %v1956
      %v1963 = vpop.permute.xlu0 %1962
      %1966 = vset.pattern.permute.xlu0 0
      %1967 = vperm.xlu0 %1966, %v1957
      %v1968 = vpop.permute.xlu0 %1967
      %1971 = vset.pattern.permute.xlu0 0
      %1972 = vperm.xlu0 %1971, %v1958
      %v1973 = vpop.permute.xlu0 %1972
      %1976 = vset.pattern.permute.xlu0 0
      %1977 = vperm.xlu0 %1976, %v1959
      %v1978 = vpop.permute.xlu0 %1977
      %vm1980 = vcmask 261120
      %v1982 = vsel %vm1980, %v1952, 0
      %v1985 = vsel %vm1980, %v1953, 0
      %1987 = vmatpush.bf16.msra.mxu0 0
      %1988 = vmatpush.bf16.msra.mxu0 0
      %1989 = vmatpush.bf16.msra.mxu0 0
      %1990 = vmatpush.bf16.msra.mxu0 0
      %1991 = vmatpush.bf16.msra.mxu0 0
      %1992 = vmatpush.bf16.msra.mxu0 0
      %1993 = vmatpush.bf16.msra.mxu0 %v1955
      %1994 = vmatpush.bf16.msra.mxu0 %v1954
      %1995 = vmatmul.bf16.gmra.mxu0 %v1982
      %v1996 = vpop.f32.mrf.mxu0
      %v1997 = vadd.f32 %v1963, %v1996
      %v1998 = vpop.f32.mrf.mxu0
      %v1999 = vadd.f32 %v1968, %v1998
      %2000 = vmatmul.bf16.gmra.mxu0 %v1985
      %v2001 = vpop.f32.mrf.mxu0
      %v2002 = vadd.f32 %v1973, %v2001
      %v2003 = vpop.f32.mrf.mxu0
      %v2004 = vadd.f32 %v1978, %v2003
      %2005 = vdwg.mxu0
      %v2006 = vmul.f32 %v1997, %v1997
      %v2007 = vmul.f32 %v1999, %v1999
      %v2008 = vmul.f32 %v2002, %v2002
      %v2009 = vmul.f32 %v2004, %v2004
      %v2010 = vmul.f32 %v1997, %v2006
      %v2011 = vmul.f32 %v1999, %v2007
      %v2012 = vmul.f32 %v2002, %v2008
      %v2013 = vmul.f32 %v2004, %v2009
      %v2014 = vmul.f32 %v2010, 0.044715
      %v2015 = vmul.f32 %v2011, 0.044715
      %v2016 = vmul.f32 %v2012, 0.044715
      %v2017 = vmul.f32 %v2013, 0.044715
      %v2018 = vadd.f32 %v1997, %v2014
      %v2019 = vadd.f32 %v1999, %v2015
      %v2020 = vadd.f32 %v2002, %v2016
      %v2021 = vadd.f32 %v2004, %v2017
      %v2022 = vmul.f32 %v2018, 0.7978846
      %v2023 = vmul.f32 %v2019, 0.7978846
      %v2024 = vmul.f32 %v2020, 0.7978846
      %v2025 = vmul.f32 %v2021, 0.7978846
      %v2026 = vtanh.pop %v2022
      %v2027 = vtanh.pop %v2023
      %v2028 = vtanh.pop %v2024
      %v2029 = vtanh.pop %v2025
      %v2030 = vadd.f32 %v2026, 1.0
      %v2031 = vadd.f32 %v2027, 1.0
      %v2032 = vadd.f32 %v2028, 1.0
      %v2033 = vadd.f32 %v2029, 1.0
      %v2034 = vmul.f32 %v2030, 0.5
      %v2035 = vmul.f32 %v2031, 0.5
      %v2036 = vmul.f32 %v2032, 0.5
      %v2037 = vmul.f32 %v2033, 0.5
      %v2038 = vmul.f32 %v1997, %v2034
      %v2039 = vmul.f32 %v1999, %v2035
      %v2040 = vmul.f32 %v2002, %v2036
      %v2041 = vmul.f32 %v2004, %v2037
      %v2042 = vsel %vm1803, %v2038, 0.0
      %2043 = vadd.xlane.f32.xlu0 %v2042
      %v2044 = vpop.xlane.xlu0 %2043
      %v2045 = vsel %vm1803, %v2039, 0.0
      %2046 = vadd.xlane.f32.xlu0 %v2045
      %v2047 = vpop.xlane.xlu0 %2046
      %v2048 = vsel %vm1803, %v2040, 0.0
      %2049 = vadd.xlane.f32.xlu0 %v2048
      %v2050 = vpop.xlane.xlu0 %2049
      %v2051 = vsel %vm1803, %v2041, 0.0
      %2052 = vadd.xlane.f32.xlu0 %v2051
      %v2053 = vpop.xlane.xlu0 %2052
      %v2054 = vrcp.pop 16.0
      %v2055 = vmul.f32 16.0, %v2054
      %v2056 = vsub.f32 1.0, %v2055
      %v2057 = vmul.f32 %v2054, %v2056
      %v2058 = vadd.f32 %v2054, %v2057
      %vm2059 = vweird.f32 %v2054
      %v2060 = vsel %vm2059, %v2054, %v2058
      %v2061 = vmul.f32 %v2044, %v2060
      %v2062 = vmul.f32 %v2047, %v2060
      %v2063 = vmul.f32 %v2050, %v2060
      %v2064 = vmul.f32 %v2053, %v2060
      %v2065 = vld [vmem:[%s4 + $0x540] sm:$0xf]
      %v2066 = vld [vmem:[%s4 + $0x548] sm:$0xf]
      %v2067 = vpack.c.bf16 %v2039, %v2038
      %v2068 = vpack.c.bf16 %v2041, %v2040
      %v2071 = vunpack.c.l.b16 %v2065
      %v2072 = vunpack.c.l.b16 %v2066
      %v2073 = vpack.c.b16 %v2072, %v2071
      %v2076 = vsel %vm1803, %v2067, 0
      %v2079 = vsel %vm1803, %v2068, 0
      %2081 = vmatpush.bf16.msra.mxu0 0
      %2082 = vmatpush.bf16.msra.mxu0 0
      %2083 = vmatpush.bf16.msra.mxu0 0
      %2084 = vmatpush.bf16.msra.mxu0 0
      %2085 = vmatpush.bf16.msra.mxu0 0
      %2086 = vmatpush.bf16.msra.mxu0 0
      %2087 = vmatpush.bf16.msra.mxu0 0
      %2088 = vmatpush.bf16.msra.mxu0 %v2073
      %2089 = vmatmul.bf16.gmra.mxu0 %v2076
      %v2090 = vpop.f32.mrf.mxu0
      %v2091 = vadd.f32 0.0, %v2090
      %v2092 = vpop.f32.mrf.mxu0
      %v2093 = vadd.f32 0.0, %v2092
      %2094 = vmatmul.bf16.gmra.mxu0 %v2079
      %v2095 = vpop.f32.mrf.mxu0
      %v2096 = vadd.f32 0.0, %v2095
      %v2097 = vpop.f32.mrf.mxu0
      %v2098 = vadd.f32 0.0, %v2097
      %2099 = vdwg.mxu0
      %v2100 = vld [vmem:[%s2 + $0xb0] sm:$0xff]
      %v2101 = vld [vmem:[%s2 + $0xb8] sm:$0xff]
      %v2102 = vld [vmem:[%s2 + $0xc0] sm:$0xff]
      %v2103 = vld [vmem:[%s2 + $0xc8] sm:$0xff]
      %v2104 = vpack.c.bf16 %v2101, %v2100
      %v2105 = vpack.c.bf16 %v2103, %v2102
      %v2106 = vpack.c.bf16 %v2093, %v2091
      %v2107 = vpack.c.bf16 %v2098, %v2096
      %v2108 = vld [vmem:[%s2 + $0xd0] sm:$0xff]
      %v2109 = vld [vmem:[%s2 + $0xd8] sm:$0xff]
      %v2110 = vld [vmem:[%s2 + $0xe0] sm:$0xff]
      %v2111 = vld [vmem:[%s2 + $0xe8] sm:$0xff]
      %2113 = vset.pattern.permute.xlu0 0
      %2114 = vperm.xlu0 %2113, %v2108
      %v2115 = vpop.permute.xlu0 %2114
      %2118 = vset.pattern.permute.xlu0 0
      %2119 = vperm.xlu0 %2118, %v2109
      %v2120 = vpop.permute.xlu0 %2119
      %2123 = vset.pattern.permute.xlu0 0
      %2124 = vperm.xlu0 %2123, %v2110
      %v2125 = vpop.permute.xlu0 %2124
      %2128 = vset.pattern.permute.xlu0 0
      %2129 = vperm.xlu0 %2128, %v2111
      %v2130 = vpop.permute.xlu0 %2129
      %v2133 = vsel %vm1980, %v2104, 0
      %v2136 = vsel %vm1980, %v2105, 0
      %2138 = vmatpush.bf16.msra.mxu0 0
      %2139 = vmatpush.bf16.msra.mxu0 0
      %2140 = vmatpush.bf16.msra.mxu0 0
      %2141 = vmatpush.bf16.msra.mxu0 0
      %2142 = vmatpush.bf16.msra.mxu0 0
      %2143 = vmatpush.bf16.msra.mxu0 0
      %2144 = vmatpush.bf16.msra.mxu0 %v2107
      %2145 = vmatpush.bf16.msra.mxu0 %v2106
      %2146 = vmatmul.bf16.gmra.mxu0 %v2133
      %v2147 = vpop.f32.mrf.mxu0
      %v2148 = vadd.f32 %v2115, %v2147
      %v2149 = vpop.f32.mrf.mxu0
      %v2150 = vadd.f32 %v2120, %v2149
      %2151 = vmatmul.bf16.gmra.mxu0 %v2136
      %v2152 = vpop.f32.mrf.mxu0
      %v2153 = vadd.f32 %v2125, %v2152
      %v2154 = vpop.f32.mrf.mxu0
      %v2155 = vadd.f32 %v2130, %v2154
      %2156 = vdwg.mxu0
      %v2157 = vmul.f32 %v2148, %v2148
      %v2158 = vmul.f32 %v2150, %v2150
      %v2159 = vmul.f32 %v2153, %v2153
      %v2160 = vmul.f32 %v2155, %v2155
      %v2161 = vmul.f32 %v2148, %v2157
      %v2162 = vmul.f32 %v2150, %v2158
      %v2163 = vmul.f32 %v2153, %v2159
      %v2164 = vmul.f32 %v2155, %v2160
      %v2165 = vmul.f32 %v2161, 0.044715
      %v2166 = vmul.f32 %v2162, 0.044715
      %v2167 = vmul.f32 %v2163, 0.044715
      %v2168 = vmul.f32 %v2164, 0.044715
      %v2169 = vadd.f32 %v2148, %v2165
      %v2170 = vadd.f32 %v2150, %v2166
      %v2171 = vadd.f32 %v2153, %v2167
      %v2172 = vadd.f32 %v2155, %v2168
      %v2173 = vmul.f32 %v2169, 0.7978846
      %v2174 = vmul.f32 %v2170, 0.7978846
      %v2175 = vmul.f32 %v2171, 0.7978846
      %v2176 = vmul.f32 %v2172, 0.7978846
      %v2177 = vtanh.pop %v2173
      %v2178 = vtanh.pop %v2174
      %v2179 = vtanh.pop %v2175
      %v2180 = vtanh.pop %v2176
      %v2181 = vadd.f32 %v2177, 1.0
      %v2182 = vadd.f32 %v2178, 1.0
      %v2183 = vadd.f32 %v2179, 1.0
      %v2184 = vadd.f32 %v2180, 1.0
      %v2185 = vmul.f32 %v2181, 0.5
      %v2186 = vmul.f32 %v2182, 0.5
      %v2187 = vmul.f32 %v2183, 0.5
      %v2188 = vmul.f32 %v2184, 0.5
      %v2189 = vmul.f32 %v2148, %v2185
      %v2190 = vmul.f32 %v2150, %v2186
      %v2191 = vmul.f32 %v2153, %v2187
      %v2192 = vmul.f32 %v2155, %v2188
      %vm2193 = vcmask 31744
      %v2194 = vsel %vm2193, %v2189, 0.0
      %2195 = vadd.xlane.f32.xlu0 %v2194
      %v2196 = vpop.xlane.xlu0 %2195
      %v2197 = vsel %vm2193, %v2190, 0.0
      %2198 = vadd.xlane.f32.xlu0 %v2197
      %v2199 = vpop.xlane.xlu0 %2198
      %v2200 = vsel %vm2193, %v2191, 0.0
      %2201 = vadd.xlane.f32.xlu0 %v2200
      %v2202 = vpop.xlane.xlu0 %2201
      %v2203 = vsel %vm2193, %v2192, 0.0
      %2204 = vadd.xlane.f32.xlu0 %v2203
      %v2205 = vpop.xlane.xlu0 %2204
      %v2206 = vrcp.pop 4.0
      %v2207 = vmul.f32 4.0, %v2206
      %v2208 = vsub.f32 1.0, %v2207
      %v2209 = vmul.f32 %v2206, %v2208
      %v2210 = vadd.f32 %v2206, %v2209
      %vm2211 = vweird.f32 %v2206
      %v2212 = vsel %vm2211, %v2206, %v2210
      %v2213 = vmul.f32 %v2196, %v2212
      %v2214 = vmul.f32 %v2199, %v2212
      %v2215 = vmul.f32 %v2202, %v2212
      %v2216 = vmul.f32 %v2205, %v2212
      %v2217 = vld [vmem:[%s2 + $0x250] sm:$0xff]
      %v2218 = vld [vmem:[%s239] sm:$0xff]
      %v2219 = vld [vmem:[%s239 + $0x8] sm:$0xff]
      %v2220 = vld [vmem:[%s239 + $0x10] sm:$0xff]
      %v2221 = vld [vmem:[%s239 + $0x18] sm:$0xff]
      %v2222 = vld [vmem:[%s239 + $0x20] sm:$0xff]
      %v2223 = vld [vmem:[%s239 + $0x28] sm:$0xff]
      %v2224 = vld [vmem:[%s239 + $0x30] sm:$0xff]
      %v2225 = vld [vmem:[%s239 + $0x38] sm:$0xff]
      %v2226 = vld [vmem:[%s2 + $0x118] sm:$0xff]
      %v2227 = vld [vmem:[%s2 + $0x120] sm:$0xff]
      %v2228 = vld [vmem:[%s2 + $0x128] sm:$0xff]
      %v2229 = vld [vmem:[%s2 + $0x130] sm:$0xff]
      %v2230 = vld [vmem:[%s2 + $0x138] sm:$0xff]
      %v2231 = vld [vmem:[%s2 + $0x140] sm:$0xff]
      %v2232 = vpack.c.bf16 %v2219, %v2218
      %v2233 = vpack.c.bf16 %v2221, %v2220
      %v2234 = vpack.c.bf16 %v2223, %v2222
      %v2235 = vpack.c.bf16 %v2225, %v2224
      %v2236 = vpack.c.bf16 %v2227, %v2226
      %v2237 = vpack.c.bf16 %v2229, %v2228
      %v2238 = vpack.c.bf16 %v2231, %v2230
      %v2239 = vld [vmem:[%s2 + $0x148] sm:$0x1]
      %v2240 = vperm.slane %v2239, 0
      %vm2241 = vcmask 392192
      %v2243 = vsel %vm2241, %v2232, 0
      %v2246 = vsel %vm2241, %v2233, 0
      %v2249 = vsel %vm2241, %v2234, 0
      %v2252 = vsel %vm2241, %v2235, 0
      %2254 = vmatpush.bf16.msra.mxu0 0
      %2255 = vmatpush.bf16.msra.mxu0 0
      %2256 = vmatpush.bf16.msra.mxu0 0
      %2257 = vmatpush.bf16.msra.mxu0 0
      %2258 = vmatpush.bf16.msra.mxu0 0
      %2259 = vmatpush.bf16.msra.mxu0 %v2238
      %2260 = vmatpush.bf16.msra.mxu0 %v2237
      %2261 = vmatpush.bf16.msra.mxu0 %v2236
      %2262 = vmatmul.bf16.gmra.mxu0 %v2243
      %v2263 = vpop.f32.mrf.mxu0
      %v2264 = vadd.f32 %v2240, %v2263
      %v2265 = vpop.f32.mrf.mxu0
      %v2266 = vadd.f32 %v2240, %v2265
      %2267 = vmatmul.bf16.gmra.mxu0 %v2246
      %v2268 = vpop.f32.mrf.mxu0
      %v2269 = vadd.f32 %v2240, %v2268
      %v2270 = vpop.f32.mrf.mxu0
      %v2271 = vadd.f32 %v2240, %v2270
      %2272 = vmatmul.bf16.gmra.mxu0 %v2249
      %v2273 = vpop.f32.mrf.mxu0
      %v2274 = vadd.f32 %v2240, %v2273
      %v2275 = vpop.f32.mrf.mxu0
      %v2276 = vadd.f32 %v2240, %v2275
      %2277 = vmatmul.bf16.gmra.mxu0 %v2252
      %v2278 = vpop.f32.mrf.mxu0
      %v2279 = vadd.f32 %v2240, %v2278
      %v2280 = vpop.f32.mrf.mxu0
      %v2281 = vadd.f32 %v2240, %v2280
      %2282 = vdwg.mxu0
      %v2283 = vld [vmem:[%s2 + $0x150] sm:$0xff]
      %v2284 = vld [vmem:[%s2 + $0x158] sm:$0xff]
      %v2285 = vld [vmem:[%s2 + $0x160] sm:$0xff]
      %v2286 = vld [vmem:[%s2 + $0x168] sm:$0xff]
      %v2287 = vld [vmem:[%s2 + $0x170] sm:$0xff]
      %v2288 = vld [vmem:[%s2 + $0x178] sm:$0xff]
      %v2289 = vld [vmem:[%s2 + $0x180] sm:$0xff]
      %v2290 = vld [vmem:[%s2 + $0x188] sm:$0xff]
      %v2291 = vadd.f32 %v2264, %v2283
      %v2292 = vadd.f32 %v2266, %v2284
      %v2293 = vadd.f32 %v2269, %v2285
      %v2294 = vadd.f32 %v2271, %v2286
      %v2295 = vadd.f32 %v2274, %v2287
      %v2296 = vadd.f32 %v2276, %v2288
      %v2297 = vadd.f32 %v2279, %v2289
      %v2298 = vadd.f32 %v2281, %v2290
      %v2299 = vsel %vm1980, %v2291, 0.0
      %2300 = vadd.xlane.f32.xlu0 %v2299
      %v2301 = vpop.xlane.xlu0 %2300
      %v2302 = vsel %vm1980, %v2292, 0.0
      %2303 = vadd.xlane.f32.xlu0 %v2302
      %v2304 = vpop.xlane.xlu0 %2303
      %v2305 = vsel %vm1980, %v2293, 0.0
      %2306 = vadd.xlane.f32.xlu0 %v2305
      %v2307 = vpop.xlane.xlu0 %2306
      %v2308 = vsel %vm1980, %v2294, 0.0
      %2309 = vadd.xlane.f32.xlu0 %v2308
      %v2310 = vpop.xlane.xlu0 %2309
      %v2311 = vsel %vm1980, %v2295, 0.0
      %2312 = vadd.xlane.f32.xlu0 %v2311
      %v2313 = vpop.xlane.xlu0 %2312
      %v2314 = vsel %vm1980, %v2296, 0.0
      %2315 = vadd.xlane.f32.xlu0 %v2314
      %v2316 = vpop.xlane.xlu0 %2315
      %v2317 = vsel %vm1980, %v2297, 0.0
      %2318 = vadd.xlane.f32.xlu0 %v2317
      %v2319 = vpop.xlane.xlu0 %2318
      %v2320 = vsel %vm1980, %v2298, 0.0
      %2321 = vadd.xlane.f32.xlu0 %v2320
      %v2322 = vpop.xlane.xlu0 %2321
      %v2323 = vrcp.pop 32.0
      %v2324 = vmul.f32 32.0, %v2323
      %v2325 = vsub.f32 1.0, %v2324
      %v2326 = vmul.f32 %v2323, %v2325
      %v2327 = vadd.f32 %v2323, %v2326
      %vm2328 = vweird.f32 %v2323
      %v2329 = vsel %vm2328, %v2323, %v2327
      %v2330 = vmul.f32 %v2301, %v2329
      %v2331 = vmul.f32 %v2304, %v2329
      %v2332 = vmul.f32 %v2307, %v2329
      %v2333 = vmul.f32 %v2310, %v2329
      %v2334 = vmul.f32 %v2313, %v2329
      %v2335 = vmul.f32 %v2316, %v2329
      %v2336 = vmul.f32 %v2319, %v2329
      %v2337 = vmul.f32 %v2322, %v2329
      %v2338 = vsub.f32 %v2291, %v2330
      %v2339 = vsub.f32 %v2292, %v2331
      %v2340 = vsub.f32 %v2293, %v2332
      %v2341 = vsub.f32 %v2294, %v2333
      %v2342 = vsub.f32 %v2295, %v2334
      %v2343 = vsub.f32 %v2296, %v2335
      %v2344 = vsub.f32 %v2297, %v2336
      %v2345 = vsub.f32 %v2298, %v2337
      %v2346 = vmul.f32 %v2338, %v2338
      %v2347 = vmul.f32 %v2339, %v2339
      %v2348 = vmul.f32 %v2340, %v2340
      %v2349 = vmul.f32 %v2341, %v2341
      %v2350 = vmul.f32 %v2342, %v2342
      %v2351 = vmul.f32 %v2343, %v2343
      %v2352 = vmul.f32 %v2344, %v2344
      %v2353 = vmul.f32 %v2345, %v2345
      %v2354 = vsel %vm1980, %v2346, 0.0
      %2355 = vadd.xlane.f32.xlu0 %v2354
      %v2356 = vpop.xlane.xlu0 %2355
      %v2357 = vsel %vm1980, %v2347, 0.0
      %2358 = vadd.xlane.f32.xlu0 %v2357
      %v2359 = vpop.xlane.xlu0 %2358
      %v2360 = vsel %vm1980, %v2348, 0.0
      %2361 = vadd.xlane.f32.xlu0 %v2360
      %v2362 = vpop.xlane.xlu0 %2361
      %v2363 = vsel %vm1980, %v2349, 0.0
      %2364 = vadd.xlane.f32.xlu0 %v2363
      %v2365 = vpop.xlane.xlu0 %2364
      %v2366 = vsel %vm1980, %v2350, 0.0
      %2367 = vadd.xlane.f32.xlu0 %v2366
      %v2368 = vpop.xlane.xlu0 %2367
      %v2369 = vsel %vm1980, %v2351, 0.0
      %2370 = vadd.xlane.f32.xlu0 %v2369
      %v2371 = vpop.xlane.xlu0 %2370
      %v2372 = vsel %vm1980, %v2352, 0.0
      %2373 = vadd.xlane.f32.xlu0 %v2372
      %v2374 = vpop.xlane.xlu0 %2373
      %v2375 = vsel %vm1980, %v2353, 0.0
      %2376 = vadd.xlane.f32.xlu0 %v2375
      %v2377 = vpop.xlane.xlu0 %2376
      %v2378 = vmul.f32 %v2356, %v2329
      %v2379 = vmul.f32 %v2359, %v2329
      %v2380 = vmul.f32 %v2362, %v2329
      %v2381 = vmul.f32 %v2365, %v2329
      %v2382 = vmul.f32 %v2368, %v2329
      %v2383 = vmul.f32 %v2371, %v2329
      %v2384 = vmul.f32 %v2374, %v2329
      %v2385 = vmul.f32 %v2377, %v2329
      %v2386 = vadd.f32 %v2378, 1e-05
      %v2387 = vadd.f32 %v2379, 1e-05
      %v2388 = vadd.f32 %v2380, 1e-05
      %v2389 = vadd.f32 %v2381, 1e-05
      %v2390 = vadd.f32 %v2382, 1e-05
      %v2391 = vadd.f32 %v2383, 1e-05
      %v2392 = vadd.f32 %v2384, 1e-05
      %v2393 = vadd.f32 %v2385, 1e-05
      %v2394 = vrsqrt.pop %v2386
      %v2395 = vmul.f32 %v2394, %v2386
      %v2396 = vmul.f32 %v2395, %v2394
      %v2397 = vmul.f32 0.5, %v2396
      %v2398 = vsub.f32 1.5, %v2397
      %v2399 = vmul.f32 %v2394, %v2398
      %vm2400 = vweird.f32 %v2386
      %vm2401 = vweird.f32 %v2394
      %vm2402 = vmor %vm2400, %vm2401
      %v2403 = vsel %vm2402, %v2394, %v2399
      %v2404 = vrsqrt.pop %v2387
      %v2405 = vmul.f32 %v2404, %v2387
      %v2406 = vmul.f32 %v2405, %v2404
      %v2407 = vmul.f32 0.5, %v2406
      %v2408 = vsub.f32 1.5, %v2407
      %v2409 = vmul.f32 %v2404, %v2408
      %vm2410 = vweird.f32 %v2387
      %vm2411 = vweird.f32 %v2404
      %vm2412 = vmor %vm2410, %vm2411
      %v2413 = vsel %vm2412, %v2404, %v2409
      %v2414 = vrsqrt.pop %v2388
      %v2415 = vmul.f32 %v2414, %v2388
      %v2416 = vmul.f32 %v2415, %v2414
      %v2417 = vmul.f32 0.5, %v2416
      %v2418 = vsub.f32 1.5, %v2417
      %v2419 = vmul.f32 %v2414, %v2418
      %vm2420 = vweird.f32 %v2388
      %vm2421 = vweird.f32 %v2414
      %vm2422 = vmor %vm2420, %vm2421
      %v2423 = vsel %vm2422, %v2414, %v2419
      %v2424 = vrsqrt.pop %v2389
      %v2425 = vmul.f32 %v2424, %v2389
      %v2426 = vmul.f32 %v2425, %v2424
      %v2427 = vmul.f32 0.5, %v2426
      %v2428 = vsub.f32 1.5, %v2427
      %v2429 = vmul.f32 %v2424, %v2428
      %vm2430 = vweird.f32 %v2389
      %vm2431 = vweird.f32 %v2424
      %vm2432 = vmor %vm2430, %vm2431
      %v2433 = vsel %vm2432, %v2424, %v2429
      %v2434 = vrsqrt.pop %v2390
      %v2435 = vmul.f32 %v2434, %v2390
      %v2436 = vmul.f32 %v2435, %v2434
      %v2437 = vmul.f32 0.5, %v2436
      %v2438 = vsub.f32 1.5, %v2437
      %v2439 = vmul.f32 %v2434, %v2438
      %vm2440 = vweird.f32 %v2390
      %vm2441 = vweird.f32 %v2434
      %vm2442 = vmor %vm2440, %vm2441
      %v2443 = vsel %vm2442, %v2434, %v2439
      %v2444 = vrsqrt.pop %v2391
      %v2445 = vmul.f32 %v2444, %v2391
      %v2446 = vmul.f32 %v2445, %v2444
      %v2447 = vmul.f32 0.5, %v2446
      %v2448 = vsub.f32 1.5, %v2447
      %v2449 = vmul.f32 %v2444, %v2448
      %vm2450 = vweird.f32 %v2391
      %vm2451 = vweird.f32 %v2444
      %vm2452 = vmor %vm2450, %vm2451
      %v2453 = vsel %vm2452, %v2444, %v2449
      %v2454 = vrsqrt.pop %v2392
      %v2455 = vmul.f32 %v2454, %v2392
      %v2456 = vmul.f32 %v2455, %v2454
      %v2457 = vmul.f32 0.5, %v2456
      %v2458 = vsub.f32 1.5, %v2457
      %v2459 = vmul.f32 %v2454, %v2458
      %vm2460 = vweird.f32 %v2392
      %vm2461 = vweird.f32 %v2454
      %vm2462 = vmor %vm2460, %vm2461
      %v2463 = vsel %vm2462, %v2454, %v2459
      %v2464 = vrsqrt.pop %v2393
      %v2465 = vmul.f32 %v2464, %v2393
      %v2466 = vmul.f32 %v2465, %v2464
      %v2467 = vmul.f32 0.5, %v2466
      %v2468 = vsub.f32 1.5, %v2467
      %v2469 = vmul.f32 %v2464, %v2468
      %vm2470 = vweird.f32 %v2393
      %vm2471 = vweird.f32 %v2464
      %vm2472 = vmor %vm2470, %vm2471
      %v2473 = vsel %vm2472, %v2464, %v2469
      %v2474 = vmul.f32 %v2338, %v2403
      %v2475 = vmul.f32 %v2339, %v2413
      %v2476 = vmul.f32 %v2340, %v2423
      %v2477 = vmul.f32 %v2341, %v2433
      %v2478 = vmul.f32 %v2342, %v2443
      %v2479 = vmul.f32 %v2343, %v2453
      %v2480 = vmul.f32 %v2344, %v2463
      %v2481 = vmul.f32 %v2345, %v2473
      %v2482 = vperm.slane %v2217, 0
      %v2483 = vmul.f32 %v2474, %v2482
      %v2484 = vmul.f32 %v2475, %v2482
      %v2485 = vmul.f32 %v2476, %v2482
      %v2486 = vmul.f32 %v2477, %v2482
      %v2487 = vmul.f32 %v2478, %v2482
      %v2488 = vmul.f32 %v2479, %v2482
      %v2489 = vmul.f32 %v2480, %v2482
      %v2490 = vmul.f32 %v2481, %v2482
      %v2491 = vperm.slane %v2217, 1
      %v2492 = vadd.f32 %v2483, %v2491
      %v2493 = vadd.f32 %v2484, %v2491
      %v2494 = vadd.f32 %v2485, %v2491
      %v2495 = vadd.f32 %v2486, %v2491
      %v2496 = vadd.f32 %v2487, %v2491
      %v2497 = vadd.f32 %v2488, %v2491
      %v2498 = vadd.f32 %v2489, %v2491
      %v2499 = vadd.f32 %v2490, %v2491
      %v2500 = vld [vmem:[%s3] sm:$0xff]
      %v2501 = vld [vmem:[%s3 + $0x10] sm:$0xff]
      %v2502 = vld [vmem:[%s3 + $0x20] sm:$0xff]
      %v2503 = vld [vmem:[%s3 + $0x30] sm:$0xff]
      %v2504 = vpack.c.bf16 %v2493, %v2492
      %v2505 = vpack.c.bf16 %v2495, %v2494
      %v2506 = vpack.c.bf16 %v2497, %v2496
      %v2507 = vpack.c.bf16 %v2499, %v2498
      %v2508 = vpack.c.bf16 %v2501, %v2500
      %v2509 = vpack.c.bf16 %v2503, %v2502
      %v2510 = vld [vmem:[%s3 + $0x40] ss:$0 sm:$0xff]
      %v2512 = vsel %vm1980, %v2504, 0
      %v2515 = vsel %vm1980, %v2505, 0
      %v2518 = vsel %vm1980, %v2506, 0
      %v2521 = vsel %vm1980, %v2507, 0
      %2523 = vmatpush.bf16.msra.mxu0 0
      %2524 = vmatpush.bf16.msra.mxu0 0
      %2525 = vmatpush.bf16.msra.mxu0 0
      %2526 = vmatpush.bf16.msra.mxu0 0
      %2527 = vmatpush.bf16.msra.mxu0 0
      %2528 = vmatpush.bf16.msra.mxu0 0
      %2529 = vmatpush.bf16.msra.mxu0 %v2509
      %2530 = vmatpush.bf16.msra.mxu0 %v2508
      %2531 = vmatmul.bf16.gmra.mxu0 %v2512
      %v2532 = vpop.f32.mrf.mxu0
      %v2533 = vadd.f32 %v2510, %v2532
      %v2534 = vpop.f32.mrf.mxu0
      %v2535 = vadd.f32 %v2510, %v2534
      %2536 = vmatmul.bf16.gmra.mxu0 %v2515
      %v2537 = vpop.f32.mrf.mxu0
      %v2538 = vadd.f32 %v2510, %v2537
      %v2539 = vpop.f32.mrf.mxu0
      %v2540 = vadd.f32 %v2510, %v2539
      %2541 = vmatmul.bf16.gmra.mxu0 %v2518
      %v2542 = vpop.f32.mrf.mxu0
      %v2543 = vadd.f32 %v2510, %v2542
      %v2544 = vpop.f32.mrf.mxu0
      %v2545 = vadd.f32 %v2510, %v2544
      %2546 = vmatmul.bf16.gmra.mxu0 %v2521
      %v2547 = vpop.f32.mrf.mxu0
      %v2548 = vadd.f32 %v2510, %v2547
      %v2549 = vpop.f32.mrf.mxu0
      %v2550 = vadd.f32 %v2510, %v2549
      %2551 = vdwg.mxu0
      %2560 = vrot.lane.b32.xlu0 %v2533, 96
      %v2561 = vpop.permute.xlu0 %2560
      %2562 = vrot.lane.b32.xlu0 %v2535, 96
      %v2563 = vpop.permute.xlu0 %2562
      %2564 = vrot.lane.b32.xlu0 %v2538, 96
      %v2565 = vpop.permute.xlu0 %2564
      %2566 = vrot.lane.b32.xlu0 %v2540, 96
      %v2567 = vpop.permute.xlu0 %2566
      %2568 = vrot.lane.b32.xlu0 %v2543, 96
      %v2569 = vpop.permute.xlu0 %2568
      %2570 = vrot.lane.b32.xlu0 %v2545, 96
      %v2571 = vpop.permute.xlu0 %2570
      %2572 = vrot.lane.b32.xlu0 %v2548, 96
      %v2573 = vpop.permute.xlu0 %2572
      %2574 = vrot.lane.b32.xlu0 %v2550, 96
      %v2575 = vpop.permute.xlu0 %2574
      %2584 = vxpose.xlu0.b32.start [1/16] %v2561, 128
      %2585 = vxpose.xlu0.b32.cont [2/16] %v2563, 128
      %2586 = vxpose.xlu0.b32.cont [3/16] %v2565, 128
      %2587 = vxpose.xlu0.b32.cont [4/16] %v2567, 128
      %2588 = vxpose.xlu0.b32.cont [5/16] %v2569, 128
      %2589 = vxpose.xlu0.b32.cont [6/16] %v2571, 128
      %2590 = vxpose.xlu0.b32.cont [7/16] %v2573, 128
      %2591 = vxpose.xlu0.b32.cont [8/16] %v2575, 128
      %2592 = vxpose.xlu0.b32.cont [9/16] 0.0, 128
      %2593 = vxpose.xlu0.b32.cont [10/16] 0.0, 128
      %2594 = vxpose.xlu0.b32.cont [11/16] 0.0, 128
      %2595 = vxpose.xlu0.b32.cont [12/16] 0.0, 128
      %2596 = vxpose.xlu0.b32.cont [13/16] 0.0, 128
      %2597 = vxpose.xlu0.b32.cont [14/16] 0.0, 128
      %2598 = vxpose.xlu0.b32.cont [15/16] 0.0, 128
      %2599 = vxpose.xlu0.b32.end [16/16] 0.0, 128
      %v2600 = vpop.trf.xlu0
      %v2601 = vpop.trf.xlu0
      %v2602 = vpop.trf.xlu0
      %v2603 = vpop.trf.xlu0
      %v2604 = vpop.trf.xlu0
      %v2605 = vpop.trf.xlu0
      %v2606 = vpop.trf.xlu0
      %v2607 = vpop.trf.xlu0
      %v2608 = vpop.trf.xlu0
      %v2609 = vpop.trf.xlu0
      %v2610 = vpop.trf.xlu0
      %v2611 = vpop.trf.xlu0
      %v2612 = vpop.trf.xlu0
      %v2613 = vpop.trf.xlu0
      %v2614 = vpop.trf.xlu0
      %v2615 = vpop.trf.xlu0
      %2617 = vset.pattern.permute.xlu0 0
      %2618 = vperm.xlu0 %2617, %v247
      %v2619 = vpop.permute.xlu0 %2618
      %2622 = vset.pattern.permute.xlu0 0
      %2623 = vperm.xlu0 %2622, %v248
      %v2624 = vpop.permute.xlu0 %2623
      %2627 = vset.pattern.permute.xlu0 0
      %2628 = vperm.xlu0 %2627, %v249
      %v2629 = vpop.permute.xlu0 %2628
      %2632 = vset.pattern.permute.xlu0 0
      %2633 = vperm.xlu0 %2632, %v250
      %v2634 = vpop.permute.xlu0 %2633
      %v2636 = vmul.f32 %v2600, %v2619
      %v2637 = vmul.f32 %v2601, %v2624
      %v2638 = vmul.f32 %v2602, %v2629
      %v2639 = vmul.f32 %v2603, %v2634
      %2640 = vset.pattern.permute.xlu0 1
      %2641 = vperm.xlu0 %2640, %v247
      %v2642 = vpop.permute.xlu0 %2641
      %2644 = vset.pattern.permute.xlu0 1
      %2645 = vperm.xlu0 %2644, %v248
      %v2646 = vpop.permute.xlu0 %2645
      %2648 = vset.pattern.permute.xlu0 1
      %2649 = vperm.xlu0 %2648, %v249
      %v2650 = vpop.permute.xlu0 %2649
      %2652 = vset.pattern.permute.xlu0 1
      %2653 = vperm.xlu0 %2652, %v250
      %v2654 = vpop.permute.xlu0 %2653
      %v2656 = vmul.f32 %v2600, %v2642
      %v2657 = vmul.f32 %v2601, %v2646
      %v2658 = vmul.f32 %v2602, %v2650
      %v2659 = vmul.f32 %v2603, %v2654
      %2664 = vrot.lane.b32.xlu0 %v2656, 64
      %v2665 = vpop.permute.xlu0 %2664
      %2666 = vrot.lane.b32.xlu0 %v2657, 64
      %v2667 = vpop.permute.xlu0 %2666
      %2668 = vrot.lane.b32.xlu0 %v2658, 64
      %v2669 = vpop.permute.xlu0 %2668
      %2670 = vrot.lane.b32.xlu0 %v2659, 64
      %v2671 = vpop.permute.xlu0 %2670
      %v2676 = vsel %vm1865, %v2636, %v2665
      %v2677 = vsel %vm1865, %v2637, %v2667
      %v2678 = vsel %vm1865, %v2638, %v2669
      %v2679 = vsel %vm1865, %v2639, %v2671
      %v2680 = vperm.slane %v246, 0
      %2682 = vrot.lane.b32.xlu0 %v2680, 64
      %v2683 = vpop.permute.xlu0 %2682
      %v2685 = vmul.f32 %v2533, %v2683
      %v2686 = vmul.f32 %v2535, %v2683
      %v2687 = vmul.f32 %v2538, %v2683
      %v2688 = vmul.f32 %v2540, %v2683
      %v2689 = vmul.f32 %v2543, %v2683
      %v2690 = vmul.f32 %v2545, %v2683
      %v2691 = vmul.f32 %v2548, %v2683
      %v2692 = vmul.f32 %v2550, %v2683
      %v2693 = vperm.slane %v246, 1
      %2695 = vrot.lane.b32.xlu0 %v2693, 64
      %v2696 = vpop.permute.xlu0 %2695
      %v2698 = vmul.f32 %v2533, %v2696
      %v2699 = vmul.f32 %v2535, %v2696
      %v2700 = vmul.f32 %v2538, %v2696
      %v2701 = vmul.f32 %v2540, %v2696
      %v2702 = vmul.f32 %v2543, %v2696
      %v2703 = vmul.f32 %v2545, %v2696
      %v2704 = vmul.f32 %v2548, %v2696
      %v2705 = vmul.f32 %v2550, %v2696
      %v2706 = vpack.c.bf16 %v2535, %v2533
      %v2707 = vpack.c.bf16 %v2540, %v2538
      %v2708 = vpack.c.bf16 %v2545, %v2543
      %v2709 = vpack.c.bf16 %v2550, %v2548
      %v2710 = vpack.c.bf16 %v2677, %v2676
      %v2711 = vpack.c.bf16 %v2679, %v2678
      %v2713 = vsel %vm1980, %v2706, 0
      %v2716 = vsel %vm1980, %v2707, 0
      %v2719 = vsel %vm1980, %v2708, 0
      %v2722 = vsel %vm1980, %v2709, 0
      %2724 = vmatpush.bf16.msra.mxu0 0
      %2725 = vmatpush.bf16.msra.mxu0 0
      %2726 = vmatpush.bf16.msra.mxu0 0
      %2727 = vmatpush.bf16.msra.mxu0 0
      %2728 = vmatpush.bf16.msra.mxu0 0
      %2729 = vmatpush.bf16.msra.mxu0 0
      %2730 = vmatpush.bf16.msra.mxu0 %v2711
      %2731 = vmatpush.bf16.msra.mxu0 %v2710
      %2732 = vmatmul.bf16.gmra.mxu0 %v2713
      %v2733 = vpop.f32.mrf.mxu0
      %v2734 = vadd.f32 0.0, %v2733
      %v2735 = vpop.f32.mrf.mxu0
      %v2736 = vadd.f32 0.0, %v2735
      %2737 = vmatmul.bf16.gmra.mxu0 %v2716
      %v2738 = vpop.f32.mrf.mxu0
      %v2739 = vadd.f32 0.0, %v2738
      %v2740 = vpop.f32.mrf.mxu0
      %v2741 = vadd.f32 0.0, %v2740
      %2742 = vmatmul.bf16.gmra.mxu0 %v2719
      %v2743 = vpop.f32.mrf.mxu0
      %v2744 = vadd.f32 0.0, %v2743
      %v2745 = vpop.f32.mrf.mxu0
      %v2746 = vadd.f32 0.0, %v2745
      %2747 = vmatmul.bf16.gmra.mxu0 %v2722
      %v2748 = vpop.f32.mrf.mxu0
      %v2749 = vadd.f32 0.0, %v2748
      %v2750 = vpop.f32.mrf.mxu0
      %v2751 = vadd.f32 0.0, %v2750
      %2752 = vdwg.mxu0
      %v2753 = vmul.f32 %v2734, 0.25
      %v2754 = vmul.f32 %v2736, 0.25
      %v2755 = vmul.f32 %v2739, 0.25
      %v2756 = vmul.f32 %v2741, 0.25
      %v2757 = vmul.f32 %v2744, 0.25
      %v2758 = vmul.f32 %v2746, 0.25
      %v2759 = vmul.f32 %v2749, 0.25
      %v2760 = vmul.f32 %v2751, 0.25
      %v2761 = vsel %vm1865, %v2753, -inf
      %2762 = vmax.xlane.f32.xlu0 %v2761
      %v2763 = vpop.xlane.xlu0 %2762
      %v2764 = vsel %vm1865, %v2754, -inf
      %2765 = vmax.xlane.f32.xlu0 %v2764
      %v2766 = vpop.xlane.xlu0 %2765
      %v2767 = vsel %vm1865, %v2755, -inf
      %2768 = vmax.xlane.f32.xlu0 %v2767
      %v2769 = vpop.xlane.xlu0 %2768
      %v2770 = vsel %vm1865, %v2756, -inf
      %2771 = vmax.xlane.f32.xlu0 %v2770
      %v2772 = vpop.xlane.xlu0 %2771
      %v2773 = vsel %vm1865, %v2757, -inf
      %2774 = vmax.xlane.f32.xlu0 %v2773
      %v2775 = vpop.xlane.xlu0 %2774
      %v2776 = vsel %vm1865, %v2758, -inf
      %2777 = vmax.xlane.f32.xlu0 %v2776
      %v2778 = vpop.xlane.xlu0 %2777
      %v2779 = vsel %vm1865, %v2759, -inf
      %2780 = vmax.xlane.f32.xlu0 %v2779
      %v2781 = vpop.xlane.xlu0 %2780
      %v2782 = vsel %vm1865, %v2760, -inf
      %2783 = vmax.xlane.f32.xlu0 %v2782
      %v2784 = vpop.xlane.xlu0 %2783
      %v2785 = vsub.f32 %v2753, %v2763
      %v2786 = vsub.f32 %v2754, %v2766
      %v2787 = vsub.f32 %v2755, %v2769
      %v2788 = vsub.f32 %v2756, %v2772
      %v2789 = vsub.f32 %v2757, %v2775
      %v2790 = vsub.f32 %v2758, %v2778
      %v2791 = vsub.f32 %v2759, %v2781
      %v2792 = vsub.f32 %v2760, %v2784
      %v2793 = vmul.f32 %v2785, 1.442695
      %v2794 = vpow.pop %v2793
      %v2795 = vmul.f32 %v2786, 1.442695
      %v2796 = vpow.pop %v2795
      %v2797 = vmul.f32 %v2787, 1.442695
      %v2798 = vpow.pop %v2797
      %v2799 = vmul.f32 %v2788, 1.442695
      %v2800 = vpow.pop %v2799
      %v2801 = vmul.f32 %v2789, 1.442695
      %v2802 = vpow.pop %v2801
      %v2803 = vmul.f32 %v2790, 1.442695
      %v2804 = vpow.pop %v2803
      %v2805 = vmul.f32 %v2791, 1.442695
      %v2806 = vpow.pop %v2805
      %v2807 = vmul.f32 %v2792, 1.442695
      %v2808 = vpow.pop %v2807
      %v2809 = vsel %vm1865, %v2794, 0.0
      %2810 = vadd.xlane.f32.xlu0 %v2809
      %v2811 = vpop.xlane.xlu0 %2810
      %v2812 = vsel %vm1865, %v2796, 0.0
      %2813 = vadd.xlane.f32.xlu0 %v2812
      %v2814 = vpop.xlane.xlu0 %2813
      %v2815 = vsel %vm1865, %v2798, 0.0
      %2816 = vadd.xlane.f32.xlu0 %v2815
      %v2817 = vpop.xlane.xlu0 %2816
      %v2818 = vsel %vm1865, %v2800, 0.0
      %2819 = vadd.xlane.f32.xlu0 %v2818
      %v2820 = vpop.xlane.xlu0 %2819
      %v2821 = vsel %vm1865, %v2802, 0.0
      %2822 = vadd.xlane.f32.xlu0 %v2821
      %v2823 = vpop.xlane.xlu0 %2822
      %v2824 = vsel %vm1865, %v2804, 0.0
      %2825 = vadd.xlane.f32.xlu0 %v2824
      %v2826 = vpop.xlane.xlu0 %2825
      %v2827 = vsel %vm1865, %v2806, 0.0
      %2828 = vadd.xlane.f32.xlu0 %v2827
      %v2829 = vpop.xlane.xlu0 %2828
      %v2830 = vsel %vm1865, %v2808, 0.0
      %2831 = vadd.xlane.f32.xlu0 %v2830
      %v2832 = vpop.xlane.xlu0 %2831
      %v2833 = vrcp.pop %v2811
      %v2834 = vrcp.pop %v2814
      %v2835 = vrcp.pop %v2817
      %v2836 = vrcp.pop %v2820
      %v2837 = vrcp.pop %v2823
      %v2838 = vrcp.pop %v2826
      %v2839 = vrcp.pop %v2829
      %v2840 = vrcp.pop %v2832
      %v2841 = vmul.f32 %v2794, %v2833
      %v2842 = vmul.f32 %v2796, %v2834
      %v2843 = vmul.f32 %v2798, %v2835
      %v2844 = vmul.f32 %v2800, %v2836
      %v2845 = vmul.f32 %v2802, %v2837
      %v2846 = vmul.f32 %v2804, %v2838
      %v2847 = vmul.f32 %v2806, %v2839
      %v2848 = vmul.f32 %v2808, %v2840
      %vm2849 = vcmask 1048064
      %v2850 = vsel %vm2849, %v2753, -inf
      %2851 = vmax.xlane.f32.xlu0 %v2850
      %v2852 = vpop.xlane.xlu0 %2851
      %v2853 = vsel %vm2849, %v2754, -inf
      %2854 = vmax.xlane.f32.xlu0 %v2853
      %v2855 = vpop.xlane.xlu0 %2854
      %v2856 = vsel %vm2849, %v2755, -inf
      %2857 = vmax.xlane.f32.xlu0 %v2856
      %v2858 = vpop.xlane.xlu0 %2857
      %v2859 = vsel %vm2849, %v2756, -inf
      %2860 = vmax.xlane.f32.xlu0 %v2859
      %v2861 = vpop.xlane.xlu0 %2860
      %v2862 = vsel %vm2849, %v2757, -inf
      %2863 = vmax.xlane.f32.xlu0 %v2862
      %v2864 = vpop.xlane.xlu0 %2863
      %v2865 = vsel %vm2849, %v2758, -inf
      %2866 = vmax.xlane.f32.xlu0 %v2865
      %v2867 = vpop.xlane.xlu0 %2866
      %v2868 = vsel %vm2849, %v2759, -inf
      %2869 = vmax.xlane.f32.xlu0 %v2868
      %v2870 = vpop.xlane.xlu0 %2869
      %v2871 = vsel %vm2849, %v2760, -inf
      %2872 = vmax.xlane.f32.xlu0 %v2871
      %v2873 = vpop.xlane.xlu0 %2872
      %v2874 = vsub.f32 %v2753, %v2852
      %v2875 = vsub.f32 %v2754, %v2855
      %v2876 = vsub.f32 %v2755, %v2858
      %v2877 = vsub.f32 %v2756, %v2861
      %v2878 = vsub.f32 %v2757, %v2864
      %v2879 = vsub.f32 %v2758, %v2867
      %v2880 = vsub.f32 %v2759, %v2870
      %v2881 = vsub.f32 %v2760, %v2873
      %v2882 = vmul.f32 %v2874, 1.442695
      %v2883 = vpow.pop %v2882
      %v2884 = vmul.f32 %v2875, 1.442695
      %v2885 = vpow.pop %v2884
      %v2886 = vmul.f32 %v2876, 1.442695
      %v2887 = vpow.pop %v2886
      %v2888 = vmul.f32 %v2877, 1.442695
      %v2889 = vpow.pop %v2888
      %v2890 = vmul.f32 %v2878, 1.442695
      %v2891 = vpow.pop %v2890
      %v2892 = vmul.f32 %v2879, 1.442695
      %v2893 = vpow.pop %v2892
      %v2894 = vmul.f32 %v2880, 1.442695
      %v2895 = vpow.pop %v2894
      %v2896 = vmul.f32 %v2881, 1.442695
      %v2897 = vpow.pop %v2896
      %2906 = vrot.lane.b32.xlu0 %v2883, 64
      %v2907 = vpop.permute.xlu0 %2906
      %2908 = vrot.lane.b32.xlu0 %v2885, 64
      %v2909 = vpop.permute.xlu0 %2908
      %2910 = vrot.lane.b32.xlu0 %v2887, 64
      %v2911 = vpop.permute.xlu0 %2910
      %2912 = vrot.lane.b32.xlu0 %v2889, 64
      %v2913 = vpop.permute.xlu0 %2912
      %2914 = vrot.lane.b32.xlu0 %v2891, 64
      %v2915 = vpop.permute.xlu0 %2914
      %2916 = vrot.lane.b32.xlu0 %v2893, 64
      %v2917 = vpop.permute.xlu0 %2916
      %2918 = vrot.lane.b32.xlu0 %v2895, 64
      %v2919 = vpop.permute.xlu0 %2918
      %2920 = vrot.lane.b32.xlu0 %v2897, 64
      %v2921 = vpop.permute.xlu0 %2920
      %v2930 = vsel %vm1865, %v2907, 0.0
      %2931 = vadd.xlane.f32.xlu0 %v2930
      %v2932 = vpop.xlane.xlu0 %2931
      %v2933 = vsel %vm1865, %v2909, 0.0
      %2934 = vadd.xlane.f32.xlu0 %v2933
      %v2935 = vpop.xlane.xlu0 %2934
      %v2936 = vsel %vm1865, %v2911, 0.0
      %2937 = vadd.xlane.f32.xlu0 %v2936
      %v2938 = vpop.xlane.xlu0 %2937
      %v2939 = vsel %vm1865, %v2913, 0.0
      %2940 = vadd.xlane.f32.xlu0 %v2939
      %v2941 = vpop.xlane.xlu0 %2940
      %v2942 = vsel %vm1865, %v2915, 0.0
      %2943 = vadd.xlane.f32.xlu0 %v2942
      %v2944 = vpop.xlane.xlu0 %2943
      %v2945 = vsel %vm1865, %v2917, 0.0
      %2946 = vadd.xlane.f32.xlu0 %v2945
      %v2947 = vpop.xlane.xlu0 %2946
      %v2948 = vsel %vm1865, %v2919, 0.0
      %2949 = vadd.xlane.f32.xlu0 %v2948
      %v2950 = vpop.xlane.xlu0 %2949
      %v2951 = vsel %vm1865, %v2921, 0.0
      %2952 = vadd.xlane.f32.xlu0 %v2951
      %v2953 = vpop.xlane.xlu0 %2952
      %v2954 = vrcp.pop %v2932
      %v2955 = vrcp.pop %v2935
      %v2956 = vrcp.pop %v2938
      %v2957 = vrcp.pop %v2941
      %v2958 = vrcp.pop %v2944
      %v2959 = vrcp.pop %v2947
      %v2960 = vrcp.pop %v2950
      %v2961 = vrcp.pop %v2953
      %v2962 = vmul.f32 %v2883, %v2954
      %v2963 = vmul.f32 %v2885, %v2955
      %v2964 = vmul.f32 %v2887, %v2956
      %v2965 = vmul.f32 %v2889, %v2957
      %v2966 = vmul.f32 %v2891, %v2958
      %v2967 = vmul.f32 %v2893, %v2959
      %v2968 = vmul.f32 %v2895, %v2960
      %v2969 = vmul.f32 %v2897, %v2961
      %v2970 = vsel %vm1865, %v2841, %v2962
      %v2971 = vsel %vm1865, %v2842, %v2963
      %v2972 = vsel %vm1865, %v2843, %v2964
      %v2973 = vsel %vm1865, %v2844, %v2965
      %v2974 = vsel %vm1865, %v2845, %v2966
      %v2975 = vsel %vm1865, %v2846, %v2967
      %v2976 = vsel %vm1865, %v2847, %v2968
      %v2977 = vsel %vm1865, %v2848, %v2969
      %v2978 = vpack.c.bf16 %v2971, %v2970
      %v2979 = vpack.c.bf16 %v2973, %v2972
      %v2980 = vpack.c.bf16 %v2975, %v2974
      %v2981 = vpack.c.bf16 %v2977, %v2976
      %v2982 = vpack.c.bf16 %v2686, %v2685
      %v2983 = vpack.c.bf16 %v2688, %v2687
      %v2984 = vpack.c.bf16 %v2690, %v2689
      %v2985 = vpack.c.bf16 %v2692, %v2691
      %v2986 = vpack.c.bf16 %v2699, %v2698
      %v2987 = vpack.c.bf16 %v2701, %v2700
      %v2988 = vpack.c.bf16 %v2703, %v2702
      %v2989 = vpack.c.bf16 %v2705, %v2704
      %2998 = vrot.lane.b32.xlu0 %v2982, 64
      %v2999 = vpop.permute.xlu0 %2998
      %3000 = vrot.lane.b32.xlu0 %v2983, 64
      %v3001 = vpop.permute.xlu0 %3000
      %3002 = vrot.lane.b32.xlu0 %v2984, 64
      %v3003 = vpop.permute.xlu0 %3002
      %3004 = vrot.lane.b32.xlu0 %v2985, 64
      %v3005 = vpop.permute.xlu0 %3004
      %3006 = vrot.lane.b32.xlu0 %v2986, 64
      %v3007 = vpop.permute.xlu0 %3006
      %3008 = vrot.lane.b32.xlu0 %v2987, 64
      %v3009 = vpop.permute.xlu0 %3008
      %3010 = vrot.lane.b32.xlu0 %v2988, 64
      %v3011 = vpop.permute.xlu0 %3010
      %3012 = vrot.lane.b32.xlu0 %v2989, 64
      %v3013 = vpop.permute.xlu0 %3012
      %3022 = vmatpush.bf16.msra.mxu0 %v3013
      %3023 = vmatpush.bf16.msra.mxu0 %v3011
      %3024 = vmatpush.bf16.msra.mxu0 %v3009
      %3025 = vmatpush.bf16.msra.mxu0 %v3007
      %3026 = vmatpush.bf16.msra.mxu0 %v3005
      %3027 = vmatpush.bf16.msra.mxu0 %v3003
      %3028 = vmatpush.bf16.msra.mxu0 %v3001
      %3029 = vmatpush.bf16.msra.mxu0 %v2999
      %3030 = vmatmul.bf16.gmra.mxu0 %v2978
      %v3031 = vpop.f32.mrf.mxu0
      %v3032 = vadd.f32 0.0, %v3031
      %v3033 = vpop.f32.mrf.mxu0
      %v3034 = vadd.f32 0.0, %v3033
      %3035 = vmatmul.bf16.gmra.mxu0 %v2979
      %v3036 = vpop.f32.mrf.mxu0
      %v3037 = vadd.f32 0.0, %v3036
      %v3038 = vpop.f32.mrf.mxu0
      %v3039 = vadd.f32 0.0, %v3038
      %3040 = vmatmul.bf16.gmra.mxu0 %v2980
      %v3041 = vpop.f32.mrf.mxu0
      %v3042 = vadd.f32 0.0, %v3041
      %v3043 = vpop.f32.mrf.mxu0
      %v3044 = vadd.f32 0.0, %v3043
      %3045 = vmatmul.bf16.gmra.mxu0 %v2981
      %v3046 = vpop.f32.mrf.mxu0
      %v3047 = vadd.f32 0.0, %v3046
      %v3048 = vpop.f32.mrf.mxu0
      %v3049 = vadd.f32 0.0, %v3048
      %3050 = vdwg.mxu0
      %v3051 = vld [vmem:[%s2 + $0x190] sm:$0xff]
      %v3052 = vld [vmem:[%s2 + $0x198] sm:$0xff]
      %v3053 = vld [vmem:[%s2 + $0x1a0] sm:$0xff]
      %v3054 = vld [vmem:[%s2 + $0x1a8] sm:$0xff]
      %v3055 = vpack.c.bf16 %v3034, %v3032
      %v3056 = vpack.c.bf16 %v3039, %v3037
      %v3057 = vpack.c.bf16 %v3044, %v3042
      %v3058 = vpack.c.bf16 %v3049, %v3047
      %v3059 = vpack.c.bf16 %v3052, %v3051
      %v3060 = vpack.c.bf16 %v3054, %v3053
      %v3062 = vsel %vm1980, %v3055, 0
      %v3065 = vsel %vm1980, %v3056, 0
      %v3068 = vsel %vm1980, %v3057, 0
      %v3071 = vsel %vm1980, %v3058, 0
      %3073 = vmatpush.bf16.msra.mxu0 0
      %3074 = vmatpush.bf16.msra.mxu0 0
      %3075 = vmatpush.bf16.msra.mxu0 0
      %3076 = vmatpush.bf16.msra.mxu0 0
      %3077 = vmatpush.bf16.msra.mxu0 0
      %3078 = vmatpush.bf16.msra.mxu0 0
      %3079 = vmatpush.bf16.msra.mxu0 %v3060
      %3080 = vmatpush.bf16.msra.mxu0 %v3059
      %3081 = vmatmul.bf16.gmra.mxu0 %v3062
      %v3082 = vpop.f32.mrf.mxu0
      %v3083 = vadd.f32 0.0, %v3082
      %v3084 = vpop.f32.mrf.mxu0
      %v3085 = vadd.f32 0.0, %v3084
      %3086 = vmatmul.bf16.gmra.mxu0 %v3065
      %v3087 = vpop.f32.mrf.mxu0
      %v3088 = vadd.f32 0.0, %v3087
      %v3089 = vpop.f32.mrf.mxu0
      %v3090 = vadd.f32 0.0, %v3089
      %3091 = vmatmul.bf16.gmra.mxu0 %v3068
      %v3092 = vpop.f32.mrf.mxu0
      %v3093 = vadd.f32 0.0, %v3092
      %v3094 = vpop.f32.mrf.mxu0
      %v3095 = vadd.f32 0.0, %v3094
      %3096 = vmatmul.bf16.gmra.mxu0 %v3071
      %v3097 = vpop.f32.mrf.mxu0
      %v3098 = vadd.f32 0.0, %v3097
      %v3099 = vpop.f32.mrf.mxu0
      %v3100 = vadd.f32 0.0, %v3099
      %3101 = vdwg.mxu0
      %v3102 = vadd.f32 %v2291, %v3083
      %v3103 = vadd.f32 %v2292, %v3085
      %v3104 = vadd.f32 %v2293, %v3088
      %v3105 = vadd.f32 %v2294, %v3090
      %v3106 = vadd.f32 %v2295, %v3093
      %v3107 = vadd.f32 %v2296, %v3095
      %v3108 = vadd.f32 %v2297, %v3098
      %v3109 = vadd.f32 %v2298, %v3100
      %v3110 = vld [vmem:[%s2 + $0x1b0] sm:$0x1]
      %v3111 = vperm.slane %v3110, 0
      %v3112 = vadd.f32 %v3102, %v3111
      %v3113 = vadd.f32 %v3103, %v3111
      %v3114 = vadd.f32 %v3104, %v3111
      %v3115 = vadd.f32 %v3105, %v3111
      %v3116 = vadd.f32 %v3106, %v3111
      %v3117 = vadd.f32 %v3107, %v3111
      %v3118 = vadd.f32 %v3108, %v3111
      %v3119 = vadd.f32 %v3109, %v3111
      %v3120 = vsel %vm1980, %v3112, 0.0
      %3121 = vadd.xlane.f32.xlu0 %v3120
      %v3122 = vpop.xlane.xlu0 %3121
      %v3123 = vsel %vm1980, %v3113, 0.0
      %3124 = vadd.xlane.f32.xlu0 %v3123
      %v3125 = vpop.xlane.xlu0 %3124
      %v3126 = vsel %vm1980, %v3114, 0.0
      %3127 = vadd.xlane.f32.xlu0 %v3126
      %v3128 = vpop.xlane.xlu0 %3127
      %v3129 = vsel %vm1980, %v3115, 0.0
      %3130 = vadd.xlane.f32.xlu0 %v3129
      %v3131 = vpop.xlane.xlu0 %3130
      %v3132 = vsel %vm1980, %v3116, 0.0
      %3133 = vadd.xlane.f32.xlu0 %v3132
      %v3134 = vpop.xlane.xlu0 %3133
      %v3135 = vsel %vm1980, %v3117, 0.0
      %3136 = vadd.xlane.f32.xlu0 %v3135
      %v3137 = vpop.xlane.xlu0 %3136
      %v3138 = vsel %vm1980, %v3118, 0.0
      %3139 = vadd.xlane.f32.xlu0 %v3138
      %v3140 = vpop.xlane.xlu0 %3139
      %v3141 = vsel %vm1980, %v3119, 0.0
      %3142 = vadd.xlane.f32.xlu0 %v3141
      %v3143 = vpop.xlane.xlu0 %3142
      %v3144 = vmul.f32 %v3122, %v2329
      %v3145 = vmul.f32 %v3125, %v2329
      %v3146 = vmul.f32 %v3128, %v2329
      %v3147 = vmul.f32 %v3131, %v2329
      %v3148 = vmul.f32 %v3134, %v2329
      %v3149 = vmul.f32 %v3137, %v2329
      %v3150 = vmul.f32 %v3140, %v2329
      %v3151 = vmul.f32 %v3143, %v2329
      %v3152 = vsub.f32 %v3112, %v3144
      %v3153 = vsub.f32 %v3113, %v3145
      %v3154 = vsub.f32 %v3114, %v3146
      %v3155 = vsub.f32 %v3115, %v3147
      %v3156 = vsub.f32 %v3116, %v3148
      %v3157 = vsub.f32 %v3117, %v3149
      %v3158 = vsub.f32 %v3118, %v3150
      %v3159 = vsub.f32 %v3119, %v3151
      %v3160 = vmul.f32 %v3152, %v3152
      %v3161 = vmul.f32 %v3153, %v3153
      %v3162 = vmul.f32 %v3154, %v3154
      %v3163 = vmul.f32 %v3155, %v3155
      %v3164 = vmul.f32 %v3156, %v3156
      %v3165 = vmul.f32 %v3157, %v3157
      %v3166 = vmul.f32 %v3158, %v3158
      %v3167 = vmul.f32 %v3159, %v3159
      %v3168 = vsel %vm1980, %v3160, 0.0
      %3169 = vadd.xlane.f32.xlu0 %v3168
      %v3170 = vpop.xlane.xlu0 %3169
      %v3171 = vsel %vm1980, %v3161, 0.0
      %3172 = vadd.xlane.f32.xlu0 %v3171
      %v3173 = vpop.xlane.xlu0 %3172
      %v3174 = vsel %vm1980, %v3162, 0.0
      %3175 = vadd.xlane.f32.xlu0 %v3174
      %v3176 = vpop.xlane.xlu0 %3175
      %v3177 = vsel %vm1980, %v3163, 0.0
      %3178 = vadd.xlane.f32.xlu0 %v3177
      %v3179 = vpop.xlane.xlu0 %3178
      %v3180 = vsel %vm1980, %v3164, 0.0
      %3181 = vadd.xlane.f32.xlu0 %v3180
      %v3182 = vpop.xlane.xlu0 %3181
      %v3183 = vsel %vm1980, %v3165, 0.0
      %3184 = vadd.xlane.f32.xlu0 %v3183
      %v3185 = vpop.xlane.xlu0 %3184
      %v3186 = vsel %vm1980, %v3166, 0.0
      %3187 = vadd.xlane.f32.xlu0 %v3186
      %v3188 = vpop.xlane.xlu0 %3187
      %v3189 = vsel %vm1980, %v3167, 0.0
      %3190 = vadd.xlane.f32.xlu0 %v3189
      %v3191 = vpop.xlane.xlu0 %3190
      %v3192 = vmul.f32 %v3170, %v2329
      %v3193 = vmul.f32 %v3173, %v2329
      %v3194 = vmul.f32 %v3176, %v2329
      %v3195 = vmul.f32 %v3179, %v2329
      %v3196 = vmul.f32 %v3182, %v2329
      %v3197 = vmul.f32 %v3185, %v2329
      %v3198 = vmul.f32 %v3188, %v2329
      %v3199 = vmul.f32 %v3191, %v2329
      %v3200 = vadd.f32 %v3192, 1e-05
      %v3201 = vadd.f32 %v3193, 1e-05
      %v3202 = vadd.f32 %v3194, 1e-05
      %v3203 = vadd.f32 %v3195, 1e-05
      %v3204 = vadd.f32 %v3196, 1e-05
      %v3205 = vadd.f32 %v3197, 1e-05
      %v3206 = vadd.f32 %v3198, 1e-05
      %v3207 = vadd.f32 %v3199, 1e-05
      %v3208 = vrsqrt.pop %v3200
      %v3209 = vmul.f32 %v3208, %v3200
      %v3210 = vmul.f32 %v3209, %v3208
      %v3211 = vmul.f32 0.5, %v3210
      %v3212 = vsub.f32 1.5, %v3211
      %v3213 = vmul.f32 %v3208, %v3212
      %vm3214 = vweird.f32 %v3200
      %vm3215 = vweird.f32 %v3208
      %vm3216 = vmor %vm3214, %vm3215
      %v3217 = vsel %vm3216, %v3208, %v3213
      %v3218 = vrsqrt.pop %v3201
      %v3219 = vmul.f32 %v3218, %v3201
      %v3220 = vmul.f32 %v3219, %v3218
      %v3221 = vmul.f32 0.5, %v3220
      %v3222 = vsub.f32 1.5, %v3221
      %v3223 = vmul.f32 %v3218, %v3222
      %vm3224 = vweird.f32 %v3201
      %vm3225 = vweird.f32 %v3218
      %vm3226 = vmor %vm3224, %vm3225
      %v3227 = vsel %vm3226, %v3218, %v3223
      %v3228 = vrsqrt.pop %v3202
      %v3229 = vmul.f32 %v3228, %v3202
      %v3230 = vmul.f32 %v3229, %v3228
      %v3231 = vmul.f32 0.5, %v3230
      %v3232 = vsub.f32 1.5, %v3231
      %v3233 = vmul.f32 %v3228, %v3232
      %vm3234 = vweird.f32 %v3202
      %vm3235 = vweird.f32 %v3228
      %vm3236 = vmor %vm3234, %vm3235
      %v3237 = vsel %vm3236, %v3228, %v3233
      %v3238 = vrsqrt.pop %v3203
      %v3239 = vmul.f32 %v3238, %v3203
      %v3240 = vmul.f32 %v3239, %v3238
      %v3241 = vmul.f32 0.5, %v3240
      %v3242 = vsub.f32 1.5, %v3241
      %v3243 = vmul.f32 %v3238, %v3242
      %vm3244 = vweird.f32 %v3203
      %vm3245 = vweird.f32 %v3238
      %vm3246 = vmor %vm3244, %vm3245
      %v3247 = vsel %vm3246, %v3238, %v3243
      %v3248 = vrsqrt.pop %v3204
      %v3249 = vmul.f32 %v3248, %v3204
      %v3250 = vmul.f32 %v3249, %v3248
      %v3251 = vmul.f32 0.5, %v3250
      %v3252 = vsub.f32 1.5, %v3251
      %v3253 = vmul.f32 %v3248, %v3252
      %vm3254 = vweird.f32 %v3204
      %vm3255 = vweird.f32 %v3248
      %vm3256 = vmor %vm3254, %vm3255
      %v3257 = vsel %vm3256, %v3248, %v3253
      %v3258 = vrsqrt.pop %v3205
      %v3259 = vmul.f32 %v3258, %v3205
      %v3260 = vmul.f32 %v3259, %v3258
      %v3261 = vmul.f32 0.5, %v3260
      %v3262 = vsub.f32 1.5, %v3261
      %v3263 = vmul.f32 %v3258, %v3262
      %vm3264 = vweird.f32 %v3205
      %vm3265 = vweird.f32 %v3258
      %vm3266 = vmor %vm3264, %vm3265
      %v3267 = vsel %vm3266, %v3258, %v3263
      %v3268 = vrsqrt.pop %v3206
      %v3269 = vmul.f32 %v3268, %v3206
      %v3270 = vmul.f32 %v3269, %v3268
      %v3271 = vmul.f32 0.5, %v3270
      %v3272 = vsub.f32 1.5, %v3271
      %v3273 = vmul.f32 %v3268, %v3272
      %vm3274 = vweird.f32 %v3206
      %vm3275 = vweird.f32 %v3268
      %vm3276 = vmor %vm3274, %vm3275
      %v3277 = vsel %vm3276, %v3268, %v3273
      %v3278 = vrsqrt.pop %v3207
      %v3279 = vmul.f32 %v3278, %v3207
      %v3280 = vmul.f32 %v3279, %v3278
      %v3281 = vmul.f32 0.5, %v3280
      %v3282 = vsub.f32 1.5, %v3281
      %v3283 = vmul.f32 %v3278, %v3282
      %vm3284 = vweird.f32 %v3207
      %vm3285 = vweird.f32 %v3278
      %vm3286 = vmor %vm3284, %vm3285
      %v3287 = vsel %vm3286, %v3278, %v3283
      %v3288 = vmul.f32 %v3152, %v3217
      %v3289 = vmul.f32 %v3153, %v3227
      %v3290 = vmul.f32 %v3154, %v3237
      %v3291 = vmul.f32 %v3155, %v3247
      %v3292 = vmul.f32 %v3156, %v3257
      %v3293 = vmul.f32 %v3157, %v3267
      %v3294 = vmul.f32 %v3158, %v3277
      %v3295 = vmul.f32 %v3159, %v3287
      %v3296 = vperm.slane %v2217, 2
      %v3297 = vmul.f32 %v3288, %v3296
      %v3298 = vmul.f32 %v3289, %v3296
      %v3299 = vmul.f32 %v3290, %v3296
      %v3300 = vmul.f32 %v3291, %v3296
      %v3301 = vmul.f32 %v3292, %v3296
      %v3302 = vmul.f32 %v3293, %v3296
      %v3303 = vmul.f32 %v3294, %v3296
      %v3304 = vmul.f32 %v3295, %v3296
      %v3305 = vperm.slane %v2217, 3
      %v3306 = vadd.f32 %v3297, %v3305
      %v3307 = vadd.f32 %v3298, %v3305
      %v3308 = vadd.f32 %v3299, %v3305
      %v3309 = vadd.f32 %v3300, %v3305
      %v3310 = vadd.f32 %v3301, %v3305
      %v3311 = vadd.f32 %v3302, %v3305
      %v3312 = vadd.f32 %v3303, %v3305
      %v3313 = vadd.f32 %v3304, %v3305
      %v3314 = vld [vmem:[%s3 + $0x50] sm:$0xff]
      %v3315 = vld [vmem:[%s3 + $0x60] sm:$0xff]
      %v3316 = vld [vmem:[%s3 + $0x70] sm:$0xff]
      %v3317 = vld [vmem:[%s3 + $0x80] sm:$0xff]
      %v3318 = vpack.c.bf16 %v3307, %v3306
      %v3319 = vpack.c.bf16 %v3309, %v3308
      %v3320 = vpack.c.bf16 %v3311, %v3310
      %v3321 = vpack.c.bf16 %v3313, %v3312
      %v3322 = vpack.c.bf16 %v3315, %v3314
      %v3323 = vpack.c.bf16 %v3317, %v3316
      %v3324 = vld [vmem:[%s3 + $0x90] ss:$0 sm:$0xff]
      %v3326 = vsel %vm1980, %v3318, 0
      %v3329 = vsel %vm1980, %v3319, 0
      %v3332 = vsel %vm1980, %v3320, 0
      %v3335 = vsel %vm1980, %v3321, 0
      %3337 = vmatpush.bf16.msra.mxu0 0
      %3338 = vmatpush.bf16.msra.mxu0 0
      %3339 = vmatpush.bf16.msra.mxu0 0
      %3340 = vmatpush.bf16.msra.mxu0 0
      %3341 = vmatpush.bf16.msra.mxu0 0
      %3342 = vmatpush.bf16.msra.mxu0 0
      %3343 = vmatpush.bf16.msra.mxu0 %v3323
      %3344 = vmatpush.bf16.msra.mxu0 %v3322
      %3345 = vmatmul.bf16.gmra.mxu0 %v3326
      %v3346 = vpop.f32.mrf.mxu0
      %v3347 = vadd.f32 %v3324, %v3346
      %v3348 = vpop.f32.mrf.mxu0
      %v3349 = vadd.f32 %v3324, %v3348
      %3350 = vmatmul.bf16.gmra.mxu0 %v3329
      %v3351 = vpop.f32.mrf.mxu0
      %v3352 = vadd.f32 %v3324, %v3351
      %v3353 = vpop.f32.mrf.mxu0
      %v3354 = vadd.f32 %v3324, %v3353
      %3355 = vmatmul.bf16.gmra.mxu0 %v3332
      %v3356 = vpop.f32.mrf.mxu0
      %v3357 = vadd.f32 %v3324, %v3356
      %v3358 = vpop.f32.mrf.mxu0
      %v3359 = vadd.f32 %v3324, %v3358
      %3360 = vmatmul.bf16.gmra.mxu0 %v3335
      %v3361 = vpop.f32.mrf.mxu0
      %v3362 = vadd.f32 %v3324, %v3361
      %v3363 = vpop.f32.mrf.mxu0
      %v3364 = vadd.f32 %v3324, %v3363
      %3365 = vdwg.mxu0
      %v3366 = vmul.f32 %v3347, %v3347
      %v3367 = vmul.f32 %v3349, %v3349
      %v3368 = vmul.f32 %v3352, %v3352
      %v3369 = vmul.f32 %v3354, %v3354
      %v3370 = vmul.f32 %v3357, %v3357
      %v3371 = vmul.f32 %v3359, %v3359
      %v3372 = vmul.f32 %v3362, %v3362
      %v3373 = vmul.f32 %v3364, %v3364
      %v3374 = vmul.f32 %v3347, %v3366
      %v3375 = vmul.f32 %v3349, %v3367
      %v3376 = vmul.f32 %v3352, %v3368
      %v3377 = vmul.f32 %v3354, %v3369
      %v3378 = vmul.f32 %v3357, %v3370
      %v3379 = vmul.f32 %v3359, %v3371
      %v3380 = vmul.f32 %v3362, %v3372
      %v3381 = vmul.f32 %v3364, %v3373
      %v3382 = vmul.f32 %v3374, 0.044715
      %v3383 = vmul.f32 %v3375, 0.044715
      %v3384 = vmul.f32 %v3376, 0.044715
      %v3385 = vmul.f32 %v3377, 0.044715
      %v3386 = vmul.f32 %v3378, 0.044715
      %v3387 = vmul.f32 %v3379, 0.044715
      %v3388 = vmul.f32 %v3380, 0.044715
      %v3389 = vmul.f32 %v3381, 0.044715
      %v3390 = vadd.f32 %v3347, %v3382
      %v3391 = vadd.f32 %v3349, %v3383
      %v3392 = vadd.f32 %v3352, %v3384
      %v3393 = vadd.f32 %v3354, %v3385
      %v3394 = vadd.f32 %v3357, %v3386
      %v3395 = vadd.f32 %v3359, %v3387
      %v3396 = vadd.f32 %v3362, %v3388
      %v3397 = vadd.f32 %v3364, %v3389
      %v3398 = vmul.f32 %v3390, 0.7978846
      %v3399 = vmul.f32 %v3391, 0.7978846
      %v3400 = vmul.f32 %v3392, 0.7978846
      %v3401 = vmul.f32 %v3393, 0.7978846
      %v3402 = vmul.f32 %v3394, 0.7978846
      %v3403 = vmul.f32 %v3395, 0.7978846
      %v3404 = vmul.f32 %v3396, 0.7978846
      %v3405 = vmul.f32 %v3397, 0.7978846
      %v3406 = vtanh.pop %v3398
      %v3407 = vtanh.pop %v3399
      %v3408 = vtanh.pop %v3400
      %v3409 = vtanh.pop %v3401
      %v3410 = vtanh.pop %v3402
      %v3411 = vtanh.pop %v3403
      %v3412 = vtanh.pop %v3404
      %v3413 = vtanh.pop %v3405
      %v3414 = vadd.f32 %v3406, 1.0
      %v3415 = vadd.f32 %v3407, 1.0
      %v3416 = vadd.f32 %v3408, 1.0
      %v3417 = vadd.f32 %v3409, 1.0
      %v3418 = vadd.f32 %v3410, 1.0
      %v3419 = vadd.f32 %v3411, 1.0
      %v3420 = vadd.f32 %v3412, 1.0
      %v3421 = vadd.f32 %v3413, 1.0
      %v3422 = vmul.f32 %v3414, 0.5
      %v3423 = vmul.f32 %v3415, 0.5
      %v3424 = vmul.f32 %v3416, 0.5
      %v3425 = vmul.f32 %v3417, 0.5
      %v3426 = vmul.f32 %v3418, 0.5
      %v3427 = vmul.f32 %v3419, 0.5
      %v3428 = vmul.f32 %v3420, 0.5
      %v3429 = vmul.f32 %v3421, 0.5
      %v3430 = vmul.f32 %v3347, %v3422
      %v3431 = vmul.f32 %v3349, %v3423
      %v3432 = vmul.f32 %v3352, %v3424
      %v3433 = vmul.f32 %v3354, %v3425
      %v3434 = vmul.f32 %v3357, %v3426
      %v3435 = vmul.f32 %v3359, %v3427
      %v3436 = vmul.f32 %v3362, %v3428
      %v3437 = vmul.f32 %v3364, %v3429
      %v3438 = vld [vmem:[%s2 + $0x1b8] sm:$0xff]
      %v3439 = vld [vmem:[%s2 + $0x1c0] sm:$0xff]
      %v3440 = vld [vmem:[%s2 + $0x1c8] sm:$0xff]
      %v3441 = vld [vmem:[%s2 + $0x1d0] sm:$0xff]
      %v3442 = vld [vmem:[%s2 + $0x1d8] sm:$0xff]
      %v3443 = vld [vmem:[%s2 + $0x1e0] sm:$0xff]
      %v3444 = vld [vmem:[%s2 + $0x1e8] sm:$0xff]
      %v3445 = vld [vmem:[%s2 + $0x1f0] sm:$0xff]
      %v3446 = vpack.c.bf16 %v3431, %v3430
      %v3447 = vpack.c.bf16 %v3433, %v3432
      %v3448 = vpack.c.bf16 %v3435, %v3434
      %v3449 = vpack.c.bf16 %v3437, %v3436
      %v3450 = vpack.c.bf16 %v3439, %v3438
      %v3451 = vpack.c.bf16 %v3441, %v3440
      %v3452 = vpack.c.bf16 %v3443, %v3442
      %v3453 = vpack.c.bf16 %v3445, %v3444
      %v3455 = vsel %vm1865, %v3446, 0
      %v3458 = vsel %vm1865, %v3447, 0
      %v3461 = vsel %vm1865, %v3448, 0
      %v3464 = vsel %vm1865, %v3449, 0
      %3466 = vmatpush.bf16.msra.mxu0 0
      %3467 = vmatpush.bf16.msra.mxu0 0
      %3468 = vmatpush.bf16.msra.mxu0 0
      %3469 = vmatpush.bf16.msra.mxu0 0
      %3470 = vmatpush.bf16.msra.mxu0 %v3453
      %3471 = vmatpush.bf16.msra.mxu0 %v3452
      %3472 = vmatpush.bf16.msra.mxu0 %v3451
      %3473 = vmatpush.bf16.msra.mxu0 %v3450
      %3474 = vmatmul.bf16.gmra.mxu0 %v3455
      %v3475 = vpop.f32.mrf.mxu0
      %v3476 = vadd.f32 0.0, %v3475
      %v3477 = vpop.f32.mrf.mxu0
      %v3478 = vadd.f32 0.0, %v3477
      %3479 = vmatmul.bf16.gmra.mxu0 %v3458
      %v3480 = vpop.f32.mrf.mxu0
      %v3481 = vadd.f32 0.0, %v3480
      %v3482 = vpop.f32.mrf.mxu0
      %v3483 = vadd.f32 0.0, %v3482
      %3484 = vmatmul.bf16.gmra.mxu0 %v3461
      %v3485 = vpop.f32.mrf.mxu0
      %v3486 = vadd.f32 0.0, %v3485
      %v3487 = vpop.f32.mrf.mxu0
      %v3488 = vadd.f32 0.0, %v3487
      %3489 = vmatmul.bf16.gmra.mxu0 %v3464
      %v3490 = vpop.f32.mrf.mxu0
      %v3491 = vadd.f32 0.0, %v3490
      %v3492 = vpop.f32.mrf.mxu0
      %v3493 = vadd.f32 0.0, %v3492
      %3494 = vdwg.mxu0
      %v3495 = vadd.f32 %v3112, %v3476
      %v3496 = vadd.f32 %v3113, %v3478
      %v3497 = vadd.f32 %v3114, %v3481
      %v3498 = vadd.f32 %v3115, %v3483
      %v3499 = vadd.f32 %v3116, %v3486
      %v3500 = vadd.f32 %v3117, %v3488
      %v3501 = vadd.f32 %v3118, %v3491
      %v3502 = vadd.f32 %v3119, %v3493
      %v3503 = vld [vmem:[%s2 + $0x1f8] sm:$0x1]
      %v3504 = vperm.slane %v3503, 0
      %v3505 = vadd.f32 %v3495, %v3504
      %v3506 = vadd.f32 %v3496, %v3504
      %v3507 = vadd.f32 %v3497, %v3504
      %v3508 = vadd.f32 %v3498, %v3504
      %v3509 = vadd.f32 %v3499, %v3504
      %v3510 = vadd.f32 %v3500, %v3504
      %v3511 = vadd.f32 %v3501, %v3504
      %v3512 = vadd.f32 %v3502, %v3504
      %v3513 = vld [vmem:[%s2 + $0x200] sm:$0xff]
      %v3514 = vld [vmem:[%s2 + $0x208] sm:$0xff]
      %v3515 = vld [vmem:[%s2 + $0x210] sm:$0xff]
      %v3516 = vld [vmem:[%s2 + $0x218] sm:$0xff]
      %v3517 = vpack.c.bf16 %v3506, %v3505
      %v3518 = vpack.c.bf16 %v3508, %v3507
      %v3519 = vpack.c.bf16 %v3510, %v3509
      %v3520 = vpack.c.bf16 %v3512, %v3511
      %v3521 = vpack.c.bf16 %v3514, %v3513
      %v3522 = vpack.c.bf16 %v3516, %v3515
      %v3523 = vld [vmem:[%s2 + $0x220] sm:$0x1]
      %v3524 = vperm.slane %v3523, 0
      %v3526 = vsel %vm1980, %v3517, 0
      %v3529 = vsel %vm1980, %v3518, 0
      %v3532 = vsel %vm1980, %v3519, 0
      %v3535 = vsel %vm1980, %v3520, 0
      %3537 = vmatpush.bf16.msra.mxu0 0
      %3538 = vmatpush.bf16.msra.mxu0 0
      %3539 = vmatpush.bf16.msra.mxu0 0
      %3540 = vmatpush.bf16.msra.mxu0 0
      %3541 = vmatpush.bf16.msra.mxu0 0
      %3542 = vmatpush.bf16.msra.mxu0 0
      %3543 = vmatpush.bf16.msra.mxu0 %v3522
      %3544 = vmatpush.bf16.msra.mxu0 %v3521
      %3545 = vmatmul.bf16.gmra.mxu0 %v3526
      %v3546 = vpop.f32.mrf.mxu0
      %v3547 = vadd.f32 %v3524, %v3546
      %v3548 = vpop.f32.mrf.mxu0
      %v3549 = vadd.f32 %v3524, %v3548
      %3550 = vmatmul.bf16.gmra.mxu0 %v3529
      %v3551 = vpop.f32.mrf.mxu0
      %v3552 = vadd.f32 %v3524, %v3551
      %v3553 = vpop.f32.mrf.mxu0
      %v3554 = vadd.f32 %v3524, %v3553
      %3555 = vmatmul.bf16.gmra.mxu0 %v3532
      %v3556 = vpop.f32.mrf.mxu0
      %v3557 = vadd.f32 %v3524, %v3556
      %v3558 = vpop.f32.mrf.mxu0
      %v3559 = vadd.f32 %v3524, %v3558
      %3560 = vmatmul.bf16.gmra.mxu0 %v3535
      %v3561 = vpop.f32.mrf.mxu0
      %v3562 = vadd.f32 %v3524, %v3561
      %v3563 = vpop.f32.mrf.mxu0
      %v3564 = vadd.f32 %v3524, %v3563
      %3565 = vdwg.mxu0
      %v3566 = vsel %vm1980, %v3547, 0.0
      %3567 = vadd.xlane.f32.xlu0 %v3566
      %v3568 = vpop.xlane.xlu0 %3567
      %v3569 = vsel %vm1980, %v3549, 0.0
      %3570 = vadd.xlane.f32.xlu0 %v3569
      %v3571 = vpop.xlane.xlu0 %3570
      %v3572 = vsel %vm1980, %v3552, 0.0
      %3573 = vadd.xlane.f32.xlu0 %v3572
      %v3574 = vpop.xlane.xlu0 %3573
      %v3575 = vsel %vm1980, %v3554, 0.0
      %3576 = vadd.xlane.f32.xlu0 %v3575
      %v3577 = vpop.xlane.xlu0 %3576
      %v3578 = vsel %vm1980, %v3557, 0.0
      %3579 = vadd.xlane.f32.xlu0 %v3578
      %v3580 = vpop.xlane.xlu0 %3579
      %v3581 = vsel %vm1980, %v3559, 0.0
      %3582 = vadd.xlane.f32.xlu0 %v3581
      %v3583 = vpop.xlane.xlu0 %3582
      %v3584 = vsel %vm1980, %v3562, 0.0
      %3585 = vadd.xlane.f32.xlu0 %v3584
      %v3586 = vpop.xlane.xlu0 %3585
      %v3587 = vsel %vm1980, %v3564, 0.0
      %3588 = vadd.xlane.f32.xlu0 %v3587
      %v3589 = vpop.xlane.xlu0 %3588
      %v3590 = vmul.f32 %v3568, %v2329
      %v3591 = vmul.f32 %v3571, %v2329
      %v3592 = vmul.f32 %v3574, %v2329
      %v3593 = vmul.f32 %v3577, %v2329
      %v3594 = vmul.f32 %v3580, %v2329
      %v3595 = vmul.f32 %v3583, %v2329
      %v3596 = vmul.f32 %v3586, %v2329
      %v3597 = vmul.f32 %v3589, %v2329
      %v3598 = vsub.f32 %v3547, %v3590
      %v3599 = vsub.f32 %v3549, %v3591
      %v3600 = vsub.f32 %v3552, %v3592
      %v3601 = vsub.f32 %v3554, %v3593
      %v3602 = vsub.f32 %v3557, %v3594
      %v3603 = vsub.f32 %v3559, %v3595
      %v3604 = vsub.f32 %v3562, %v3596
      %v3605 = vsub.f32 %v3564, %v3597
      %v3606 = vmul.f32 %v3598, %v3598
      %v3607 = vmul.f32 %v3599, %v3599
      %v3608 = vmul.f32 %v3600, %v3600
      %v3609 = vmul.f32 %v3601, %v3601
      %v3610 = vmul.f32 %v3602, %v3602
      %v3611 = vmul.f32 %v3603, %v3603
      %v3612 = vmul.f32 %v3604, %v3604
      %v3613 = vmul.f32 %v3605, %v3605
      %v3614 = vsel %vm1980, %v3606, 0.0
      %3615 = vadd.xlane.f32.xlu0 %v3614
      %v3616 = vpop.xlane.xlu0 %3615
      %v3617 = vsel %vm1980, %v3607, 0.0
      %3618 = vadd.xlane.f32.xlu0 %v3617
      %v3619 = vpop.xlane.xlu0 %3618
      %v3620 = vsel %vm1980, %v3608, 0.0
      %3621 = vadd.xlane.f32.xlu0 %v3620
      %v3622 = vpop.xlane.xlu0 %3621
      %v3623 = vsel %vm1980, %v3609, 0.0
      %3624 = vadd.xlane.f32.xlu0 %v3623
      %v3625 = vpop.xlane.xlu0 %3624
      %v3626 = vsel %vm1980, %v3610, 0.0
      %3627 = vadd.xlane.f32.xlu0 %v3626
      %v3628 = vpop.xlane.xlu0 %3627
      %v3629 = vsel %vm1980, %v3611, 0.0
      %3630 = vadd.xlane.f32.xlu0 %v3629
      %v3631 = vpop.xlane.xlu0 %3630
      %v3632 = vsel %vm1980, %v3612, 0.0
      %3633 = vadd.xlane.f32.xlu0 %v3632
      %v3634 = vpop.xlane.xlu0 %3633
      %v3635 = vsel %vm1980, %v3613, 0.0
      %3636 = vadd.xlane.f32.xlu0 %v3635
      %v3637 = vpop.xlane.xlu0 %3636
      %v3638 = vmul.f32 %v3616, %v2329
      %v3639 = vmul.f32 %v3619, %v2329
      %v3640 = vmul.f32 %v3622, %v2329
      %v3641 = vmul.f32 %v3625, %v2329
      %v3642 = vmul.f32 %v3628, %v2329
      %v3643 = vmul.f32 %v3631, %v2329
      %v3644 = vmul.f32 %v3634, %v2329
      %v3645 = vmul.f32 %v3637, %v2329
      %v3646 = vadd.f32 %v3638, 1e-06
      %v3647 = vadd.f32 %v3639, 1e-06
      %v3648 = vadd.f32 %v3640, 1e-06
      %v3649 = vadd.f32 %v3641, 1e-06
      %v3650 = vadd.f32 %v3642, 1e-06
      %v3651 = vadd.f32 %v3643, 1e-06
      %v3652 = vadd.f32 %v3644, 1e-06
      %v3653 = vadd.f32 %v3645, 1e-06
      %v3654 = vrsqrt.pop %v3646
      %v3655 = vmul.f32 %v3654, %v3646
      %v3656 = vmul.f32 %v3655, %v3654
      %v3657 = vmul.f32 0.5, %v3656
      %v3658 = vsub.f32 1.5, %v3657
      %v3659 = vmul.f32 %v3654, %v3658
      %vm3660 = vweird.f32 %v3646
      %vm3661 = vweird.f32 %v3654
      %vm3662 = vmor %vm3660, %vm3661
      %v3663 = vsel %vm3662, %v3654, %v3659
      %v3664 = vrsqrt.pop %v3647
      %v3665 = vmul.f32 %v3664, %v3647
      %v3666 = vmul.f32 %v3665, %v3664
      %v3667 = vmul.f32 0.5, %v3666
      %v3668 = vsub.f32 1.5, %v3667
      %v3669 = vmul.f32 %v3664, %v3668
      %vm3670 = vweird.f32 %v3647
      %vm3671 = vweird.f32 %v3664
      %vm3672 = vmor %vm3670, %vm3671
      %v3673 = vsel %vm3672, %v3664, %v3669
      %v3674 = vrsqrt.pop %v3648
      %v3675 = vmul.f32 %v3674, %v3648
      %v3676 = vmul.f32 %v3675, %v3674
      %v3677 = vmul.f32 0.5, %v3676
      %v3678 = vsub.f32 1.5, %v3677
      %v3679 = vmul.f32 %v3674, %v3678
      %vm3680 = vweird.f32 %v3648
      %vm3681 = vweird.f32 %v3674
      %vm3682 = vmor %vm3680, %vm3681
      %v3683 = vsel %vm3682, %v3674, %v3679
      %v3684 = vrsqrt.pop %v3649
      %v3685 = vmul.f32 %v3684, %v3649
      %v3686 = vmul.f32 %v3685, %v3684
      %v3687 = vmul.f32 0.5, %v3686
      %v3688 = vsub.f32 1.5, %v3687
      %v3689 = vmul.f32 %v3684, %v3688
      %vm3690 = vweird.f32 %v3649
      %vm3691 = vweird.f32 %v3684
      %vm3692 = vmor %vm3690, %vm3691
      %v3693 = vsel %vm3692, %v3684, %v3689
      %v3694 = vrsqrt.pop %v3650
      %v3695 = vmul.f32 %v3694, %v3650
      %v3696 = vmul.f32 %v3695, %v3694
      %v3697 = vmul.f32 0.5, %v3696
      %v3698 = vsub.f32 1.5, %v3697
      %v3699 = vmul.f32 %v3694, %v3698
      %vm3700 = vweird.f32 %v3650
      %vm3701 = vweird.f32 %v3694
      %vm3702 = vmor %vm3700, %vm3701
      %v3703 = vsel %vm3702, %v3694, %v3699
      %v3704 = vrsqrt.pop %v3651
      %v3705 = vmul.f32 %v3704, %v3651
      %v3706 = vmul.f32 %v3705, %v3704
      %v3707 = vmul.f32 0.5, %v3706
      %v3708 = vsub.f32 1.5, %v3707
      %v3709 = vmul.f32 %v3704, %v3708
      %vm3710 = vweird.f32 %v3651
      %vm3711 = vweird.f32 %v3704
      %vm3712 = vmor %vm3710, %vm3711
      %v3713 = vsel %vm3712, %v3704, %v3709
      %v3714 = vrsqrt.pop %v3652
      %v3715 = vmul.f32 %v3714, %v3652
      %v3716 = vmul.f32 %v3715, %v3714
      %v3717 = vmul.f32 0.5, %v3716
      %v3718 = vsub.f32 1.5, %v3717
      %v3719 = vmul.f32 %v3714, %v3718
      %vm3720 = vweird.f32 %v3652
      %vm3721 = vweird.f32 %v3714
      %vm3722 = vmor %vm3720, %vm3721
      %v3723 = vsel %vm3722, %v3714, %v3719
      %v3724 = vrsqrt.pop %v3653
      %v3725 = vmul.f32 %v3724, %v3653
      %v3726 = vmul.f32 %v3725, %v3724
      %v3727 = vmul.f32 0.5, %v3726
      %v3728 = vsub.f32 1.5, %v3727
      %v3729 = vmul.f32 %v3724, %v3728
      %vm3730 = vweird.f32 %v3653
      %vm3731 = vweird.f32 %v3724
      %vm3732 = vmor %vm3730, %vm3731
      %v3733 = vsel %vm3732, %v3724, %v3729
      %v3734 = vmul.f32 %v3598, %v3663
      %v3735 = vmul.f32 %v3599, %v3673
      %v3736 = vmul.f32 %v3600, %v3683
      %v3737 = vmul.f32 %v3601, %v3693
      %v3738 = vmul.f32 %v3602, %v3703
      %v3739 = vmul.f32 %v3603, %v3713
      %v3740 = vmul.f32 %v3604, %v3723
      %v3741 = vmul.f32 %v3605, %v3733
      %v3742 = vperm.slane %v2217, 4
      %v3743 = vmul.f32 %v3734, %v3742
      %v3744 = vmul.f32 %v3735, %v3742
      %v3745 = vmul.f32 %v3736, %v3742
      %v3746 = vmul.f32 %v3737, %v3742
      %v3747 = vmul.f32 %v3738, %v3742
      %v3748 = vmul.f32 %v3739, %v3742
      %v3749 = vmul.f32 %v3740, %v3742
      %v3750 = vmul.f32 %v3741, %v3742
      %v3751 = vperm.slane %v2217, 5
      %v3752 = vadd.f32 %v3743, %v3751
      %v3753 = vadd.f32 %v3744, %v3751
      %v3754 = vadd.f32 %v3745, %v3751
      %v3755 = vadd.f32 %v3746, %v3751
      %v3756 = vadd.f32 %v3747, %v3751
      %v3757 = vadd.f32 %v3748, %v3751
      %v3758 = vadd.f32 %v3749, %v3751
      %v3759 = vadd.f32 %v3750, %v3751
      %v3760 = vld [vmem:[%s2 + $0x228] sm:$0xff]
      %v3761 = vld [vmem:[%s2 + $0x230] sm:$0xff]
      %v3762 = vld [vmem:[%s2 + $0x238] sm:$0xff]
      %v3763 = vld [vmem:[%s2 + $0x240] sm:$0xff]
      %v3764 = vpack.c.bf16 %v3753, %v3752
      %v3765 = vpack.c.bf16 %v3755, %v3754
      %v3766 = vpack.c.bf16 %v3757, %v3756
      %v3767 = vpack.c.bf16 %v3759, %v3758
      %v3768 = vpack.c.bf16 %v3761, %v3760
      %v3769 = vpack.c.bf16 %v3763, %v3762
      %v3770 = vld [vmem:[%s2 + $0x248] sm:$0x1]
      %v3771 = vperm.slane %v3770, 0
      %v3773 = vsel %vm1980, %v3764, 0
      %v3776 = vsel %vm1980, %v3765, 0
      %v3779 = vsel %vm1980, %v3766, 0
      %v3782 = vsel %vm1980, %v3767, 0
      %3784 = vmatpush.bf16.msra.mxu0 0
      %3785 = vmatpush.bf16.msra.mxu0 0
      %3786 = vmatpush.bf16.msra.mxu0 0
      %3787 = vmatpush.bf16.msra.mxu0 0
      %3788 = vmatpush.bf16.msra.mxu0 0
      %3789 = vmatpush.bf16.msra.mxu0 0
      %3790 = vmatpush.bf16.msra.mxu0 %v3769
      %3791 = vmatpush.bf16.msra.mxu0 %v3768
      %3792 = vmatmul.bf16.gmra.mxu0 %v3773
      %v3793 = vpop.f32.mrf.mxu0
      %v3794 = vadd.f32 %v3771, %v3793
      %v3795 = vpop.f32.mrf.mxu0
      %v3796 = vadd.f32 %v3771, %v3795
      %3797 = vmatmul.bf16.gmra.mxu0 %v3776
      %v3798 = vpop.f32.mrf.mxu0
      %v3799 = vadd.f32 %v3771, %v3798
      %v3800 = vpop.f32.mrf.mxu0
      %v3801 = vadd.f32 %v3771, %v3800
      %3802 = vmatmul.bf16.gmra.mxu0 %v3779
      %v3803 = vpop.f32.mrf.mxu0
      %v3804 = vadd.f32 %v3771, %v3803
      %v3805 = vpop.f32.mrf.mxu0
      %v3806 = vadd.f32 %v3771, %v3805
      %3807 = vmatmul.bf16.gmra.mxu0 %v3782
      %v3808 = vpop.f32.mrf.mxu0
      %v3809 = vadd.f32 %v3771, %v3808
      %v3810 = vpop.f32.mrf.mxu0
      %v3811 = vadd.f32 %v3771, %v3810
      %3812 = vdwg.mxu0
      %v3813 = vsel %vm1980, %v3794, 0.0
      %3814 = vadd.xlane.f32.xlu0 %v3813
      %v3815 = vpop.xlane.xlu0 %3814
      %v3816 = vsel %vm1980, %v3796, 0.0
      %3817 = vadd.xlane.f32.xlu0 %v3816
      %v3818 = vpop.xlane.xlu0 %3817
      %v3819 = vsel %vm1980, %v3799, 0.0
      %3820 = vadd.xlane.f32.xlu0 %v3819
      %v3821 = vpop.xlane.xlu0 %3820
      %v3822 = vsel %vm1980, %v3801, 0.0
      %3823 = vadd.xlane.f32.xlu0 %v3822
      %v3824 = vpop.xlane.xlu0 %3823
      %v3825 = vsel %vm1980, %v3804, 0.0
      %3826 = vadd.xlane.f32.xlu0 %v3825
      %v3827 = vpop.xlane.xlu0 %3826
      %v3828 = vsel %vm1980, %v3806, 0.0
      %3829 = vadd.xlane.f32.xlu0 %v3828
      %v3830 = vpop.xlane.xlu0 %3829
      %v3831 = vsel %vm1980, %v3809, 0.0
      %3832 = vadd.xlane.f32.xlu0 %v3831
      %v3833 = vpop.xlane.xlu0 %3832
      %v3834 = vsel %vm1980, %v3811, 0.0
      %3835 = vadd.xlane.f32.xlu0 %v3834
      %v3836 = vpop.xlane.xlu0 %3835
      %v3837 = vmul.f32 %v3815, %v2329
      %v3838 = vmul.f32 %v3818, %v2329
      %v3839 = vmul.f32 %v3821, %v2329
      %v3840 = vmul.f32 %v3824, %v2329
      %v3841 = vmul.f32 %v3827, %v2329
      %v3842 = vmul.f32 %v3830, %v2329
      %v3843 = vmul.f32 %v3833, %v2329
      %v3844 = vmul.f32 %v3836, %v2329
      %v3845 = vsub.f32 %v3794, %v3837
      %v3846 = vsub.f32 %v3796, %v3838
      %v3847 = vsub.f32 %v3799, %v3839
      %v3848 = vsub.f32 %v3801, %v3840
      %v3849 = vsub.f32 %v3804, %v3841
      %v3850 = vsub.f32 %v3806, %v3842
      %v3851 = vsub.f32 %v3809, %v3843
      %v3852 = vsub.f32 %v3811, %v3844
      %v3853 = vmul.f32 %v3845, %v3845
      %v3854 = vmul.f32 %v3846, %v3846
      %v3855 = vmul.f32 %v3847, %v3847
      %v3856 = vmul.f32 %v3848, %v3848
      %v3857 = vmul.f32 %v3849, %v3849
      %v3858 = vmul.f32 %v3850, %v3850
      %v3859 = vmul.f32 %v3851, %v3851
      %v3860 = vmul.f32 %v3852, %v3852
      %v3861 = vsel %vm1980, %v3853, 0.0
      %3862 = vadd.xlane.f32.xlu0 %v3861
      %v3863 = vpop.xlane.xlu0 %3862
      %v3864 = vsel %vm1980, %v3854, 0.0
      %3865 = vadd.xlane.f32.xlu0 %v3864
      %v3866 = vpop.xlane.xlu0 %3865
      %v3867 = vsel %vm1980, %v3855, 0.0
      %3868 = vadd.xlane.f32.xlu0 %v3867
      %v3869 = vpop.xlane.xlu0 %3868
      %v3870 = vsel %vm1980, %v3856, 0.0
      %3871 = vadd.xlane.f32.xlu0 %v3870
      %v3872 = vpop.xlane.xlu0 %3871
      %v3873 = vsel %vm1980, %v3857, 0.0
      %3874 = vadd.xlane.f32.xlu0 %v3873
      %v3875 = vpop.xlane.xlu0 %3874
      %v3876 = vsel %vm1980, %v3858, 0.0
      %3877 = vadd.xlane.f32.xlu0 %v3876
      %v3878 = vpop.xlane.xlu0 %3877
      %v3879 = vsel %vm1980, %v3859, 0.0
      %3880 = vadd.xlane.f32.xlu0 %v3879
      %v3881 = vpop.xlane.xlu0 %3880
      %v3882 = vsel %vm1980, %v3860, 0.0
      %3883 = vadd.xlane.f32.xlu0 %v3882
      %v3884 = vpop.xlane.xlu0 %3883
      %v3885 = vmul.f32 %v3863, %v2329
      %v3886 = vmul.f32 %v3866, %v2329
      %v3887 = vmul.f32 %v3869, %v2329
      %v3888 = vmul.f32 %v3872, %v2329
      %v3889 = vmul.f32 %v3875, %v2329
      %v3890 = vmul.f32 %v3878, %v2329
      %v3891 = vmul.f32 %v3881, %v2329
      %v3892 = vmul.f32 %v3884, %v2329
      %v3893 = vadd.f32 %v3885, 1e-06
      %v3894 = vadd.f32 %v3886, 1e-06
      %v3895 = vadd.f32 %v3887, 1e-06
      %v3896 = vadd.f32 %v3888, 1e-06
      %v3897 = vadd.f32 %v3889, 1e-06
      %v3898 = vadd.f32 %v3890, 1e-06
      %v3899 = vadd.f32 %v3891, 1e-06
      %v3900 = vadd.f32 %v3892, 1e-06
      %v3901 = vrsqrt.pop %v3893
      %v3902 = vmul.f32 %v3901, %v3893
      %v3903 = vmul.f32 %v3902, %v3901
      %v3904 = vmul.f32 0.5, %v3903
      %v3905 = vsub.f32 1.5, %v3904
      %v3906 = vmul.f32 %v3901, %v3905
      %vm3907 = vweird.f32 %v3893
      %vm3908 = vweird.f32 %v3901
      %vm3909 = vmor %vm3907, %vm3908
      %v3910 = vsel %vm3909, %v3901, %v3906
      %v3911 = vrsqrt.pop %v3894
      %v3912 = vmul.f32 %v3911, %v3894
      %v3913 = vmul.f32 %v3912, %v3911
      %v3914 = vmul.f32 0.5, %v3913
      %v3915 = vsub.f32 1.5, %v3914
      %v3916 = vmul.f32 %v3911, %v3915
      %vm3917 = vweird.f32 %v3894
      %vm3918 = vweird.f32 %v3911
      %vm3919 = vmor %vm3917, %vm3918
      %v3920 = vsel %vm3919, %v3911, %v3916
      %v3921 = vrsqrt.pop %v3895
      %v3922 = vmul.f32 %v3921, %v3895
      %v3923 = vmul.f32 %v3922, %v3921
      %v3924 = vmul.f32 0.5, %v3923
      %v3925 = vsub.f32 1.5, %v3924
      %v3926 = vmul.f32 %v3921, %v3925
      %vm3927 = vweird.f32 %v3895
      %vm3928 = vweird.f32 %v3921
      %vm3929 = vmor %vm3927, %vm3928
      %v3930 = vsel %vm3929, %v3921, %v3926
      %v3931 = vrsqrt.pop %v3896
      %v3932 = vmul.f32 %v3931, %v3896
      %v3933 = vmul.f32 %v3932, %v3931
      %v3934 = vmul.f32 0.5, %v3933
      %v3935 = vsub.f32 1.5, %v3934
      %v3936 = vmul.f32 %v3931, %v3935
      %vm3937 = vweird.f32 %v3896
      %vm3938 = vweird.f32 %v3931
      %vm3939 = vmor %vm3937, %vm3938
      %v3940 = vsel %vm3939, %v3931, %v3936
      %v3941 = vrsqrt.pop %v3897
      %v3942 = vmul.f32 %v3941, %v3897
      %v3943 = vmul.f32 %v3942, %v3941
      %v3944 = vmul.f32 0.5, %v3943
      %v3945 = vsub.f32 1.5, %v3944
      %v3946 = vmul.f32 %v3941, %v3945
      %vm3947 = vweird.f32 %v3897
      %vm3948 = vweird.f32 %v3941
      %vm3949 = vmor %vm3947, %vm3948
      %v3950 = vsel %vm3949, %v3941, %v3946
      %v3951 = vrsqrt.pop %v3898
      %v3952 = vmul.f32 %v3951, %v3898
      %v3953 = vmul.f32 %v3952, %v3951
      %v3954 = vmul.f32 0.5, %v3953
      %v3955 = vsub.f32 1.5, %v3954
      %v3956 = vmul.f32 %v3951, %v3955
      %vm3957 = vweird.f32 %v3898
      %vm3958 = vweird.f32 %v3951
      %vm3959 = vmor %vm3957, %vm3958
      %v3960 = vsel %vm3959, %v3951, %v3956
      %v3961 = vrsqrt.pop %v3899
      %v3962 = vmul.f32 %v3961, %v3899
      %v3963 = vmul.f32 %v3962, %v3961
      %v3964 = vmul.f32 0.5, %v3963
      %v3965 = vsub.f32 1.5, %v3964
      %v3966 = vmul.f32 %v3961, %v3965
      %vm3967 = vweird.f32 %v3899
      %vm3968 = vweird.f32 %v3961
      %vm3969 = vmor %vm3967, %vm3968
      %v3970 = vsel %vm3969, %v3961, %v3966
      %v3971 = vrsqrt.pop %v3900
      %v3972 = vmul.f32 %v3971, %v3900
      %v3973 = vmul.f32 %v3972, %v3971
      %v3974 = vmul.f32 0.5, %v3973
      %v3975 = vsub.f32 1.5, %v3974
      %v3976 = vmul.f32 %v3971, %v3975
      %vm3977 = vweird.f32 %v3900
      %vm3978 = vweird.f32 %v3971
      %vm3979 = vmor %vm3977, %vm3978
      %v3980 = vsel %vm3979, %v3971, %v3976
      %v3981 = vmul.f32 %v3845, %v3910
      %v3982 = vmul.f32 %v3846, %v3920
      %v3983 = vmul.f32 %v3847, %v3930
      %v3984 = vmul.f32 %v3848, %v3940
      %v3985 = vmul.f32 %v3849, %v3950
      %v3986 = vmul.f32 %v3850, %v3960
      %v3987 = vmul.f32 %v3851, %v3970
      %v3988 = vmul.f32 %v3852, %v3980
      %v3989 = vperm.slane %v2217, 6
      %v3990 = vmul.f32 %v3981, %v3989
      %v3991 = vmul.f32 %v3982, %v3989
      %v3992 = vmul.f32 %v3983, %v3989
      %v3993 = vmul.f32 %v3984, %v3989
      %v3994 = vmul.f32 %v3985, %v3989
      %v3995 = vmul.f32 %v3986, %v3989
      %v3996 = vmul.f32 %v3987, %v3989
      %v3997 = vmul.f32 %v3988, %v3989
      %v3998 = vperm.slane %v2217, 7
      %v3999 = vadd.f32 %v3990, %v3998
      %v4000 = vadd.f32 %v3991, %v3998
      %v4001 = vadd.f32 %v3992, %v3998
      %v4002 = vadd.f32 %v3993, %v3998
      %v4003 = vadd.f32 %v3994, %v3998
      %v4004 = vadd.f32 %v3995, %v3998
      %v4005 = vadd.f32 %v3996, %v3998
      %v4006 = vadd.f32 %v3997, %v3998
      %v4007 = vsel %vm1980, %v3752, 0.0
      %v4008 = vsel %vm1980, %v3753, 0.0
      %v4009 = vadd.f32 %v4007, %v4008
      %v4010 = vsel %vm1980, %v3754, 0.0
      %v4011 = vadd.f32 %v4009, %v4010
      %v4012 = vsel %vm1980, %v3755, 0.0
      %v4013 = vadd.f32 %v4011, %v4012
      %v4014 = vsel %vm1980, %v3756, 0.0
      %v4015 = vadd.f32 %v4013, %v4014
      %v4016 = vsel %vm1980, %v3757, 0.0
      %v4017 = vadd.f32 %v4015, %v4016
      %v4018 = vsel %vm1980, %v3758, 0.0
      %v4019 = vadd.f32 %v4017, %v4018
      %v4020 = vsel %vm1980, %v3759, 0.0
      %v4021 = vadd.f32 %v4019, %v4020
      %v4022 = vrot.slane %v4021, 4
      %v4023 = vadd.f32 %v4021, %v4022
      %v4024 = vrot.slane %v4023, 2
      %v4025 = vadd.f32 %v4023, %v4024
      %v4026 = vrot.slane %v4025, 1
      %v4027 = vadd.f32 %v4025, %v4026
      %v4028 = vmul.f32 %v4027, %v1884
      %4029 = vxpose.xlu0.b32.start [1/16] %v1861, 128
      %4030 = vxpose.xlu0.b32.cont [2/16] %v1862, 128
      %4031 = vxpose.xlu0.b32.cont [3/16] %v1863, 128
      %4032 = vxpose.xlu0.b32.cont [4/16] %v1864, 128
      %4033 = vxpose.xlu0.b32.cont [5/16] 0.0, 128
      %4034 = vxpose.xlu0.b32.cont [6/16] 0.0, 128
      %4035 = vxpose.xlu0.b32.cont [7/16] 0.0, 128
      %4036 = vxpose.xlu0.b32.cont [8/16] 0.0, 128
      %4037 = vxpose.xlu0.b32.cont [9/16] 0.0, 128
      %4038 = vxpose.xlu0.b32.cont [10/16] 0.0, 128
      %4039 = vxpose.xlu0.b32.cont [11/16] 0.0, 128
      %4040 = vxpose.xlu0.b32.cont [12/16] 0.0, 128
      %4041 = vxpose.xlu0.b32.cont [13/16] 0.0, 128
      %4042 = vxpose.xlu0.b32.cont [14/16] 0.0, 128
      %4043 = vxpose.xlu0.b32.cont [15/16] 0.0, 128
      %4044 = vxpose.xlu0.b32.end [16/16] 0.0, 128
      %v4045 = vpop.trf.xlu0
      %v4046 = vpop.trf.xlu0
      %v4047 = vpop.trf.xlu0
      %v4048 = vpop.trf.xlu0
      %v4049 = vpop.trf.xlu0
      %v4050 = vpop.trf.xlu0
      %v4051 = vpop.trf.xlu0
      %v4052 = vpop.trf.xlu0
      %v4053 = vpop.trf.xlu0
      %v4054 = vpop.trf.xlu0
      %v4055 = vpop.trf.xlu0
      %v4056 = vpop.trf.xlu0
      %v4057 = vpop.trf.xlu0
      %v4058 = vpop.trf.xlu0
      %v4059 = vpop.trf.xlu0
      %v4060 = vpop.trf.xlu0
      %v4061 = vld [vmem:[%s2 + $0xf0] sm:$0xff]
      %v4062 = vld [vmem:[%s2 + $0xf8] sm:$0xff]
      %v4063 = vld [vmem:[%s2 + $0x100] sm:$0xff]
      %v4064 = vld [vmem:[%s2 + $0x108] sm:$0xff]
      %v4065 = vpack.c.bf16 %v4046, %v4045
      %v4066 = vpack.c.bf16 %v4048, %v4047
      %v4067 = vpack.c.bf16 %v4050, %v4049
      %v4068 = vpack.c.bf16 %v4052, %v4051
      %v4069 = vpack.c.bf16 %v4062, %v4061
      %v4070 = vpack.c.bf16 %v4064, %v4063
      %v4072 = vsel %vm1980, %v4065, 0
      %v4075 = vsel %vm1980, %v4066, 0
      %v4078 = vsel %vm1980, %v4067, 0
      %v4081 = vsel %vm1980, %v4068, 0
      %4083 = vmatpush.bf16.msra.mxu0 0
      %4084 = vmatpush.bf16.msra.mxu0 0
      %4085 = vmatpush.bf16.msra.mxu0 0
      %4086 = vmatpush.bf16.msra.mxu0 0
      %4087 = vmatpush.bf16.msra.mxu0 0
      %4088 = vmatpush.bf16.msra.mxu0 0
      %4089 = vmatpush.bf16.msra.mxu0 %v4070
      %4090 = vmatpush.bf16.msra.mxu0 %v4069
      %4091 = vmatmul.bf16.gmra.mxu0 %v4072
      %v4092 = vpop.f32.mrf.mxu0
      %v4093 = vadd.f32 0.0, %v4092
      %v4094 = vpop.f32.mrf.mxu0
      %v4095 = vadd.f32 0.0, %v4094
      %4096 = vmatmul.bf16.gmra.mxu0 %v4075
      %v4097 = vpop.f32.mrf.mxu0
      %v4098 = vadd.f32 0.0, %v4097
      %v4099 = vpop.f32.mrf.mxu0
      %v4100 = vadd.f32 0.0, %v4099
      %4101 = vmatmul.bf16.gmra.mxu0 %v4078
      %v4102 = vpop.f32.mrf.mxu0
      %v4103 = vadd.f32 0.0, %v4102
      %v4104 = vpop.f32.mrf.mxu0
      %v4105 = vadd.f32 0.0, %v4104
      %4106 = vmatmul.bf16.gmra.mxu0 %v4081
      %v4107 = vpop.f32.mrf.mxu0
      %v4108 = vadd.f32 0.0, %v4107
      %v4109 = vpop.f32.mrf.mxu0
      %v4110 = vadd.f32 0.0, %v4109
      %4111 = vdwg.mxu0
      %v4112 = vadd.f32 %v3752, %v4093
      %v4113 = vadd.f32 %v3753, %v4095
      %v4114 = vadd.f32 %v3754, %v4098
      %v4115 = vadd.f32 %v3755, %v4100
      %v4116 = vadd.f32 %v3756, %v4103
      %v4117 = vadd.f32 %v3757, %v4105
      %v4118 = vadd.f32 %v3758, %v4108
      %v4119 = vadd.f32 %v3759, %v4110
      %v4120 = vld [vmem:[%s2 + $0x110] sm:$0x1]
      %v4121 = vperm.slane %v4120, 0
      %v4122 = vadd.f32 %v4112, %v4121
      %v4123 = vadd.f32 %v4113, %v4121
      %v4124 = vadd.f32 %v4114, %v4121
      %v4125 = vadd.f32 %v4115, %v4121
      %v4126 = vadd.f32 %v4116, %v4121
      %v4127 = vadd.f32 %v4117, %v4121
      %v4128 = vadd.f32 %v4118, %v4121
      %v4129 = vadd.f32 %v4119, %v4121
      %v4130 = vld [vmem:[%s4 + $0x5a0] sm:$0xf]
      %v4131 = vld [vmem:[%s4 + $0x5a8] sm:$0xf]
      %v4132 = vld [vmem:[%s4 + $0x5b0] sm:$0xf]
      %v4133 = vld [vmem:[%s4 + $0x5b8] sm:$0xf]
      %v4134 = vld [vmem:[%s4 + $0x5c0] sm:$0xf]
      %v4135 = vld [vmem:[%s4 + $0x5c8] sm:$0xf]
      %v4136 = vld [vmem:[%s4 + $0x5d0] sm:$0xf]
      %v4137 = vld [vmem:[%s4 + $0x5d8] sm:$0xf]
      %v4138 = vld [vmem:[%s4 + $0x5e0] sm:$0xf]
      %v4139 = vld [vmem:[%s4 + $0x5e8] sm:$0xf]
      %v4140 = vld [vmem:[%s4 + $0x5f0] sm:$0xf]
      %v4141 = vld [vmem:[%s4 + $0x5f8] sm:$0xf]
      %v4142 = vld [vmem:[%s4 + $0x600] sm:$0xf]
      %v4143 = vld [vmem:[%s4 + $0x608] sm:$0xf]
      %v4144 = vld [vmem:[%s4 + $0x610] sm:$0xf]
      %v4145 = vunpack.c.l.bf16 %v4130
      %v4146 = vunpack.c.l.bf16 %v4131
      %v4147 = vunpack.c.l.bf16 %v4132
      %v4148 = vunpack.c.l.bf16 %v4133
      %v4149 = vunpack.c.l.bf16 %v4134
      %v4150 = vunpack.c.l.bf16 %v4135
      %v4151 = vunpack.c.l.bf16 %v4136
      %v4152 = vunpack.c.l.bf16 %v4137
      %v4153 = vunpack.c.l.bf16 %v4138
      %v4154 = vunpack.c.l.bf16 %v4139
      %v4155 = vunpack.c.l.bf16 %v4140
      %v4156 = vunpack.c.l.bf16 %v4141
      %v4157 = vunpack.c.l.bf16 %v4142
      %v4158 = vunpack.c.l.bf16 %v4143
      %v4159 = vunpack.c.l.bf16 %v4144
      %4161 = vset.pattern.permute.xlu0 0
      %4162 = vperm.xlu0 %4161, %v522
      %v4163 = vpop.permute.xlu0 %4162
      %4166 = vset.pattern.permute.xlu0 0
      %4167 = vperm.xlu0 %4166, %v1612
      %v4168 = vpop.permute.xlu0 %4167
      %4171 = vset.pattern.permute.xlu0 0
      %4172 = vperm.xlu0 %4171, %v1613
      %v4173 = vpop.permute.xlu0 %4172
      %4176 = vset.pattern.permute.xlu0 0
      %4177 = vperm.xlu0 %4176, %v1885
      %v4178 = vpop.permute.xlu0 %4177
      %4181 = vset.pattern.permute.xlu0 0
      %4182 = vperm.xlu0 %4181, %v1886
      %v4183 = vpop.permute.xlu0 %4182
      %4186 = vset.pattern.permute.xlu0 0
      %4187 = vperm.xlu0 %4186, %v1887
      %v4188 = vpop.permute.xlu0 %4187
      %4191 = vset.pattern.permute.xlu0 0
      %4192 = vperm.xlu0 %4191, %v1888
      %v4193 = vpop.permute.xlu0 %4192
      %4196 = vset.pattern.permute.xlu0 0
      %4197 = vperm.xlu0 %4196, %v2061
      %v4198 = vpop.permute.xlu0 %4197
      %4201 = vset.pattern.permute.xlu0 0
      %4202 = vperm.xlu0 %4201, %v2062
      %v4203 = vpop.permute.xlu0 %4202
      %4206 = vset.pattern.permute.xlu0 0
      %4207 = vperm.xlu0 %4206, %v2063
      %v4208 = vpop.permute.xlu0 %4207
      %4211 = vset.pattern.permute.xlu0 0
      %4212 = vperm.xlu0 %4211, %v2064
      %v4213 = vpop.permute.xlu0 %4212
      %4216 = vset.pattern.permute.xlu0 0
      %4217 = vperm.xlu0 %4216, %v2213
      %v4218 = vpop.permute.xlu0 %4217
      %4221 = vset.pattern.permute.xlu0 0
      %4222 = vperm.xlu0 %4221, %v2214
      %v4223 = vpop.permute.xlu0 %4222
      %4226 = vset.pattern.permute.xlu0 0
      %4227 = vperm.xlu0 %4226, %v2215
      %v4228 = vpop.permute.xlu0 %4227
      %4231 = vset.pattern.permute.xlu0 0
      %4232 = vperm.xlu0 %4231, %v2216
      %v4233 = vpop.permute.xlu0 %4232
      %v4235 = vmul.f32 %v4145, %v4163
      %v4236 = vmul.f32 %v4146, %v4168
      %v4237 = vmul.f32 %v4147, %v4173
      %v4238 = vmul.f32 %v4148, %v4178
      %v4239 = vmul.f32 %v4149, %v4183
      %v4240 = vmul.f32 %v4150, %v4188
      %v4241 = vmul.f32 %v4151, %v4193
      %v4242 = vmul.f32 %v4152, %v4198
      %v4243 = vmul.f32 %v4153, %v4203
      %v4244 = vmul.f32 %v4154, %v4208
      %v4245 = vmul.f32 %v4155, %v4213
      %v4246 = vmul.f32 %v4156, %v4218
      %v4247 = vmul.f32 %v4157, %v4223
      %v4248 = vmul.f32 %v4158, %v4228
      %v4249 = vmul.f32 %v4159, %v4233
      %vm4250 = vcmask 982016
      %v4251 = vsel %vm4250, %v4235, 0.0
      %v4252 = vsel %vm4250, %v4236, 0.0
      %v4253 = vadd.f32 %v4251, %v4252
      %v4254 = vsel %vm4250, %v4237, 0.0
      %v4255 = vadd.f32 %v4253, %v4254
      %v4256 = vsel %vm4250, %v4238, 0.0
      %v4257 = vadd.f32 %v4255, %v4256
      %v4258 = vsel %vm4250, %v4239, 0.0
      %v4259 = vadd.f32 %v4257, %v4258
      %v4260 = vsel %vm4250, %v4240, 0.0
      %v4261 = vadd.f32 %v4259, %v4260
      %v4262 = vsel %vm4250, %v4241, 0.0
      %v4263 = vadd.f32 %v4261, %v4262
      %v4264 = vsel %vm4250, %v4242, 0.0
      %v4265 = vadd.f32 %v4263, %v4264
      %v4266 = vsel %vm4250, %v4243, 0.0
      %v4267 = vadd.f32 %v4265, %v4266
      %v4268 = vsel %vm4250, %v4244, 0.0
      %v4269 = vadd.f32 %v4267, %v4268
      %v4270 = vsel %vm4250, %v4245, 0.0
      %v4271 = vadd.f32 %v4269, %v4270
      %v4272 = vsel %vm4250, %v4246, 0.0
      %v4273 = vadd.f32 %v4271, %v4272
      %v4274 = vsel %vm4250, %v4247, 0.0
      %v4275 = vadd.f32 %v4273, %v4274
      %v4276 = vsel %vm4250, %v4248, 0.0
      %v4277 = vadd.f32 %v4275, %v4276
      %v4278 = vsel %vm4250, %v4249, 0.0
      %v4279 = vadd.f32 %v4277, %v4278
      %v4280 = vrot.slane %v4279, 4
      %v4281 = vadd.f32 %v4279, %v4280
      %v4282 = vrot.slane %v4281, 2
      %v4283 = vadd.f32 %v4281, %v4282
      %v4284 = vrot.slane %v4283, 1
      %v4285 = vadd.f32 %v4283, %v4284
      %4287 = vrot.lane.b32.xlu0 %v4028, 120
      %v4288 = vpop.permute.xlu0 %4287
      %v4290 = vsel %vm4250, %v4285, %v4288
      %v4291 = vld [vmem:[%s3 + $0xf0] sm:$0xff]
      %v4292 = vld [vmem:[%s3 + $0x100] sm:$0xff]
      %v4293 = vld [vmem:[%s3 + $0x110] sm:$0xff]
      %v4294 = vld [vmem:[%s3 + $0x120] sm:$0xff]
      %v4295 = vld [vmem:[%s3 + $0x130] sm:$0xff]
      %v4296 = vld [vmem:[%s3 + $0x140] sm:$0xff]
      %v4297 = vld [vmem:[%s3 + $0x150] sm:$0xff]
      %v4298 = vld [vmem:[%s3 + $0x160] sm:$0xff]
      %v4299 = vld [vmem:[%s3 + $0x170] sm:$0xff]
      %v4300 = vld [vmem:[%s3 + $0x180] sm:$0xff]
      %v4301 = vld [vmem:[%s3 + $0x190] sm:$0xff]
      %v4302 = vld [vmem:[%s3 + $0x1a0] sm:$0xff]
      %v4303 = vld [vmem:[%s3 + $0x1b0] sm:$0xff]
      %v4304 = vld [vmem:[%s3 + $0x1c0] sm:$0xff]
      %v4305 = vld [vmem:[%s3 + $0x1d0] sm:$0xff]
      %v4306 = vld [vmem:[%s3 + $0x1e0] sm:$0xff]
      %v4307 = vld [vmem:[%s3 + $0x1f0] sm:$0xff]
      %v4308 = vld [vmem:[%s3 + $0x200] sm:$0xff]
      %v4309 = vld [vmem:[%s3 + $0x210] sm:$0xff]
      %v4310 = vpack.c.bf16 %v4290, %v4290
      %v4311 = vpack.c.bf16 %v4288, %v4288
      %v4312 = vpack.c.bf16 %v4292, %v4291
      %v4313 = vpack.c.bf16 %v4294, %v4293
      %v4314 = vpack.c.bf16 %v4296, %v4295
      %v4315 = vpack.c.bf16 %v4298, %v4297
      %v4316 = vpack.c.bf16 %v4300, %v4299
      %v4317 = vpack.c.bf16 %v4302, %v4301
      %v4318 = vpack.c.bf16 %v4304, %v4303
      %v4319 = vpack.c.bf16 %v4306, %v4305
      %v4320 = vpack.c.bf16 %v4308, %v4307
      %v4321 = vpack.c.bf16 %v4309, %v4309
      %v4322 = vld [vmem:[%s3 + $0x220] ss:$0 sm:$0xff]
      %vm4323 = vcmask 195584
      %v4325 = vsel %vm4323, %v4311, 0
      %v4328 = vsel %vm1528, %v4321, 0
      %4330 = vmatpush.bf16.msra.mxu0 %v4319
      %4331 = vmatpush.bf16.msra.mxu0 %v4318
      %4332 = vmatpush.bf16.msra.mxu0 %v4317
      %4333 = vmatpush.bf16.msra.mxu0 %v4316
      %4334 = vmatpush.bf16.msra.mxu0 %v4315
      %4335 = vmatpush.bf16.msra.mxu0 %v4314
      %4336 = vmatpush.bf16.msra.mxu0 %v4313
      %4337 = vmatpush.bf16.msra.mxu0 %v4312
      %4338 = vmatmul.bf16.gmra.mxu0 %v4310
      %v4339 = vpop.f32.mrf.mxu0
      %v4340 = vadd.f32 %v4322, %v4339
      %v4341 = vpop.f32.mrf.mxu0
      %4342 = vdwg.mxu0
      %4343 = vmatpush.bf16.msra.mxu0 0
      %4344 = vmatpush.bf16.msra.mxu0 0
      %4345 = vmatpush.bf16.msra.mxu0 0
      %4346 = vmatpush.bf16.msra.mxu0 0
      %4347 = vmatpush.bf16.msra.mxu0 0
      %4348 = vmatpush.bf16.msra.mxu0 0
      %4349 = vmatpush.bf16.msra.mxu0 %v4328
      %4350 = vmatpush.bf16.msra.mxu0 %v4320
      %4351 = vmatmul.bf16.gmra.mxu0 %v4325
      %v4352 = vpop.f32.mrf.mxu0
      %v4353 = vadd.f32 %v4340, %v4352
      %v4354 = vpop.f32.mrf.mxu0
      %4355 = vdwg.mxu0
      %v4356 = vmul.f32 %v4353, %v4353
      %v4357 = vmul.f32 %v4353, %v4356
      %v4358 = vmul.f32 %v4357, 0.044715
      %v4359 = vadd.f32 %v4353, %v4358
      %v4360 = vmul.f32 %v4359, 0.7978846
      %v4361 = vtanh.pop %v4360
      %v4362 = vadd.f32 %v4361, 1.0
      %v4363 = vmul.f32 %v4362, 0.5
      %v4364 = vmul.f32 %v4353, %v4363
      %v4365 = vld [vmem:[%s3 + $0x230] sm:$0xff]
      %v4366 = vld [vmem:[%s3 + $0x238] sm:$0xff]
      %v4367 = vld [vmem:[%s3 + $0x240] sm:$0xff]
      %v4368 = vld [vmem:[%s3 + $0x248] sm:$0xff]
      %v4369 = vld [vmem:[%s3 + $0x250] sm:$0xff]
      %v4370 = vld [vmem:[%s3 + $0x258] sm:$0xff]
      %v4371 = vld [vmem:[%s3 + $0x260] sm:$0xff]
      %v4372 = vld [vmem:[%s3 + $0x268] sm:$0xff]
      %v4373 = vld [vmem:[%s3 + $0x270] sm:$0xff]
      %v4374 = vld [vmem:[%s3 + $0x278] sm:$0xff]
      %v4375 = vld [vmem:[%s3 + $0x280] sm:$0xff]
      %v4376 = vld [vmem:[%s3 + $0x288] sm:$0xff]
      %v4377 = vld [vmem:[%s3 + $0x290] sm:$0xff]
      %v4378 = vld [vmem:[%s3 + $0x298] sm:$0xff]
      %v4379 = vld [vmem:[%s3 + $0x2a0] sm:$0xff]
      %v4380 = vld [vmem:[%s3 + $0x2a8] sm:$0xff]
      %v4381 = vpack.c.bf16 %v4364, %v4364
      %v4382 = vpack.c.bf16 %v4367, %v4365
      %v4383 = vpack.c.bf16 %v4368, %v4366
      %v4384 = vpack.c.bf16 %v4371, %v4369
      %v4385 = vpack.c.bf16 %v4372, %v4370
      %v4386 = vpack.c.bf16 %v4375, %v4373
      %v4387 = vpack.c.bf16 %v4376, %v4374
      %v4388 = vpack.c.bf16 %v4379, %v4377
      %v4389 = vpack.c.bf16 %v4380, %v4378
      %s4390 = scalar_lea.vmem %s3, 688
      %v4391 = vld [vmem:[%s4390] ss:$8 sm:$0x3]
      %v4393 = vperm.slane %v4391, 0
      %v4394 = vperm.slane %v4391, 1
      %v4398 = vsel %vm1865, %v4381, 0
      %4400 = vmatpush.bf16.msra.mxu0 0
      %4401 = vmatpush.bf16.msra.mxu0 0
      %4402 = vmatpush.bf16.msra.mxu0 0
      %4403 = vmatpush.bf16.msra.mxu0 0
      %4404 = vmatpush.bf16.msra.mxu0 %v4388
      %4405 = vmatpush.bf16.msra.mxu0 %v4386
      %4406 = vmatpush.bf16.msra.mxu0 %v4384
      %4407 = vmatpush.bf16.msra.mxu0 %v4382
      %4408 = vmatmul.bf16.gmra.mxu0 %v4398
      %v4409 = vpop.f32.mrf.mxu0
      %v4410 = vadd.f32 %v4393, %v4409
      %v4411 = vpop.f32.mrf.mxu0
      %4412 = vdwg.mxu0
      %4413 = vmatpush.bf16.msra.mxu0 0
      %4414 = vmatpush.bf16.msra.mxu0 0
      %4415 = vmatpush.bf16.msra.mxu0 0
      %4416 = vmatpush.bf16.msra.mxu0 0
      %4417 = vmatpush.bf16.msra.mxu0 %v4389
      %4418 = vmatpush.bf16.msra.mxu0 %v4387
      %4419 = vmatpush.bf16.msra.mxu0 %v4385
      %4420 = vmatpush.bf16.msra.mxu0 %v4383
      %4421 = vmatmul.bf16.gmra.mxu0 %v4398
      %v4422 = vpop.f32.mrf.mxu0
      %v4423 = vadd.f32 %v4394, %v4422
      %v4424 = vpop.f32.mrf.mxu0
      %4425 = vdwg.mxu0
      %v4426 = vld [vmem:[%s2 + $0x550] sm:$0x1f]
      %v4428 = vrot.slane %v4410, 3
      %v4430 = vrot.slane %v4410, 2
      %4431 = vrot.lane.b32.xlu0 %v4430, 96
      %v4432 = vpop.permute.xlu0 %4431
      %v4434 = vrot.slane %v4410, 1
      %4435 = vrot.lane.b32.xlu0 %v4434, 64
      %v4436 = vpop.permute.xlu0 %4435
      %4438 = vrot.lane.b32.xlu0 %v4410, 32
      %v4439 = vpop.permute.xlu0 %4438
      %vm4441 = vcmask 1044480
      %v4442 = vsel %vm4441, %v4426, %v4428
      %vm4443 = vcmask 1045504
      %v4444 = vsel %vm4443, %v4442, %v4432
      %vm4445 = vcmask 1046528
      %v4446 = vsel %vm4445, %v4444, %v4436
      %v4447 = vld [vmem:[%s2 + $0x558] sm:$0x1]
      %v4448 = vperm.slane %v4447, 0
      %v4449 = vadd.f32 %v4122, %v4448
      %v4450 = vadd.f32 %v4123, %v4448
      %v4451 = vadd.f32 %v4124, %v4448
      %v4452 = vadd.f32 %v4125, %v4448
      %v4453 = vadd.f32 %v4126, %v4448
      %v4454 = vadd.f32 %v4127, %v4448
      %v4455 = vadd.f32 %v4128, %v4448
      %v4456 = vadd.f32 %v4129, %v4448
      %v4457 = vadd.f32 %v4449, %v3999
      %v4458 = vadd.f32 %v4450, %v4000
      %v4459 = vadd.f32 %v4451, %v4001
      %v4460 = vadd.f32 %v4452, %v4002
      %v4461 = vadd.f32 %v4453, %v4003
      %v4462 = vadd.f32 %v4454, %v4004
      %v4463 = vadd.f32 %v4455, %v4005
      %v4464 = vadd.f32 %v4456, %v4006
      %v4465 = vld [vmem:[%s2 + $0x560] sm:$0xff]
      %v4466 = vld [vmem:[%s2 + $0x568] sm:$0xff]
      %v4467 = vld [vmem:[%s2 + $0x570] sm:$0xff]
      %v4468 = vld [vmem:[%s2 + $0x578] sm:$0xff]
      %v4469 = vld [vmem:[%s2 + $0x580] sm:$0xff]
      %v4470 = vld [vmem:[%s2 + $0x588] sm:$0xff]
      %v4471 = vld [vmem:[%s2 + $0x590] sm:$0xff]
      %v4472 = vld [vmem:[%s2 + $0x598] sm:$0xff]
      %v4473 = vld [vmem:[%s2 + $0x458] sm:$0xff]
      %v4474 = vld [vmem:[%s2 + $0x460] sm:$0xff]
      %v4475 = vld [vmem:[%s2 + $0x468] sm:$0x1f]
      %v4476 = vld [vmem:[%s2 + $0x470] sm:$0x1f]
      %v4477 = vld [vmem:[%s2 + $0x258] sm:$0xff]
      %v4478 = vld [vmem:[%s2 + $0x260] sm:$0xff]
      %v4479 = vld [vmem:[%s2 + $0x268] sm:$0xff]
      %v4480 = vld [vmem:[%s2 + $0x270] sm:$0xff]
      %v4481 = vpack.c.bf16 %v4439, %v4446
      %v4482 = vpack.c.bf16 %v4478, %v4477
      %v4483 = vpack.c.bf16 %v4480, %v4479
      %v4484 = vperm.slane %v4473, 0
      %v4486 = vsel %vm1980, %v4481, 0
      %4488 = vmatpush.bf16.msra.mxu0 0
      %4489 = vmatpush.bf16.msra.mxu0 0
      %4490 = vmatpush.bf16.msra.mxu0 0
      %4491 = vmatpush.bf16.msra.mxu0 0
      %4492 = vmatpush.bf16.msra.mxu0 0
      %4493 = vmatpush.bf16.msra.mxu0 0
      %4494 = vmatpush.bf16.msra.mxu0 %v4483
      %4495 = vmatpush.bf16.msra.mxu0 %v4482
      %4496 = vmatmul.bf16.gmra.mxu0 %v4486
      %v4497 = vpop.f32.mrf.mxu0
      %v4498 = vadd.f32 %v4484, %v4497
      %v4499 = vpop.f32.mrf.mxu0
      %v4500 = vadd.f32 %v4484, %v4499
      %4501 = vdwg.mxu0
      %v4502 = vld [vmem:[%s2 + $0x278] sm:$0xff]
      %v4503 = vld [vmem:[%s2 + $0x280] sm:$0xff]
      %v4504 = vld [vmem:[%s2 + $0x288] sm:$0xff]
      %v4505 = vld [vmem:[%s2 + $0x290] sm:$0xff]
      %v4506 = vpack.c.bf16 %v4503, %v4502
      %v4507 = vpack.c.bf16 %v4505, %v4504
      %v4508 = vperm.slane %v4473, 1
      %4509 = vmatpush.bf16.msra.mxu0 0
      %4510 = vmatpush.bf16.msra.mxu0 0
      %4511 = vmatpush.bf16.msra.mxu0 0
      %4512 = vmatpush.bf16.msra.mxu0 0
      %4513 = vmatpush.bf16.msra.mxu0 0
      %4514 = vmatpush.bf16.msra.mxu0 0
      %4515 = vmatpush.bf16.msra.mxu0 %v4507
      %4516 = vmatpush.bf16.msra.mxu0 %v4506
      %4517 = vmatmul.bf16.gmra.mxu0 %v4486
      %v4518 = vpop.f32.mrf.mxu0
      %v4519 = vadd.f32 %v4508, %v4518
      %v4520 = vpop.f32.mrf.mxu0
      %v4521 = vadd.f32 %v4508, %v4520
      %4522 = vdwg.mxu0
      %v4523 = vld [vmem:[%s2 + $0x298] sm:$0xff]
      %v4524 = vld [vmem:[%s2 + $0x2a0] sm:$0xff]
      %v4525 = vld [vmem:[%s2 + $0x2a8] sm:$0xff]
      %v4526 = vld [vmem:[%s2 + $0x2b0] sm:$0xff]
      %v4527 = vpack.c.bf16 %v4524, %v4523
      %v4528 = vpack.c.bf16 %v4526, %v4525
      %v4529 = vperm.slane %v4473, 2
      %4530 = vmatpush.bf16.msra.mxu0 0
      %4531 = vmatpush.bf16.msra.mxu0 0
      %4532 = vmatpush.bf16.msra.mxu0 0
      %4533 = vmatpush.bf16.msra.mxu0 0
      %4534 = vmatpush.bf16.msra.mxu0 0
      %4535 = vmatpush.bf16.msra.mxu0 0
      %4536 = vmatpush.bf16.msra.mxu0 %v4528
      %4537 = vmatpush.bf16.msra.mxu0 %v4527
      %4538 = vmatmul.bf16.gmra.mxu0 %v4486
      %v4539 = vpop.f32.mrf.mxu0
      %v4540 = vadd.f32 %v4529, %v4539
      %v4541 = vpop.f32.mrf.mxu0
      %v4542 = vadd.f32 %v4529, %v4541
      %4543 = vdwg.mxu0
      %4544 = vxpose.xlu0.b32.start [1/16] %v4519, 128
      %4545 = vxpose.xlu0.b32.cont [2/16] %v4521, 128
      %4546 = vxpose.xlu0.b32.cont [3/16] 0.0, 128
      %4547 = vxpose.xlu0.b32.cont [4/16] 0.0, 128
      %4548 = vxpose.xlu0.b32.cont [5/16] 0.0, 128
      %4549 = vxpose.xlu0.b32.cont [6/16] 0.0, 128
      %4550 = vxpose.xlu0.b32.cont [7/16] 0.0, 128
      %4551 = vxpose.xlu0.b32.cont [8/16] 0.0, 128
      %4552 = vxpose.xlu0.b32.cont [9/16] 0.0, 128
      %4553 = vxpose.xlu0.b32.cont [10/16] 0.0, 128
      %4554 = vxpose.xlu0.b32.cont [11/16] 0.0, 128
      %4555 = vxpose.xlu0.b32.cont [12/16] 0.0, 128
      %4556 = vxpose.xlu0.b32.cont [13/16] 0.0, 128
      %4557 = vxpose.xlu0.b32.cont [14/16] 0.0, 128
      %4558 = vxpose.xlu0.b32.cont [15/16] 0.0, 128
      %4559 = vxpose.xlu0.b32.end [16/16] 0.0, 128
      %v4560 = vpop.trf.xlu0
      %v4561 = vpop.trf.xlu0
      %v4562 = vpop.trf.xlu0
      %v4563 = vpop.trf.xlu0
      %v4564 = vpop.trf.xlu0
      %v4565 = vpop.trf.xlu0
      %v4566 = vpop.trf.xlu0
      %v4567 = vpop.trf.xlu0
      %v4568 = vpop.trf.xlu0
      %v4569 = vpop.trf.xlu0
      %v4570 = vpop.trf.xlu0
      %v4571 = vpop.trf.xlu0
      %v4572 = vpop.trf.xlu0
      %v4573 = vpop.trf.xlu0
      %v4574 = vpop.trf.xlu0
      %v4575 = vpop.trf.xlu0
      %v4576 = vmul.f32 %v4560, %v2619
      %v4577 = vmul.f32 %v4561, %v2624
      %v4578 = vmul.f32 %v4562, %v2629
      %v4579 = vmul.f32 %v4563, %v2634
      %v4580 = vmul.f32 %v4560, %v2642
      %v4581 = vmul.f32 %v4561, %v2646
      %v4582 = vmul.f32 %v4562, %v2650
      %v4583 = vmul.f32 %v4563, %v2654
      %4588 = vrot.lane.b32.xlu0 %v4580, 9
      %v4589 = vpop.permute.xlu0 %4588
      %4590 = vrot.lane.b32.xlu0 %v4581, 9
      %v4591 = vpop.permute.xlu0 %4590
      %4592 = vrot.lane.b32.xlu0 %v4582, 9
      %v4593 = vpop.permute.xlu0 %4592
      %4594 = vrot.lane.b32.xlu0 %v4583, 9
      %v4595 = vpop.permute.xlu0 %4594
      %vm4600 = vcmask 72704
      %v4601 = vsel %vm4600, %v4576, %v4589
      %v4602 = vsel %vm4600, %v4577, %v4591
      %v4603 = vsel %vm4600, %v4578, %v4593
      %v4604 = vsel %vm4600, %v4579, %v4595
      %v4605 = vmul.f32 %v4540, %v2680
      %v4606 = vmul.f32 %v4542, %v2680
      %v4607 = vmul.f32 %v4540, %v2693
      %v4608 = vmul.f32 %v4542, %v2693
      %v4611 = vrot.slane %v4607, 7
      %v4612 = vrot.slane %v4608, 7
      %v4613 = vsel %vm302, %v4611, %v4612
      %v4616 = vsel %vm302, %v4606, %v4611
      %v4617 = vpack.c.bf16 %v4500, %v4498
      %v4618 = vpack.c.bf16 %v4602, %v4601
      %v4619 = vpack.c.bf16 %v4604, %v4603
      %v4621 = vsel %vm1980, %v4617, 0
      %4623 = vmatpush.bf16.msra.mxu0 0
      %4624 = vmatpush.bf16.msra.mxu0 0
      %4625 = vmatpush.bf16.msra.mxu0 0
      %4626 = vmatpush.bf16.msra.mxu0 0
      %4627 = vmatpush.bf16.msra.mxu0 0
      %4628 = vmatpush.bf16.msra.mxu0 0
      %4629 = vmatpush.bf16.msra.mxu0 %v4619
      %4630 = vmatpush.bf16.msra.mxu0 %v4618
      %4631 = vmatmul.bf16.gmra.mxu0 %v4621
      %v4632 = vpop.f32.mrf.mxu0
      %v4633 = vadd.f32 0.0, %v4632
      %v4634 = vpop.f32.mrf.mxu0
      %v4635 = vadd.f32 0.0, %v4634
      %4636 = vdwg.mxu0
      %v4637 = vmul.f32 %v4633, 0.25
      %v4638 = vmul.f32 %v4635, 0.25
      %v4639 = vsel %vm4600, %v4637, -inf
      %4640 = vmax.xlane.f32.xlu0 %v4639
      %v4641 = vpop.xlane.xlu0 %4640
      %vm4642 = vcmask 65536
      %v4643 = vsel %vm4642, %v4638, -inf
      %4644 = vmax.xlane.f32.xlu0 %v4643
      %v4645 = vpop.xlane.xlu0 %4644
      %v4646 = vsub.f32 %v4637, %v4641
      %v4647 = vsub.f32 %v4638, %v4645
      %v4648 = vmul.f32 %v4646, 1.442695
      %v4649 = vpow.pop %v4648
      %v4650 = vmul.f32 %v4647, 1.442695
      %v4651 = vpow.pop %v4650
      %v4652 = vsel %vm4600, %v4649, 0.0
      %4653 = vadd.xlane.f32.xlu0 %v4652
      %v4654 = vpop.xlane.xlu0 %4653
      %v4655 = vsel %vm4642, %v4651, 0.0
      %4656 = vadd.xlane.f32.xlu0 %v4655
      %v4657 = vpop.xlane.xlu0 %4656
      %v4658 = vrcp.pop %v4654
      %v4659 = vrcp.pop %v4657
      %v4660 = vmul.f32 %v4649, %v4658
      %v4661 = vmul.f32 %v4651, %v4659
      %vm4662 = vcmask 146504
      %v4663 = vsel %vm4662, %v4637, -inf
      %4664 = vmax.xlane.f32.xlu0 %v4663
      %v4665 = vpop.xlane.xlu0 %4664
      %vm4666 = vcmask 139336
      %v4667 = vsel %vm4666, %v4638, -inf
      %4668 = vmax.xlane.f32.xlu0 %v4667
      %v4669 = vpop.xlane.xlu0 %4668
      %v4670 = vsub.f32 %v4637, %v4665
      %v4671 = vsub.f32 %v4638, %v4669
      %v4672 = vmul.f32 %v4670, 1.442695
      %v4673 = vpow.pop %v4672
      %v4674 = vmul.f32 %v4671, 1.442695
      %v4675 = vpow.pop %v4674
      %4678 = vrot.lane.b32.xlu0 %v4673, 119
      %v4679 = vpop.permute.xlu0 %4678
      %4680 = vrot.lane.b32.xlu0 %v4675, 119
      %v4681 = vpop.permute.xlu0 %4680
      %v4684 = vsel %vm4600, %v4679, 0.0
      %4685 = vadd.xlane.f32.xlu0 %v4684
      %v4686 = vpop.xlane.xlu0 %4685
      %v4687 = vsel %vm4642, %v4681, 0.0
      %4688 = vadd.xlane.f32.xlu0 %v4687
      %v4689 = vpop.xlane.xlu0 %4688
      %v4690 = vrcp.pop %v4686
      %v4691 = vrcp.pop %v4689
      %v4692 = vmul.f32 %v4673, %v4690
      %v4693 = vmul.f32 %v4675, %v4691
      %v4694 = vsel %vm4600, %v4660, %v4692
      %v4695 = vsel %vm4600, %v4661, %v4693
      %v4696 = vpack.c.bf16 %v4695, %v4694
      %v4697 = vpack.c.bf16 %v4616, %v4605
      %v4698 = vpack.c.bf16 %v4613, %v4613
      %vm4699 = vcmask 146432
      %v4701 = vsel %vm4699, %v4696, 0
      %v4704 = vsel %vm302, %v4698, 0
      %4706 = vmatpush.bf16.msra.mxu0 0
      %4707 = vmatpush.bf16.msra.mxu0 0
      %4708 = vmatpush.bf16.msra.mxu0 0
      %4709 = vmatpush.bf16.msra.mxu0 0
      %4710 = vmatpush.bf16.msra.mxu0 0
      %4711 = vmatpush.bf16.msra.mxu0 0
      %4712 = vmatpush.bf16.msra.mxu0 %v4704
      %4713 = vmatpush.bf16.msra.mxu0 %v4697
      %4714 = vmatmul.bf16.gmra.mxu0 %v4701
      %v4715 = vpop.f32.mrf.mxu0
      %v4716 = vadd.f32 0.0, %v4715
      %v4717 = vpop.f32.mrf.mxu0
      %v4718 = vadd.f32 0.0, %v4717
      %4719 = vdwg.mxu0
      %v4720 = vld [vmem:[%s2 + $0x2b8] sm:$0xff]
      %v4721 = vld [vmem:[%s2 + $0x2c0] sm:$0xff]
      %v4722 = vld [vmem:[%s2 + $0x2c8] sm:$0xff]
      %v4723 = vld [vmem:[%s2 + $0x2d0] sm:$0xff]
      %v4724 = vpack.c.bf16 %v4718, %v4716
      %v4725 = vpack.c.bf16 %v4721, %v4720
      %v4726 = vpack.c.bf16 %v4723, %v4722
      %v4727 = vperm.slane %v4473, 3
      %v4729 = vsel %vm1980, %v4724, 0
      %4731 = vmatpush.bf16.msra.mxu0 0
      %4732 = vmatpush.bf16.msra.mxu0 0
      %4733 = vmatpush.bf16.msra.mxu0 0
      %4734 = vmatpush.bf16.msra.mxu0 0
      %4735 = vmatpush.bf16.msra.mxu0 0
      %4736 = vmatpush.bf16.msra.mxu0 0
      %4737 = vmatpush.bf16.msra.mxu0 %v4726
      %4738 = vmatpush.bf16.msra.mxu0 %v4725
      %4739 = vmatmul.bf16.gmra.mxu0 %v4729
      %v4740 = vpop.f32.mrf.mxu0
      %v4741 = vadd.f32 %v4727, %v4740
      %v4742 = vpop.f32.mrf.mxu0
      %v4743 = vadd.f32 %v4727, %v4742
      %4744 = vdwg.mxu0
      %v4745 = vsel %vm1980, %v4741, 0.0
      %4746 = vadd.xlane.f32.xlu0 %v4745
      %v4747 = vpop.xlane.xlu0 %4746
      %vm4748 = vcmask 253952
      %v4749 = vsel %vm4748, %v4743, 0.0
      %4750 = vadd.xlane.f32.xlu0 %v4749
      %v4751 = vpop.xlane.xlu0 %4750
      %v4752 = vmul.f32 %v4747, %v2329
      %v4753 = vmul.f32 %v4751, %v2329
      %v4754 = vsub.f32 %v4741, %v4752
      %v4755 = vsub.f32 %v4743, %v4753
      %v4756 = vmul.f32 %v4754, %v4754
      %v4757 = vmul.f32 %v4755, %v4755
      %v4758 = vsel %vm1980, %v4756, 0.0
      %4759 = vadd.xlane.f32.xlu0 %v4758
      %v4760 = vpop.xlane.xlu0 %4759
      %v4761 = vsel %vm4748, %v4757, 0.0
      %4762 = vadd.xlane.f32.xlu0 %v4761
      %v4763 = vpop.xlane.xlu0 %4762
      %v4764 = vmul.f32 %v4760, %v2329
      %v4765 = vmul.f32 %v4763, %v2329
      %v4766 = vadd.f32 %v4764, 1e-05
      %v4767 = vadd.f32 %v4765, 1e-05
      %v4768 = vrsqrt.pop %v4766
      %v4769 = vmul.f32 %v4768, %v4766
      %v4770 = vmul.f32 %v4769, %v4768
      %v4771 = vmul.f32 0.5, %v4770
      %v4772 = vsub.f32 1.5, %v4771
      %v4773 = vmul.f32 %v4768, %v4772
      %vm4774 = vweird.f32 %v4766
      %vm4775 = vweird.f32 %v4768
      %vm4776 = vmor %vm4774, %vm4775
      %v4777 = vsel %vm4776, %v4768, %v4773
      %v4778 = vrsqrt.pop %v4767
      %v4779 = vmul.f32 %v4778, %v4767
      %v4780 = vmul.f32 %v4779, %v4778
      %v4781 = vmul.f32 0.5, %v4780
      %v4782 = vsub.f32 1.5, %v4781
      %v4783 = vmul.f32 %v4778, %v4782
      %vm4784 = vweird.f32 %v4767
      %vm4785 = vweird.f32 %v4778
      %vm4786 = vmor %vm4784, %vm4785
      %v4787 = vsel %vm4786, %v4778, %v4783
      %v4788 = vmul.f32 %v4754, %v4777
      %v4789 = vmul.f32 %v4755, %v4787
      %v4790 = vperm.slane %v4475, 0
      %v4791 = vmul.f32 %v4788, %v4790
      %v4792 = vmul.f32 %v4789, %v4790
      %v4793 = vperm.slane %v4476, 0
      %v4794 = vadd.f32 %v4791, %v4793
      %v4795 = vadd.f32 %v4792, %v4793
      %v4796 = vadd.f32 %v4794, %v4446
      %v4797 = vadd.f32 %v4795, %v4439
      %v4798 = vadd.f32 %v4457, %v4465
      %v4799 = vadd.f32 %v4458, %v4466
      %v4800 = vadd.f32 %v4459, %v4467
      %v4801 = vadd.f32 %v4460, %v4468
      %v4802 = vadd.f32 %v4461, %v4469
      %v4803 = vadd.f32 %v4462, %v4470
      %v4804 = vadd.f32 %v4463, %v4471
      %v4805 = vadd.f32 %v4464, %v4472
      %v4806 = vld [vmem:[%s2 + $0x2d8] sm:$0xff]
      %v4807 = vld [vmem:[%s2 + $0x2e0] sm:$0xff]
      %v4808 = vld [vmem:[%s2 + $0x2e8] sm:$0xff]
      %v4809 = vld [vmem:[%s2 + $0x2f0] sm:$0xff]
      %v4810 = vpack.c.bf16 %v4797, %v4796
      %v4811 = vpack.c.bf16 %v4807, %v4806
      %v4812 = vpack.c.bf16 %v4809, %v4808
      %v4813 = vperm.slane %v4473, 4
      %v4815 = vsel %vm1980, %v4810, 0
      %4817 = vmatpush.bf16.msra.mxu0 0
      %4818 = vmatpush.bf16.msra.mxu0 0
      %4819 = vmatpush.bf16.msra.mxu0 0
      %4820 = vmatpush.bf16.msra.mxu0 0
      %4821 = vmatpush.bf16.msra.mxu0 0
      %4822 = vmatpush.bf16.msra.mxu0 0
      %4823 = vmatpush.bf16.msra.mxu0 %v4812
      %4824 = vmatpush.bf16.msra.mxu0 %v4811
      %4825 = vmatmul.bf16.gmra.mxu0 %v4815
      %v4826 = vpop.f32.mrf.mxu0
      %v4827 = vadd.f32 %v4813, %v4826
      %v4828 = vpop.f32.mrf.mxu0
      %v4829 = vadd.f32 %v4813, %v4828
      %4830 = vdwg.mxu0
      %v4831 = vld [vmem:[%s2 + $0x2f8] sm:$0xff]
      %v4832 = vld [vmem:[%s2 + $0x300] sm:$0xff]
      %v4833 = vld [vmem:[%s2 + $0x308] sm:$0xff]
      %v4834 = vld [vmem:[%s2 + $0x310] sm:$0xff]
      %v4835 = vpack.c.bf16 %v4799, %v4798
      %v4836 = vpack.c.bf16 %v4801, %v4800
      %v4837 = vpack.c.bf16 %v4803, %v4802
      %v4838 = vpack.c.bf16 %v4805, %v4804
      %v4839 = vpack.c.bf16 %v4832, %v4831
      %v4840 = vpack.c.bf16 %v4834, %v4833
      %v4841 = vperm.slane %v4473, 5
      %v4843 = vsel %vm1980, %v4835, 0
      %v4846 = vsel %vm1980, %v4836, 0
      %v4849 = vsel %vm1980, %v4837, 0
      %v4852 = vsel %vm1980, %v4838, 0
      %4854 = vmatpush.bf16.msra.mxu0 0
      %4855 = vmatpush.bf16.msra.mxu0 0
      %4856 = vmatpush.bf16.msra.mxu0 0
      %4857 = vmatpush.bf16.msra.mxu0 0
      %4858 = vmatpush.bf16.msra.mxu0 0
      %4859 = vmatpush.bf16.msra.mxu0 0
      %4860 = vmatpush.bf16.msra.mxu0 %v4840
      %4861 = vmatpush.bf16.msra.mxu0 %v4839
      %4862 = vmatmul.bf16.gmra.mxu0 %v4843
      %v4863 = vpop.f32.mrf.mxu0
      %v4864 = vadd.f32 %v4841, %v4863
      %v4865 = vpop.f32.mrf.mxu0
      %v4866 = vadd.f32 %v4841, %v4865
      %4867 = vmatmul.bf16.gmra.mxu0 %v4846
      %v4868 = vpop.f32.mrf.mxu0
      %v4869 = vadd.f32 %v4841, %v4868
      %v4870 = vpop.f32.mrf.mxu0
      %v4871 = vadd.f32 %v4841, %v4870
      %4872 = vmatmul.bf16.gmra.mxu0 %v4849
      %v4873 = vpop.f32.mrf.mxu0
      %v4874 = vadd.f32 %v4841, %v4873
      %v4875 = vpop.f32.mrf.mxu0
      %v4876 = vadd.f32 %v4841, %v4875
      %4877 = vmatmul.bf16.gmra.mxu0 %v4852
      %v4878 = vpop.f32.mrf.mxu0
      %v4879 = vadd.f32 %v4841, %v4878
      %v4880 = vpop.f32.mrf.mxu0
      %v4881 = vadd.f32 %v4841, %v4880
      %4882 = vdwg.mxu0
      %v4883 = vld [vmem:[%s2 + $0x318] sm:$0xff]
      %v4884 = vld [vmem:[%s2 + $0x320] sm:$0xff]
      %v4885 = vld [vmem:[%s2 + $0x328] sm:$0xff]
      %v4886 = vld [vmem:[%s2 + $0x330] sm:$0xff]
      %v4887 = vpack.c.bf16 %v4458, %v4457
      %v4888 = vpack.c.bf16 %v4460, %v4459
      %v4889 = vpack.c.bf16 %v4462, %v4461
      %v4890 = vpack.c.bf16 %v4464, %v4463
      %v4891 = vpack.c.bf16 %v4884, %v4883
      %v4892 = vpack.c.bf16 %v4886, %v4885
      %v4893 = vperm.slane %v4473, 6
      %v4895 = vsel %vm1980, %v4887, 0
      %v4898 = vsel %vm1980, %v4888, 0
      %v4901 = vsel %vm1980, %v4889, 0
      %v4904 = vsel %vm1980, %v4890, 0
      %4906 = vmatpush.bf16.msra.mxu0 0
      %4907 = vmatpush.bf16.msra.mxu0 0
      %4908 = vmatpush.bf16.msra.mxu0 0
      %4909 = vmatpush.bf16.msra.mxu0 0
      %4910 = vmatpush.bf16.msra.mxu0 0
      %4911 = vmatpush.bf16.msra.mxu0 0
      %4912 = vmatpush.bf16.msra.mxu0 %v4892
      %4913 = vmatpush.bf16.msra.mxu0 %v4891
      %4914 = vmatmul.bf16.gmra.mxu0 %v4895
      %v4915 = vpop.f32.mrf.mxu0
      %v4916 = vadd.f32 %v4893, %v4915
      %v4917 = vpop.f32.mrf.mxu0
      %v4918 = vadd.f32 %v4893, %v4917
      %4919 = vmatmul.bf16.gmra.mxu0 %v4898
      %v4920 = vpop.f32.mrf.mxu0
      %v4921 = vadd.f32 %v4893, %v4920
      %v4922 = vpop.f32.mrf.mxu0
      %v4923 = vadd.f32 %v4893, %v4922
      %4924 = vmatmul.bf16.gmra.mxu0 %v4901
      %v4925 = vpop.f32.mrf.mxu0
      %v4926 = vadd.f32 %v4893, %v4925
      %v4927 = vpop.f32.mrf.mxu0
      %v4928 = vadd.f32 %v4893, %v4927
      %4929 = vmatmul.bf16.gmra.mxu0 %v4904
      %v4930 = vpop.f32.mrf.mxu0
      %v4931 = vadd.f32 %v4893, %v4930
      %v4932 = vpop.f32.mrf.mxu0
      %v4933 = vadd.f32 %v4893, %v4932
      %4934 = vdwg.mxu0
      %4935 = vxpose.xlu0.b32.start [1/16] %v4864, 128
      %4936 = vxpose.xlu0.b32.cont [2/16] %v4866, 128
      %4937 = vxpose.xlu0.b32.cont [3/16] %v4869, 128
      %4938 = vxpose.xlu0.b32.cont [4/16] %v4871, 128
      %4939 = vxpose.xlu0.b32.cont [5/16] %v4874, 128
      %4940 = vxpose.xlu0.b32.cont [6/16] %v4876, 128
      %4941 = vxpose.xlu0.b32.cont [7/16] %v4879, 128
      %4942 = vxpose.xlu0.b32.cont [8/16] %v4881, 128
      %4943 = vxpose.xlu0.b32.cont [9/16] 0.0, 128
      %4944 = vxpose.xlu0.b32.cont [10/16] 0.0, 128
      %4945 = vxpose.xlu0.b32.cont [11/16] 0.0, 128
      %4946 = vxpose.xlu0.b32.cont [12/16] 0.0, 128
      %4947 = vxpose.xlu0.b32.cont [13/16] 0.0, 128
      %4948 = vxpose.xlu0.b32.cont [14/16] 0.0, 128
      %4949 = vxpose.xlu0.b32.cont [15/16] 0.0, 128
      %4950 = vxpose.xlu0.b32.end [16/16] 0.0, 128
      %v4951 = vpop.trf.xlu0
      %v4952 = vpop.trf.xlu0
      %v4953 = vpop.trf.xlu0
      %v4954 = vpop.trf.xlu0
      %v4955 = vpop.trf.xlu0
      %v4956 = vpop.trf.xlu0
      %v4957 = vpop.trf.xlu0
      %v4958 = vpop.trf.xlu0
      %v4959 = vpop.trf.xlu0
      %v4960 = vpop.trf.xlu0
      %v4961 = vpop.trf.xlu0
      %v4962 = vpop.trf.xlu0
      %v4963 = vpop.trf.xlu0
      %v4964 = vpop.trf.xlu0
      %v4965 = vpop.trf.xlu0
      %v4966 = vpop.trf.xlu0
      %v4967 = vmul.f32 %v4951, %v2619
      %v4968 = vmul.f32 %v4952, %v2624
      %v4969 = vmul.f32 %v4953, %v2629
      %v4970 = vmul.f32 %v4954, %v2634
      %v4971 = vmul.f32 %v4951, %v2642
      %v4972 = vmul.f32 %v4952, %v2646
      %v4973 = vmul.f32 %v4953, %v2650
      %v4974 = vmul.f32 %v4954, %v2654
      %4979 = vrot.lane.b32.xlu0 %v4971, 64
      %v4980 = vpop.permute.xlu0 %4979
      %4981 = vrot.lane.b32.xlu0 %v4972, 64
      %v4982 = vpop.permute.xlu0 %4981
      %4983 = vrot.lane.b32.xlu0 %v4973, 64
      %v4984 = vpop.permute.xlu0 %4983
      %4985 = vrot.lane.b32.xlu0 %v4974, 64
      %v4986 = vpop.permute.xlu0 %4985
      %v4991 = vsel %vm1865, %v4967, %v4980
      %v4992 = vsel %vm1865, %v4968, %v4982
      %v4993 = vsel %vm1865, %v4969, %v4984
      %v4994 = vsel %vm1865, %v4970, %v4986
      %v4995 = vmul.f32 %v4916, %v2680
      %v4996 = vmul.f32 %v4918, %v2680
      %v4997 = vmul.f32 %v4921, %v2680
      %v4998 = vmul.f32 %v4923, %v2680
      %v4999 = vmul.f32 %v4926, %v2680
      %v5000 = vmul.f32 %v4928, %v2680
      %v5001 = vmul.f32 %v4931, %v2680
      %v5002 = vmul.f32 %v4933, %v2680
      %v5003 = vmul.f32 %v4916, %v2693
      %v5004 = vmul.f32 %v4918, %v2693
      %v5005 = vmul.f32 %v4921, %v2693
      %v5006 = vmul.f32 %v4923, %v2693
      %v5007 = vmul.f32 %v4926, %v2693
      %v5008 = vmul.f32 %v4928, %v2693
      %v5009 = vmul.f32 %v4931, %v2693
      %v5010 = vmul.f32 %v4933, %v2693
      %v5011 = vpack.c.bf16 %v4829, %v4827
      %v5012 = vpack.c.bf16 %v4992, %v4991
      %v5013 = vpack.c.bf16 %v4994, %v4993
      %v5015 = vsel %vm1980, %v5011, 0
      %5017 = vmatpush.bf16.msra.mxu0 0
      %5018 = vmatpush.bf16.msra.mxu0 0
      %5019 = vmatpush.bf16.msra.mxu0 0
      %5020 = vmatpush.bf16.msra.mxu0 0
      %5021 = vmatpush.bf16.msra.mxu0 0
      %5022 = vmatpush.bf16.msra.mxu0 0
      %5023 = vmatpush.bf16.msra.mxu0 %v5013
      %5024 = vmatpush.bf16.msra.mxu0 %v5012
      %5025 = vmatmul.bf16.gmra.mxu0 %v5015
      %v5026 = vpop.f32.mrf.mxu0
      %v5027 = vadd.f32 0.0, %v5026
      %v5028 = vpop.f32.mrf.mxu0
      %v5029 = vadd.f32 0.0, %v5028
      %5030 = vdwg.mxu0
      %v5031 = vmul.f32 %v5027, 0.25
      %v5032 = vmul.f32 %v5029, 0.25
      %v5033 = vsel %vm1865, %v5031, -inf
      %5034 = vmax.xlane.f32.xlu0 %v5033
      %v5035 = vpop.xlane.xlu0 %5034
      %vm5036 = vcmask 516096
      %v5037 = vsel %vm5036, %v5032, -inf
      %5038 = vmax.xlane.f32.xlu0 %v5037
      %v5039 = vpop.xlane.xlu0 %5038
      %v5040 = vsub.f32 %v5031, %v5035
      %v5041 = vsub.f32 %v5032, %v5039
      %v5042 = vmul.f32 %v5040, 1.442695
      %v5043 = vpow.pop %v5042
      %v5044 = vmul.f32 %v5041, 1.442695
      %v5045 = vpow.pop %v5044
      %v5046 = vsel %vm1865, %v5043, 0.0
      %5047 = vadd.xlane.f32.xlu0 %v5046
      %v5048 = vpop.xlane.xlu0 %5047
      %v5049 = vsel %vm5036, %v5045, 0.0
      %5050 = vadd.xlane.f32.xlu0 %v5049
      %v5051 = vpop.xlane.xlu0 %5050
      %v5052 = vrcp.pop %v5048
      %v5053 = vrcp.pop %v5051
      %v5054 = vmul.f32 %v5043, %v5052
      %v5055 = vmul.f32 %v5045, %v5053
      %v5056 = vsel %vm2849, %v5031, -inf
      %5057 = vmax.xlane.f32.xlu0 %v5056
      %v5058 = vpop.xlane.xlu0 %5057
      %vm5059 = vcmask 1040896
      %v5060 = vsel %vm5059, %v5032, -inf
      %5061 = vmax.xlane.f32.xlu0 %v5060
      %v5062 = vpop.xlane.xlu0 %5061
      %v5063 = vsub.f32 %v5031, %v5058
      %v5064 = vsub.f32 %v5032, %v5062
      %v5065 = vmul.f32 %v5063, 1.442695
      %v5066 = vpow.pop %v5065
      %v5067 = vmul.f32 %v5064, 1.442695
      %v5068 = vpow.pop %v5067
      %5071 = vrot.lane.b32.xlu0 %v5066, 64
      %v5072 = vpop.permute.xlu0 %5071
      %5073 = vrot.lane.b32.xlu0 %v5068, 64
      %v5074 = vpop.permute.xlu0 %5073
      %v5077 = vsel %vm1865, %v5072, 0.0
      %5078 = vadd.xlane.f32.xlu0 %v5077
      %v5079 = vpop.xlane.xlu0 %5078
      %v5080 = vsel %vm5036, %v5074, 0.0
      %5081 = vadd.xlane.f32.xlu0 %v5080
      %v5082 = vpop.xlane.xlu0 %5081
      %v5083 = vrcp.pop %v5079
      %v5084 = vrcp.pop %v5082
      %v5085 = vmul.f32 %v5066, %v5083
      %v5086 = vmul.f32 %v5068, %v5084
      %v5087 = vsel %vm1865, %v5054, %v5085
      %v5088 = vsel %vm1865, %v5055, %v5086
      %v5089 = vpack.c.bf16 %v5088, %v5087
      %v5090 = vpack.c.bf16 %v4996, %v4995
      %v5091 = vpack.c.bf16 %v4998, %v4997
      %v5092 = vpack.c.bf16 %v5000, %v4999
      %v5093 = vpack.c.bf16 %v5002, %v5001
      %v5094 = vpack.c.bf16 %v5004, %v5003
      %v5095 = vpack.c.bf16 %v5006, %v5005
      %v5096 = vpack.c.bf16 %v5008, %v5007
      %v5097 = vpack.c.bf16 %v5010, %v5009
      %5098 = vmatpush.bf16.msra.mxu0 %v5097
      %5099 = vmatpush.bf16.msra.mxu0 %v5096
      %5100 = vmatpush.bf16.msra.mxu0 %v5095
      %5101 = vmatpush.bf16.msra.mxu0 %v5094
      %5102 = vmatpush.bf16.msra.mxu0 %v5093
      %5103 = vmatpush.bf16.msra.mxu0 %v5092
      %5104 = vmatpush.bf16.msra.mxu0 %v5091
      %5105 = vmatpush.bf16.msra.mxu0 %v5090
      %5106 = vmatmul.bf16.gmra.mxu0 %v5089
      %v5107 = vpop.f32.mrf.mxu0
      %v5108 = vadd.f32 0.0, %v5107
      %v5109 = vpop.f32.mrf.mxu0
      %v5110 = vadd.f32 0.0, %v5109
      %5111 = vdwg.mxu0
      %v5112 = vld [vmem:[%s2 + $0x338] sm:$0xff]
      %v5113 = vld [vmem:[%s2 + $0x340] sm:$0xff]
      %v5114 = vld [vmem:[%s2 + $0x348] sm:$0xff]
      %v5115 = vld [vmem:[%s2 + $0x350] sm:$0xff]
      %v5116 = vpack.c.bf16 %v5110, %v5108
      %v5117 = vpack.c.bf16 %v5113, %v5112
      %v5118 = vpack.c.bf16 %v5115, %v5114
      %v5119 = vperm.slane %v4473, 7
      %v5121 = vsel %vm1980, %v5116, 0
      %5123 = vmatpush.bf16.msra.mxu0 0
      %5124 = vmatpush.bf16.msra.mxu0 0
      %5125 = vmatpush.bf16.msra.mxu0 0
      %5126 = vmatpush.bf16.msra.mxu0 0
      %5127 = vmatpush.bf16.msra.mxu0 0
      %5128 = vmatpush.bf16.msra.mxu0 0
      %5129 = vmatpush.bf16.msra.mxu0 %v5118
      %5130 = vmatpush.bf16.msra.mxu0 %v5117
      %5131 = vmatmul.bf16.gmra.mxu0 %v5121
      %v5132 = vpop.f32.mrf.mxu0
      %v5133 = vadd.f32 %v5119, %v5132
      %v5134 = vpop.f32.mrf.mxu0
      %v5135 = vadd.f32 %v5119, %v5134
      %5136 = vdwg.mxu0
      %v5137 = vadd.f32 %v4794, %v5133
      %v5138 = vadd.f32 %v4795, %v5135
      %v5139 = vsel %vm1980, %v5137, 0.0
      %5140 = vadd.xlane.f32.xlu0 %v5139
      %v5141 = vpop.xlane.xlu0 %5140
      %v5142 = vsel %vm4748, %v5138, 0.0
      %5143 = vadd.xlane.f32.xlu0 %v5142
      %v5144 = vpop.xlane.xlu0 %5143
      %v5145 = vmul.f32 %v5141, %v2329
      %v5146 = vmul.f32 %v5144, %v2329
      %v5147 = vsub.f32 %v5137, %v5145
      %v5148 = vsub.f32 %v5138, %v5146
      %v5149 = vmul.f32 %v5147, %v5147
      %v5150 = vmul.f32 %v5148, %v5148
      %v5151 = vsel %vm1980, %v5149, 0.0
      %5152 = vadd.xlane.f32.xlu0 %v5151
      %v5153 = vpop.xlane.xlu0 %5152
      %v5154 = vsel %vm4748, %v5150, 0.0
      %5155 = vadd.xlane.f32.xlu0 %v5154
      %v5156 = vpop.xlane.xlu0 %5155
      %v5157 = vmul.f32 %v5153, %v2329
      %v5158 = vmul.f32 %v5156, %v2329
      %v5159 = vadd.f32 %v5157, 1e-05
      %v5160 = vadd.f32 %v5158, 1e-05
      %v5161 = vrsqrt.pop %v5159
      %v5162 = vmul.f32 %v5161, %v5159
      %v5163 = vmul.f32 %v5162, %v5161
      %v5164 = vmul.f32 0.5, %v5163
      %v5165 = vsub.f32 1.5, %v5164
      %v5166 = vmul.f32 %v5161, %v5165
      %vm5167 = vweird.f32 %v5159
      %vm5168 = vweird.f32 %v5161
      %vm5169 = vmor %vm5167, %vm5168
      %v5170 = vsel %vm5169, %v5161, %v5166
      %v5171 = vrsqrt.pop %v5160
      %v5172 = vmul.f32 %v5171, %v5160
      %v5173 = vmul.f32 %v5172, %v5171
      %v5174 = vmul.f32 0.5, %v5173
      %v5175 = vsub.f32 1.5, %v5174
      %v5176 = vmul.f32 %v5171, %v5175
      %vm5177 = vweird.f32 %v5160
      %vm5178 = vweird.f32 %v5171
      %vm5179 = vmor %vm5177, %vm5178
      %v5180 = vsel %vm5179, %v5171, %v5176
      %v5181 = vmul.f32 %v5147, %v5170
      %v5182 = vmul.f32 %v5148, %v5180
      %v5183 = vperm.slane %v4475, 1
      %v5184 = vmul.f32 %v5181, %v5183
      %v5185 = vmul.f32 %v5182, %v5183
      %v5186 = vperm.slane %v4476, 1
      %v5187 = vadd.f32 %v5184, %v5186
      %v5188 = vadd.f32 %v5185, %v5186
      %v5189 = vld [vmem:[%s3 + $0xa0] sm:$0xff]
      %v5190 = vld [vmem:[%s3 + $0xb0] sm:$0xff]
      %v5191 = vld [vmem:[%s3 + $0xc0] sm:$0xff]
      %v5192 = vld [vmem:[%s3 + $0xd0] sm:$0xff]
      %v5193 = vpack.c.bf16 %v5188, %v5187
      %v5194 = vpack.c.bf16 %v5190, %v5189
      %v5195 = vpack.c.bf16 %v5192, %v5191
      %v5196 = vld [vmem:[%s3 + $0xe0] ss:$0 sm:$0xff]
      %v5198 = vsel %vm1980, %v5193, 0
      %5200 = vmatpush.bf16.msra.mxu0 0
      %5201 = vmatpush.bf16.msra.mxu0 0
      %5202 = vmatpush.bf16.msra.mxu0 0
      %5203 = vmatpush.bf16.msra.mxu0 0
      %5204 = vmatpush.bf16.msra.mxu0 0
      %5205 = vmatpush.bf16.msra.mxu0 0
      %5206 = vmatpush.bf16.msra.mxu0 %v5195
      %5207 = vmatpush.bf16.msra.mxu0 %v5194
      %5208 = vmatmul.bf16.gmra.mxu0 %v5198
      %v5209 = vpop.f32.mrf.mxu0
      %v5210 = vadd.f32 %v5196, %v5209
      %v5211 = vpop.f32.mrf.mxu0
      %v5212 = vadd.f32 %v5196, %v5211
      %5213 = vdwg.mxu0
      %v5214 = vmax.f32 %v5210, 0.0
      %v5215 = vmax.f32 %v5212, 0.0
      %v5216 = vld [vmem:[%s2 + $0x478] sm:$0xff]
      %v5217 = vld [vmem:[%s2 + $0x480] sm:$0xff]
      %v5218 = vld [vmem:[%s2 + $0x488] sm:$0xff]
      %v5219 = vld [vmem:[%s2 + $0x490] sm:$0xff]
      %v5220 = vld [vmem:[%s2 + $0x498] sm:$0xff]
      %v5221 = vld [vmem:[%s2 + $0x4a0] sm:$0xff]
      %v5222 = vld [vmem:[%s2 + $0x4a8] sm:$0xff]
      %v5223 = vld [vmem:[%s2 + $0x4b0] sm:$0xff]
      %v5224 = vpack.c.bf16 %v5215, %v5214
      %v5225 = vpack.c.bf16 %v5217, %v5216
      %v5226 = vpack.c.bf16 %v5219, %v5218
      %v5227 = vpack.c.bf16 %v5221, %v5220
      %v5228 = vpack.c.bf16 %v5223, %v5222
      %v5229 = vld [vmem:[%s2 + $0x4b8] sm:$0x1]
      %v5230 = vperm.slane %v5229, 0
      %v5232 = vsel %vm1865, %v5224, 0
      %5234 = vmatpush.bf16.msra.mxu0 0
      %5235 = vmatpush.bf16.msra.mxu0 0
      %5236 = vmatpush.bf16.msra.mxu0 0
      %5237 = vmatpush.bf16.msra.mxu0 0
      %5238 = vmatpush.bf16.msra.mxu0 %v5228
      %5239 = vmatpush.bf16.msra.mxu0 %v5227
      %5240 = vmatpush.bf16.msra.mxu0 %v5226
      %5241 = vmatpush.bf16.msra.mxu0 %v5225
      %5242 = vmatmul.bf16.gmra.mxu0 %v5232
      %v5243 = vpop.f32.mrf.mxu0
      %v5244 = vadd.f32 %v5230, %v5243
      %v5245 = vpop.f32.mrf.mxu0
      %v5246 = vadd.f32 %v5230, %v5245
      %5247 = vdwg.mxu0
      %v5248 = vadd.f32 %v5187, %v5244
      %v5249 = vadd.f32 %v5188, %v5246
      %v5250 = vsel %vm1980, %v5248, 0.0
      %5251 = vadd.xlane.f32.xlu0 %v5250
      %v5252 = vpop.xlane.xlu0 %5251
      %v5253 = vsel %vm4748, %v5249, 0.0
      %5254 = vadd.xlane.f32.xlu0 %v5253
      %v5255 = vpop.xlane.xlu0 %5254
      %v5256 = vmul.f32 %v5252, %v2329
      %v5257 = vmul.f32 %v5255, %v2329
      %v5258 = vsub.f32 %v5248, %v5256
      %v5259 = vsub.f32 %v5249, %v5257
      %v5260 = vmul.f32 %v5258, %v5258
      %v5261 = vmul.f32 %v5259, %v5259
      %v5262 = vsel %vm1980, %v5260, 0.0
      %5263 = vadd.xlane.f32.xlu0 %v5262
      %v5264 = vpop.xlane.xlu0 %5263
      %v5265 = vsel %vm4748, %v5261, 0.0
      %5266 = vadd.xlane.f32.xlu0 %v5265
      %v5267 = vpop.xlane.xlu0 %5266
      %v5268 = vmul.f32 %v5264, %v2329
      %v5269 = vmul.f32 %v5267, %v2329
      %v5270 = vadd.f32 %v5268, 1e-05
      %v5271 = vadd.f32 %v5269, 1e-05
      %v5272 = vrsqrt.pop %v5270
      %v5273 = vmul.f32 %v5272, %v5270
      %v5274 = vmul.f32 %v5273, %v5272
      %v5275 = vmul.f32 0.5, %v5274
      %v5276 = vsub.f32 1.5, %v5275
      %v5277 = vmul.f32 %v5272, %v5276
      %vm5278 = vweird.f32 %v5270
      %vm5279 = vweird.f32 %v5272
      %vm5280 = vmor %vm5278, %vm5279
      %v5281 = vsel %vm5280, %v5272, %v5277
      %v5282 = vrsqrt.pop %v5271
      %v5283 = vmul.f32 %v5282, %v5271
      %v5284 = vmul.f32 %v5283, %v5282
      %v5285 = vmul.f32 0.5, %v5284
      %v5286 = vsub.f32 1.5, %v5285
      %v5287 = vmul.f32 %v5282, %v5286
      %vm5288 = vweird.f32 %v5271
      %vm5289 = vweird.f32 %v5282
      %vm5290 = vmor %vm5288, %vm5289
      %v5291 = vsel %vm5290, %v5282, %v5287
      %v5292 = vmul.f32 %v5258, %v5281
      %v5293 = vmul.f32 %v5259, %v5291
      %v5294 = vperm.slane %v4475, 2
      %v5295 = vmul.f32 %v5292, %v5294
      %v5296 = vmul.f32 %v5293, %v5294
      %v5297 = vperm.slane %v4476, 2
      %v5298 = vadd.f32 %v5295, %v5297
      %v5299 = vadd.f32 %v5296, %v5297
      %v5300 = vadd.f32 %v5298, %v4446
      %v5301 = vadd.f32 %v5299, %v4439
      %v5302 = vld [vmem:[%s2 + $0x358] sm:$0xff]
      %v5303 = vld [vmem:[%s2 + $0x360] sm:$0xff]
      %v5304 = vld [vmem:[%s2 + $0x368] sm:$0xff]
      %v5305 = vld [vmem:[%s2 + $0x370] sm:$0xff]
      %v5306 = vpack.c.bf16 %v5303, %v5302
      %v5307 = vpack.c.bf16 %v5305, %v5304
      %v5308 = vperm.slane %v4474, 0
      %5309 = vmatpush.bf16.msra.mxu0 0
      %5310 = vmatpush.bf16.msra.mxu0 0
      %5311 = vmatpush.bf16.msra.mxu0 0
      %5312 = vmatpush.bf16.msra.mxu0 0
      %5313 = vmatpush.bf16.msra.mxu0 0
      %5314 = vmatpush.bf16.msra.mxu0 0
      %5315 = vmatpush.bf16.msra.mxu0 %v5307
      %5316 = vmatpush.bf16.msra.mxu0 %v5306
      %5317 = vmatmul.bf16.gmra.mxu0 %v4843
      %v5318 = vpop.f32.mrf.mxu0
      %v5319 = vadd.f32 %v5308, %v5318
      %v5320 = vpop.f32.mrf.mxu0
      %v5321 = vadd.f32 %v5308, %v5320
      %5322 = vmatmul.bf16.gmra.mxu0 %v4846
      %v5323 = vpop.f32.mrf.mxu0
      %v5324 = vadd.f32 %v5308, %v5323
      %v5325 = vpop.f32.mrf.mxu0
      %v5326 = vadd.f32 %v5308, %v5325
      %5327 = vmatmul.bf16.gmra.mxu0 %v4849
      %v5328 = vpop.f32.mrf.mxu0
      %v5329 = vadd.f32 %v5308, %v5328
      %v5330 = vpop.f32.mrf.mxu0
      %v5331 = vadd.f32 %v5308, %v5330
      %5332 = vmatmul.bf16.gmra.mxu0 %v4852
      %v5333 = vpop.f32.mrf.mxu0
      %v5334 = vadd.f32 %v5308, %v5333
      %v5335 = vpop.f32.mrf.mxu0
      %v5336 = vadd.f32 %v5308, %v5335
      %5337 = vdwg.mxu0
      %v5338 = vld [vmem:[%s2 + $0x378] sm:$0xff]
      %v5339 = vld [vmem:[%s2 + $0x380] sm:$0xff]
      %v5340 = vld [vmem:[%s2 + $0x388] sm:$0xff]
      %v5341 = vld [vmem:[%s2 + $0x390] sm:$0xff]
      %v5342 = vpack.c.bf16 %v5301, %v5300
      %v5343 = vpack.c.bf16 %v5339, %v5338
      %v5344 = vpack.c.bf16 %v5341, %v5340
      %v5345 = vperm.slane %v4474, 1
      %v5347 = vsel %vm1980, %v5342, 0
      %5349 = vmatpush.bf16.msra.mxu0 0
      %5350 = vmatpush.bf16.msra.mxu0 0
      %5351 = vmatpush.bf16.msra.mxu0 0
      %5352 = vmatpush.bf16.msra.mxu0 0
      %5353 = vmatpush.bf16.msra.mxu0 0
      %5354 = vmatpush.bf16.msra.mxu0 0
      %5355 = vmatpush.bf16.msra.mxu0 %v5344
      %5356 = vmatpush.bf16.msra.mxu0 %v5343
      %5357 = vmatmul.bf16.gmra.mxu0 %v5347
      %v5358 = vpop.f32.mrf.mxu0
      %v5359 = vadd.f32 %v5345, %v5358
      %v5360 = vpop.f32.mrf.mxu0
      %v5361 = vadd.f32 %v5345, %v5360
      %5362 = vdwg.mxu0
      %v5363 = vld [vmem:[%s2 + $0x398] sm:$0xff]
      %v5364 = vld [vmem:[%s2 + $0x3a0] sm:$0xff]
      %v5365 = vld [vmem:[%s2 + $0x3a8] sm:$0xff]
      %v5366 = vld [vmem:[%s2 + $0x3b0] sm:$0xff]
      %v5367 = vpack.c.bf16 %v5299, %v5298
      %v5368 = vpack.c.bf16 %v5364, %v5363
      %v5369 = vpack.c.bf16 %v5366, %v5365
      %v5370 = vperm.slane %v4474, 2
      %v5372 = vsel %vm1980, %v5367, 0
      %5374 = vmatpush.bf16.msra.mxu0 0
      %5375 = vmatpush.bf16.msra.mxu0 0
      %5376 = vmatpush.bf16.msra.mxu0 0
      %5377 = vmatpush.bf16.msra.mxu0 0
      %5378 = vmatpush.bf16.msra.mxu0 0
      %5379 = vmatpush.bf16.msra.mxu0 0
      %5380 = vmatpush.bf16.msra.mxu0 %v5369
      %5381 = vmatpush.bf16.msra.mxu0 %v5368
      %5382 = vmatmul.bf16.gmra.mxu0 %v5372
      %v5383 = vpop.f32.mrf.mxu0
      %v5384 = vadd.f32 %v5370, %v5383
      %v5385 = vpop.f32.mrf.mxu0
      %v5386 = vadd.f32 %v5370, %v5385
      %5387 = vdwg.mxu0
      %5388 = vxpose.xlu0.b32.start [1/16] %v5359, 128
      %5389 = vxpose.xlu0.b32.cont [2/16] %v5361, 128
      %5390 = vxpose.xlu0.b32.cont [3/16] 0.0, 128
      %5391 = vxpose.xlu0.b32.cont [4/16] 0.0, 128
      %5392 = vxpose.xlu0.b32.cont [5/16] 0.0, 128
      %5393 = vxpose.xlu0.b32.cont [6/16] 0.0, 128
      %5394 = vxpose.xlu0.b32.cont [7/16] 0.0, 128
      %5395 = vxpose.xlu0.b32.cont [8/16] 0.0, 128
      %5396 = vxpose.xlu0.b32.cont [9/16] 0.0, 128
      %5397 = vxpose.xlu0.b32.cont [10/16] 0.0, 128
      %5398 = vxpose.xlu0.b32.cont [11/16] 0.0, 128
      %5399 = vxpose.xlu0.b32.cont [12/16] 0.0, 128
      %5400 = vxpose.xlu0.b32.cont [13/16] 0.0, 128
      %5401 = vxpose.xlu0.b32.cont [14/16] 0.0, 128
      %5402 = vxpose.xlu0.b32.cont [15/16] 0.0, 128
      %5403 = vxpose.xlu0.b32.end [16/16] 0.0, 128
      %v5404 = vpop.trf.xlu0
      %v5405 = vpop.trf.xlu0
      %v5406 = vpop.trf.xlu0
      %v5407 = vpop.trf.xlu0
      %v5408 = vpop.trf.xlu0
      %v5409 = vpop.trf.xlu0
      %v5410 = vpop.trf.xlu0
      %v5411 = vpop.trf.xlu0
      %v5412 = vpop.trf.xlu0
      %v5413 = vpop.trf.xlu0
      %v5414 = vpop.trf.xlu0
      %v5415 = vpop.trf.xlu0
      %v5416 = vpop.trf.xlu0
      %v5417 = vpop.trf.xlu0
      %v5418 = vpop.trf.xlu0
      %v5419 = vpop.trf.xlu0
      %v5420 = vmul.f32 %v5404, %v2619
      %v5421 = vmul.f32 %v5405, %v2624
      %v5422 = vmul.f32 %v5406, %v2629
      %v5423 = vmul.f32 %v5407, %v2634
      %v5424 = vmul.f32 %v5404, %v2642
      %v5425 = vmul.f32 %v5405, %v2646
      %v5426 = vmul.f32 %v5406, %v2650
      %v5427 = vmul.f32 %v5407, %v2654
      %5432 = vrot.lane.b32.xlu0 %v5424, 9
      %v5433 = vpop.permute.xlu0 %5432
      %5434 = vrot.lane.b32.xlu0 %v5425, 9
      %v5435 = vpop.permute.xlu0 %5434
      %5436 = vrot.lane.b32.xlu0 %v5426, 9
      %v5437 = vpop.permute.xlu0 %5436
      %5438 = vrot.lane.b32.xlu0 %v5427, 9
      %v5439 = vpop.permute.xlu0 %5438
      %v5444 = vsel %vm4600, %v5420, %v5433
      %v5445 = vsel %vm4600, %v5421, %v5435
      %v5446 = vsel %vm4600, %v5422, %v5437
      %v5447 = vsel %vm4600, %v5423, %v5439
      %v5448 = vmul.f32 %v5384, %v2680
      %v5449 = vmul.f32 %v5386, %v2680
      %v5450 = vmul.f32 %v5384, %v2693
      %v5451 = vmul.f32 %v5386, %v2693
      %v5454 = vrot.slane %v5450, 7
      %v5455 = vrot.slane %v5451, 7
      %v5456 = vsel %vm302, %v5454, %v5455
      %v5459 = vsel %vm302, %v5449, %v5454
      %v5460 = vpack.c.bf16 %v5321, %v5319
      %v5461 = vpack.c.bf16 %v5326, %v5324
      %v5462 = vpack.c.bf16 %v5331, %v5329
      %v5463 = vpack.c.bf16 %v5336, %v5334
      %v5464 = vpack.c.bf16 %v5445, %v5444
      %v5465 = vpack.c.bf16 %v5447, %v5446
      %v5467 = vsel %vm1980, %v5460, 0
      %v5470 = vsel %vm1980, %v5461, 0
      %v5473 = vsel %vm1980, %v5462, 0
      %v5476 = vsel %vm1980, %v5463, 0
      %5478 = vmatpush.bf16.msra.mxu0 0
      %5479 = vmatpush.bf16.msra.mxu0 0
      %5480 = vmatpush.bf16.msra.mxu0 0
      %5481 = vmatpush.bf16.msra.mxu0 0
      %5482 = vmatpush.bf16.msra.mxu0 0
      %5483 = vmatpush.bf16.msra.mxu0 0
      %5484 = vmatpush.bf16.msra.mxu0 %v5465
      %5485 = vmatpush.bf16.msra.mxu0 %v5464
      %5486 = vmatmul.bf16.gmra.mxu0 %v5467
      %v5487 = vpop.f32.mrf.mxu0
      %v5488 = vadd.f32 0.0, %v5487
      %v5489 = vpop.f32.mrf.mxu0
      %v5490 = vadd.f32 0.0, %v5489
      %5491 = vmatmul.bf16.gmra.mxu0 %v5470
      %v5492 = vpop.f32.mrf.mxu0
      %v5493 = vadd.f32 0.0, %v5492
      %v5494 = vpop.f32.mrf.mxu0
      %v5495 = vadd.f32 0.0, %v5494
      %5496 = vmatmul.bf16.gmra.mxu0 %v5473
      %v5497 = vpop.f32.mrf.mxu0
      %v5498 = vadd.f32 0.0, %v5497
      %v5499 = vpop.f32.mrf.mxu0
      %v5500 = vadd.f32 0.0, %v5499
      %5501 = vmatmul.bf16.gmra.mxu0 %v5476
      %v5502 = vpop.f32.mrf.mxu0
      %v5503 = vadd.f32 0.0, %v5502
      %v5504 = vpop.f32.mrf.mxu0
      %v5505 = vadd.f32 0.0, %v5504
      %5506 = vdwg.mxu0
      %v5507 = vmul.f32 %v5488, 0.25
      %v5508 = vmul.f32 %v5490, 0.25
      %v5509 = vmul.f32 %v5493, 0.25
      %v5510 = vmul.f32 %v5495, 0.25
      %v5511 = vmul.f32 %v5498, 0.25
      %v5512 = vmul.f32 %v5500, 0.25
      %v5513 = vmul.f32 %v5503, 0.25
      %v5514 = vmul.f32 %v5505, 0.25
      %v5515 = vsel %vm4600, %v5507, -inf
      %5516 = vmax.xlane.f32.xlu0 %v5515
      %v5517 = vpop.xlane.xlu0 %5516
      %v5518 = vsel %vm4600, %v5508, -inf
      %5519 = vmax.xlane.f32.xlu0 %v5518
      %v5520 = vpop.xlane.xlu0 %5519
      %v5521 = vsel %vm4600, %v5509, -inf
      %5522 = vmax.xlane.f32.xlu0 %v5521
      %v5523 = vpop.xlane.xlu0 %5522
      %v5524 = vsel %vm4600, %v5510, -inf
      %5525 = vmax.xlane.f32.xlu0 %v5524
      %v5526 = vpop.xlane.xlu0 %5525
      %v5527 = vsel %vm4600, %v5511, -inf
      %5528 = vmax.xlane.f32.xlu0 %v5527
      %v5529 = vpop.xlane.xlu0 %5528
      %v5530 = vsel %vm4600, %v5512, -inf
      %5531 = vmax.xlane.f32.xlu0 %v5530
      %v5532 = vpop.xlane.xlu0 %5531
      %v5533 = vsel %vm4600, %v5513, -inf
      %5534 = vmax.xlane.f32.xlu0 %v5533
      %v5535 = vpop.xlane.xlu0 %5534
      %v5536 = vsel %vm4600, %v5514, -inf
      %5537 = vmax.xlane.f32.xlu0 %v5536
      %v5538 = vpop.xlane.xlu0 %5537
      %v5539 = vsub.f32 %v5507, %v5517
      %v5540 = vsub.f32 %v5508, %v5520
      %v5541 = vsub.f32 %v5509, %v5523
      %v5542 = vsub.f32 %v5510, %v5526
      %v5543 = vsub.f32 %v5511, %v5529
      %v5544 = vsub.f32 %v5512, %v5532
      %v5545 = vsub.f32 %v5513, %v5535
      %v5546 = vsub.f32 %v5514, %v5538
      %v5547 = vmul.f32 %v5539, 1.442695
      %v5548 = vpow.pop %v5547
      %v5549 = vmul.f32 %v5540, 1.442695
      %v5550 = vpow.pop %v5549
      %v5551 = vmul.f32 %v5541, 1.442695
      %v5552 = vpow.pop %v5551
      %v5553 = vmul.f32 %v5542, 1.442695
      %v5554 = vpow.pop %v5553
      %v5555 = vmul.f32 %v5543, 1.442695
      %v5556 = vpow.pop %v5555
      %v5557 = vmul.f32 %v5544, 1.442695
      %v5558 = vpow.pop %v5557
      %v5559 = vmul.f32 %v5545, 1.442695
      %v5560 = vpow.pop %v5559
      %v5561 = vmul.f32 %v5546, 1.442695
      %v5562 = vpow.pop %v5561
      %v5563 = vsel %vm4600, %v5548, 0.0
      %5564 = vadd.xlane.f32.xlu0 %v5563
      %v5565 = vpop.xlane.xlu0 %5564
      %v5566 = vsel %vm4600, %v5550, 0.0
      %5567 = vadd.xlane.f32.xlu0 %v5566
      %v5568 = vpop.xlane.xlu0 %5567
      %v5569 = vsel %vm4600, %v5552, 0.0
      %5570 = vadd.xlane.f32.xlu0 %v5569
      %v5571 = vpop.xlane.xlu0 %5570
      %v5572 = vsel %vm4600, %v5554, 0.0
      %5573 = vadd.xlane.f32.xlu0 %v5572
      %v5574 = vpop.xlane.xlu0 %5573
      %v5575 = vsel %vm4600, %v5556, 0.0
      %5576 = vadd.xlane.f32.xlu0 %v5575
      %v5577 = vpop.xlane.xlu0 %5576
      %v5578 = vsel %vm4600, %v5558, 0.0
      %5579 = vadd.xlane.f32.xlu0 %v5578
      %v5580 = vpop.xlane.xlu0 %5579
      %v5581 = vsel %vm4600, %v5560, 0.0
      %5582 = vadd.xlane.f32.xlu0 %v5581
      %v5583 = vpop.xlane.xlu0 %5582
      %v5584 = vsel %vm4600, %v5562, 0.0
      %5585 = vadd.xlane.f32.xlu0 %v5584
      %v5586 = vpop.xlane.xlu0 %5585
      %v5587 = vrcp.pop %v5565
      %v5588 = vrcp.pop %v5568
      %v5589 = vrcp.pop %v5571
      %v5590 = vrcp.pop %v5574
      %v5591 = vrcp.pop %v5577
      %v5592 = vrcp.pop %v5580
      %v5593 = vrcp.pop %v5583
      %v5594 = vrcp.pop %v5586
      %v5595 = vmul.f32 %v5548, %v5587
      %v5596 = vmul.f32 %v5550, %v5588
      %v5597 = vmul.f32 %v5552, %v5589
      %v5598 = vmul.f32 %v5554, %v5590
      %v5599 = vmul.f32 %v5556, %v5591
      %v5600 = vmul.f32 %v5558, %v5592
      %v5601 = vmul.f32 %v5560, %v5593
      %v5602 = vmul.f32 %v5562, %v5594
      %v5603 = vsel %vm4662, %v5507, -inf
      %5604 = vmax.xlane.f32.xlu0 %v5603
      %v5605 = vpop.xlane.xlu0 %5604
      %v5606 = vsel %vm4662, %v5508, -inf
      %5607 = vmax.xlane.f32.xlu0 %v5606
      %v5608 = vpop.xlane.xlu0 %5607
      %v5609 = vsel %vm4662, %v5509, -inf
      %5610 = vmax.xlane.f32.xlu0 %v5609
      %v5611 = vpop.xlane.xlu0 %5610
      %v5612 = vsel %vm4662, %v5510, -inf
      %5613 = vmax.xlane.f32.xlu0 %v5612
      %v5614 = vpop.xlane.xlu0 %5613
      %v5615 = vsel %vm4662, %v5511, -inf
      %5616 = vmax.xlane.f32.xlu0 %v5615
      %v5617 = vpop.xlane.xlu0 %5616
      %v5618 = vsel %vm4662, %v5512, -inf
      %5619 = vmax.xlane.f32.xlu0 %v5618
      %v5620 = vpop.xlane.xlu0 %5619
      %v5621 = vsel %vm4662, %v5513, -inf
      %5622 = vmax.xlane.f32.xlu0 %v5621
      %v5623 = vpop.xlane.xlu0 %5622
      %v5624 = vsel %vm4662, %v5514, -inf
      %5625 = vmax.xlane.f32.xlu0 %v5624
      %v5626 = vpop.xlane.xlu0 %5625
      %v5627 = vsub.f32 %v5507, %v5605
      %v5628 = vsub.f32 %v5508, %v5608
      %v5629 = vsub.f32 %v5509, %v5611
      %v5630 = vsub.f32 %v5510, %v5614
      %v5631 = vsub.f32 %v5511, %v5617
      %v5632 = vsub.f32 %v5512, %v5620
      %v5633 = vsub.f32 %v5513, %v5623
      %v5634 = vsub.f32 %v5514, %v5626
      %v5635 = vmul.f32 %v5627, 1.442695
      %v5636 = vpow.pop %v5635
      %v5637 = vmul.f32 %v5628, 1.442695
      %v5638 = vpow.pop %v5637
      %v5639 = vmul.f32 %v5629, 1.442695
      %v5640 = vpow.pop %v5639
      %v5641 = vmul.f32 %v5630, 1.442695
      %v5642 = vpow.pop %v5641
      %v5643 = vmul.f32 %v5631, 1.442695
      %v5644 = vpow.pop %v5643
      %v5645 = vmul.f32 %v5632, 1.442695
      %v5646 = vpow.pop %v5645
      %v5647 = vmul.f32 %v5633, 1.442695
      %v5648 = vpow.pop %v5647
      %v5649 = vmul.f32 %v5634, 1.442695
      %v5650 = vpow.pop %v5649
      %5659 = vrot.lane.b32.xlu0 %v5636, 119
      %v5660 = vpop.permute.xlu0 %5659
      %5661 = vrot.lane.b32.xlu0 %v5638, 119
      %v5662 = vpop.permute.xlu0 %5661
      %5663 = vrot.lane.b32.xlu0 %v5640, 119
      %v5664 = vpop.permute.xlu0 %5663
      %5665 = vrot.lane.b32.xlu0 %v5642, 119
      %v5666 = vpop.permute.xlu0 %5665
      %5667 = vrot.lane.b32.xlu0 %v5644, 119
      %v5668 = vpop.permute.xlu0 %5667
      %5669 = vrot.lane.b32.xlu0 %v5646, 119
      %v5670 = vpop.permute.xlu0 %5669
      %5671 = vrot.lane.b32.xlu0 %v5648, 119
      %v5672 = vpop.permute.xlu0 %5671
      %5673 = vrot.lane.b32.xlu0 %v5650, 119
      %v5674 = vpop.permute.xlu0 %5673
      %v5683 = vsel %vm4600, %v5660, 0.0
      %5684 = vadd.xlane.f32.xlu0 %v5683
      %v5685 = vpop.xlane.xlu0 %5684
      %v5686 = vsel %vm4600, %v5662, 0.0
      %5687 = vadd.xlane.f32.xlu0 %v5686
      %v5688 = vpop.xlane.xlu0 %5687
      %v5689 = vsel %vm4600, %v5664, 0.0
      %5690 = vadd.xlane.f32.xlu0 %v5689
      %v5691 = vpop.xlane.xlu0 %5690
      %v5692 = vsel %vm4600, %v5666, 0.0
      %5693 = vadd.xlane.f32.xlu0 %v5692
      %v5694 = vpop.xlane.xlu0 %5693
      %v5695 = vsel %vm4600, %v5668, 0.0
      %5696 = vadd.xlane.f32.xlu0 %v5695
      %v5697 = vpop.xlane.xlu0 %5696
      %v5698 = vsel %vm4600, %v5670, 0.0
      %5699 = vadd.xlane.f32.xlu0 %v5698
      %v5700 = vpop.xlane.xlu0 %5699
      %v5701 = vsel %vm4600, %v5672, 0.0
      %5702 = vadd.xlane.f32.xlu0 %v5701
      %v5703 = vpop.xlane.xlu0 %5702
      %v5704 = vsel %vm4600, %v5674, 0.0
      %5705 = vadd.xlane.f32.xlu0 %v5704
      %v5706 = vpop.xlane.xlu0 %5705
      %v5707 = vrcp.pop %v5685
      %v5708 = vrcp.pop %v5688
      %v5709 = vrcp.pop %v5691
      %v5710 = vrcp.pop %v5694
      %v5711 = vrcp.pop %v5697
      %v5712 = vrcp.pop %v5700
      %v5713 = vrcp.pop %v5703
      %v5714 = vrcp.pop %v5706
      %v5715 = vmul.f32 %v5636, %v5707
      %v5716 = vmul.f32 %v5638, %v5708
      %v5717 = vmul.f32 %v5640, %v5709
      %v5718 = vmul.f32 %v5642, %v5710
      %v5719 = vmul.f32 %v5644, %v5711
      %v5720 = vmul.f32 %v5646, %v5712
      %v5721 = vmul.f32 %v5648, %v5713
      %v5722 = vmul.f32 %v5650, %v5714
      %v5723 = vsel %vm4600, %v5595, %v5715
      %v5724 = vsel %vm4600, %v5596, %v5716
      %v5725 = vsel %vm4600, %v5597, %v5717
      %v5726 = vsel %vm4600, %v5598, %v5718
      %v5727 = vsel %vm4600, %v5599, %v5719
      %v5728 = vsel %vm4600, %v5600, %v5720
      %v5729 = vsel %vm4600, %v5601, %v5721
      %v5730 = vsel %vm4600, %v5602, %v5722
      %v5731 = vpack.c.bf16 %v5724, %v5723
      %v5732 = vpack.c.bf16 %v5726, %v5725
      %v5733 = vpack.c.bf16 %v5728, %v5727
      %v5734 = vpack.c.bf16 %v5730, %v5729
      %v5735 = vpack.c.bf16 %v5459, %v5448
      %v5736 = vpack.c.bf16 %v5456, %v5456
      %v5738 = vsel %vm4699, %v5731, 0
      %v5741 = vsel %vm4699, %v5732, 0
      %v5744 = vsel %vm4699, %v5733, 0
      %v5747 = vsel %vm4699, %v5734, 0
      %v5750 = vsel %vm302, %v5736, 0
      %5752 = vmatpush.bf16.msra.mxu0 0
      %5753 = vmatpush.bf16.msra.mxu0 0
      %5754 = vmatpush.bf16.msra.mxu0 0
      %5755 = vmatpush.bf16.msra.mxu0 0
      %5756 = vmatpush.bf16.msra.mxu0 0
      %5757 = vmatpush.bf16.msra.mxu0 0
      %5758 = vmatpush.bf16.msra.mxu0 %v5750
      %5759 = vmatpush.bf16.msra.mxu0 %v5735
      %5760 = vmatmul.bf16.gmra.mxu0 %v5738
      %v5761 = vpop.f32.mrf.mxu0
      %v5762 = vadd.f32 0.0, %v5761
      %v5763 = vpop.f32.mrf.mxu0
      %v5764 = vadd.f32 0.0, %v5763
      %5765 = vmatmul.bf16.gmra.mxu0 %v5741
      %v5766 = vpop.f32.mrf.mxu0
      %v5767 = vadd.f32 0.0, %v5766
      %v5768 = vpop.f32.mrf.mxu0
      %v5769 = vadd.f32 0.0, %v5768
      %5770 = vmatmul.bf16.gmra.mxu0 %v5744
      %v5771 = vpop.f32.mrf.mxu0
      %v5772 = vadd.f32 0.0, %v5771
      %v5773 = vpop.f32.mrf.mxu0
      %v5774 = vadd.f32 0.0, %v5773
      %5775 = vmatmul.bf16.gmra.mxu0 %v5747
      %v5776 = vpop.f32.mrf.mxu0
      %v5777 = vadd.f32 0.0, %v5776
      %v5778 = vpop.f32.mrf.mxu0
      %v5779 = vadd.f32 0.0, %v5778
      %5780 = vdwg.mxu0
      %v5781 = vld [vmem:[%s2 + $0x3b8] sm:$0xff]
      %v5782 = vld [vmem:[%s2 + $0x3c0] sm:$0xff]
      %v5783 = vld [vmem:[%s2 + $0x3c8] sm:$0xff]
      %v5784 = vld [vmem:[%s2 + $0x3d0] sm:$0xff]
      %v5785 = vpack.c.bf16 %v5764, %v5762
      %v5786 = vpack.c.bf16 %v5769, %v5767
      %v5787 = vpack.c.bf16 %v5774, %v5772
      %v5788 = vpack.c.bf16 %v5779, %v5777
      %v5789 = vpack.c.bf16 %v5782, %v5781
      %v5790 = vpack.c.bf16 %v5784, %v5783
      %v5791 = vperm.slane %v4474, 3
      %v5793 = vsel %vm1980, %v5785, 0
      %v5796 = vsel %vm1980, %v5786, 0
      %v5799 = vsel %vm1980, %v5787, 0
      %v5802 = vsel %vm1980, %v5788, 0
      %5804 = vmatpush.bf16.msra.mxu0 0
      %5805 = vmatpush.bf16.msra.mxu0 0
      %5806 = vmatpush.bf16.msra.mxu0 0
      %5807 = vmatpush.bf16.msra.mxu0 0
      %5808 = vmatpush.bf16.msra.mxu0 0
      %5809 = vmatpush.bf16.msra.mxu0 0
      %5810 = vmatpush.bf16.msra.mxu0 %v5790
      %5811 = vmatpush.bf16.msra.mxu0 %v5789
      %5812 = vmatmul.bf16.gmra.mxu0 %v5793
      %v5813 = vpop.f32.mrf.mxu0
      %v5814 = vadd.f32 %v5791, %v5813
      %v5815 = vpop.f32.mrf.mxu0
      %v5816 = vadd.f32 %v5791, %v5815
      %5817 = vmatmul.bf16.gmra.mxu0 %v5796
      %v5818 = vpop.f32.mrf.mxu0
      %v5819 = vadd.f32 %v5791, %v5818
      %v5820 = vpop.f32.mrf.mxu0
      %v5821 = vadd.f32 %v5791, %v5820
      %5822 = vmatmul.bf16.gmra.mxu0 %v5799
      %v5823 = vpop.f32.mrf.mxu0
      %v5824 = vadd.f32 %v5791, %v5823
      %v5825 = vpop.f32.mrf.mxu0
      %v5826 = vadd.f32 %v5791, %v5825
      %5827 = vmatmul.bf16.gmra.mxu0 %v5802
      %v5828 = vpop.f32.mrf.mxu0
      %v5829 = vadd.f32 %v5791, %v5828
      %v5830 = vpop.f32.mrf.mxu0
      %v5831 = vadd.f32 %v5791, %v5830
      %5832 = vdwg.mxu0
      %v5833 = vadd.f32 %v4457, %v5814
      %v5834 = vadd.f32 %v4458, %v5816
      %v5835 = vadd.f32 %v4459, %v5819
      %v5836 = vadd.f32 %v4460, %v5821
      %v5837 = vadd.f32 %v4461, %v5824
      %v5838 = vadd.f32 %v4462, %v5826
      %v5839 = vadd.f32 %v4463, %v5829
      %v5840 = vadd.f32 %v4464, %v5831
      %v5841 = vsel %vm1980, %v5833, 0.0
      %5842 = vadd.xlane.f32.xlu0 %v5841
      %v5843 = vpop.xlane.xlu0 %5842
      %v5844 = vsel %vm1980, %v5834, 0.0
      %5845 = vadd.xlane.f32.xlu0 %v5844
      %v5846 = vpop.xlane.xlu0 %5845
      %v5847 = vsel %vm1980, %v5835, 0.0
      %5848 = vadd.xlane.f32.xlu0 %v5847
      %v5849 = vpop.xlane.xlu0 %5848
      %v5850 = vsel %vm1980, %v5836, 0.0
      %5851 = vadd.xlane.f32.xlu0 %v5850
      %v5852 = vpop.xlane.xlu0 %5851
      %v5853 = vsel %vm1980, %v5837, 0.0
      %5854 = vadd.xlane.f32.xlu0 %v5853
      %v5855 = vpop.xlane.xlu0 %5854
      %v5856 = vsel %vm1980, %v5838, 0.0
      %5857 = vadd.xlane.f32.xlu0 %v5856
      %v5858 = vpop.xlane.xlu0 %5857
      %v5859 = vsel %vm1980, %v5839, 0.0
      %5860 = vadd.xlane.f32.xlu0 %v5859
      %v5861 = vpop.xlane.xlu0 %5860
      %v5862 = vsel %vm1980, %v5840, 0.0
      %5863 = vadd.xlane.f32.xlu0 %v5862
      %v5864 = vpop.xlane.xlu0 %5863
      %v5865 = vmul.f32 %v5843, %v2329
      %v5866 = vmul.f32 %v5846, %v2329
      %v5867 = vmul.f32 %v5849, %v2329
      %v5868 = vmul.f32 %v5852, %v2329
      %v5869 = vmul.f32 %v5855, %v2329
      %v5870 = vmul.f32 %v5858, %v2329
      %v5871 = vmul.f32 %v5861, %v2329
      %v5872 = vmul.f32 %v5864, %v2329
      %v5873 = vsub.f32 %v5833, %v5865
      %v5874 = vsub.f32 %v5834, %v5866
      %v5875 = vsub.f32 %v5835, %v5867
      %v5876 = vsub.f32 %v5836, %v5868
      %v5877 = vsub.f32 %v5837, %v5869
      %v5878 = vsub.f32 %v5838, %v5870
      %v5879 = vsub.f32 %v5839, %v5871
      %v5880 = vsub.f32 %v5840, %v5872
      %v5881 = vmul.f32 %v5873, %v5873
      %v5882 = vmul.f32 %v5874, %v5874
      %v5883 = vmul.f32 %v5875, %v5875
      %v5884 = vmul.f32 %v5876, %v5876
      %v5885 = vmul.f32 %v5877, %v5877
      %v5886 = vmul.f32 %v5878, %v5878
      %v5887 = vmul.f32 %v5879, %v5879
      %v5888 = vmul.f32 %v5880, %v5880
      %v5889 = vsel %vm1980, %v5881, 0.0
      %5890 = vadd.xlane.f32.xlu0 %v5889
      %v5891 = vpop.xlane.xlu0 %5890
      %v5892 = vsel %vm1980, %v5882, 0.0
      %5893 = vadd.xlane.f32.xlu0 %v5892
      %v5894 = vpop.xlane.xlu0 %5893
      %v5895 = vsel %vm1980, %v5883, 0.0
      %5896 = vadd.xlane.f32.xlu0 %v5895
      %v5897 = vpop.xlane.xlu0 %5896
      %v5898 = vsel %vm1980, %v5884, 0.0
      %5899 = vadd.xlane.f32.xlu0 %v5898
      %v5900 = vpop.xlane.xlu0 %5899
      %v5901 = vsel %vm1980, %v5885, 0.0
      %5902 = vadd.xlane.f32.xlu0 %v5901
      %v5903 = vpop.xlane.xlu0 %5902
      %v5904 = vsel %vm1980, %v5886, 0.0
      %5905 = vadd.xlane.f32.xlu0 %v5904
      %v5906 = vpop.xlane.xlu0 %5905
      %v5907 = vsel %vm1980, %v5887, 0.0
      %5908 = vadd.xlane.f32.xlu0 %v5907
      %v5909 = vpop.xlane.xlu0 %5908
      %v5910 = vsel %vm1980, %v5888, 0.0
      %5911 = vadd.xlane.f32.xlu0 %v5910
      %v5912 = vpop.xlane.xlu0 %5911
      %v5913 = vmul.f32 %v5891, %v2329
      %v5914 = vmul.f32 %v5894, %v2329
      %v5915 = vmul.f32 %v5897, %v2329
      %v5916 = vmul.f32 %v5900, %v2329
      %v5917 = vmul.f32 %v5903, %v2329
      %v5918 = vmul.f32 %v5906, %v2329
      %v5919 = vmul.f32 %v5909, %v2329
      %v5920 = vmul.f32 %v5912, %v2329
      %v5921 = vadd.f32 %v5913, 1e-05
      %v5922 = vadd.f32 %v5914, 1e-05
      %v5923 = vadd.f32 %v5915, 1e-05
      %v5924 = vadd.f32 %v5916, 1e-05
      %v5925 = vadd.f32 %v5917, 1e-05
      %v5926 = vadd.f32 %v5918, 1e-05
      %v5927 = vadd.f32 %v5919, 1e-05
      %v5928 = vadd.f32 %v5920, 1e-05
      %v5929 = vrsqrt.pop %v5921
      %v5930 = vmul.f32 %v5929, %v5921
      %v5931 = vmul.f32 %v5930, %v5929
      %v5932 = vmul.f32 0.5, %v5931
      %v5933 = vsub.f32 1.5, %v5932
      %v5934 = vmul.f32 %v5929, %v5933
      %vm5935 = vweird.f32 %v5921
      %vm5936 = vweird.f32 %v5929
      %vm5937 = vmor %vm5935, %vm5936
      %v5938 = vsel %vm5937, %v5929, %v5934
      %v5939 = vrsqrt.pop %v5922
      %v5940 = vmul.f32 %v5939, %v5922
      %v5941 = vmul.f32 %v5940, %v5939
      %v5942 = vmul.f32 0.5, %v5941
      %v5943 = vsub.f32 1.5, %v5942
      %v5944 = vmul.f32 %v5939, %v5943
      %vm5945 = vweird.f32 %v5922
      %vm5946 = vweird.f32 %v5939
      %vm5947 = vmor %vm5945, %vm5946
      %v5948 = vsel %vm5947, %v5939, %v5944
      %v5949 = vrsqrt.pop %v5923
      %v5950 = vmul.f32 %v5949, %v5923
      %v5951 = vmul.f32 %v5950, %v5949
      %v5952 = vmul.f32 0.5, %v5951
      %v5953 = vsub.f32 1.5, %v5952
      %v5954 = vmul.f32 %v5949, %v5953
      %vm5955 = vweird.f32 %v5923
      %vm5956 = vweird.f32 %v5949
      %vm5957 = vmor %vm5955, %vm5956
      %v5958 = vsel %vm5957, %v5949, %v5954
      %v5959 = vrsqrt.pop %v5924
      %v5960 = vmul.f32 %v5959, %v5924
      %v5961 = vmul.f32 %v5960, %v5959
      %v5962 = vmul.f32 0.5, %v5961
      %v5963 = vsub.f32 1.5, %v5962
      %v5964 = vmul.f32 %v5959, %v5963
      %vm5965 = vweird.f32 %v5924
      %vm5966 = vweird.f32 %v5959
      %vm5967 = vmor %vm5965, %vm5966
      %v5968 = vsel %vm5967, %v5959, %v5964
      %v5969 = vrsqrt.pop %v5925
      %v5970 = vmul.f32 %v5969, %v5925
      %v5971 = vmul.f32 %v5970, %v5969
      %v5972 = vmul.f32 0.5, %v5971
      %v5973 = vsub.f32 1.5, %v5972
      %v5974 = vmul.f32 %v5969, %v5973
      %vm5975 = vweird.f32 %v5925
      %vm5976 = vweird.f32 %v5969
      %vm5977 = vmor %vm5975, %vm5976
      %v5978 = vsel %vm5977, %v5969, %v5974
      %v5979 = vrsqrt.pop %v5926
      %v5980 = vmul.f32 %v5979, %v5926
      %v5981 = vmul.f32 %v5980, %v5979
      %v5982 = vmul.f32 0.5, %v5981
      %v5983 = vsub.f32 1.5, %v5982
      %v5984 = vmul.f32 %v5979, %v5983
      %vm5985 = vweird.f32 %v5926
      %vm5986 = vweird.f32 %v5979
      %vm5987 = vmor %vm5985, %vm5986
      %v5988 = vsel %vm5987, %v5979, %v5984
      %v5989 = vrsqrt.pop %v5927
      %v5990 = vmul.f32 %v5989, %v5927
      %v5991 = vmul.f32 %v5990, %v5989
      %v5992 = vmul.f32 0.5, %v5991
      %v5993 = vsub.f32 1.5, %v5992
      %v5994 = vmul.f32 %v5989, %v5993
      %vm5995 = vweird.f32 %v5927
      %vm5996 = vweird.f32 %v5989
      %vm5997 = vmor %vm5995, %vm5996
      %v5998 = vsel %vm5997, %v5989, %v5994
      %v5999 = vrsqrt.pop %v5928
      %v6000 = vmul.f32 %v5999, %v5928
      %v6001 = vmul.f32 %v6000, %v5999
      %v6002 = vmul.f32 0.5, %v6001
      %v6003 = vsub.f32 1.5, %v6002
      %v6004 = vmul.f32 %v5999, %v6003
      %vm6005 = vweird.f32 %v5928
      %vm6006 = vweird.f32 %v5999
      %vm6007 = vmor %vm6005, %vm6006
      %v6008 = vsel %vm6007, %v5999, %v6004
      %v6009 = vmul.f32 %v5873, %v5938
      %v6010 = vmul.f32 %v5874, %v5948
      %v6011 = vmul.f32 %v5875, %v5958
      %v6012 = vmul.f32 %v5876, %v5968
      %v6013 = vmul.f32 %v5877, %v5978
      %v6014 = vmul.f32 %v5878, %v5988
      %v6015 = vmul.f32 %v5879, %v5998
      %v6016 = vmul.f32 %v5880, %v6008
      %v6017 = vperm.slane %v4475, 3
      %v6018 = vmul.f32 %v6009, %v6017
      %v6019 = vmul.f32 %v6010, %v6017
      %v6020 = vmul.f32 %v6011, %v6017
      %v6021 = vmul.f32 %v6012, %v6017
      %v6022 = vmul.f32 %v6013, %v6017
      %v6023 = vmul.f32 %v6014, %v6017
      %v6024 = vmul.f32 %v6015, %v6017
      %v6025 = vmul.f32 %v6016, %v6017
      %v6026 = vperm.slane %v4476, 3
      %v6027 = vadd.f32 %v6018, %v6026
      %v6028 = vadd.f32 %v6019, %v6026
      %v6029 = vadd.f32 %v6020, %v6026
      %v6030 = vadd.f32 %v6021, %v6026
      %v6031 = vadd.f32 %v6022, %v6026
      %v6032 = vadd.f32 %v6023, %v6026
      %v6033 = vadd.f32 %v6024, %v6026
      %v6034 = vadd.f32 %v6025, %v6026
      %v6035 = vadd.f32 %v6027, %v4465
      %v6036 = vadd.f32 %v6028, %v4466
      %v6037 = vadd.f32 %v6029, %v4467
      %v6038 = vadd.f32 %v6030, %v4468
      %v6039 = vadd.f32 %v6031, %v4469
      %v6040 = vadd.f32 %v6032, %v4470
      %v6041 = vadd.f32 %v6033, %v4471
      %v6042 = vadd.f32 %v6034, %v4472
      %v6043 = vld [vmem:[%s2 + $0x3d8] sm:$0xff]
      %v6044 = vld [vmem:[%s2 + $0x3e0] sm:$0xff]
      %v6045 = vld [vmem:[%s2 + $0x3e8] sm:$0xff]
      %v6046 = vld [vmem:[%s2 + $0x3f0] sm:$0xff]
      %v6047 = vpack.c.bf16 %v6044, %v6043
      %v6048 = vpack.c.bf16 %v6046, %v6045
      %v6049 = vperm.slane %v4474, 4
      %6050 = vmatpush.bf16.msra.mxu0 0
      %6051 = vmatpush.bf16.msra.mxu0 0
      %6052 = vmatpush.bf16.msra.mxu0 0
      %6053 = vmatpush.bf16.msra.mxu0 0
      %6054 = vmatpush.bf16.msra.mxu0 0
      %6055 = vmatpush.bf16.msra.mxu0 0
      %6056 = vmatpush.bf16.msra.mxu0 %v6048
      %6057 = vmatpush.bf16.msra.mxu0 %v6047
      %6058 = vmatmul.bf16.gmra.mxu0 %v5347
      %v6059 = vpop.f32.mrf.mxu0
      %v6060 = vadd.f32 %v6049, %v6059
      %v6061 = vpop.f32.mrf.mxu0
      %v6062 = vadd.f32 %v6049, %v6061
      %6063 = vdwg.mxu0
      %v6064 = vld [vmem:[%s2 + $0x3f8] sm:$0xff]
      %v6065 = vld [vmem:[%s2 + $0x400] sm:$0xff]
      %v6066 = vld [vmem:[%s2 + $0x408] sm:$0xff]
      %v6067 = vld [vmem:[%s2 + $0x410] sm:$0xff]
      %v6068 = vpack.c.bf16 %v6036, %v6035
      %v6069 = vpack.c.bf16 %v6038, %v6037
      %v6070 = vpack.c.bf16 %v6040, %v6039
      %v6071 = vpack.c.bf16 %v6042, %v6041
      %v6072 = vpack.c.bf16 %v6065, %v6064
      %v6073 = vpack.c.bf16 %v6067, %v6066
      %v6074 = vperm.slane %v4474, 5
      %v6076 = vsel %vm1980, %v6068, 0
      %v6079 = vsel %vm1980, %v6069, 0
      %v6082 = vsel %vm1980, %v6070, 0
      %v6085 = vsel %vm1980, %v6071, 0
      %6087 = vmatpush.bf16.msra.mxu0 0
      %6088 = vmatpush.bf16.msra.mxu0 0
      %6089 = vmatpush.bf16.msra.mxu0 0
      %6090 = vmatpush.bf16.msra.mxu0 0
      %6091 = vmatpush.bf16.msra.mxu0 0
      %6092 = vmatpush.bf16.msra.mxu0 0
      %6093 = vmatpush.bf16.msra.mxu0 %v6073
      %6094 = vmatpush.bf16.msra.mxu0 %v6072
      %6095 = vmatmul.bf16.gmra.mxu0 %v6076
      %v6096 = vpop.f32.mrf.mxu0
      %v6097 = vadd.f32 %v6074, %v6096
      %v6098 = vpop.f32.mrf.mxu0
      %v6099 = vadd.f32 %v6074, %v6098
      %6100 = vmatmul.bf16.gmra.mxu0 %v6079
      %v6101 = vpop.f32.mrf.mxu0
      %v6102 = vadd.f32 %v6074, %v6101
      %v6103 = vpop.f32.mrf.mxu0
      %v6104 = vadd.f32 %v6074, %v6103
      %6105 = vmatmul.bf16.gmra.mxu0 %v6082
      %v6106 = vpop.f32.mrf.mxu0
      %v6107 = vadd.f32 %v6074, %v6106
      %v6108 = vpop.f32.mrf.mxu0
      %v6109 = vadd.f32 %v6074, %v6108
      %6110 = vmatmul.bf16.gmra.mxu0 %v6085
      %v6111 = vpop.f32.mrf.mxu0
      %v6112 = vadd.f32 %v6074, %v6111
      %v6113 = vpop.f32.mrf.mxu0
      %v6114 = vadd.f32 %v6074, %v6113
      %6115 = vdwg.mxu0
      %v6116 = vld [vmem:[%s2 + $0x418] sm:$0xff]
      %v6117 = vld [vmem:[%s2 + $0x420] sm:$0xff]
      %v6118 = vld [vmem:[%s2 + $0x428] sm:$0xff]
      %v6119 = vld [vmem:[%s2 + $0x430] sm:$0xff]
      %v6120 = vpack.c.bf16 %v6028, %v6027
      %v6121 = vpack.c.bf16 %v6030, %v6029
      %v6122 = vpack.c.bf16 %v6032, %v6031
      %v6123 = vpack.c.bf16 %v6034, %v6033
      %v6124 = vpack.c.bf16 %v6117, %v6116
      %v6125 = vpack.c.bf16 %v6119, %v6118
      %v6126 = vperm.slane %v4474, 6
      %v6128 = vsel %vm1980, %v6120, 0
      %v6131 = vsel %vm1980, %v6121, 0
      %v6134 = vsel %vm1980, %v6122, 0
      %v6137 = vsel %vm1980, %v6123, 0
      %6139 = vmatpush.bf16.msra.mxu0 0
      %6140 = vmatpush.bf16.msra.mxu0 0
      %6141 = vmatpush.bf16.msra.mxu0 0
      %6142 = vmatpush.bf16.msra.mxu0 0
      %6143 = vmatpush.bf16.msra.mxu0 0
      %6144 = vmatpush.bf16.msra.mxu0 0
      %6145 = vmatpush.bf16.msra.mxu0 %v6125
      %6146 = vmatpush.bf16.msra.mxu0 %v6124
      %6147 = vmatmul.bf16.gmra.mxu0 %v6128
      %v6148 = vpop.f32.mrf.mxu0
      %v6149 = vadd.f32 %v6126, %v6148
      %v6150 = vpop.f32.mrf.mxu0
      %v6151 = vadd.f32 %v6126, %v6150
      %6152 = vmatmul.bf16.gmra.mxu0 %v6131
      %v6153 = vpop.f32.mrf.mxu0
      %v6154 = vadd.f32 %v6126, %v6153
      %v6155 = vpop.f32.mrf.mxu0
      %v6156 = vadd.f32 %v6126, %v6155
      %6157 = vmatmul.bf16.gmra.mxu0 %v6134
      %v6158 = vpop.f32.mrf.mxu0
      %v6159 = vadd.f32 %v6126, %v6158
      %v6160 = vpop.f32.mrf.mxu0
      %v6161 = vadd.f32 %v6126, %v6160
      %6162 = vmatmul.bf16.gmra.mxu0 %v6137
      %v6163 = vpop.f32.mrf.mxu0
      %v6164 = vadd.f32 %v6126, %v6163
      %v6165 = vpop.f32.mrf.mxu0
      %v6166 = vadd.f32 %v6126, %v6165
      %6167 = vdwg.mxu0
      %6168 = vxpose.xlu0.b32.start [1/16] %v6097, 128
      %6169 = vxpose.xlu0.b32.cont [2/16] %v6099, 128
      %6170 = vxpose.xlu0.b32.cont [3/16] %v6102, 128
      %6171 = vxpose.xlu0.b32.cont [4/16] %v6104, 128
      %6172 = vxpose.xlu0.b32.cont [5/16] %v6107, 128
      %6173 = vxpose.xlu0.b32.cont [6/16] %v6109, 128
      %6174 = vxpose.xlu0.b32.cont [7/16] %v6112, 128
      %6175 = vxpose.xlu0.b32.cont [8/16] %v6114, 128
      %6176 = vxpose.xlu0.b32.cont [9/16] 0.0, 128
      %6177 = vxpose.xlu0.b32.cont [10/16] 0.0, 128
      %6178 = vxpose.xlu0.b32.cont [11/16] 0.0, 128
      %6179 = vxpose.xlu0.b32.cont [12/16] 0.0, 128
      %6180 = vxpose.xlu0.b32.cont [13/16] 0.0, 128
      %6181 = vxpose.xlu0.b32.cont [14/16] 0.0, 128
      %6182 = vxpose.xlu0.b32.cont [15/16] 0.0, 128
      %6183 = vxpose.xlu0.b32.end [16/16] 0.0, 128
      %v6184 = vpop.trf.xlu0
      %v6185 = vpop.trf.xlu0
      %v6186 = vpop.trf.xlu0
      %v6187 = vpop.trf.xlu0
      %v6188 = vpop.trf.xlu0
      %v6189 = vpop.trf.xlu0
      %v6190 = vpop.trf.xlu0
      %v6191 = vpop.trf.xlu0
      %v6192 = vpop.trf.xlu0
      %v6193 = vpop.trf.xlu0
      %v6194 = vpop.trf.xlu0
      %v6195 = vpop.trf.xlu0
      %v6196 = vpop.trf.xlu0
      %v6197 = vpop.trf.xlu0
      %v6198 = vpop.trf.xlu0
      %v6199 = vpop.trf.xlu0
      %v6200 = vmul.f32 %v6184, %v2619
      %v6201 = vmul.f32 %v6185, %v2624
      %v6202 = vmul.f32 %v6186, %v2629
      %v6203 = vmul.f32 %v6187, %v2634
      %v6204 = vmul.f32 %v6184, %v2642
      %v6205 = vmul.f32 %v6185, %v2646
      %v6206 = vmul.f32 %v6186, %v2650
      %v6207 = vmul.f32 %v6187, %v2654
      %6212 = vrot.lane.b32.xlu0 %v6204, 64
      %v6213 = vpop.permute.xlu0 %6212
      %6214 = vrot.lane.b32.xlu0 %v6205, 64
      %v6215 = vpop.permute.xlu0 %6214
      %6216 = vrot.lane.b32.xlu0 %v6206, 64
      %v6217 = vpop.permute.xlu0 %6216
      %6218 = vrot.lane.b32.xlu0 %v6207, 64
      %v6219 = vpop.permute.xlu0 %6218
      %v6224 = vsel %vm1865, %v6200, %v6213
      %v6225 = vsel %vm1865, %v6201, %v6215
      %v6226 = vsel %vm1865, %v6202, %v6217
      %v6227 = vsel %vm1865, %v6203, %v6219
      %v6228 = vmul.f32 %v6149, %v2680
      %v6229 = vmul.f32 %v6151, %v2680
      %v6230 = vmul.f32 %v6154, %v2680
      %v6231 = vmul.f32 %v6156, %v2680
      %v6232 = vmul.f32 %v6159, %v2680
      %v6233 = vmul.f32 %v6161, %v2680
      %v6234 = vmul.f32 %v6164, %v2680
      %v6235 = vmul.f32 %v6166, %v2680
      %v6236 = vmul.f32 %v6149, %v2693
      %v6237 = vmul.f32 %v6151, %v2693
      %v6238 = vmul.f32 %v6154, %v2693
      %v6239 = vmul.f32 %v6156, %v2693
      %v6240 = vmul.f32 %v6159, %v2693
      %v6241 = vmul.f32 %v6161, %v2693
      %v6242 = vmul.f32 %v6164, %v2693
      %v6243 = vmul.f32 %v6166, %v2693
      %v6244 = vpack.c.bf16 %v6062, %v6060
      %v6245 = vpack.c.bf16 %v6225, %v6224
      %v6246 = vpack.c.bf16 %v6227, %v6226
      %v6248 = vsel %vm1980, %v6244, 0
      %6250 = vmatpush.bf16.msra.mxu0 0
      %6251 = vmatpush.bf16.msra.mxu0 0
      %6252 = vmatpush.bf16.msra.mxu0 0
      %6253 = vmatpush.bf16.msra.mxu0 0
      %6254 = vmatpush.bf16.msra.mxu0 0
      %6255 = vmatpush.bf16.msra.mxu0 0
      %6256 = vmatpush.bf16.msra.mxu0 %v6246
      %6257 = vmatpush.bf16.msra.mxu0 %v6245
      %6258 = vmatmul.bf16.gmra.mxu0 %v6248
      %v6259 = vpop.f32.mrf.mxu0
      %v6260 = vadd.f32 0.0, %v6259
      %v6261 = vpop.f32.mrf.mxu0
      %v6262 = vadd.f32 0.0, %v6261
      %6263 = vdwg.mxu0
      %v6264 = vmul.f32 %v6260, 0.25
      %v6265 = vmul.f32 %v6262, 0.25
      %v6266 = vsel %vm1865, %v6264, -inf
      %6267 = vmax.xlane.f32.xlu0 %v6266
      %v6268 = vpop.xlane.xlu0 %6267
      %v6269 = vsel %vm5036, %v6265, -inf
      %6270 = vmax.xlane.f32.xlu0 %v6269
      %v6271 = vpop.xlane.xlu0 %6270
      %v6272 = vsub.f32 %v6264, %v6268
      %v6273 = vsub.f32 %v6265, %v6271
      %v6274 = vmul.f32 %v6272, 1.442695
      %v6275 = vpow.pop %v6274
      %v6276 = vmul.f32 %v6273, 1.442695
      %v6277 = vpow.pop %v6276
      %v6278 = vsel %vm1865, %v6275, 0.0
      %6279 = vadd.xlane.f32.xlu0 %v6278
      %v6280 = vpop.xlane.xlu0 %6279
      %v6281 = vsel %vm5036, %v6277, 0.0
      %6282 = vadd.xlane.f32.xlu0 %v6281
      %v6283 = vpop.xlane.xlu0 %6282
      %v6284 = vrcp.pop %v6280
      %v6285 = vrcp.pop %v6283
      %v6286 = vmul.f32 %v6275, %v6284
      %v6287 = vmul.f32 %v6277, %v6285
      %v6288 = vsel %vm2849, %v6264, -inf
      %6289 = vmax.xlane.f32.xlu0 %v6288
      %v6290 = vpop.xlane.xlu0 %6289
      %v6291 = vsel %vm5059, %v6265, -inf
      %6292 = vmax.xlane.f32.xlu0 %v6291
      %v6293 = vpop.xlane.xlu0 %6292
      %v6294 = vsub.f32 %v6264, %v6290
      %v6295 = vsub.f32 %v6265, %v6293
      %v6296 = vmul.f32 %v6294, 1.442695
      %v6297 = vpow.pop %v6296
      %v6298 = vmul.f32 %v6295, 1.442695
      %v6299 = vpow.pop %v6298
      %6302 = vrot.lane.b32.xlu0 %v6297, 64
      %v6303 = vpop.permute.xlu0 %6302
      %6304 = vrot.lane.b32.xlu0 %v6299, 64
      %v6305 = vpop.permute.xlu0 %6304
      %v6308 = vsel %vm1865, %v6303, 0.0
      %6309 = vadd.xlane.f32.xlu0 %v6308
      %v6310 = vpop.xlane.xlu0 %6309
      %v6311 = vsel %vm5036, %v6305, 0.0
      %6312 = vadd.xlane.f32.xlu0 %v6311
      %v6313 = vpop.xlane.xlu0 %6312
      %v6314 = vrcp.pop %v6310
      %v6315 = vrcp.pop %v6313
      %v6316 = vmul.f32 %v6297, %v6314
      %v6317 = vmul.f32 %v6299, %v6315
      %v6318 = vsel %vm1865, %v6286, %v6316
      %v6319 = vsel %vm1865, %v6287, %v6317
      %v6320 = vpack.c.bf16 %v6319, %v6318
      %v6321 = vpack.c.bf16 %v6229, %v6228
      %v6322 = vpack.c.bf16 %v6231, %v6230
      %v6323 = vpack.c.bf16 %v6233, %v6232
      %v6324 = vpack.c.bf16 %v6235, %v6234
      %v6325 = vpack.c.bf16 %v6237, %v6236
      %v6326 = vpack.c.bf16 %v6239, %v6238
      %v6327 = vpack.c.bf16 %v6241, %v6240
      %v6328 = vpack.c.bf16 %v6243, %v6242
      %6329 = vmatpush.bf16.msra.mxu0 %v6328
      %6330 = vmatpush.bf16.msra.mxu0 %v6327
      %6331 = vmatpush.bf16.msra.mxu0 %v6326
      %6332 = vmatpush.bf16.msra.mxu0 %v6325
      %6333 = vmatpush.bf16.msra.mxu0 %v6324
      %6334 = vmatpush.bf16.msra.mxu0 %v6323
      %6335 = vmatpush.bf16.msra.mxu0 %v6322
      %6336 = vmatpush.bf16.msra.mxu0 %v6321
      %6337 = vmatmul.bf16.gmra.mxu0 %v6320
      %v6338 = vpop.f32.mrf.mxu0
      %v6339 = vadd.f32 0.0, %v6338
      %v6340 = vpop.f32.mrf.mxu0
      %v6341 = vadd.f32 0.0, %v6340
      %6342 = vdwg.mxu0
      %v6343 = vld [vmem:[%s2 + $0x438] sm:$0xff]
      %v6344 = vld [vmem:[%s2 + $0x440] sm:$0xff]
      %v6345 = vld [vmem:[%s2 + $0x448] sm:$0xff]
      %v6346 = vld [vmem:[%s2 + $0x450] sm:$0xff]
      %v6347 = vpack.c.bf16 %v6341, %v6339
      %v6348 = vpack.c.bf16 %v6344, %v6343
      %v6349 = vpack.c.bf16 %v6346, %v6345
      %v6350 = vperm.slane %v4474, 7
      %v6352 = vsel %vm1980, %v6347, 0
      %6354 = vmatpush.bf16.msra.mxu0 0
      %6355 = vmatpush.bf16.msra.mxu0 0
      %6356 = vmatpush.bf16.msra.mxu0 0
      %6357 = vmatpush.bf16.msra.mxu0 0
      %6358 = vmatpush.bf16.msra.mxu0 0
      %6359 = vmatpush.bf16.msra.mxu0 0
      %6360 = vmatpush.bf16.msra.mxu0 %v6349
      %6361 = vmatpush.bf16.msra.mxu0 %v6348
      %6362 = vmatmul.bf16.gmra.mxu0 %v6352
      %v6363 = vpop.f32.mrf.mxu0
      %v6364 = vadd.f32 %v6350, %v6363
      %v6365 = vpop.f32.mrf.mxu0
      %6366 = vdwg.mxu0
      %v6367 = vadd.f32 %v5298, %v6364
      %v6368 = vsel %vm1980, %v6367, 0.0
      %6369 = vadd.xlane.f32.xlu0 %v6368
      %v6370 = vpop.xlane.xlu0 %6369
      %v6371 = vmul.f32 %v6370, %v2329
      %v6372 = vsub.f32 %v6367, %v6371
      %v6373 = vmul.f32 %v6372, %v6372
      %v6374 = vsel %vm1980, %v6373, 0.0
      %6375 = vadd.xlane.f32.xlu0 %v6374
      %v6376 = vpop.xlane.xlu0 %6375
      %v6377 = vmul.f32 %v6376, %v2329
      %v6378 = vadd.f32 %v6377, 1e-05
      %v6379 = vrsqrt.pop %v6378
      %v6380 = vmul.f32 %v6379, %v6378
      %v6381 = vmul.f32 %v6380, %v6379
      %v6382 = vmul.f32 0.5, %v6381
      %v6383 = vsub.f32 1.5, %v6382
      %v6384 = vmul.f32 %v6379, %v6383
      %vm6385 = vweird.f32 %v6378
      %vm6386 = vweird.f32 %v6379
      %vm6387 = vmor %vm6385, %vm6386
      %v6388 = vsel %vm6387, %v6379, %v6384
      %v6389 = vmul.f32 %v6372, %v6388
      %v6390 = vperm.slane %v4475, 4
      %v6391 = vmul.f32 %v6389, %v6390
      %v6392 = vperm.slane %v4476, 4
      %v6393 = vadd.f32 %v6391, %v6392
      %v6394 = vld [vmem:[%s2 + $0x4c0] sm:$0xff]
      %v6395 = vld [vmem:[%s2 + $0x4c8] sm:$0xff]
      %v6396 = vld [vmem:[%s2 + $0x4d0] sm:$0xff]
      %v6397 = vld [vmem:[%s2 + $0x4d8] sm:$0xff]
      %v6398 = vpack.c.bf16 %v6395, %v6394
      %v6399 = vpack.c.bf16 %v6397, %v6396
      %v6400 = vld [vmem:[%s2 + $0x4e0] sm:$0x1]
      %v6401 = vperm.slane %v6400, 0
      %6402 = vmatpush.bf16.msra.mxu0 0
      %6403 = vmatpush.bf16.msra.mxu0 0
      %6404 = vmatpush.bf16.msra.mxu0 0
      %6405 = vmatpush.bf16.msra.mxu0 0
      %6406 = vmatpush.bf16.msra.mxu0 0
      %6407 = vmatpush.bf16.msra.mxu0 0
      %6408 = vmatpush.bf16.msra.mxu0 %v6399
      %6409 = vmatpush.bf16.msra.mxu0 %v6398
      %6410 = vmatmul.bf16.gmra.mxu0 %v6128
      %v6411 = vpop.f32.mrf.mxu0
      %v6412 = vadd.f32 %v6401, %v6411
      %v6413 = vpop.f32.mrf.mxu0
      %v6414 = vadd.f32 %v6401, %v6413
      %6415 = vmatmul.bf16.gmra.mxu0 %v6131
      %v6416 = vpop.f32.mrf.mxu0
      %v6417 = vadd.f32 %v6401, %v6416
      %v6418 = vpop.f32.mrf.mxu0
      %v6419 = vadd.f32 %v6401, %v6418
      %6420 = vmatmul.bf16.gmra.mxu0 %v6134
      %v6421 = vpop.f32.mrf.mxu0
      %v6422 = vadd.f32 %v6401, %v6421
      %v6423 = vpop.f32.mrf.mxu0
      %v6424 = vadd.f32 %v6401, %v6423
      %6425 = vmatmul.bf16.gmra.mxu0 %v6137
      %v6426 = vpop.f32.mrf.mxu0
      %v6427 = vadd.f32 %v6401, %v6426
      %v6428 = vpop.f32.mrf.mxu0
      %v6429 = vadd.f32 %v6401, %v6428
      %6430 = vdwg.mxu0
      %v6431 = vmul.f32 %v6412, %v6412
      %v6432 = vmul.f32 %v6414, %v6414
      %v6433 = vmul.f32 %v6417, %v6417
      %v6434 = vmul.f32 %v6419, %v6419
      %v6435 = vmul.f32 %v6422, %v6422
      %v6436 = vmul.f32 %v6424, %v6424
      %v6437 = vmul.f32 %v6427, %v6427
      %v6438 = vmul.f32 %v6429, %v6429
      %v6439 = vmul.f32 %v6412, %v6431
      %v6440 = vmul.f32 %v6414, %v6432
      %v6441 = vmul.f32 %v6417, %v6433
      %v6442 = vmul.f32 %v6419, %v6434
      %v6443 = vmul.f32 %v6422, %v6435
      %v6444 = vmul.f32 %v6424, %v6436
      %v6445 = vmul.f32 %v6427, %v6437
      %v6446 = vmul.f32 %v6429, %v6438
      %v6447 = vmul.f32 %v6439, 0.044715
      %v6448 = vmul.f32 %v6440, 0.044715
      %v6449 = vmul.f32 %v6441, 0.044715
      %v6450 = vmul.f32 %v6442, 0.044715
      %v6451 = vmul.f32 %v6443, 0.044715
      %v6452 = vmul.f32 %v6444, 0.044715
      %v6453 = vmul.f32 %v6445, 0.044715
      %v6454 = vmul.f32 %v6446, 0.044715
      %v6455 = vadd.f32 %v6412, %v6447
      %v6456 = vadd.f32 %v6414, %v6448
      %v6457 = vadd.f32 %v6417, %v6449
      %v6458 = vadd.f32 %v6419, %v6450
      %v6459 = vadd.f32 %v6422, %v6451
      %v6460 = vadd.f32 %v6424, %v6452
      %v6461 = vadd.f32 %v6427, %v6453
      %v6462 = vadd.f32 %v6429, %v6454
      %v6463 = vmul.f32 %v6455, 0.7978846
      %v6464 = vmul.f32 %v6456, 0.7978846
      %v6465 = vmul.f32 %v6457, 0.7978846
      %v6466 = vmul.f32 %v6458, 0.7978846
      %v6467 = vmul.f32 %v6459, 0.7978846
      %v6468 = vmul.f32 %v6460, 0.7978846
      %v6469 = vmul.f32 %v6461, 0.7978846
      %v6470 = vmul.f32 %v6462, 0.7978846
      %v6471 = vtanh.pop %v6463
      %v6472 = vtanh.pop %v6464
      %v6473 = vtanh.pop %v6465
      %v6474 = vtanh.pop %v6466
      %v6475 = vtanh.pop %v6467
      %v6476 = vtanh.pop %v6468
      %v6477 = vtanh.pop %v6469
      %v6478 = vtanh.pop %v6470
      %v6479 = vadd.f32 %v6471, 1.0
      %v6480 = vadd.f32 %v6472, 1.0
      %v6481 = vadd.f32 %v6473, 1.0
      %v6482 = vadd.f32 %v6474, 1.0
      %v6483 = vadd.f32 %v6475, 1.0
      %v6484 = vadd.f32 %v6476, 1.0
      %v6485 = vadd.f32 %v6477, 1.0
      %v6486 = vadd.f32 %v6478, 1.0
      %v6487 = vmul.f32 %v6479, 0.5
      %v6488 = vmul.f32 %v6480, 0.5
      %v6489 = vmul.f32 %v6481, 0.5
      %v6490 = vmul.f32 %v6482, 0.5
      %v6491 = vmul.f32 %v6483, 0.5
      %v6492 = vmul.f32 %v6484, 0.5
      %v6493 = vmul.f32 %v6485, 0.5
      %v6494 = vmul.f32 %v6486, 0.5
      %v6495 = vmul.f32 %v6412, %v6487
      %v6496 = vmul.f32 %v6414, %v6488
      %v6497 = vmul.f32 %v6417, %v6489
      %v6498 = vmul.f32 %v6419, %v6490
      %v6499 = vmul.f32 %v6422, %v6491
      %v6500 = vmul.f32 %v6424, %v6492
      %v6501 = vmul.f32 %v6427, %v6493
      %v6502 = vmul.f32 %v6429, %v6494
      %v6503 = vld [vmem:[%s2 + $0x4e8] sm:$0xff]
      %v6504 = vld [vmem:[%s2 + $0x4f0] sm:$0xff]
      %v6505 = vpack.c.bf16 %v6496, %v6495
      %v6506 = vpack.c.bf16 %v6498, %v6497
      %v6507 = vpack.c.bf16 %v6500, %v6499
      %v6508 = vpack.c.bf16 %v6502, %v6501
      %v6509 = vpack.c.bf16 %v6504, %v6503
      %v6510 = vld [vmem:[%s2 + $0x4f8] sm:$0x1]
      %v6511 = vperm.slane %v6510, 0
      %v6513 = vsel %vm1803, %v6505, 0
      %v6516 = vsel %vm1803, %v6506, 0
      %v6519 = vsel %vm1803, %v6507, 0
      %v6522 = vsel %vm1803, %v6508, 0
      %6524 = vmatpush.bf16.msra.mxu0 0
      %6525 = vmatpush.bf16.msra.mxu0 0
      %6526 = vmatpush.bf16.msra.mxu0 0
      %6527 = vmatpush.bf16.msra.mxu0 0
      %6528 = vmatpush.bf16.msra.mxu0 0
      %6529 = vmatpush.bf16.msra.mxu0 0
      %6530 = vmatpush.bf16.msra.mxu0 0
      %6531 = vmatpush.bf16.msra.mxu0 %v6509
      %6532 = vmatmul.bf16.gmra.mxu0 %v6513
      %v6533 = vpop.f32.mrf.mxu0
      %v6534 = vadd.f32 %v6511, %v6533
      %v6535 = vpop.f32.mrf.mxu0
      %v6536 = vadd.f32 %v6511, %v6535
      %6537 = vmatmul.bf16.gmra.mxu0 %v6516
      %v6538 = vpop.f32.mrf.mxu0
      %v6539 = vadd.f32 %v6511, %v6538
      %v6540 = vpop.f32.mrf.mxu0
      %v6541 = vadd.f32 %v6511, %v6540
      %6542 = vmatmul.bf16.gmra.mxu0 %v6519
      %v6543 = vpop.f32.mrf.mxu0
      %v6544 = vadd.f32 %v6511, %v6543
      %v6545 = vpop.f32.mrf.mxu0
      %v6546 = vadd.f32 %v6511, %v6545
      %6547 = vmatmul.bf16.gmra.mxu0 %v6522
      %v6548 = vpop.f32.mrf.mxu0
      %v6549 = vadd.f32 %v6511, %v6548
      %v6550 = vpop.f32.mrf.mxu0
      %v6551 = vadd.f32 %v6511, %v6550
      %6552 = vdwg.mxu0
      %v6553 = vld [vmem:[%s2 + $0x500] sm:$0xff]
      %v6554 = vld [vmem:[%s2 + $0x508] sm:$0xff]
      %v6555 = vld [vmem:[%s2 + $0x510] sm:$0xff]
      %v6556 = vld [vmem:[%s2 + $0x518] sm:$0xff]
      %v6557 = vpack.c.bf16 %v6393, %v6393
      %v6558 = vpack.c.bf16 %v6554, %v6553
      %v6559 = vpack.c.bf16 %v6556, %v6555
      %v6560 = vld [vmem:[%s2 + $0x520] sm:$0x1]
      %v6562 = vshrl.u32 %v6557, 16
      %v6565 = vsel %vm1980, %v6562, 0
      %6567 = vmatpush.bf16.msra.mxu0 0
      %6568 = vmatpush.bf16.msra.mxu0 0
      %6569 = vmatpush.bf16.msra.mxu0 0
      %6570 = vmatpush.bf16.msra.mxu0 0
      %6571 = vmatpush.bf16.msra.mxu0 0
      %6572 = vmatpush.bf16.msra.mxu0 0
      %6573 = vmatpush.bf16.msra.mxu0 %v6559
      %6574 = vmatpush.bf16.msra.mxu0 %v6558
      %6575 = vmatmul.bf16.gmra.mxu0 %v6565
      %v6576 = vpop.f32.mrf.mxu0
      %v6577 = vadd.f32 %v6560, %v6576
      %v6578 = vpop.f32.mrf.mxu0
      %6579 = vdwg.mxu0
      %v6580 = vmul.f32 %v6577, %v6577
      %v6581 = vmul.f32 %v6577, %v6580
      %v6582 = vmul.f32 %v6581, 0.044715
      %v6583 = vadd.f32 %v6577, %v6582
      %v6584 = vmul.f32 %v6583, 0.7978846
      %v6585 = vtanh.pop %v6584
      %v6586 = vadd.f32 %v6585, 1.0
      %v6587 = vmul.f32 %v6586, 0.5
      %v6588 = vmul.f32 %v6577, %v6587
      %v6589 = vld [vmem:[%s2 + $0x528] sm:$0xff]
      %v6590 = vld [vmem:[%s2 + $0x530] sm:$0xff]
      %v6591 = vld [vmem:[%s2 + $0x538] sm:$0xff]
      %v6592 = vld [vmem:[%s2 + $0x540] sm:$0xff]
      %v6593 = vpack.c.bf16 %v6588, %v6588
      %v6594 = vpack.c.bf16 %v6590, %v6589
      %v6595 = vpack.c.bf16 %v6592, %v6591
      %v6596 = vld [vmem:[%s2 + $0x548] sm:$0x1]
      %v6598 = vsel %vm1980, %v6593, 0
      %6600 = vmatpush.bf16.msra.mxu0 0
      %6601 = vmatpush.bf16.msra.mxu0 0
      %6602 = vmatpush.bf16.msra.mxu0 0
      %6603 = vmatpush.bf16.msra.mxu0 0
      %6604 = vmatpush.bf16.msra.mxu0 0
      %6605 = vmatpush.bf16.msra.mxu0 0
      %6606 = vmatpush.bf16.msra.mxu0 %v6595
      %6607 = vmatpush.bf16.msra.mxu0 %v6594
      %6608 = vmatmul.bf16.gmra.mxu0 %v6598
      %v6609 = vpop.f32.mrf.mxu0
      %v6610 = vadd.f32 %v6596, %v6609
      %v6611 = vpop.f32.mrf.mxu0
      %6612 = vdwg.mxu0
      %v6613 = vperm.slane %v6610, 0
      %v6614 = vmul.f32 %v6534, %v6613
      %v6615 = vmul.f32 %v6536, %v6613
      %v6616 = vmul.f32 %v6539, %v6613
      %v6617 = vmul.f32 %v6541, %v6613
      %v6618 = vmul.f32 %v6544, %v6613
      %v6619 = vmul.f32 %v6546, %v6613
      %v6620 = vmul.f32 %v6549, %v6613
      %v6621 = vmul.f32 %v6551, %v6613
      %v6622 = vsel %vm2193, %v6614, 0.0
      %6623 = vadd.xlane.f32.xlu0 %v6622
      %v6624 = vpop.xlane.xlu0 %6623
      %v6625 = vsel %vm2193, %v6615, 0.0
      %6626 = vadd.xlane.f32.xlu0 %v6625
      %v6627 = vpop.xlane.xlu0 %6626
      %v6628 = vsel %vm2193, %v6616, 0.0
      %6629 = vadd.xlane.f32.xlu0 %v6628
      %v6630 = vpop.xlane.xlu0 %6629
      %v6631 = vsel %vm2193, %v6617, 0.0
      %6632 = vadd.xlane.f32.xlu0 %v6631
      %v6633 = vpop.xlane.xlu0 %6632
      %v6634 = vsel %vm2193, %v6618, 0.0
      %6635 = vadd.xlane.f32.xlu0 %v6634
      %v6636 = vpop.xlane.xlu0 %6635
      %v6637 = vsel %vm2193, %v6619, 0.0
      %6638 = vadd.xlane.f32.xlu0 %v6637
      %v6639 = vpop.xlane.xlu0 %6638
      %v6640 = vsel %vm2193, %v6620, 0.0
      %6641 = vadd.xlane.f32.xlu0 %v6640
      %v6642 = vpop.xlane.xlu0 %6641
      %v6643 = vsel %vm2193, %v6621, 0.0
      %6644 = vadd.xlane.f32.xlu0 %v6643
      %v6645 = vpop.xlane.xlu0 %6644
      %v6646 = vld [vmem:[%s4 + $0x550] sm:$0x3]
      %v6647 = vunpack.c.l.bf16 %v6646
      %v6648 = vld [vmem:[%s4 + $0x560] sm:$0xff]
      %v6649 = vld [vmem:[%s4 + $0x568] sm:$0xff]
      %v6650 = vld [vmem:[%s4 + $0x570] sm:$0xff]
      %v6651 = vld [vmem:[%s4 + $0x578] sm:$0xff]
      %v6652 = vld [vmem:[%s4 + $0x580] sm:$0xff]
      %v6653 = vld [vmem:[%s4 + $0x588] sm:$0xff]
      %v6654 = vld [vmem:[%s4 + $0x590] sm:$0xff]
      %v6655 = vld [vmem:[%s4 + $0x598] sm:$0xff]
      %v6656 = vunpack.c.l.bf16 %v6648
      %v6657 = vunpack.c.h.bf16 %v6648
      %v6658 = vunpack.c.l.bf16 %v6649
      %v6659 = vunpack.c.h.bf16 %v6649
      %v6660 = vunpack.c.l.bf16 %v6650
      %v6661 = vunpack.c.h.bf16 %v6650
      %v6662 = vunpack.c.l.bf16 %v6651
      %v6663 = vunpack.c.h.bf16 %v6651
      %v6664 = vunpack.c.l.bf16 %v6652
      %v6665 = vunpack.c.h.bf16 %v6652
      %v6666 = vunpack.c.l.bf16 %v6653
      %v6667 = vunpack.c.h.bf16 %v6653
      %v6668 = vunpack.c.l.bf16 %v6654
      %v6669 = vunpack.c.h.bf16 %v6654
      %v6670 = vunpack.c.l.bf16 %v6655
      %v6671 = vunpack.c.h.bf16 %v6655
      %v6672 = vmul.f32 %v6624, %v6656
      %v6673 = vmul.f32 %v6624, %v6657
      %v6674 = vmul.f32 %v6627, %v6658
      %v6675 = vmul.f32 %v6627, %v6659
      %v6676 = vmul.f32 %v6630, %v6660
      %v6677 = vmul.f32 %v6630, %v6661
      %v6678 = vmul.f32 %v6633, %v6662
      %v6679 = vmul.f32 %v6633, %v6663
      %v6680 = vmul.f32 %v6636, %v6664
      %v6681 = vmul.f32 %v6636, %v6665
      %v6682 = vmul.f32 %v6639, %v6666
      %v6683 = vmul.f32 %v6639, %v6667
      %v6684 = vmul.f32 %v6642, %v6668
      %v6685 = vmul.f32 %v6642, %v6669
      %v6686 = vmul.f32 %v6645, %v6670
      %v6687 = vmul.f32 %v6645, %v6671
      %v6689 = vsel %vm1865, %v6647, 0
      %6691 = vmatpush.msra.mxu0 0.0
      %6692 = vmatpush.msra.mxu0 0.0
      %6693 = vmatpush.msra.mxu0 0.0
      %6694 = vmatpush.msra.mxu0 0.0
      %6695 = vmatpush.msra.mxu0 0.0
      %6696 = vmatpush.msra.mxu0 0.0
      %6697 = vmatpush.msra.mxu0 0.0
      %6698 = vmatpush.msra.mxu0 0.0
      %6699 = vmatpush.msra.mxu0 %v6686
      %6700 = vmatpush.msra.mxu0 %v6684
      %6701 = vmatpush.msra.mxu0 %v6682
      %6702 = vmatpush.msra.mxu0 %v6680
      %6703 = vmatpush.msra.mxu0 %v6678
      %6704 = vmatpush.msra.mxu0 %v6676
      %6705 = vmatpush.msra.mxu0 %v6674
      %6706 = vmatpush.msra.mxu0 %v6672
      %6707 = vmatmul.f32.gmra.mxu0 %v6689
      %v6708 = vpop.f32.mrf.mxu0
      %v6709 = vadd.f32 0.0, %v6708
      %6710 = vdwg.mxu0
      %6711 = vmatpush.msra.mxu0 0.0
      %6712 = vmatpush.msra.mxu0 0.0
      %6713 = vmatpush.msra.mxu0 0.0
      %6714 = vmatpush.msra.mxu0 0.0
      %6715 = vmatpush.msra.mxu0 0.0
      %6716 = vmatpush.msra.mxu0 0.0
      %6717 = vmatpush.msra.mxu0 0.0
      %6718 = vmatpush.msra.mxu0 0.0
      %6719 = vmatpush.msra.mxu0 %v6687
      %6720 = vmatpush.msra.mxu0 %v6685
      %6721 = vmatpush.msra.mxu0 %v6683
      %6722 = vmatpush.msra.mxu0 %v6681
      %6723 = vmatpush.msra.mxu0 %v6679
      %6724 = vmatpush.msra.mxu0 %v6677
      %6725 = vmatpush.msra.mxu0 %v6675
      %6726 = vmatpush.msra.mxu0 %v6673
      %6727 = vmatmul.f32.gmra.mxu0 %v6689
      %v6728 = vpop.f32.mrf.mxu0
      %v6729 = vadd.f32 0.0, %v6728
      %6730 = vdwg.mxu0
      %v6732 = vrot.slane %v4410, 4
      %v6733 = vrot.slane %v4423, 4
      %v6736 = vsel %vm1528, %v6709, %v6732
      %v6737 = vsel %vm1528, %v6729, %v6733
      %v6738 = vsel %vm4441, %v6736, 0.0
      %v6739 = vsel %vm4441, %v6737, 0.0
      %6740 = vst [vmem:[%s244] sm:$0xff] %v6738
      %6741 = vst [vmem:[%s244 + $0x8] sm:$0xff] %v6739
      %p6742 = scmp.lt.s32.totalorder %s16, 1
      %s6743 = scalar_select %p6742, %s16, 1
      %s6744 = smul.addr %s6743, 2
      %s6745 = smul.addr %s6744, 8
      %s6746 = scalar_lea.vmem %s5, %s6745
      // Predicated region
      $region41: #{forward.1} parent=39 // pred_check
        %p6747 = pneg %p149
      $region42: #{forward.1} parent=39 // pred_check_branch
        %6749 = sbr.rel (%p6747) target = $region44
      $region43: #{forward.1} parent=39 // pred_region
        _
      $region44: #{forward.1} parent=39 // pred_fallthru
        _
    $region40: #{forward.1} parent=5 // pred_fallthru
      _
    %p6750 = scmp.le.s32.totalorder 2, %s11
    // Predicated region
    $region45: #{forward.1} parent=5 // pred_check
      %p6751 = pneg %p6750
    $region46: #{forward.1} parent=5 // pred_check_branch
      %6753 = sbr.rel (%p6751) target = $region48
    $region47: #{forward.1} parent=5 // pred_region
      %s6754 = ssub.s32 %s11, 2
      // Predicated region
      $region49: #{forward.1} parent=47 // pred_check
        %p6755 = pneg %p155
      $region50: #{forward.1} parent=47 // pred_check_branch
        %6757 = sbr.rel (%p6755) target = $region52
      $region51: #{forward.1} parent=47 // pred_region
        %p6758 = scmp.lt.s32.totalorder %s17, 1
        %s6759 = scalar_select %p6758, %s17, 1
        %s6760 = smul.addr %s6759, 2
        %s6761 = smul.addr %s6760, 8
        %s6762 = scalar_lea.vmem %s5, %s6761
      $region52: #{forward.1} parent=47 // pred_fallthru
        _
    $region48: #{forward.1} parent=5 // pred_fallthru
      _
  $region6: #{forward.1} parent=0 // loop_footer
    %s15 = sadd.s32 1, %s11
  $region7: #{forward.1} parent=0 // loop_footer_branch
    %10 = sbr.rel target = $region3
  $region8: #{forward.1} parent=0 // loop_exit
    _

</llo_original>
